<compile_context>
chip_gen: v6e
topology: v6e:2x2x1
jax: 0.10.0
libtpu: 0.0.40
codegen_flags: <defaults>
</compile_context>

<pallas_src>
import math

import jax
import jax.numpy as jnp
from jax.experimental import pallas as pl
from jax.experimental.pallas import tpu as pltpu


def _generator_kernel(x_ref, noise_ref,
                      w1_ref, b1_ref, w2_ref, b2_ref,
                      w3_ref, b3_ref, w4_ref, b4_ref,
                      w5_ref, b5_ref, w6_ref, b6_ref,
                      out_ref):
    """Full GeneratorCGANNew forward on one batch tile (NHWC, eval-mode BN folded)."""
    _, TB, HP, WP = x_ref.shape
    H, W = HP - 2, WP - 2
    H4, W4 = H // 4, W // 4
    C1 = w1_ref.shape[2]          # 16
    C2 = w3_ref.shape[3]          # 32
    C4 = b5_ref.shape[1]          # 128
    f32 = jnp.float32

    def leaky(v):
        return jnp.where(v >= 0, v, 0.2 * v)

    def pad_hw(v):
        """Zero-pad 1 pixel on each side of the spatial dims (axes 1, 2) of a 4-D value.

        Only the thin halo strips are materialized as zeros (value-level concat); the
        interior is the existing activation — no full-buffer zero fill, no scratch.
        """
        b, h, w, c = v.shape
        zrow = jnp.zeros((b, 1, w, c), v.dtype)
        v = jnp.concatenate([zrow, v, zrow], axis=1)      # leading-dim concat
        zcol = jnp.zeros((b, h + 2, 1, c), v.dtype)
        return jnp.concatenate([zcol, v, zcol], axis=2)   # sublane concat

    # ----------------------- convDown -----------------------
    # Conv2d(1, 16) (+BN folded) + LeakyReLU.  Cin == 1 -> broadcast MAC on the VPU.
    xp = x_ref[0]                                          # (TB, H+2, W+2), halo pre-zeroed
    w1 = w1_ref[...]                                       # (3, 3, C1)
    a1 = jnp.zeros((TB, H, W, C1), f32)
    for dy in range(3):
        for dx in range(3):
            win = xp[:, dy:dy + H, dx:dx + W]              # (TB, H, W)
            a1 = a1 + win[..., None] * w1[dy, dx]          # -> (TB, H, W, C1)
    a1 = leaky(a1 + b1_ref[...])

    # MaxPool2d(4): H via a free leading-dim split + elementwise maxima,
    # W via 4 sublane-window maxima and one concat (no per-column scratch stores).
    a1r = a1.reshape(TB, H4, 4, W, C1)
    hp = jnp.maximum(jnp.maximum(a1r[:, :, 0], a1r[:, :, 1]),
                     jnp.maximum(a1r[:, :, 2], a1r[:, :, 3]))   # (TB, H4, W, C1)
    cols = [jnp.max(hp[:, :, 4 * wo:4 * wo + 4, :], axis=2, keepdims=True)
            for wo in range(W4)]
    pooled = jnp.concatenate(cols, axis=2)                 # (TB, H4, W4, C1)

    # Conv2d(16, 1): Cout == 1 -> VPU tap accumulation, ONE lane reduction at the end.
    pp = pad_hw(pooled)
    w2 = w2_ref[...]                                       # (3, 3, C1)
    acc2 = jnp.zeros((TB, H4, W4, C1), f32)
    for dy in range(3):
        for dx in range(3):
            acc2 = acc2 + pp[:, dy:dy + H4, dx:dx + W4, :] * w2[dy, dx]
    a2 = jnp.sum(acc2, axis=-1, keepdims=True) + b2_ref[0, 0]   # SMEM scalar bias

    # ------------------ cat(noise) + convUp ------------------
    # torch.cat((x, noise), dim=1) is fused away: the two Cin channels stay in separate
    # planes and w3 is split along Cin (noise arrives with its halo pre-zeroed).
    nzp = noise_ref[0]                                     # (TB, H4+2, W4+2)
    a2p = pad_hw(a2)                                       # (TB, H4+2, W4+2, 1)
    w3 = w3_ref[...]                                       # (3, 3, 2, C2), BN folded
    a3 = jnp.zeros((TB, H4, W4, C2), f32)
    for dy in range(3):
        for dx in range(3):
            a3 = (a3
                  + a2p[:, dy:dy + H4, dx:dx + W4, :] * w3[dy, dx, 0]
                  + nzp[:, dy:dy + H4, dx:dx + W4][..., None] * w3[dy, dx, 1])
    a3 = leaky(a3 + b3_ref[...])                           # (TB, H4, W4, C2)

    # Upsample(x4, nearest): H via leading-dim broadcast + merge (free),
    # W via 4 sublane broadcasts + one concat (no per-column masked stores).
    up = jnp.broadcast_to(a3[:, :, None], (TB, H4, 4, W4, C2)).reshape(TB, H, W4, C2)
    up = jnp.concatenate(
        [jnp.broadcast_to(up[:, :, wo:wo + 1, :], (TB, H, 4, C2)) for wo in range(W4)],
        axis=2)                                            # (TB, H, W, C2)

    # ----------------------- convNormal -----------------------
    rows = TB * H * W

    def conv3x3_mxu(act, w_ref, b_ref):
        """3x3 conv as ONE im2col matmul: big K, bf16 operands, f32 accumulation."""
        cin = act.shape[-1]
        cout = b_ref.shape[1]
        ap = pad_hw(act)                                   # (TB, H+2, W+2, cin) f32
        wins = [ap[:, dy:dy + H, dx:dx + W, :]
                for dy in range(3) for dx in range(3)]
        col = jnp.concatenate(wins, axis=-1)               # (TB, H, W, 9*cin) im2col
        col = col.reshape(rows, 9 * cin).astype(jnp.bfloat16)
        y = jnp.dot(col, w_ref[...], preferred_element_type=f32)   # (rows, cout) on MXU
        return leaky(y + b_ref[...]).reshape(TB, H, W, cout)

    a4 = conv3x3_mxu(up, w4_ref, b4_ref)                   # Conv2d(32, 64)  +BN +LeakyReLU
    a5 = conv3x3_mxu(a4, w5_ref, b5_ref)                   # Conv2d(64, 128) +BN +LeakyReLU

    # Conv2d(128, 1): Cout == 1 -> VPU tap accumulation + ONE lane reduction (no N=1 MXU).
    a5p = pad_hw(a5)                                       # (TB, H+2, W+2, C4)
    w6 = w6_ref[...]                                       # (3, 3, C4)
    acc6 = jnp.zeros((TB, H, W, C4), f32)
    for dy in range(3):
        for dx in range(3):
            acc6 = acc6 + a5p[:, dy:dy + H, dx:dx + W, :] * w6[dy, dx]
    out_ref[0] = jnp.sum(acc6, axis=-1) + b6_ref[0, 0]     # (TB, H, W), SMEM scalar bias


def generator_cgan_forward(img_nchw, noise_nchw, params, *, batch_tile=4):
    """img_nchw: (B, 1, H, W); noise_nchw: (B, 1, H//4, W//4).  Returns (B, 1, H, W)."""
    B, cin, H, W = img_nchw.shape
    assert cin == 1 and H % 4 == 0 and W % 4 == 0
    H4, W4 = H // 4, W // 4
    C1, C2, C3, C4 = 16, 32, 64, 128

    # Batch tiling: keep >= 2 grid steps whenever B >= 2 (both v7x TensorCores get work),
    # and keep TB modest so per-step temporaries stay far inside the default 32 MiB scoped
    # VMEM limit (and v7x's 64 MiB physical VMEM).  For larger B, batch_tile=4 gives
    # matmul M = TB*H*W = 1024 at 16x16 which fills the MXU nicely.
    TB = max(1, min(batch_tile, B))
    if B > 1:
        TB = min(TB, max(1, (B + 1) // 2))
    G = (B + TB - 1) // TB
    Bp = G * TB

    # Lane/layout-friendly inputs: drop the channel-1 dim, pre-zero the 1-pixel conv halo
    # (so the kernel never zero-fills big padded buffers), split batch into (G, TB).
    x = img_nchw[:, 0].astype(jnp.float32)                 # (B, H, W)
    nz = noise_nchw[:, 0].astype(jnp.float32)              # (B, H4, W4)
    x = jnp.pad(x, ((0, Bp - B), (1, 1), (1, 1)))
    nz = jnp.pad(nz, ((0, Bp - B), (1, 1), (1, 1)))
    x = x.reshape(G, TB, H + 2, W + 2)
    nz = nz.reshape(G, TB, H4 + 2, W4 + 2)

    # Fold eval-mode BatchNorm into the preceding conv (per output channel).
    def fold(w, b, bnp):
        scale = bnp["gamma"] / jnp.sqrt(bnp["var"] + bnp["eps"])
        return w * scale, b * scale + bnp["beta"] - bnp["mean"] * scale

    w1f, b1f = fold(params["w1"], params["b1"], params["bn1"])
    w3f, b3f = fold(params["w3"], params["b3"], params["bn2"])
    w4f, b4f = fold(params["w4"], params["b4"], params["bn3"])
    w5f, b5f = fold(params["w5"], params["b5"], params["bn4"])

    # Kernel weight layouts (HWIO -> packed).  conv4/conv5 weights are pre-reshaped to the
    # im2col layout [(dy,dx), cin] x cout and cast to bf16 (MXU operands only).
    w1k = w1f[:, :, 0, :]                                  # (3,3,16)    Cin == 1
    b1k = b1f.reshape(1, C1)
    w2k = params["w2"][:, :, :, 0]                         # (3,3,16)    Cout == 1
    b2k = params["b2"].reshape(1, 1)
    w3k = w3f                                              # (3,3,2,32)
    b3k = b3f.reshape(1, C2)
    w4k = w4f.reshape(9 * C2, C3).astype(jnp.bfloat16)     # (288, 64)
    b4k = b4f.reshape(1, C3)
    w5k = w5f.reshape(9 * C3, C4).astype(jnp.bfloat16)     # (576, 128)
    b5k = b5f.reshape(1, C4)
    w6k = params["w6"][:, :, :, 0]                         # (3,3,128)   Cout == 1
    b6k = params["b6"].reshape(1, 1)

    def resident(arr):        # full-array block, same block every grid step (stays in VMEM)
        n = arr.ndim
        return pl.BlockSpec(arr.shape, lambda i, n=n: (0,) * n)

    def per_tile(arr):        # tiled over the batch-tile axis only
        n = arr.ndim
        return pl.BlockSpec((1,) + arr.shape[1:], lambda i, n=n: (i,) + (0,) * (n - 1))

    def smem_scalar():
        return pl.BlockSpec(memory_space=pltpu.MemorySpace.SMEM)

    out = pl.pallas_call(
        _generator_kernel,
        out_shape=jax.ShapeDtypeStruct((G, TB, H, W), jnp.float32),
        grid=(G,),
        in_specs=[
            per_tile(x), per_tile(nz),
            resident(w1k), resident(b1k),
            resident(w2k), smem_scalar(),
            resident(w3k), resident(b3k),
            resident(w4k), resident(b4k),
            resident(w5k), resident(b5k),
            resident(w6k), smem_scalar(),
        ],
        out_specs=pl.BlockSpec((1, TB, H, W), lambda i: (i, 0, 0, 0)),
        compiler_params=pltpu.CompilerParams(
            dimension_semantics=("parallel",)),   # v7x: both TensorCores split the batch
    )(x, nz, w1k, b1k, w2k, b2k, w3k, b3k, w4k, b4k, w5k, b5k, w6k, b6k)

    out = out.reshape(Bp, H, W)[:B]
    return out[:, None, :, :]                              # back to NCHW (B, 1, H, W)


def init_params(key, img_shape):
    """Deterministic PyTorch-like init; BatchNorm carries eval-mode running stats."""
    c_img = img_shape[0]
    assert c_img == 1, "GeneratorCGANNew's first conv is hard-wired to 1 input channel"
    c0, c1, c2, c3, c4 = 1, 16, 32, 64, 128
    keys = iter(jax.random.split(key, 28))

    def conv(cin, cout):
        bound = 1.0 / math.sqrt(cin * 9)
        w = jax.random.uniform(next(keys), (3, 3, cin, cout), jnp.float32, -bound, bound)
        b = jax.random.uniform(next(keys), (cout,), jnp.float32, -bound, bound)
        return w, b

    def bn(c):
        return {
            "gamma": jax.random.uniform(next(keys), (c,), jnp.float32, 0.5, 1.5),
            "beta": 0.1 * jax.random.normal(next(keys), (c,), jnp.float32),
            "mean": 0.1 * jax.random.normal(next(keys), (c,), jnp.float32),
            "var": jax.random.uniform(next(keys), (c,), jnp.float32, 0.5, 1.5),
            "eps": 0.8,   # nn.BatchNorm2d(C, 0.8): second positional arg is eps
        }

    p = {}
    p["w1"], p["b1"] = conv(1, c1);       p["bn1"] = bn(c1)
    p["w2"], p["b2"] = conv(c1, c0)
    p["w3"], p["b3"] = conv(c0 + 1, c2);  p["bn2"] = bn(c2)
    p["w4"], p["b4"] = conv(c2, c3);      p["bn3"] = bn(c3)
    p["w5"], p["b5"] = conv(c3, c4);      p["bn4"] = bn(c4)
    p["w6"], p["b6"] = conv(c4, c_img)
    return p


def reference_forward(img_nchw, noise_nchw, params):
    """Plain-JAX (XLA) f32 reference with identical eval-mode semantics."""
    hi = jax.lax.Precision.HIGHEST

    def conv(x, w, b):
        y = jax.lax.conv_general_dilated(
            x, w, window_strides=(1, 1), padding="SAME",
            dimension_numbers=("NHWC", "HWIO", "NHWC"), precision=hi)
        return y + b

    def bn(x, p):
        scale = p["gamma"] / jnp.sqrt(p["var"] + p["eps"])
        return (x - p["mean"]) * scale + p["beta"]

    leaky = lambda v: jnp.where(v >= 0, v, 0.2 * v)

    x = jnp.transpose(img_nchw, (0, 2, 3, 1)).astype(jnp.float32)
    noise = jnp.transpose(noise_nchw, (0, 2, 3, 1)).astype(jnp.float32)

    # convDown
    x = leaky(bn(conv(x, params["w1"], params["b1"]), params["bn1"]))
    x = jax.lax.reduce_window(x, -jnp.inf, jax.lax.max,
                              (1, 4, 4, 1), (1, 4, 4, 1), "VALID")
    x = conv(x, params["w2"], params["b2"])
    # cat noise along channels + convUp
    x = jnp.concatenate([x, noise], axis=-1)
    x = leaky(bn(conv(x, params["w3"], params["b3"]), params["bn2"]))
    x = jnp.repeat(jnp.repeat(x, 4, axis=1), 4, axis=2)       # nearest upsample x4
    # convNormal
    x = leaky(bn(conv(x, params["w4"], params["b4"]), params["bn3"]))
    x = leaky(bn(conv(x, params["w5"], params["b5"]), params["bn4"]))
    x = conv(x, params["w6"], params["b6"])
    return jnp.transpose(x, (0, 3, 1, 2))


if __name__ == "__main__":
    img_shape = (1, 16, 16)       # (channels, H, W)
    B = 2

    key = jax.random.PRNGKey(0)
    k_img, k_noise, k_par = jax.random.split(key, 3)

    img = jax.random.normal(k_img, (B,) + img_shape, jnp.float32)               # NCHW
    noise = jax.random.normal(
        k_noise, (B, 1, img_shape[1] // 4, img_shape[2] // 4), jnp.float32)     # torch.randn equivalent
    params = init_params(k_par, img_shape)

    fwd = jax.jit(lambda im, nzz: generator_cgan_forward(im, nzz, params))
    out = jax.block_until_ready(fwd(img, noise))

    ref = jax.block_until_ready(reference_forward(img, noise, params))

    assert out.shape == (B,) + img_shape, out.shape
    # conv4/conv5 run with bf16 MXU operands (f32 accumulation); 1e-2 abs tolerance is ample
    # for this network's output magnitudes.
    err = float(jnp.max(jnp.abs(out - ref)))
    assert err < 1e-2, err
    print("KERNEL_OK")
</pallas_src>

<mosaic_0001>
module attributes {stable_mosaic.version = 11 : i64} {
  func.func @_generator_kernel(%arg0: i32, %arg1: memref<1x1x18x18xf32, #tpu.memory_space<vmem>>, %arg2: memref<1x1x6x6xf32, #tpu.memory_space<vmem>>, %arg3: memref<3x3x16xf32, #tpu.memory_space<vmem>>, %arg4: memref<1x16xf32, #tpu.memory_space<vmem>>, %arg5: memref<3x3x16xf32, #tpu.memory_space<vmem>>, %arg6: memref<1x1xf32, #tpu.memory_space<smem>>, %arg7: memref<3x3x2x32xf32, #tpu.memory_space<vmem>>, %arg8: memref<1x32xf32, #tpu.memory_space<vmem>>, %arg9: memref<288x64xbf16, #tpu.memory_space<vmem>>, %arg10: memref<1x64xf32, #tpu.memory_space<vmem>>, %arg11: memref<576x128xbf16, #tpu.memory_space<vmem>>, %arg12: memref<1x128xf32, #tpu.memory_space<vmem>>, %arg13: memref<3x3x128xf32, #tpu.memory_space<vmem>>, %arg14: memref<1x1xf32, #tpu.memory_space<smem>>, %arg15: memref<1x1x16x16xf32, #tpu.memory_space<vmem>>) attributes {dimension_semantics = [#tpu.dimension_semantics<parallel>], iteration_bounds = array<i64: 2>, scalar_prefetch = 0 : i64, scratch_operands = 0 : i64, tpu.core_type = #tpu.core_type<tc>, window_params = [{transform_indices = @transform_0, window_bounds = array<i64: 1, 1, 18, 18>}, {transform_indices = @transform_1, window_bounds = array<i64: 1, 1, 6, 6>}, {pipeline_mode = #tpu.pipeline_mode<synchronous>, transform_indices = @transform_2, window_bounds = array<i64: 3, 3, 16>}, {pipeline_mode = #tpu.pipeline_mode<synchronous>, transform_indices = @transform_3, window_bounds = array<i64: 1, 16>}, {pipeline_mode = #tpu.pipeline_mode<synchronous>, transform_indices = @transform_4, window_bounds = array<i64: 3, 3, 16>}, {transform_indices = @transform_5, window_bounds = array<i64: 1, 1>}, {pipeline_mode = #tpu.pipeline_mode<synchronous>, transform_indices = @transform_6, window_bounds = array<i64: 3, 3, 2, 32>}, {pipeline_mode = #tpu.pipeline_mode<synchronous>, transform_indices = @transform_7, window_bounds = array<i64: 1, 32>}, {pipeline_mode = #tpu.pipeline_mode<synchronous>, transform_indices = @transform_8, window_bounds = array<i64: 288, 64>}, {pipeline_mode = #tpu.pipeline_mode<synchronous>, transform_indices = @transform_9, window_bounds = array<i64: 1, 64>}, {pipeline_mode = #tpu.pipeline_mode<synchronous>, transform_indices = @transform_10, window_bounds = array<i64: 576, 128>}, {pipeline_mode = #tpu.pipeline_mode<synchronous>, transform_indices = @transform_11, window_bounds = array<i64: 1, 128>}, {pipeline_mode = #tpu.pipeline_mode<synchronous>, transform_indices = @transform_12, window_bounds = array<i64: 3, 3, 128>}, {transform_indices = @transform_13, window_bounds = array<i64: 1, 1>}, {transform_indices = @transform_14, window_bounds = array<i64: 1, 1, 16, 16>}]} {
    %c0 = arith.constant 0 : index
    %c0_0 = arith.constant 0 : index
    %c0_1 = arith.constant 0 : index
    %c0_2 = arith.constant 0 : index
    %0 = vector.load %arg1[%c0, %c0_0, %c0_1, %c0_2] : memref<1x1x18x18xf32, #tpu.memory_space<vmem>>, vector<1x1x18x18xf32>
    %1 = vector.shape_cast %0 : vector<1x1x18x18xf32> to vector<1x18x18xf32>
    %c0_3 = arith.constant 0 : index
    %c0_4 = arith.constant 0 : index
    %c0_5 = arith.constant 0 : index
    %2 = vector.load %arg3[%c0_3, %c0_4, %c0_5] : memref<3x3x16xf32, #tpu.memory_space<vmem>>, vector<3x3x16xf32>
    %cst = arith.constant 0.000000e+00 : f32
    %3 = vector.broadcast %cst : f32 to vector<1x16x16x16xf32>
    %4 = vector.extract_strided_slice %1 {offsets = [0, 0, 0], sizes = [1, 16, 16], strides = [1, 1, 1]} : vector<1x18x18xf32> to vector<1x16x16xf32>
    %5 = vector.shape_cast %4 : vector<1x16x16xf32> to vector<1x16x16x1xf32>
    %6 = vector.extract_strided_slice %2 {offsets = [0, 0, 0], sizes = [1, 1, 16], strides = [1, 1, 1]} : vector<3x3x16xf32> to vector<1x1x16xf32>
    %7 = vector.shape_cast %6 : vector<1x1x16xf32> to vector<16xf32>
    %8 = vector.shape_cast %7 : vector<16xf32> to vector<1x1x1x16xf32>
    %9 = vector.broadcast %5 : vector<1x16x16x1xf32> to vector<1x16x16x16xf32>
    %10 = vector.broadcast %8 : vector<1x1x1x16xf32> to vector<1x16x16x16xf32>
    %11 = arith.mulf %9, %10 : vector<1x16x16x16xf32>
    %12 = arith.addf %3, %11 : vector<1x16x16x16xf32>
    %13 = vector.extract_strided_slice %1 {offsets = [0, 0, 1], sizes = [1, 16, 16], strides = [1, 1, 1]} : vector<1x18x18xf32> to vector<1x16x16xf32>
    %14 = vector.shape_cast %13 : vector<1x16x16xf32> to vector<1x16x16x1xf32>
    %15 = vector.extract_strided_slice %2 {offsets = [0, 1, 0], sizes = [1, 1, 16], strides = [1, 1, 1]} : vector<3x3x16xf32> to vector<1x1x16xf32>
    %16 = vector.shape_cast %15 : vector<1x1x16xf32> to vector<16xf32>
    %17 = vector.shape_cast %16 : vector<16xf32> to vector<1x1x1x16xf32>
    %18 = vector.broadcast %14 : vector<1x16x16x1xf32> to vector<1x16x16x16xf32>
    %19 = vector.broadcast %17 : vector<1x1x1x16xf32> to vector<1x16x16x16xf32>
    %20 = arith.mulf %18, %19 : vector<1x16x16x16xf32>
    %21 = arith.addf %12, %20 : vector<1x16x16x16xf32>
    %22 = vector.extract_strided_slice %1 {offsets = [0, 0, 2], sizes = [1, 16, 16], strides = [1, 1, 1]} : vector<1x18x18xf32> to vector<1x16x16xf32>
    %23 = vector.shape_cast %22 : vector<1x16x16xf32> to vector<1x16x16x1xf32>
    %24 = vector.extract_strided_slice %2 {offsets = [0, 2, 0], sizes = [1, 1, 16], strides = [1, 1, 1]} : vector<3x3x16xf32> to vector<1x1x16xf32>
    %25 = vector.shape_cast %24 : vector<1x1x16xf32> to vector<16xf32>
    %26 = vector.shape_cast %25 : vector<16xf32> to vector<1x1x1x16xf32>
    %27 = vector.broadcast %23 : vector<1x16x16x1xf32> to vector<1x16x16x16xf32>
    %28 = vector.broadcast %26 : vector<1x1x1x16xf32> to vector<1x16x16x16xf32>
    %29 = arith.mulf %27, %28 : vector<1x16x16x16xf32>
    %30 = arith.addf %21, %29 : vector<1x16x16x16xf32>
    %31 = vector.extract_strided_slice %1 {offsets = [0, 1, 0], sizes = [1, 16, 16], strides = [1, 1, 1]} : vector<1x18x18xf32> to vector<1x16x16xf32>
    %32 = vector.shape_cast %31 : vector<1x16x16xf32> to vector<1x16x16x1xf32>
    %33 = vector.extract_strided_slice %2 {offsets = [1, 0, 0], sizes = [1, 1, 16], strides = [1, 1, 1]} : vector<3x3x16xf32> to vector<1x1x16xf32>
    %34 = vector.shape_cast %33 : vector<1x1x16xf32> to vector<16xf32>
    %35 = vector.shape_cast %34 : vector<16xf32> to vector<1x1x1x16xf32>
    %36 = vector.broadcast %32 : vector<1x16x16x1xf32> to vector<1x16x16x16xf32>
    %37 = vector.broadcast %35 : vector<1x1x1x16xf32> to vector<1x16x16x16xf32>
    %38 = arith.mulf %36, %37 : vector<1x16x16x16xf32>
    %39 = arith.addf %30, %38 : vector<1x16x16x16xf32>
    %40 = vector.extract_strided_slice %1 {offsets = [0, 1, 1], sizes = [1, 16, 16], strides = [1, 1, 1]} : vector<1x18x18xf32> to vector<1x16x16xf32>
    %41 = vector.shape_cast %40 : vector<1x16x16xf32> to vector<1x16x16x1xf32>
    %42 = vector.extract_strided_slice %2 {offsets = [1, 1, 0], sizes = [1, 1, 16], strides = [1, 1, 1]} : vector<3x3x16xf32> to vector<1x1x16xf32>
    %43 = vector.shape_cast %42 : vector<1x1x16xf32> to vector<16xf32>
    %44 = vector.shape_cast %43 : vector<16xf32> to vector<1x1x1x16xf32>
    %45 = vector.broadcast %41 : vector<1x16x16x1xf32> to vector<1x16x16x16xf32>
    %46 = vector.broadcast %44 : vector<1x1x1x16xf32> to vector<1x16x16x16xf32>
    %47 = arith.mulf %45, %46 : vector<1x16x16x16xf32>
    %48 = arith.addf %39, %47 : vector<1x16x16x16xf32>
    %49 = vector.extract_strided_slice %1 {offsets = [0, 1, 2], sizes = [1, 16, 16], strides = [1, 1, 1]} : vector<1x18x18xf32> to vector<1x16x16xf32>
    %50 = vector.shape_cast %49 : vector<1x16x16xf32> to vector<1x16x16x1xf32>
    %51 = vector.extract_strided_slice %2 {offsets = [1, 2, 0], sizes = [1, 1, 16], strides = [1, 1, 1]} : vector<3x3x16xf32> to vector<1x1x16xf32>
    %52 = vector.shape_cast %51 : vector<1x1x16xf32> to vector<16xf32>
    %53 = vector.shape_cast %52 : vector<16xf32> to vector<1x1x1x16xf32>
    %54 = vector.broadcast %50 : vector<1x16x16x1xf32> to vector<1x16x16x16xf32>
    %55 = vector.broadcast %53 : vector<1x1x1x16xf32> to vector<1x16x16x16xf32>
    %56 = arith.mulf %54, %55 : vector<1x16x16x16xf32>
    %57 = arith.addf %48, %56 : vector<1x16x16x16xf32>
    %58 = vector.extract_strided_slice %1 {offsets = [0, 2, 0], sizes = [1, 16, 16], strides = [1, 1, 1]} : vector<1x18x18xf32> to vector<1x16x16xf32>
    %59 = vector.shape_cast %58 : vector<1x16x16xf32> to vector<1x16x16x1xf32>
    %60 = vector.extract_strided_slice %2 {offsets = [2, 0, 0], sizes = [1, 1, 16], strides = [1, 1, 1]} : vector<3x3x16xf32> to vector<1x1x16xf32>
    %61 = vector.shape_cast %60 : vector<1x1x16xf32> to vector<16xf32>
    %62 = vector.shape_cast %61 : vector<16xf32> to vector<1x1x1x16xf32>
    %63 = vector.broadcast %59 : vector<1x16x16x1xf32> to vector<1x16x16x16xf32>
    %64 = vector.broadcast %62 : vector<1x1x1x16xf32> to vector<1x16x16x16xf32>
    %65 = arith.mulf %63, %64 : vector<1x16x16x16xf32>
    %66 = arith.addf %57, %65 : vector<1x16x16x16xf32>
    %67 = vector.extract_strided_slice %1 {offsets = [0, 2, 1], sizes = [1, 16, 16], strides = [1, 1, 1]} : vector<1x18x18xf32> to vector<1x16x16xf32>
    %68 = vector.shape_cast %67 : vector<1x16x16xf32> to vector<1x16x16x1xf32>
    %69 = vector.extract_strided_slice %2 {offsets = [2, 1, 0], sizes = [1, 1, 16], strides = [1, 1, 1]} : vector<3x3x16xf32> to vector<1x1x16xf32>
    %70 = vector.shape_cast %69 : vector<1x1x16xf32> to vector<16xf32>
    %71 = vector.shape_cast %70 : vector<16xf32> to vector<1x1x1x16xf32>
    %72 = vector.broadcast %68 : vector<1x16x16x1xf32> to vector<1x16x16x16xf32>
    %73 = vector.broadcast %71 : vector<1x1x1x16xf32> to vector<1x16x16x16xf32>
    %74 = arith.mulf %72, %73 : vector<1x16x16x16xf32>
    %75 = arith.addf %66, %74 : vector<1x16x16x16xf32>
    %76 = vector.extract_strided_slice %1 {offsets = [0, 2, 2], sizes = [1, 16, 16], strides = [1, 1, 1]} : vector<1x18x18xf32> to vector<1x16x16xf32>
    %77 = vector.shape_cast %76 : vector<1x16x16xf32> to vector<1x16x16x1xf32>
    %78 = vector.extract_strided_slice %2 {offsets = [2, 2, 0], sizes = [1, 1, 16], strides = [1, 1, 1]} : vector<3x3x16xf32> to vector<1x1x16xf32>
    %79 = vector.shape_cast %78 : vector<1x1x16xf32> to vector<16xf32>
    %80 = vector.shape_cast %79 : vector<16xf32> to vector<1x1x1x16xf32>
    %81 = vector.broadcast %77 : vector<1x16x16x1xf32> to vector<1x16x16x16xf32>
    %82 = vector.broadcast %80 : vector<1x1x1x16xf32> to vector<1x16x16x16xf32>
    %83 = arith.mulf %81, %82 : vector<1x16x16x16xf32>
    %84 = arith.addf %75, %83 : vector<1x16x16x16xf32>
    %c0_6 = arith.constant 0 : index
    %c0_7 = arith.constant 0 : index
    %85 = vector.load %arg4[%c0_6, %c0_7] : memref<1x16xf32, #tpu.memory_space<vmem>>, vector<1x16xf32>
    %86 = vector.shape_cast %85 : vector<1x16xf32> to vector<1x1x1x16xf32>
    %87 = vector.broadcast %86 : vector<1x1x1x16xf32> to vector<1x16x16x16xf32>
    %88 = arith.addf %84, %87 : vector<1x16x16x16xf32>
    %cst_8 = arith.constant 0.000000e+00 : f32
    %89 = vector.broadcast %cst_8 : f32 to vector<1x16x16x16xf32>
    %90 = arith.cmpf oge, %88, %89 : vector<1x16x16x16xf32>
    %cst_9 = arith.constant 2.000000e-01 : f32
    %91 = vector.broadcast %cst_9 : f32 to vector<1x16x16x16xf32>
    %92 = arith.mulf %91, %88 : vector<1x16x16x16xf32>
    %93 = arith.select %90, %88, %92 : vector<1x16x16x16xi1>, vector<1x16x16x16xf32>
    %94 = vector.shape_cast %93 : vector<1x16x16x16xf32> to vector<1x4x4x16x16xf32>
    %95 = vector.extract_strided_slice %94 {offsets = [0, 0, 0, 0, 0], sizes = [1, 4, 1, 16, 16], strides = [1, 1, 1, 1, 1]} : vector<1x4x4x16x16xf32> to vector<1x4x1x16x16xf32>
    %96 = vector.shape_cast %95 : vector<1x4x1x16x16xf32> to vector<1x4x16x16xf32>
    %97 = vector.extract_strided_slice %94 {offsets = [0, 0, 1, 0, 0], sizes = [1, 4, 1, 16, 16], strides = [1, 1, 1, 1, 1]} : vector<1x4x4x16x16xf32> to vector<1x4x1x16x16xf32>
    %98 = vector.shape_cast %97 : vector<1x4x1x16x16xf32> to vector<1x4x16x16xf32>
    %99 = arith.maximumf %96, %98 : vector<1x4x16x16xf32>
    %100 = vector.extract_strided_slice %94 {offsets = [0, 0, 2, 0, 0], sizes = [1, 4, 1, 16, 16], strides = [1, 1, 1, 1, 1]} : vector<1x4x4x16x16xf32> to vector<1x4x1x16x16xf32>
    %101 = vector.shape_cast %100 : vector<1x4x1x16x16xf32> to vector<1x4x16x16xf32>
    %102 = vector.extract_strided_slice %94 {offsets = [0, 0, 3, 0, 0], sizes = [1, 4, 1, 16, 16], strides = [1, 1, 1, 1, 1]} : vector<1x4x4x16x16xf32> to vector<1x4x1x16x16xf32>
    %103 = vector.shape_cast %102 : vector<1x4x1x16x16xf32> to vector<1x4x16x16xf32>
    %104 = arith.maximumf %101, %103 : vector<1x4x16x16xf32>
    %105 = arith.maximumf %99, %104 : vector<1x4x16x16xf32>
    %106 = vector.extract_strided_slice %105 {offsets = [0, 0, 0, 0], sizes = [1, 4, 4, 16], strides = [1, 1, 1, 1]} : vector<1x4x16x16xf32> to vector<1x4x4x16xf32>
    %cst_10 = arith.constant dense<0xFF800000> : vector<1x4x16xf32>
    %107 = vector.multi_reduction <maximumf>, %106, %cst_10 [2] : vector<1x4x4x16xf32> to vector<1x4x16xf32>
    %108 = vector.shape_cast %107 : vector<1x4x16xf32> to vector<1x4x1x16xf32>
    %109 = vector.extract_strided_slice %105 {offsets = [0, 0, 4, 0], sizes = [1, 4, 4, 16], strides = [1, 1, 1, 1]} : vector<1x4x16x16xf32> to vector<1x4x4x16xf32>
    %cst_11 = arith.constant dense<0xFF800000> : vector<1x4x16xf32>
    %110 = vector.multi_reduction <maximumf>, %109, %cst_11 [2] : vector<1x4x4x16xf32> to vector<1x4x16xf32>
    %111 = vector.shape_cast %110 : vector<1x4x16xf32> to vector<1x4x1x16xf32>
    %112 = vector.extract_strided_slice %105 {offsets = [0, 0, 8, 0], sizes = [1, 4, 4, 16], strides = [1, 1, 1, 1]} : vector<1x4x16x16xf32> to vector<1x4x4x16xf32>
    %cst_12 = arith.constant dense<0xFF800000> : vector<1x4x16xf32>
    %113 = vector.multi_reduction <maximumf>, %112, %cst_12 [2] : vector<1x4x4x16xf32> to vector<1x4x16xf32>
    %114 = vector.shape_cast %113 : vector<1x4x16xf32> to vector<1x4x1x16xf32>
    %115 = vector.extract_strided_slice %105 {offsets = [0, 0, 12, 0], sizes = [1, 4, 4, 16], strides = [1, 1, 1, 1]} : vector<1x4x16x16xf32> to vector<1x4x4x16xf32>
    %cst_13 = arith.constant dense<0xFF800000> : vector<1x4x16xf32>
    %116 = vector.multi_reduction <maximumf>, %115, %cst_13 [2] : vector<1x4x4x16xf32> to vector<1x4x16xf32>
    %117 = vector.shape_cast %116 : vector<1x4x16xf32> to vector<1x4x1x16xf32>
    %118 = tpu.concatenate %108, %111, %114, %117 in 2 : vector<1x4x1x16xf32>, vector<1x4x1x16xf32>, vector<1x4x1x16xf32>, vector<1x4x1x16xf32> -> vector<1x4x4x16xf32>
    %cst_14 = arith.constant 0.000000e+00 : f32
    %119 = vector.broadcast %cst_14 : f32 to vector<1x1x4x16xf32>
    %120 = tpu.concatenate %119, %118, %119 in 1 : vector<1x1x4x16xf32>, vector<1x4x4x16xf32>, vector<1x1x4x16xf32> -> vector<1x6x4x16xf32>
    %cst_15 = arith.constant 0.000000e+00 : f32
    %121 = vector.broadcast %cst_15 : f32 to vector<1x6x1x16xf32>
    %122 = tpu.concatenate %121, %120, %121 in 2 : vector<1x6x1x16xf32>, vector<1x6x4x16xf32>, vector<1x6x1x16xf32> -> vector<1x6x6x16xf32>
    %c0_16 = arith.constant 0 : index
    %c0_17 = arith.constant 0 : index
    %c0_18 = arith.constant 0 : index
    %123 = vector.load %arg5[%c0_16, %c0_17, %c0_18] : memref<3x3x16xf32, #tpu.memory_space<vmem>>, vector<3x3x16xf32>
    %cst_19 = arith.constant 0.000000e+00 : f32
    %124 = vector.broadcast %cst_19 : f32 to vector<1x4x4x16xf32>
    %125 = vector.extract_strided_slice %122 {offsets = [0, 0, 0, 0], sizes = [1, 4, 4, 16], strides = [1, 1, 1, 1]} : vector<1x6x6x16xf32> to vector<1x4x4x16xf32>
    %126 = vector.extract_strided_slice %123 {offsets = [0, 0, 0], sizes = [1, 1, 16], strides = [1, 1, 1]} : vector<3x3x16xf32> to vector<1x1x16xf32>
    %127 = vector.shape_cast %126 : vector<1x1x16xf32> to vector<16xf32>
    %128 = vector.shape_cast %127 : vector<16xf32> to vector<1x1x1x16xf32>
    %129 = vector.broadcast %128 : vector<1x1x1x16xf32> to vector<1x4x4x16xf32>
    %130 = arith.mulf %125, %129 : vector<1x4x4x16xf32>
    %131 = arith.addf %124, %130 : vector<1x4x4x16xf32>
    %132 = vector.extract_strided_slice %122 {offsets = [0, 0, 1, 0], sizes = [1, 4, 4, 16], strides = [1, 1, 1, 1]} : vector<1x6x6x16xf32> to vector<1x4x4x16xf32>
    %133 = vector.extract_strided_slice %123 {offsets = [0, 1, 0], sizes = [1, 1, 16], strides = [1, 1, 1]} : vector<3x3x16xf32> to vector<1x1x16xf32>
    %134 = vector.shape_cast %133 : vector<1x1x16xf32> to vector<16xf32>
    %135 = vector.shape_cast %134 : vector<16xf32> to vector<1x1x1x16xf32>
    %136 = vector.broadcast %135 : vector<1x1x1x16xf32> to vector<1x4x4x16xf32>
    %137 = arith.mulf %132, %136 : vector<1x4x4x16xf32>
    %138 = arith.addf %131, %137 : vector<1x4x4x16xf32>
    %139 = vector.extract_strided_slice %122 {offsets = [0, 0, 2, 0], sizes = [1, 4, 4, 16], strides = [1, 1, 1, 1]} : vector<1x6x6x16xf32> to vector<1x4x4x16xf32>
    %140 = vector.extract_strided_slice %123 {offsets = [0, 2, 0], sizes = [1, 1, 16], strides = [1, 1, 1]} : vector<3x3x16xf32> to vector<1x1x16xf32>
    %141 = vector.shape_cast %140 : vector<1x1x16xf32> to vector<16xf32>
    %142 = vector.shape_cast %141 : vector<16xf32> to vector<1x1x1x16xf32>
    %143 = vector.broadcast %142 : vector<1x1x1x16xf32> to vector<1x4x4x16xf32>
    %144 = arith.mulf %139, %143 : vector<1x4x4x16xf32>
    %145 = arith.addf %138, %144 : vector<1x4x4x16xf32>
    %146 = vector.extract_strided_slice %122 {offsets = [0, 1, 0, 0], sizes = [1, 4, 4, 16], strides = [1, 1, 1, 1]} : vector<1x6x6x16xf32> to vector<1x4x4x16xf32>
    %147 = vector.extract_strided_slice %123 {offsets = [1, 0, 0], sizes = [1, 1, 16], strides = [1, 1, 1]} : vector<3x3x16xf32> to vector<1x1x16xf32>
    %148 = vector.shape_cast %147 : vector<1x1x16xf32> to vector<16xf32>
    %149 = vector.shape_cast %148 : vector<16xf32> to vector<1x1x1x16xf32>
    %150 = vector.broadcast %149 : vector<1x1x1x16xf32> to vector<1x4x4x16xf32>
    %151 = arith.mulf %146, %150 : vector<1x4x4x16xf32>
    %152 = arith.addf %145, %151 : vector<1x4x4x16xf32>
    %153 = vector.extract_strided_slice %122 {offsets = [0, 1, 1, 0], sizes = [1, 4, 4, 16], strides = [1, 1, 1, 1]} : vector<1x6x6x16xf32> to vector<1x4x4x16xf32>
    %154 = vector.extract_strided_slice %123 {offsets = [1, 1, 0], sizes = [1, 1, 16], strides = [1, 1, 1]} : vector<3x3x16xf32> to vector<1x1x16xf32>
    %155 = vector.shape_cast %154 : vector<1x1x16xf32> to vector<16xf32>
    %156 = vector.shape_cast %155 : vector<16xf32> to vector<1x1x1x16xf32>
    %157 = vector.broadcast %156 : vector<1x1x1x16xf32> to vector<1x4x4x16xf32>
    %158 = arith.mulf %153, %157 : vector<1x4x4x16xf32>
    %159 = arith.addf %152, %158 : vector<1x4x4x16xf32>
    %160 = vector.extract_strided_slice %122 {offsets = [0, 1, 2, 0], sizes = [1, 4, 4, 16], strides = [1, 1, 1, 1]} : vector<1x6x6x16xf32> to vector<1x4x4x16xf32>
    %161 = vector.extract_strided_slice %123 {offsets = [1, 2, 0], sizes = [1, 1, 16], strides = [1, 1, 1]} : vector<3x3x16xf32> to vector<1x1x16xf32>
    %162 = vector.shape_cast %161 : vector<1x1x16xf32> to vector<16xf32>
    %163 = vector.shape_cast %162 : vector<16xf32> to vector<1x1x1x16xf32>
    %164 = vector.broadcast %163 : vector<1x1x1x16xf32> to vector<1x4x4x16xf32>
    %165 = arith.mulf %160, %164 : vector<1x4x4x16xf32>
    %166 = arith.addf %159, %165 : vector<1x4x4x16xf32>
    %167 = vector.extract_strided_slice %122 {offsets = [0, 2, 0, 0], sizes = [1, 4, 4, 16], strides = [1, 1, 1, 1]} : vector<1x6x6x16xf32> to vector<1x4x4x16xf32>
    %168 = vector.extract_strided_slice %123 {offsets = [2, 0, 0], sizes = [1, 1, 16], strides = [1, 1, 1]} : vector<3x3x16xf32> to vector<1x1x16xf32>
    %169 = vector.shape_cast %168 : vector<1x1x16xf32> to vector<16xf32>
    %170 = vector.shape_cast %169 : vector<16xf32> to vector<1x1x1x16xf32>
    %171 = vector.broadcast %170 : vector<1x1x1x16xf32> to vector<1x4x4x16xf32>
    %172 = arith.mulf %167, %171 : vector<1x4x4x16xf32>
    %173 = arith.addf %166, %172 : vector<1x4x4x16xf32>
    %174 = vector.extract_strided_slice %122 {offsets = [0, 2, 1, 0], sizes = [1, 4, 4, 16], strides = [1, 1, 1, 1]} : vector<1x6x6x16xf32> to vector<1x4x4x16xf32>
    %175 = vector.extract_strided_slice %123 {offsets = [2, 1, 0], sizes = [1, 1, 16], strides = [1, 1, 1]} : vector<3x3x16xf32> to vector<1x1x16xf32>
    %176 = vector.shape_cast %175 : vector<1x1x16xf32> to vector<16xf32>
    %177 = vector.shape_cast %176 : vector<16xf32> to vector<1x1x1x16xf32>
    %178 = vector.broadcast %177 : vector<1x1x1x16xf32> to vector<1x4x4x16xf32>
    %179 = arith.mulf %174, %178 : vector<1x4x4x16xf32>
    %180 = arith.addf %173, %179 : vector<1x4x4x16xf32>
    %181 = vector.extract_strided_slice %122 {offsets = [0, 2, 2, 0], sizes = [1, 4, 4, 16], strides = [1, 1, 1, 1]} : vector<1x6x6x16xf32> to vector<1x4x4x16xf32>
    %182 = vector.extract_strided_slice %123 {offsets = [2, 2, 0], sizes = [1, 1, 16], strides = [1, 1, 1]} : vector<3x3x16xf32> to vector<1x1x16xf32>
    %183 = vector.shape_cast %182 : vector<1x1x16xf32> to vector<16xf32>
    %184 = vector.shape_cast %183 : vector<16xf32> to vector<1x1x1x16xf32>
    %185 = vector.broadcast %184 : vector<1x1x1x16xf32> to vector<1x4x4x16xf32>
    %186 = arith.mulf %181, %185 : vector<1x4x4x16xf32>
    %187 = arith.addf %180, %186 : vector<1x4x4x16xf32>
    %cst_20 = arith.constant dense<0.000000e+00> : vector<1x4x4xf32>
    %188 = vector.multi_reduction <add>, %187, %cst_20 [3] : vector<1x4x4x16xf32> to vector<1x4x4xf32>
    %189 = vector.shape_cast %188 : vector<1x4x4xf32> to vector<1x4x4x1xf32>
    %c0_21 = arith.constant 0 : index
    %c0_22 = arith.constant 0 : index
    %190 = memref.load %arg6[%c0_21, %c0_22] : memref<1x1xf32, #tpu.memory_space<smem>>
    %191 = vector.broadcast %190 : f32 to vector<1x4x4x1xf32>
    %192 = arith.addf %189, %191 : vector<1x4x4x1xf32>
    %c0_23 = arith.constant 0 : index
    %c0_24 = arith.constant 0 : index
    %c0_25 = arith.constant 0 : index
    %c0_26 = arith.constant 0 : index
    %193 = vector.load %arg2[%c0_23, %c0_24, %c0_25, %c0_26] : memref<1x1x6x6xf32, #tpu.memory_space<vmem>>, vector<1x1x6x6xf32>
    %194 = vector.shape_cast %193 : vector<1x1x6x6xf32> to vector<1x6x6xf32>
    %cst_27 = arith.constant 0.000000e+00 : f32
    %195 = vector.broadcast %cst_27 : f32 to vector<1x1x4x1xf32>
    %196 = tpu.concatenate %195, %192, %195 in 1 : vector<1x1x4x1xf32>, vector<1x4x4x1xf32>, vector<1x1x4x1xf32> -> vector<1x6x4x1xf32>
    %cst_28 = arith.constant 0.000000e+00 : f32
    %197 = vector.broadcast %cst_28 : f32 to vector<1x6x1x1xf32>
    %198 = tpu.concatenate %197, %196, %197 in 2 : vector<1x6x1x1xf32>, vector<1x6x4x1xf32>, vector<1x6x1x1xf32> -> vector<1x6x6x1xf32>
    %c0_29 = arith.constant 0 : index
    %c0_30 = arith.constant 0 : index
    %c0_31 = arith.constant 0 : index
    %c0_32 = arith.constant 0 : index
    %199 = vector.load %arg7[%c0_29, %c0_30, %c0_31, %c0_32] : memref<3x3x2x32xf32, #tpu.memory_space<vmem>>, vector<3x3x2x32xf32>
    %cst_33 = arith.constant 0.000000e+00 : f32
    %200 = vector.broadcast %cst_33 : f32 to vector<1x4x4x32xf32>
    %201 = vector.extract_strided_slice %198 {offsets = [0, 0, 0, 0], sizes = [1, 4, 4, 1], strides = [1, 1, 1, 1]} : vector<1x6x6x1xf32> to vector<1x4x4x1xf32>
    %202 = vector.extract_strided_slice %199 {offsets = [0, 0, 0, 0], sizes = [1, 1, 1, 32], strides = [1, 1, 1, 1]} : vector<3x3x2x32xf32> to vector<1x1x1x32xf32>
    %203 = vector.shape_cast %202 : vector<1x1x1x32xf32> to vector<32xf32>
    %204 = vector.shape_cast %203 : vector<32xf32> to vector<1x1x1x32xf32>
    %205 = vector.broadcast %201 : vector<1x4x4x1xf32> to vector<1x4x4x32xf32>
    %206 = vector.broadcast %204 : vector<1x1x1x32xf32> to vector<1x4x4x32xf32>
    %207 = arith.mulf %205, %206 : vector<1x4x4x32xf32>
    %208 = arith.addf %200, %207 : vector<1x4x4x32xf32>
    %209 = vector.extract_strided_slice %194 {offsets = [0, 0, 0], sizes = [1, 4, 4], strides = [1, 1, 1]} : vector<1x6x6xf32> to vector<1x4x4xf32>
    %210 = vector.shape_cast %209 : vector<1x4x4xf32> to vector<1x4x4x1xf32>
    %211 = vector.extract_strided_slice %199 {offsets = [0, 0, 1, 0], sizes = [1, 1, 1, 32], strides = [1, 1, 1, 1]} : vector<3x3x2x32xf32> to vector<1x1x1x32xf32>
    %212 = vector.shape_cast %211 : vector<1x1x1x32xf32> to vector<32xf32>
    %213 = vector.shape_cast %212 : vector<32xf32> to vector<1x1x1x32xf32>
    %214 = vector.broadcast %210 : vector<1x4x4x1xf32> to vector<1x4x4x32xf32>
    %215 = vector.broadcast %213 : vector<1x1x1x32xf32> to vector<1x4x4x32xf32>
    %216 = arith.mulf %214, %215 : vector<1x4x4x32xf32>
    %217 = arith.addf %208, %216 : vector<1x4x4x32xf32>
    %218 = vector.extract_strided_slice %198 {offsets = [0, 0, 1, 0], sizes = [1, 4, 4, 1], strides = [1, 1, 1, 1]} : vector<1x6x6x1xf32> to vector<1x4x4x1xf32>
    %219 = vector.extract_strided_slice %199 {offsets = [0, 1, 0, 0], sizes = [1, 1, 1, 32], strides = [1, 1, 1, 1]} : vector<3x3x2x32xf32> to vector<1x1x1x32xf32>
    %220 = vector.shape_cast %219 : vector<1x1x1x32xf32> to vector<32xf32>
    %221 = vector.shape_cast %220 : vector<32xf32> to vector<1x1x1x32xf32>
    %222 = vector.broadcast %218 : vector<1x4x4x1xf32> to vector<1x4x4x32xf32>
    %223 = vector.broadcast %221 : vector<1x1x1x32xf32> to vector<1x4x4x32xf32>
    %224 = arith.mulf %222, %223 : vector<1x4x4x32xf32>
    %225 = arith.addf %217, %224 : vector<1x4x4x32xf32>
    %226 = vector.extract_strided_slice %194 {offsets = [0, 0, 1], sizes = [1, 4, 4], strides = [1, 1, 1]} : vector<1x6x6xf32> to vector<1x4x4xf32>
    %227 = vector.shape_cast %226 : vector<1x4x4xf32> to vector<1x4x4x1xf32>
    %228 = vector.extract_strided_slice %199 {offsets = [0, 1, 1, 0], sizes = [1, 1, 1, 32], strides = [1, 1, 1, 1]} : vector<3x3x2x32xf32> to vector<1x1x1x32xf32>
    %229 = vector.shape_cast %228 : vector<1x1x1x32xf32> to vector<32xf32>
    %230 = vector.shape_cast %229 : vector<32xf32> to vector<1x1x1x32xf32>
    %231 = vector.broadcast %227 : vector<1x4x4x1xf32> to vector<1x4x4x32xf32>
    %232 = vector.broadcast %230 : vector<1x1x1x32xf32> to vector<1x4x4x32xf32>
    %233 = arith.mulf %231, %232 : vector<1x4x4x32xf32>
    %234 = arith.addf %225, %233 : vector<1x4x4x32xf32>
    %235 = vector.extract_strided_slice %198 {offsets = [0, 0, 2, 0], sizes = [1, 4, 4, 1], strides = [1, 1, 1, 1]} : vector<1x6x6x1xf32> to vector<1x4x4x1xf32>
    %236 = vector.extract_strided_slice %199 {offsets = [0, 2, 0, 0], sizes = [1, 1, 1, 32], strides = [1, 1, 1, 1]} : vector<3x3x2x32xf32> to vector<1x1x1x32xf32>
    %237 = vector.shape_cast %236 : vector<1x1x1x32xf32> to vector<32xf32>
    %238 = vector.shape_cast %237 : vector<32xf32> to vector<1x1x1x32xf32>
    %239 = vector.broadcast %235 : vector<1x4x4x1xf32> to vector<1x4x4x32xf32>
    %240 = vector.broadcast %238 : vector<1x1x1x32xf32> to vector<1x4x4x32xf32>
    %241 = arith.mulf %239, %240 : vector<1x4x4x32xf32>
    %242 = arith.addf %234, %241 : vector<1x4x4x32xf32>
    %243 = vector.extract_strided_slice %194 {offsets = [0, 0, 2], sizes = [1, 4, 4], strides = [1, 1, 1]} : vector<1x6x6xf32> to vector<1x4x4xf32>
    %244 = vector.shape_cast %243 : vector<1x4x4xf32> to vector<1x4x4x1xf32>
    %245 = vector.extract_strided_slice %199 {offsets = [0, 2, 1, 0], sizes = [1, 1, 1, 32], strides = [1, 1, 1, 1]} : vector<3x3x2x32xf32> to vector<1x1x1x32xf32>
    %246 = vector.shape_cast %245 : vector<1x1x1x32xf32> to vector<32xf32>
    %247 = vector.shape_cast %246 : vector<32xf32> to vector<1x1x1x32xf32>
    %248 = vector.broadcast %244 : vector<1x4x4x1xf32> to vector<1x4x4x32xf32>
    %249 = vector.broadcast %247 : vector<1x1x1x32xf32> to vector<1x4x4x32xf32>
    %250 = arith.mulf %248, %249 : vector<1x4x4x32xf32>
    %251 = arith.addf %242, %250 : vector<1x4x4x32xf32>
    %252 = vector.extract_strided_slice %198 {offsets = [0, 1, 0, 0], sizes = [1, 4, 4, 1], strides = [1, 1, 1, 1]} : vector<1x6x6x1xf32> to vector<1x4x4x1xf32>
    %253 = vector.extract_strided_slice %199 {offsets = [1, 0, 0, 0], sizes = [1, 1, 1, 32], strides = [1, 1, 1, 1]} : vector<3x3x2x32xf32> to vector<1x1x1x32xf32>
    %254 = vector.shape_cast %253 : vector<1x1x1x32xf32> to vector<32xf32>
    %255 = vector.shape_cast %254 : vector<32xf32> to vector<1x1x1x32xf32>
    %256 = vector.broadcast %252 : vector<1x4x4x1xf32> to vector<1x4x4x32xf32>
    %257 = vector.broadcast %255 : vector<1x1x1x32xf32> to vector<1x4x4x32xf32>
    %258 = arith.mulf %256, %257 : vector<1x4x4x32xf32>
    %259 = arith.addf %251, %258 : vector<1x4x4x32xf32>
    %260 = vector.extract_strided_slice %194 {offsets = [0, 1, 0], sizes = [1, 4, 4], strides = [1, 1, 1]} : vector<1x6x6xf32> to vector<1x4x4xf32>
    %261 = vector.shape_cast %260 : vector<1x4x4xf32> to vector<1x4x4x1xf32>
    %262 = vector.extract_strided_slice %199 {offsets = [1, 0, 1, 0], sizes = [1, 1, 1, 32], strides = [1, 1, 1, 1]} : vector<3x3x2x32xf32> to vector<1x1x1x32xf32>
    %263 = vector.shape_cast %262 : vector<1x1x1x32xf32> to vector<32xf32>
    %264 = vector.shape_cast %263 : vector<32xf32> to vector<1x1x1x32xf32>
    %265 = vector.broadcast %261 : vector<1x4x4x1xf32> to vector<1x4x4x32xf32>
    %266 = vector.broadcast %264 : vector<1x1x1x32xf32> to vector<1x4x4x32xf32>
    %267 = arith.mulf %265, %266 : vector<1x4x4x32xf32>
    %268 = arith.addf %259, %267 : vector<1x4x4x32xf32>
    %269 = vector.extract_strided_slice %198 {offsets = [0, 1, 1, 0], sizes = [1, 4, 4, 1], strides = [1, 1, 1, 1]} : vector<1x6x6x1xf32> to vector<1x4x4x1xf32>
    %270 = vector.extract_strided_slice %199 {offsets = [1, 1, 0, 0], sizes = [1, 1, 1, 32], strides = [1, 1, 1, 1]} : vector<3x3x2x32xf32> to vector<1x1x1x32xf32>
    %271 = vector.shape_cast %270 : vector<1x1x1x32xf32> to vector<32xf32>
    %272 = vector.shape_cast %271 : vector<32xf32> to vector<1x1x1x32xf32>
    %273 = vector.broadcast %269 : vector<1x4x4x1xf32> to vector<1x4x4x32xf32>
    %274 = vector.broadcast %272 : vector<1x1x1x32xf32> to vector<1x4x4x32xf32>
    %275 = arith.mulf %273, %274 : vector<1x4x4x32xf32>
    %276 = arith.addf %268, %275 : vector<1x4x4x32xf32>
    %277 = vector.extract_strided_slice %194 {offsets = [0, 1, 1], sizes = [1, 4, 4], strides = [1, 1, 1]} : vector<1x6x6xf32> to vector<1x4x4xf32>
    %278 = vector.shape_cast %277 : vector<1x4x4xf32> to vector<1x4x4x1xf32>
    %279 = vector.extract_strided_slice %199 {offsets = [1, 1, 1, 0], sizes = [1, 1, 1, 32], strides = [1, 1, 1, 1]} : vector<3x3x2x32xf32> to vector<1x1x1x32xf32>
    %280 = vector.shape_cast %279 : vector<1x1x1x32xf32> to vector<32xf32>
    %281 = vector.shape_cast %280 : vector<32xf32> to vector<1x1x1x32xf32>
    %282 = vector.broadcast %278 : vector<1x4x4x1xf32> to vector<1x4x4x32xf32>
    %283 = vector.broadcast %281 : vector<1x1x1x32xf32> to vector<1x4x4x32xf32>
    %284 = arith.mulf %282, %283 : vector<1x4x4x32xf32>
    %285 = arith.addf %276, %284 : vector<1x4x4x32xf32>
    %286 = vector.extract_strided_slice %198 {offsets = [0, 1, 2, 0], sizes = [1, 4, 4, 1], strides = [1, 1, 1, 1]} : vector<1x6x6x1xf32> to vector<1x4x4x1xf32>
    %287 = vector.extract_strided_slice %199 {offsets = [1, 2, 0, 0], sizes = [1, 1, 1, 32], strides = [1, 1, 1, 1]} : vector<3x3x2x32xf32> to vector<1x1x1x32xf32>
    %288 = vector.shape_cast %287 : vector<1x1x1x32xf32> to vector<32xf32>
    %289 = vector.shape_cast %288 : vector<32xf32> to vector<1x1x1x32xf32>
    %290 = vector.broadcast %286 : vector<1x4x4x1xf32> to vector<1x4x4x32xf32>
    %291 = vector.broadcast %289 : vector<1x1x1x32xf32> to vector<1x4x4x32xf32>
    %292 = arith.mulf %290, %291 : vector<1x4x4x32xf32>
    %293 = arith.addf %285, %292 : vector<1x4x4x32xf32>
    %294 = vector.extract_strided_slice %194 {offsets = [0, 1, 2], sizes = [1, 4, 4], strides = [1, 1, 1]} : vector<1x6x6xf32> to vector<1x4x4xf32>
    %295 = vector.shape_cast %294 : vector<1x4x4xf32> to vector<1x4x4x1xf32>
    %296 = vector.extract_strided_slice %199 {offsets = [1, 2, 1, 0], sizes = [1, 1, 1, 32], strides = [1, 1, 1, 1]} : vector<3x3x2x32xf32> to vector<1x1x1x32xf32>
    %297 = vector.shape_cast %296 : vector<1x1x1x32xf32> to vector<32xf32>
    %298 = vector.shape_cast %297 : vector<32xf32> to vector<1x1x1x32xf32>
    %299 = vector.broadcast %295 : vector<1x4x4x1xf32> to vector<1x4x4x32xf32>
    %300 = vector.broadcast %298 : vector<1x1x1x32xf32> to vector<1x4x4x32xf32>
    %301 = arith.mulf %299, %300 : vector<1x4x4x32xf32>
    %302 = arith.addf %293, %301 : vector<1x4x4x32xf32>
    %303 = vector.extract_strided_slice %198 {offsets = [0, 2, 0, 0], sizes = [1, 4, 4, 1], strides = [1, 1, 1, 1]} : vector<1x6x6x1xf32> to vector<1x4x4x1xf32>
    %304 = vector.extract_strided_slice %199 {offsets = [2, 0, 0, 0], sizes = [1, 1, 1, 32], strides = [1, 1, 1, 1]} : vector<3x3x2x32xf32> to vector<1x1x1x32xf32>
    %305 = vector.shape_cast %304 : vector<1x1x1x32xf32> to vector<32xf32>
    %306 = vector.shape_cast %305 : vector<32xf32> to vector<1x1x1x32xf32>
    %307 = vector.broadcast %303 : vector<1x4x4x1xf32> to vector<1x4x4x32xf32>
    %308 = vector.broadcast %306 : vector<1x1x1x32xf32> to vector<1x4x4x32xf32>
    %309 = arith.mulf %307, %308 : vector<1x4x4x32xf32>
    %310 = arith.addf %302, %309 : vector<1x4x4x32xf32>
    %311 = vector.extract_strided_slice %194 {offsets = [0, 2, 0], sizes = [1, 4, 4], strides = [1, 1, 1]} : vector<1x6x6xf32> to vector<1x4x4xf32>
    %312 = vector.shape_cast %311 : vector<1x4x4xf32> to vector<1x4x4x1xf32>
    %313 = vector.extract_strided_slice %199 {offsets = [2, 0, 1, 0], sizes = [1, 1, 1, 32], strides = [1, 1, 1, 1]} : vector<3x3x2x32xf32> to vector<1x1x1x32xf32>
    %314 = vector.shape_cast %313 : vector<1x1x1x32xf32> to vector<32xf32>
    %315 = vector.shape_cast %314 : vector<32xf32> to vector<1x1x1x32xf32>
    %316 = vector.broadcast %312 : vector<1x4x4x1xf32> to vector<1x4x4x32xf32>
    %317 = vector.broadcast %315 : vector<1x1x1x32xf32> to vector<1x4x4x32xf32>
    %318 = arith.mulf %316, %317 : vector<1x4x4x32xf32>
    %319 = arith.addf %310, %318 : vector<1x4x4x32xf32>
    %320 = vector.extract_strided_slice %198 {offsets = [0, 2, 1, 0], sizes = [1, 4, 4, 1], strides = [1, 1, 1, 1]} : vector<1x6x6x1xf32> to vector<1x4x4x1xf32>
    %321 = vector.extract_strided_slice %199 {offsets = [2, 1, 0, 0], sizes = [1, 1, 1, 32], strides = [1, 1, 1, 1]} : vector<3x3x2x32xf32> to vector<1x1x1x32xf32>
    %322 = vector.shape_cast %321 : vector<1x1x1x32xf32> to vector<32xf32>
    %323 = vector.shape_cast %322 : vector<32xf32> to vector<1x1x1x32xf32>
    %324 = vector.broadcast %320 : vector<1x4x4x1xf32> to vector<1x4x4x32xf32>
    %325 = vector.broadcast %323 : vector<1x1x1x32xf32> to vector<1x4x4x32xf32>
    %326 = arith.mulf %324, %325 : vector<1x4x4x32xf32>
    %327 = arith.addf %319, %326 : vector<1x4x4x32xf32>
    %328 = vector.extract_strided_slice %194 {offsets = [0, 2, 1], sizes = [1, 4, 4], strides = [1, 1, 1]} : vector<1x6x6xf32> to vector<1x4x4xf32>
    %329 = vector.shape_cast %328 : vector<1x4x4xf32> to vector<1x4x4x1xf32>
    %330 = vector.extract_strided_slice %199 {offsets = [2, 1, 1, 0], sizes = [1, 1, 1, 32], strides = [1, 1, 1, 1]} : vector<3x3x2x32xf32> to vector<1x1x1x32xf32>
    %331 = vector.shape_cast %330 : vector<1x1x1x32xf32> to vector<32xf32>
    %332 = vector.shape_cast %331 : vector<32xf32> to vector<1x1x1x32xf32>
    %333 = vector.broadcast %329 : vector<1x4x4x1xf32> to vector<1x4x4x32xf32>
    %334 = vector.broadcast %332 : vector<1x1x1x32xf32> to vector<1x4x4x32xf32>
    %335 = arith.mulf %333, %334 : vector<1x4x4x32xf32>
    %336 = arith.addf %327, %335 : vector<1x4x4x32xf32>
    %337 = vector.extract_strided_slice %198 {offsets = [0, 2, 2, 0], sizes = [1, 4, 4, 1], strides = [1, 1, 1, 1]} : vector<1x6x6x1xf32> to vector<1x4x4x1xf32>
    %338 = vector.extract_strided_slice %199 {offsets = [2, 2, 0, 0], sizes = [1, 1, 1, 32], strides = [1, 1, 1, 1]} : vector<3x3x2x32xf32> to vector<1x1x1x32xf32>
    %339 = vector.shape_cast %338 : vector<1x1x1x32xf32> to vector<32xf32>
    %340 = vector.shape_cast %339 : vector<32xf32> to vector<1x1x1x32xf32>
    %341 = vector.broadcast %337 : vector<1x4x4x1xf32> to vector<1x4x4x32xf32>
    %342 = vector.broadcast %340 : vector<1x1x1x32xf32> to vector<1x4x4x32xf32>
    %343 = arith.mulf %341, %342 : vector<1x4x4x32xf32>
    %344 = arith.addf %336, %343 : vector<1x4x4x32xf32>
    %345 = vector.extract_strided_slice %194 {offsets = [0, 2, 2], sizes = [1, 4, 4], strides = [1, 1, 1]} : vector<1x6x6xf32> to vector<1x4x4xf32>
    %346 = vector.shape_cast %345 : vector<1x4x4xf32> to vector<1x4x4x1xf32>
    %347 = vector.extract_strided_slice %199 {offsets = [2, 2, 1, 0], sizes = [1, 1, 1, 32], strides = [1, 1, 1, 1]} : vector<3x3x2x32xf32> to vector<1x1x1x32xf32>
    %348 = vector.shape_cast %347 : vector<1x1x1x32xf32> to vector<32xf32>
    %349 = vector.shape_cast %348 : vector<32xf32> to vector<1x1x1x32xf32>
    %350 = vector.broadcast %346 : vector<1x4x4x1xf32> to vector<1x4x4x32xf32>
    %351 = vector.broadcast %349 : vector<1x1x1x32xf32> to vector<1x4x4x32xf32>
    %352 = arith.mulf %350, %351 : vector<1x4x4x32xf32>
    %353 = arith.addf %344, %352 : vector<1x4x4x32xf32>
    %c0_34 = arith.constant 0 : index
    %c0_35 = arith.constant 0 : index
    %354 = vector.load %arg8[%c0_34, %c0_35] : memref<1x32xf32, #tpu.memory_space<vmem>>, vector<1x32xf32>
    %355 = vector.shape_cast %354 : vector<1x32xf32> to vector<1x1x1x32xf32>
    %356 = vector.broadcast %355 : vector<1x1x1x32xf32> to vector<1x4x4x32xf32>
    %357 = arith.addf %353, %356 : vector<1x4x4x32xf32>
    %cst_36 = arith.constant 0.000000e+00 : f32
    %358 = vector.broadcast %cst_36 : f32 to vector<1x4x4x32xf32>
    %359 = arith.cmpf oge, %357, %358 : vector<1x4x4x32xf32>
    %cst_37 = arith.constant 2.000000e-01 : f32
    %360 = vector.broadcast %cst_37 : f32 to vector<1x4x4x32xf32>
    %361 = arith.mulf %360, %357 : vector<1x4x4x32xf32>
    %362 = arith.select %359, %357, %361 : vector<1x4x4x32xi1>, vector<1x4x4x32xf32>
    %363 = vector.shape_cast %362 : vector<1x4x4x32xf32> to vector<1x4x1x4x32xf32>
    %364 = vector.shape_cast %363 : vector<1x4x1x4x32xf32> to vector<1x4x1x4x32xf32>
    %365 = vector.broadcast %364 : vector<1x4x1x4x32xf32> to vector<1x4x4x4x32xf32>
    %366 = vector.shape_cast %365 : vector<1x4x4x4x32xf32> to vector<1x16x4x32xf32>
    %367 = vector.extract_strided_slice %366 {offsets = [0, 0, 0, 0], sizes = [1, 16, 1, 32], strides = [1, 1, 1, 1]} : vector<1x16x4x32xf32> to vector<1x16x1x32xf32>
    %368 = vector.shape_cast %367 : vector<1x16x1x32xf32> to vector<1x16x1x32xf32>
    %369 = vector.broadcast %368 : vector<1x16x1x32xf32> to vector<1x16x4x32xf32>
    %370 = vector.extract_strided_slice %366 {offsets = [0, 0, 1, 0], sizes = [1, 16, 1, 32], strides = [1, 1, 1, 1]} : vector<1x16x4x32xf32> to vector<1x16x1x32xf32>
    %371 = vector.shape_cast %370 : vector<1x16x1x32xf32> to vector<1x16x1x32xf32>
    %372 = vector.broadcast %371 : vector<1x16x1x32xf32> to vector<1x16x4x32xf32>
    %373 = vector.extract_strided_slice %366 {offsets = [0, 0, 2, 0], sizes = [1, 16, 1, 32], strides = [1, 1, 1, 1]} : vector<1x16x4x32xf32> to vector<1x16x1x32xf32>
    %374 = vector.shape_cast %373 : vector<1x16x1x32xf32> to vector<1x16x1x32xf32>
    %375 = vector.broadcast %374 : vector<1x16x1x32xf32> to vector<1x16x4x32xf32>
    %376 = vector.extract_strided_slice %366 {offsets = [0, 0, 3, 0], sizes = [1, 16, 1, 32], strides = [1, 1, 1, 1]} : vector<1x16x4x32xf32> to vector<1x16x1x32xf32>
    %377 = vector.shape_cast %376 : vector<1x16x1x32xf32> to vector<1x16x1x32xf32>
    %378 = vector.broadcast %377 : vector<1x16x1x32xf32> to vector<1x16x4x32xf32>
    %379 = tpu.concatenate %369, %372, %375, %378 in 2 : vector<1x16x4x32xf32>, vector<1x16x4x32xf32>, vector<1x16x4x32xf32>, vector<1x16x4x32xf32> -> vector<1x16x16x32xf32>
    %cst_38 = arith.constant 0.000000e+00 : f32
    %380 = vector.broadcast %cst_38 : f32 to vector<1x1x16x32xf32>
    %381 = tpu.concatenate %380, %379, %380 in 1 : vector<1x1x16x32xf32>, vector<1x16x16x32xf32>, vector<1x1x16x32xf32> -> vector<1x18x16x32xf32>
    %cst_39 = arith.constant 0.000000e+00 : f32
    %382 = vector.broadcast %cst_39 : f32 to vector<1x18x1x32xf32>
    %383 = tpu.concatenate %382, %381, %382 in 2 : vector<1x18x1x32xf32>, vector<1x18x16x32xf32>, vector<1x18x1x32xf32> -> vector<1x18x18x32xf32>
    %384 = vector.extract_strided_slice %383 {offsets = [0, 0, 0, 0], sizes = [1, 16, 16, 32], strides = [1, 1, 1, 1]} : vector<1x18x18x32xf32> to vector<1x16x16x32xf32>
    %385 = vector.extract_strided_slice %383 {offsets = [0, 0, 1, 0], sizes = [1, 16, 16, 32], strides = [1, 1, 1, 1]} : vector<1x18x18x32xf32> to vector<1x16x16x32xf32>
    %386 = vector.extract_strided_slice %383 {offsets = [0, 0, 2, 0], sizes = [1, 16, 16, 32], strides = [1, 1, 1, 1]} : vector<1x18x18x32xf32> to vector<1x16x16x32xf32>
    %387 = vector.extract_strided_slice %383 {offsets = [0, 1, 0, 0], sizes = [1, 16, 16, 32], strides = [1, 1, 1, 1]} : vector<1x18x18x32xf32> to vector<1x16x16x32xf32>
    %388 = vector.extract_strided_slice %383 {offsets = [0, 1, 1, 0], sizes = [1, 16, 16, 32], strides = [1, 1, 1, 1]} : vector<1x18x18x32xf32> to vector<1x16x16x32xf32>
    %389 = vector.extract_strided_slice %383 {offsets = [0, 1, 2, 0], sizes = [1, 16, 16, 32], strides = [1, 1, 1, 1]} : vector<1x18x18x32xf32> to vector<1x16x16x32xf32>
    %390 = vector.extract_strided_slice %383 {offsets = [0, 2, 0, 0], sizes = [1, 16, 16, 32], strides = [1, 1, 1, 1]} : vector<1x18x18x32xf32> to vector<1x16x16x32xf32>
    %391 = vector.extract_strided_slice %383 {offsets = [0, 2, 1, 0], sizes = [1, 16, 16, 32], strides = [1, 1, 1, 1]} : vector<1x18x18x32xf32> to vector<1x16x16x32xf32>
    %392 = vector.extract_strided_slice %383 {offsets = [0, 2, 2, 0], sizes = [1, 16, 16, 32], strides = [1, 1, 1, 1]} : vector<1x18x18x32xf32> to vector<1x16x16x32xf32>
    %393 = tpu.concatenate %384, %385, %386, %387, %388, %389, %390, %391, %392 in 3 : vector<1x16x16x32xf32>, vector<1x16x16x32xf32>, vector<1x16x16x32xf32>, vector<1x16x16x32xf32>, vector<1x16x16x32xf32>, vector<1x16x16x32xf32>, vector<1x16x16x32xf32>, vector<1x16x16x32xf32>, vector<1x16x16x32xf32> -> vector<1x16x16x288xf32>
    %394 = vector.shape_cast %393 : vector<1x16x16x288xf32> to vector<256x288xf32>
    %395 = arith.truncf %394 : vector<256x288xf32> to vector<256x288xbf16>
    %c0_40 = arith.constant 0 : index
    %c0_41 = arith.constant 0 : index
    %396 = vector.load %arg9[%c0_40, %c0_41] : memref<288x64xbf16, #tpu.memory_space<vmem>>, vector<288x64xbf16>
    %cst_42 = arith.constant dense<0.000000e+00> : vector<256x64xf32>
    %397 = tpu.matmul %395, %396, %cst_42 {dimension_numbers = #tpu.dot_dimension_numbers<[1], [0], [0], [1], [0, 0, 1, 1], [], []>} : vector<256x288xbf16>, vector<288x64xbf16>, vector<256x64xf32> -> vector<256x64xf32>
    %c0_43 = arith.constant 0 : index
    %c0_44 = arith.constant 0 : index
    %398 = vector.load %arg10[%c0_43, %c0_44] : memref<1x64xf32, #tpu.memory_space<vmem>>, vector<1x64xf32>
    %399 = vector.broadcast %398 : vector<1x64xf32> to vector<256x64xf32>
    %400 = arith.addf %397, %399 : vector<256x64xf32>
    %cst_45 = arith.constant 0.000000e+00 : f32
    %401 = vector.broadcast %cst_45 : f32 to vector<256x64xf32>
    %402 = arith.cmpf oge, %400, %401 : vector<256x64xf32>
    %cst_46 = arith.constant 2.000000e-01 : f32
    %403 = vector.broadcast %cst_46 : f32 to vector<256x64xf32>
    %404 = arith.mulf %403, %400 : vector<256x64xf32>
    %405 = arith.select %402, %400, %404 : vector<256x64xi1>, vector<256x64xf32>
    %406 = vector.shape_cast %405 : vector<256x64xf32> to vector<1x16x16x64xf32>
    %cst_47 = arith.constant 0.000000e+00 : f32
    %407 = vector.broadcast %cst_47 : f32 to vector<1x1x16x64xf32>
    %408 = tpu.concatenate %407, %406, %407 in 1 : vector<1x1x16x64xf32>, vector<1x16x16x64xf32>, vector<1x1x16x64xf32> -> vector<1x18x16x64xf32>
    %cst_48 = arith.constant 0.000000e+00 : f32
    %409 = vector.broadcast %cst_48 : f32 to vector<1x18x1x64xf32>
    %410 = tpu.concatenate %409, %408, %409 in 2 : vector<1x18x1x64xf32>, vector<1x18x16x64xf32>, vector<1x18x1x64xf32> -> vector<1x18x18x64xf32>
    %411 = vector.extract_strided_slice %410 {offsets = [0, 0, 0, 0], sizes = [1, 16, 16, 64], strides = [1, 1, 1, 1]} : vector<1x18x18x64xf32> to vector<1x16x16x64xf32>
    %412 = vector.extract_strided_slice %410 {offsets = [0, 0, 1, 0], sizes = [1, 16, 16, 64], strides = [1, 1, 1, 1]} : vector<1x18x18x64xf32> to vector<1x16x16x64xf32>
    %413 = vector.extract_strided_slice %410 {offsets = [0, 0, 2, 0], sizes = [1, 16, 16, 64], strides = [1, 1, 1, 1]} : vector<1x18x18x64xf32> to vector<1x16x16x64xf32>
    %414 = vector.extract_strided_slice %410 {offsets = [0, 1, 0, 0], sizes = [1, 16, 16, 64], strides = [1, 1, 1, 1]} : vector<1x18x18x64xf32> to vector<1x16x16x64xf32>
    %415 = vector.extract_strided_slice %410 {offsets = [0, 1, 1, 0], sizes = [1, 16, 16, 64], strides = [1, 1, 1, 1]} : vector<1x18x18x64xf32> to vector<1x16x16x64xf32>
    %416 = vector.extract_strided_slice %410 {offsets = [0, 1, 2, 0], sizes = [1, 16, 16, 64], strides = [1, 1, 1, 1]} : vector<1x18x18x64xf32> to vector<1x16x16x64xf32>
    %417 = vector.extract_strided_slice %410 {offsets = [0, 2, 0, 0], sizes = [1, 16, 16, 64], strides = [1, 1, 1, 1]} : vector<1x18x18x64xf32> to vector<1x16x16x64xf32>
    %418 = vector.extract_strided_slice %410 {offsets = [0, 2, 1, 0], sizes = [1, 16, 16, 64], strides = [1, 1, 1, 1]} : vector<1x18x18x64xf32> to vector<1x16x16x64xf32>
    %419 = vector.extract_strided_slice %410 {offsets = [0, 2, 2, 0], sizes = [1, 16, 16, 64], strides = [1, 1, 1, 1]} : vector<1x18x18x64xf32> to vector<1x16x16x64xf32>
    %420 = tpu.concatenate %411, %412, %413, %414, %415, %416, %417, %418, %419 in 3 : vector<1x16x16x64xf32>, vector<1x16x16x64xf32>, vector<1x16x16x64xf32>, vector<1x16x16x64xf32>, vector<1x16x16x64xf32>, vector<1x16x16x64xf32>, vector<1x16x16x64xf32>, vector<1x16x16x64xf32>, vector<1x16x16x64xf32> -> vector<1x16x16x576xf32>
    %421 = vector.shape_cast %420 : vector<1x16x16x576xf32> to vector<256x576xf32>
    %422 = arith.truncf %421 : vector<256x576xf32> to vector<256x576xbf16>
    %c0_49 = arith.constant 0 : index
    %c0_50 = arith.constant 0 : index
    %423 = vector.load %arg11[%c0_49, %c0_50] : memref<576x128xbf16, #tpu.memory_space<vmem>>, vector<576x128xbf16>
    %cst_51 = arith.constant dense<0.000000e+00> : vector<256x128xf32>
    %424 = tpu.matmul %422, %423, %cst_51 {dimension_numbers = #tpu.dot_dimension_numbers<[1], [0], [0], [1], [0, 0, 1, 1], [], []>} : vector<256x576xbf16>, vector<576x128xbf16>, vector<256x128xf32> -> vector<256x128xf32>
    %c0_52 = arith.constant 0 : index
    %c0_53 = arith.constant 0 : index
    %425 = vector.load %arg12[%c0_52, %c0_53] : memref<1x128xf32, #tpu.memory_space<vmem>>, vector<1x128xf32>
    %426 = vector.broadcast %425 : vector<1x128xf32> to vector<256x128xf32>
    %427 = arith.addf %424, %426 : vector<256x128xf32>
    %cst_54 = arith.constant 0.000000e+00 : f32
    %428 = vector.broadcast %cst_54 : f32 to vector<256x128xf32>
    %429 = arith.cmpf oge, %427, %428 : vector<256x128xf32>
    %cst_55 = arith.constant 2.000000e-01 : f32
    %430 = vector.broadcast %cst_55 : f32 to vector<256x128xf32>
    %431 = arith.mulf %430, %427 : vector<256x128xf32>
    %432 = arith.select %429, %427, %431 : vector<256x128xi1>, vector<256x128xf32>
    %433 = vector.shape_cast %432 : vector<256x128xf32> to vector<1x16x16x128xf32>
    %cst_56 = arith.constant 0.000000e+00 : f32
    %434 = vector.broadcast %cst_56 : f32 to vector<1x1x16x128xf32>
    %435 = tpu.concatenate %434, %433, %434 in 1 : vector<1x1x16x128xf32>, vector<1x16x16x128xf32>, vector<1x1x16x128xf32> -> vector<1x18x16x128xf32>
    %cst_57 = arith.constant 0.000000e+00 : f32
    %436 = vector.broadcast %cst_57 : f32 to vector<1x18x1x128xf32>
    %437 = tpu.concatenate %436, %435, %436 in 2 : vector<1x18x1x128xf32>, vector<1x18x16x128xf32>, vector<1x18x1x128xf32> -> vector<1x18x18x128xf32>
    %c0_58 = arith.constant 0 : index
    %c0_59 = arith.constant 0 : index
    %c0_60 = arith.constant 0 : index
    %438 = vector.load %arg13[%c0_58, %c0_59, %c0_60] : memref<3x3x128xf32, #tpu.memory_space<vmem>>, vector<3x3x128xf32>
    %cst_61 = arith.constant 0.000000e+00 : f32
    %439 = vector.broadcast %cst_61 : f32 to vector<1x16x16x128xf32>
    %440 = vector.extract_strided_slice %437 {offsets = [0, 0, 0, 0], sizes = [1, 16, 16, 128], strides = [1, 1, 1, 1]} : vector<1x18x18x128xf32> to vector<1x16x16x128xf32>
    %441 = vector.extract_strided_slice %438 {offsets = [0, 0, 0], sizes = [1, 1, 128], strides = [1, 1, 1]} : vector<3x3x128xf32> to vector<1x1x128xf32>
    %442 = vector.shape_cast %441 : vector<1x1x128xf32> to vector<128xf32>
    %443 = vector.shape_cast %442 : vector<128xf32> to vector<1x1x1x128xf32>
    %444 = vector.broadcast %443 : vector<1x1x1x128xf32> to vector<1x16x16x128xf32>
    %445 = arith.mulf %440, %444 : vector<1x16x16x128xf32>
    %446 = arith.addf %439, %445 : vector<1x16x16x128xf32>
    %447 = vector.extract_strided_slice %437 {offsets = [0, 0, 1, 0], sizes = [1, 16, 16, 128], strides = [1, 1, 1, 1]} : vector<1x18x18x128xf32> to vector<1x16x16x128xf32>
    %448 = vector.extract_strided_slice %438 {offsets = [0, 1, 0], sizes = [1, 1, 128], strides = [1, 1, 1]} : vector<3x3x128xf32> to vector<1x1x128xf32>
    %449 = vector.shape_cast %448 : vector<1x1x128xf32> to vector<128xf32>
    %450 = vector.shape_cast %449 : vector<128xf32> to vector<1x1x1x128xf32>
    %451 = vector.broadcast %450 : vector<1x1x1x128xf32> to vector<1x16x16x128xf32>
    %452 = arith.mulf %447, %451 : vector<1x16x16x128xf32>
    %453 = arith.addf %446, %452 : vector<1x16x16x128xf32>
    %454 = vector.extract_strided_slice %437 {offsets = [0, 0, 2, 0], sizes = [1, 16, 16, 128], strides = [1, 1, 1, 1]} : vector<1x18x18x128xf32> to vector<1x16x16x128xf32>
    %455 = vector.extract_strided_slice %438 {offsets = [0, 2, 0], sizes = [1, 1, 128], strides = [1, 1, 1]} : vector<3x3x128xf32> to vector<1x1x128xf32>
    %456 = vector.shape_cast %455 : vector<1x1x128xf32> to vector<128xf32>
    %457 = vector.shape_cast %456 : vector<128xf32> to vector<1x1x1x128xf32>
    %458 = vector.broadcast %457 : vector<1x1x1x128xf32> to vector<1x16x16x128xf32>
    %459 = arith.mulf %454, %458 : vector<1x16x16x128xf32>
    %460 = arith.addf %453, %459 : vector<1x16x16x128xf32>
    %461 = vector.extract_strided_slice %437 {offsets = [0, 1, 0, 0], sizes = [1, 16, 16, 128], strides = [1, 1, 1, 1]} : vector<1x18x18x128xf32> to vector<1x16x16x128xf32>
    %462 = vector.extract_strided_slice %438 {offsets = [1, 0, 0], sizes = [1, 1, 128], strides = [1, 1, 1]} : vector<3x3x128xf32> to vector<1x1x128xf32>
    %463 = vector.shape_cast %462 : vector<1x1x128xf32> to vector<128xf32>
    %464 = vector.shape_cast %463 : vector<128xf32> to vector<1x1x1x128xf32>
    %465 = vector.broadcast %464 : vector<1x1x1x128xf32> to vector<1x16x16x128xf32>
    %466 = arith.mulf %461, %465 : vector<1x16x16x128xf32>
    %467 = arith.addf %460, %466 : vector<1x16x16x128xf32>
    %468 = vector.extract_strided_slice %437 {offsets = [0, 1, 1, 0], sizes = [1, 16, 16, 128], strides = [1, 1, 1, 1]} : vector<1x18x18x128xf32> to vector<1x16x16x128xf32>
    %469 = vector.extract_strided_slice %438 {offsets = [1, 1, 0], sizes = [1, 1, 128], strides = [1, 1, 1]} : vector<3x3x128xf32> to vector<1x1x128xf32>
    %470 = vector.shape_cast %469 : vector<1x1x128xf32> to vector<128xf32>
    %471 = vector.shape_cast %470 : vector<128xf32> to vector<1x1x1x128xf32>
    %472 = vector.broadcast %471 : vector<1x1x1x128xf32> to vector<1x16x16x128xf32>
    %473 = arith.mulf %468, %472 : vector<1x16x16x128xf32>
    %474 = arith.addf %467, %473 : vector<1x16x16x128xf32>
    %475 = vector.extract_strided_slice %437 {offsets = [0, 1, 2, 0], sizes = [1, 16, 16, 128], strides = [1, 1, 1, 1]} : vector<1x18x18x128xf32> to vector<1x16x16x128xf32>
    %476 = vector.extract_strided_slice %438 {offsets = [1, 2, 0], sizes = [1, 1, 128], strides = [1, 1, 1]} : vector<3x3x128xf32> to vector<1x1x128xf32>
    %477 = vector.shape_cast %476 : vector<1x1x128xf32> to vector<128xf32>
    %478 = vector.shape_cast %477 : vector<128xf32> to vector<1x1x1x128xf32>
    %479 = vector.broadcast %478 : vector<1x1x1x128xf32> to vector<1x16x16x128xf32>
    %480 = arith.mulf %475, %479 : vector<1x16x16x128xf32>
    %481 = arith.addf %474, %480 : vector<1x16x16x128xf32>
    %482 = vector.extract_strided_slice %437 {offsets = [0, 2, 0, 0], sizes = [1, 16, 16, 128], strides = [1, 1, 1, 1]} : vector<1x18x18x128xf32> to vector<1x16x16x128xf32>
    %483 = vector.extract_strided_slice %438 {offsets = [2, 0, 0], sizes = [1, 1, 128], strides = [1, 1, 1]} : vector<3x3x128xf32> to vector<1x1x128xf32>
    %484 = vector.shape_cast %483 : vector<1x1x128xf32> to vector<128xf32>
    %485 = vector.shape_cast %484 : vector<128xf32> to vector<1x1x1x128xf32>
    %486 = vector.broadcast %485 : vector<1x1x1x128xf32> to vector<1x16x16x128xf32>
    %487 = arith.mulf %482, %486 : vector<1x16x16x128xf32>
    %488 = arith.addf %481, %487 : vector<1x16x16x128xf32>
    %489 = vector.extract_strided_slice %437 {offsets = [0, 2, 1, 0], sizes = [1, 16, 16, 128], strides = [1, 1, 1, 1]} : vector<1x18x18x128xf32> to vector<1x16x16x128xf32>
    %490 = vector.extract_strided_slice %438 {offsets = [2, 1, 0], sizes = [1, 1, 128], strides = [1, 1, 1]} : vector<3x3x128xf32> to vector<1x1x128xf32>
    %491 = vector.shape_cast %490 : vector<1x1x128xf32> to vector<128xf32>
    %492 = vector.shape_cast %491 : vector<128xf32> to vector<1x1x1x128xf32>
    %493 = vector.broadcast %492 : vector<1x1x1x128xf32> to vector<1x16x16x128xf32>
    %494 = arith.mulf %489, %493 : vector<1x16x16x128xf32>
    %495 = arith.addf %488, %494 : vector<1x16x16x128xf32>
    %496 = vector.extract_strided_slice %437 {offsets = [0, 2, 2, 0], sizes = [1, 16, 16, 128], strides = [1, 1, 1, 1]} : vector<1x18x18x128xf32> to vector<1x16x16x128xf32>
    %497 = vector.extract_strided_slice %438 {offsets = [2, 2, 0], sizes = [1, 1, 128], strides = [1, 1, 1]} : vector<3x3x128xf32> to vector<1x1x128xf32>
    %498 = vector.shape_cast %497 : vector<1x1x128xf32> to vector<128xf32>
    %499 = vector.shape_cast %498 : vector<128xf32> to vector<1x1x1x128xf32>
    %500 = vector.broadcast %499 : vector<1x1x1x128xf32> to vector<1x16x16x128xf32>
    %501 = arith.mulf %496, %500 : vector<1x16x16x128xf32>
    %502 = arith.addf %495, %501 : vector<1x16x16x128xf32>
    %cst_62 = arith.constant dense<0.000000e+00> : vector<1x16x16xf32>
    %503 = vector.multi_reduction <add>, %502, %cst_62 [3] : vector<1x16x16x128xf32> to vector<1x16x16xf32>
    %c0_63 = arith.constant 0 : index
    %c0_64 = arith.constant 0 : index
    %504 = memref.load %arg14[%c0_63, %c0_64] : memref<1x1xf32, #tpu.memory_space<smem>>
    %505 = vector.broadcast %504 : f32 to vector<1x16x16xf32>
    %506 = arith.addf %503, %505 : vector<1x16x16xf32>
    %c0_65 = arith.constant 0 : index
    %c0_66 = arith.constant 0 : index
    %c0_67 = arith.constant 0 : index
    %c0_68 = arith.constant 0 : index
    %507 = vector.load %arg15[%c0_65, %c0_66, %c0_67, %c0_68] : memref<1x1x16x16xf32, #tpu.memory_space<vmem>>, vector<1x1x16x16xf32>
    %508 = vector.shape_cast %507 : vector<1x1x16x16xf32> to vector<1x16x16xf32>
    %509 = vector.shape_cast %506 : vector<1x16x16xf32> to vector<1x1x16x16xf32>
    tpu.vector_store %arg15[%c0_65, %c0_66, %c0_67, %c0_68], %509 {strides = array<i32>} : memref<1x1x16x16xf32, #tpu.memory_space<vmem>>, vector<1x1x16x16xf32>,
    return
  }
  func.func @transform_0(%arg0: i32) -> (i32, i32, i32, i32) {
    %c0_i32 = arith.constant 0 : i32
    %c0_i32_0 = arith.constant 0 : i32
    %c0_i32_1 = arith.constant 0 : i32
    %c0_i32_2 = arith.constant 0 : i32
    return %arg0, %c0_i32, %c0_i32_0, %c0_i32_1 : i32, i32, i32, i32
  }
  func.func @transform_1(%arg0: i32) -> (i32, i32, i32, i32) {
    %c0_i32 = arith.constant 0 : i32
    %c0_i32_0 = arith.constant 0 : i32
    %c0_i32_1 = arith.constant 0 : i32
    %c0_i32_2 = arith.constant 0 : i32
    return %arg0, %c0_i32, %c0_i32_0, %c0_i32_1 : i32, i32, i32, i32
  }
  func.func @transform_2(%arg0: i32) -> (i32, i32, i32) {
    %c0_i32 = arith.constant 0 : i32
    %c0_i32_0 = arith.constant 0 : i32
    %c0_i32_1 = arith.constant 0 : i32
    %c0_i32_2 = arith.constant 0 : i32
    return %c0_i32, %c0_i32_0, %c0_i32_1 : i32, i32, i32
  }
  func.func @transform_3(%arg0: i32) -> (i32, i32) {
    %c0_i32 = arith.constant 0 : i32
    %c0_i32_0 = arith.constant 0 : i32
    %c0_i32_1 = arith.constant 0 : i32
    return %c0_i32, %c0_i32_0 : i32, i32
  }
  func.func @transform_4(%arg0: i32) -> (i32, i32, i32) {
    %c0_i32 = arith.constant 0 : i32
    %c0_i32_0 = arith.constant 0 : i32
    %c0_i32_1 = arith.constant 0 : i32
    %c0_i32_2 = arith.constant 0 : i32
    return %c0_i32, %c0_i32_0, %c0_i32_1 : i32, i32, i32
  }
  func.func @transform_5(%arg0: i32) -> (i32, i32) {
    %c0_i32 = arith.constant 0 : i32
    %c0_i32_0 = arith.constant 0 : i32
    %c0_i32_1 = arith.constant 0 : i32
    return %c0_i32, %c0_i32_0 : i32, i32
  }
  func.func @transform_6(%arg0: i32) -> (i32, i32, i32, i32) {
    %c0_i32 = arith.constant 0 : i32
    %c0_i32_0 = arith.constant 0 : i32
    %c0_i32_1 = arith.constant 0 : i32
    %c0_i32_2 = arith.constant 0 : i32
    %c0_i32_3 = arith.constant 0 : i32
    return %c0_i32, %c0_i32_0, %c0_i32_1, %c0_i32_2 : i32, i32, i32, i32
  }
  func.func @transform_7(%arg0: i32) -> (i32, i32) {
    %c0_i32 = arith.constant 0 : i32
    %c0_i32_0 = arith.constant 0 : i32
    %c0_i32_1 = arith.constant 0 : i32
    return %c0_i32, %c0_i32_0 : i32, i32
  }
  func.func @transform_8(%arg0: i32) -> (i32, i32) {
    %c0_i32 = arith.constant 0 : i32
    %c0_i32_0 = arith.constant 0 : i32
    %c0_i32_1 = arith.constant 0 : i32
    return %c0_i32, %c0_i32_0 : i32, i32
  }
  func.func @transform_9(%arg0: i32) -> (i32, i32) {
    %c0_i32 = arith.constant 0 : i32
    %c0_i32_0 = arith.constant 0 : i32
    %c0_i32_1 = arith.constant 0 : i32
    return %c0_i32, %c0_i32_0 : i32, i32
  }
  func.func @transform_10(%arg0: i32) -> (i32, i32) {
    %c0_i32 = arith.constant 0 : i32
    %c0_i32_0 = arith.constant 0 : i32
    %c0_i32_1 = arith.constant 0 : i32
    return %c0_i32, %c0_i32_0 : i32, i32
  }
  func.func @transform_11(%arg0: i32) -> (i32, i32) {
    %c0_i32 = arith.constant 0 : i32
    %c0_i32_0 = arith.constant 0 : i32
    %c0_i32_1 = arith.constant 0 : i32
    return %c0_i32, %c0_i32_0 : i32, i32
  }
  func.func @transform_12(%arg0: i32) -> (i32, i32, i32) {
    %c0_i32 = arith.constant 0 : i32
    %c0_i32_0 = arith.constant 0 : i32
    %c0_i32_1 = arith.constant 0 : i32
    %c0_i32_2 = arith.constant 0 : i32
    return %c0_i32, %c0_i32_0, %c0_i32_1 : i32, i32, i32
  }
  func.func @transform_13(%arg0: i32) -> (i32, i32) {
    %c0_i32 = arith.constant 0 : i32
    %c0_i32_0 = arith.constant 0 : i32
    %c0_i32_1 = arith.constant 0 : i32
    return %c0_i32, %c0_i32_0 : i32, i32
  }
  func.func @transform_14(%arg0: i32) -> (i32, i32, i32, i32) {
    %c0_i32 = arith.constant 0 : i32
    %c0_i32_0 = arith.constant 0 : i32
    %c0_i32_1 = arith.constant 0 : i32
    %c0_i32_2 = arith.constant 0 : i32
    return %arg0, %c0_i32, %c0_i32_0, %c0_i32_1 : i32, i32, i32, i32
  }
}

</mosaic_0001>

<llo_original>
// kernel: _lambda_.1
$region0: #{_lambda_.1}
  #allocation0 [shape = 'u32[]', space=smem, size = 0x4, offset = 0x4, fixed_abs, tag = 'smem constant byte address 0x4 - core index']
  #allocation1 [shape = 'u32[144,128]{1,0:T(1,128)}', space=vmem, size = 0x12000, scoped, tag = 'internal scratch']
  #allocation2 [shape = 'f32[1,1]{1,0:T(1,128)S(6)}', space=smem, size = 0x200, scoped, tag = 'scoped memory for _lambda_.1']
  #allocation3 [shape = 'f32[1,1]{1,0:T(1,128)S(6)}', space=smem, size = 0x200, scoped, tag = 'scoped memory for _lambda_.1']
  %s0 = inlined_call_operand.vmem [shape: f32[2,1,18,18], index: 0, kind: input, shape index: {}]
  %s1 = inlined_call_operand.vmem [shape: f32[2,1,6,6], index: 1, kind: input, shape index: {}]
  %s2 = inlined_call_operand.vmem [shape: f32[3,3,16], index: 2, kind: input, shape index: {}]
  %s3 = inlined_call_operand.vmem [shape: f32[1,16], index: 3, kind: input, shape index: {}]
  %s4 = inlined_call_operand.vmem [shape: f32[3,3,16], index: 4, kind: input, shape index: {}]
  %s5 = inlined_call_operand.<no memory space> [shape: f32[1,1], index: 5, kind: input, shape index: {}]
  %s6 = inlined_call_operand.vmem [shape: f32[3,3,2,32], index: 6, kind: input, shape index: {}]
  %s7 = inlined_call_operand.vmem [shape: f32[1,32], index: 7, kind: input, shape index: {}]
  %s8 = inlined_call_operand.hbm [shape: bf16[288,64], index: 8, kind: input, shape index: {}]
  %s9 = inlined_call_operand.vmem [shape: f32[1,64], index: 9, kind: input, shape index: {}]
  %s10 = inlined_call_operand.hbm [shape: bf16[576,128], index: 10, kind: input, shape index: {}]
  %s11 = inlined_call_operand.vmem [shape: f32[1,128], index: 11, kind: input, shape index: {}]
  %s12 = inlined_call_operand.vmem [shape: f32[3,3,128], index: 12, kind: input, shape index: {}]
  %s13 = inlined_call_operand.<no memory space> [shape: f32[1,1], index: 13, kind: input, shape index: {}]
  %s14 = inlined_call_operand.hbm [shape: f32[2,1,16,16], index: 14, kind: output, shape index: {}]
  %s15 = sld [smem:[#allocation0]]
  $region97: #{_lambda_.1} parent=0
    _
  %s17 = ssub.s32 1, %s15
  %s18 = scalar_select 0, %s17, %s15
  %19 = sst [smem:[#allocation2]] %s5
  %20 = sst [smem:[#allocation3]] %s13
  $region1: #{_lambda_.1} parent=0
    #allocation4 [shape = 'u8[73728]{0}', space=vmem, size = 0x12000, scoped, tag = 'input window, operand 8, single buffered']
    #allocation5 [shape = 's32[2]{0}', space=sflag, size = 0x8, scoped, tag = 'scoped memory for _lambda_.1']
    #allocation6 [shape = 's32[2]{0}', space=sflag, size = 0x8, scoped, tag = 'scoped memory for _lambda_.1']
    #allocation7 [shape = 'u8[147456]{0}', space=vmem, size = 0x24000, scoped, tag = 'input window, operand 10, single buffered']
    #allocation8 [shape = 's32[1]{0}', space=sflag, size = 0x4, scoped, tag = 'scoped memory for _lambda_.1']
    #allocation9 [shape = 'u8[16384]{0}', space=vmem, size = 0x4000, scoped, tag = 'output window, operand 0']
    %21 = vsyncpa [#allocation5], 0
    %22 = vsyncpa [#allocation8], 0
    %23 = vsyncpa [#allocation6], 0
    %s24 = scalar_lea.sflag [#allocation6], 1
    %25 = vsyncpa %s24, 0
    loop: start=0, step=1, limit=4
    $region2: #{_lambda_.1} parent=1 // loop_pre_header
      _
    $region3: #{_lambda_.1} parent=1 // loop_header
      %s27 = sphi 0, %s31
      %p28 = scmp.ge.s32.totalorder %s27, 4
      %s37 = sphi 0, %s39
      %s40 = sphi 0, %s37
      %s41 = sphi 0, %s40
      %s57 = sphi 0, %s41
      %s63 = sphi 0, %s65
      %s66 = sphi 0, %s63
      %s67 = sphi 0, %s66
      %s83 = sphi 0, %s67
      %s87 = sphi 0, %s87
      %s89 = sphi 0, %s87
      %s90 = sphi 0, %s89
      %s104 = sphi 0, %s90
      %s108 = sphi 0, %s108
      %s110 = sphi 0, %s108
      %s111 = sphi 0, %s110
      %s125 = sphi 0, %s111
      %s129 = sphi 0, %s129
      %s131 = sphi 0, %s129
      %s132 = sphi 0, %s131
      %s146 = sphi 0, %s132
      %s150 = sphi 0, %s150
      %s152 = sphi 0, %s150
      %s153 = sphi 0, %s152
      %s167 = sphi 0, %s153
      %s171 = sphi 0, %s171
      %s173 = sphi 0, %s171
      %s174 = sphi 0, %s173
      %s188 = sphi 0, %s174
      %s192 = sphi 0, %s192
      %s194 = sphi 0, %s192
      %s195 = sphi 0, %s194
      %s209 = sphi 0, %s195
      %s213 = sphi 0, %s213
      %s215 = sphi 0, %s213
      %s216 = sphi 0, %s215
      %s230 = sphi 0, %s216
      %s234 = sphi 0, %s234
      %s236 = sphi 0, %s234
      %s237 = sphi 0, %s236
      %s251 = sphi 0, %s237
      %s255 = sphi 0, %s255
      %s257 = sphi 0, %s255
      %s258 = sphi 0, %s257
      %s272 = sphi 0, %s258
      %s276 = sphi 0, %s276
      %s278 = sphi 0, %s276
      %s279 = sphi 0, %s278
      %s293 = sphi 0, %s279
      %s297 = sphi 0, %s297
      %s299 = sphi 0, %s297
      %s300 = sphi 0, %s299
      %s314 = sphi 0, %s300
      %s318 = sphi 0, %s318
      %s320 = sphi 0, %s318
      %s321 = sphi 0, %s320
      %s335 = sphi 0, %s321
      %s341 = sphi 0, %s343
      %s344 = sphi 0, %s341
      %s345 = sphi 0, %s344
      %s361 = sphi 0, %s345
    $region4: #{_lambda_.1} parent=1 // loop_header_branch
      %30 = sbr.rel (%p28) target = $region8
    $region5: #{_lambda_.1} parent=1 // loop_body
      %s32 = ssub.s32 %s27, 1
      %s33 = ssub.s32 %s27, 2
      %s34 = sadd.s32 %s27, 1
      %s35 = ssub.s32 %s27, %s34
      %p36 = scmp.eq.s32.totalorder %s35, 0
      %s38 = sadd.s32 %s37, 1
      %s39 = scalar_select %p36, %s37, %s38
      %p42 = pneg %p36
      %p43 = scmp.eq.s32.totalorder %s27, 1
      %p44 = por %p42, %p43
      %p45 = scmp.ne.s32.totalorder %s37, %s40
      %p46 = scmp.eq.s32.totalorder %s27, 0
      %p47 = por %p45, %p46
      %p48 = scmp.ne.s32.totalorder %s37, %s40
      %p49 = scmp.eq.s32.totalorder %s32, 1
      %p50 = por %p48, %p49
      %p51 = scmp.ne.s32.totalorder %s40, %s41
      %p52 = scmp.eq.s32.totalorder %s32, 0
      %p53 = por %p51, %p52
      %p54 = scmp.ne.s32.totalorder %s40, %s41
      %p55 = scmp.eq.s32.totalorder %s33, 1
      %p56 = por %p54, %p55
      %p58 = scmp.ne.s32.totalorder %s41, %s57
      %p59 = scmp.eq.s32.totalorder %s33, 0
      %p60 = por %p58, %p59
      %s61 = ssub.s32 %s27, %s34
      %p62 = scmp.eq.s32.totalorder %s61, 0
      %s64 = sadd.s32 %s63, 1
      %s65 = scalar_select %p62, %s63, %s64
      %p68 = pneg %p62
      %p69 = scmp.eq.s32.totalorder %s27, 1
      %p70 = por %p68, %p69
      %p71 = scmp.ne.s32.totalorder %s63, %s66
      %p72 = scmp.eq.s32.totalorder %s27, 0
      %p73 = por %p71, %p72
      %p74 = scmp.ne.s32.totalorder %s63, %s66
      %p75 = scmp.eq.s32.totalorder %s32, 1
      %p76 = por %p74, %p75
      %p77 = scmp.ne.s32.totalorder %s66, %s67
      %p78 = scmp.eq.s32.totalorder %s32, 0
      %p79 = por %p77, %p78
      %p80 = scmp.ne.s32.totalorder %s66, %s67
      %p81 = scmp.eq.s32.totalorder %s33, 1
      %p82 = por %p80, %p81
      %p84 = scmp.ne.s32.totalorder %s67, %s83
      %p85 = scmp.eq.s32.totalorder %s33, 0
      %p86 = por %p84, %p85
      %s88 = sadd.s32 %s87, 1
      %p91 = scmp.eq.s32.totalorder %s27, 1
      %p92 = scmp.ne.s32.totalorder %s87, %s89
      %p93 = scmp.eq.s32.totalorder %s27, 0
      %p94 = por %p92, %p93
      %p95 = scmp.ne.s32.totalorder %s87, %s89
      %p96 = scmp.eq.s32.totalorder %s32, 1
      %p97 = por %p95, %p96
      %p98 = scmp.ne.s32.totalorder %s89, %s90
      %p99 = scmp.eq.s32.totalorder %s32, 0
      %p100 = por %p98, %p99
      %p101 = scmp.ne.s32.totalorder %s89, %s90
      %p102 = scmp.eq.s32.totalorder %s33, 1
      %p103 = por %p101, %p102
      %p105 = scmp.ne.s32.totalorder %s90, %s104
      %p106 = scmp.eq.s32.totalorder %s33, 0
      %p107 = por %p105, %p106
      %s109 = sadd.s32 %s108, 1
      %p112 = scmp.eq.s32.totalorder %s27, 1
      %p113 = scmp.ne.s32.totalorder %s108, %s110
      %p114 = scmp.eq.s32.totalorder %s27, 0
      %p115 = por %p113, %p114
      %p116 = scmp.ne.s32.totalorder %s108, %s110
      %p117 = scmp.eq.s32.totalorder %s32, 1
      %p118 = por %p116, %p117
      %p119 = scmp.ne.s32.totalorder %s110, %s111
      %p120 = scmp.eq.s32.totalorder %s32, 0
      %p121 = por %p119, %p120
      %p122 = scmp.ne.s32.totalorder %s110, %s111
      %p123 = scmp.eq.s32.totalorder %s33, 1
      %p124 = por %p122, %p123
      %p126 = scmp.ne.s32.totalorder %s111, %s125
      %p127 = scmp.eq.s32.totalorder %s33, 0
      %p128 = por %p126, %p127
      %s130 = sadd.s32 %s129, 1
      %p133 = scmp.eq.s32.totalorder %s27, 1
      %p134 = scmp.ne.s32.totalorder %s129, %s131
      %p135 = scmp.eq.s32.totalorder %s27, 0
      %p136 = por %p134, %p135
      %p137 = scmp.ne.s32.totalorder %s129, %s131
      %p138 = scmp.eq.s32.totalorder %s32, 1
      %p139 = por %p137, %p138
      %p140 = scmp.ne.s32.totalorder %s131, %s132
      %p141 = scmp.eq.s32.totalorder %s32, 0
      %p142 = por %p140, %p141
      %p143 = scmp.ne.s32.totalorder %s131, %s132
      %p144 = scmp.eq.s32.totalorder %s33, 1
      %p145 = por %p143, %p144
      %p147 = scmp.ne.s32.totalorder %s132, %s146
      %p148 = scmp.eq.s32.totalorder %s33, 0
      %p149 = por %p147, %p148
      %s151 = sadd.s32 %s150, 1
      %p154 = scmp.eq.s32.totalorder %s27, 1
      %p155 = scmp.ne.s32.totalorder %s150, %s152
      %p156 = scmp.eq.s32.totalorder %s27, 0
      %p157 = por %p155, %p156
      %p158 = scmp.ne.s32.totalorder %s150, %s152
      %p159 = scmp.eq.s32.totalorder %s32, 1
      %p160 = por %p158, %p159
      %p161 = scmp.ne.s32.totalorder %s152, %s153
      %p162 = scmp.eq.s32.totalorder %s32, 0
      %p163 = por %p161, %p162
      %p164 = scmp.ne.s32.totalorder %s152, %s153
      %p165 = scmp.eq.s32.totalorder %s33, 1
      %p166 = por %p164, %p165
      %p168 = scmp.ne.s32.totalorder %s153, %s167
      %p169 = scmp.eq.s32.totalorder %s33, 0
      %p170 = por %p168, %p169
      %s172 = sadd.s32 %s171, 1
      %p175 = scmp.eq.s32.totalorder %s27, 1
      %p176 = scmp.ne.s32.totalorder %s171, %s173
      %p177 = scmp.eq.s32.totalorder %s27, 0
      %p178 = por %p176, %p177
      %p179 = scmp.ne.s32.totalorder %s171, %s173
      %p180 = scmp.eq.s32.totalorder %s32, 1
      %p181 = por %p179, %p180
      %p182 = scmp.ne.s32.totalorder %s173, %s174
      %p183 = scmp.eq.s32.totalorder %s32, 0
      %p184 = por %p182, %p183
      %p185 = scmp.ne.s32.totalorder %s173, %s174
      %p186 = scmp.eq.s32.totalorder %s33, 1
      %p187 = por %p185, %p186
      %p189 = scmp.ne.s32.totalorder %s174, %s188
      %p190 = scmp.eq.s32.totalorder %s33, 0
      %p191 = por %p189, %p190
      %s193 = sadd.s32 %s192, 1
      %p196 = scmp.eq.s32.totalorder %s27, 1
      %p197 = scmp.ne.s32.totalorder %s192, %s194
      %p198 = scmp.eq.s32.totalorder %s27, 0
      %p199 = por %p197, %p198
      %p200 = scmp.ne.s32.totalorder %s192, %s194
      %p201 = scmp.eq.s32.totalorder %s32, 1
      %p202 = por %p200, %p201
      %p203 = scmp.ne.s32.totalorder %s194, %s195
      %p204 = scmp.eq.s32.totalorder %s32, 0
      %p205 = por %p203, %p204
      %p206 = scmp.ne.s32.totalorder %s194, %s195
      %p207 = scmp.eq.s32.totalorder %s33, 1
      %p208 = por %p206, %p207
      %p210 = scmp.ne.s32.totalorder %s195, %s209
      %p211 = scmp.eq.s32.totalorder %s33, 0
      %p212 = por %p210, %p211
      %s214 = sadd.s32 %s213, 1
      %p217 = scmp.eq.s32.totalorder %s27, 1
      %p218 = scmp.ne.s32.totalorder %s213, %s215
      %p219 = scmp.eq.s32.totalorder %s27, 0
      %p220 = por %p218, %p219
      %p221 = scmp.ne.s32.totalorder %s213, %s215
      %p222 = scmp.eq.s32.totalorder %s32, 1
      %p223 = por %p221, %p222
      %p224 = scmp.ne.s32.totalorder %s215, %s216
      %p225 = scmp.eq.s32.totalorder %s32, 0
      %p226 = por %p224, %p225
      %p227 = scmp.ne.s32.totalorder %s215, %s216
      %p228 = scmp.eq.s32.totalorder %s33, 1
      %p229 = por %p227, %p228
      %p231 = scmp.ne.s32.totalorder %s216, %s230
      %p232 = scmp.eq.s32.totalorder %s33, 0
      %p233 = por %p231, %p232
      %s235 = sadd.s32 %s234, 1
      %p238 = scmp.eq.s32.totalorder %s27, 1
      %p239 = scmp.ne.s32.totalorder %s234, %s236
      %p240 = scmp.eq.s32.totalorder %s27, 0
      %p241 = por %p239, %p240
      %p242 = scmp.ne.s32.totalorder %s234, %s236
      %p243 = scmp.eq.s32.totalorder %s32, 1
      %p244 = por %p242, %p243
      %p245 = scmp.ne.s32.totalorder %s236, %s237
      %p246 = scmp.eq.s32.totalorder %s32, 0
      %p247 = por %p245, %p246
      %p248 = scmp.ne.s32.totalorder %s236, %s237
      %p249 = scmp.eq.s32.totalorder %s33, 1
      %p250 = por %p248, %p249
      %p252 = scmp.ne.s32.totalorder %s237, %s251
      %p253 = scmp.eq.s32.totalorder %s33, 0
      %p254 = por %p252, %p253
      %s256 = sadd.s32 %s255, 1
      %p259 = scmp.eq.s32.totalorder %s27, 1
      %p260 = scmp.ne.s32.totalorder %s255, %s257
      %p261 = scmp.eq.s32.totalorder %s27, 0
      %p262 = por %p260, %p261
      %p263 = scmp.ne.s32.totalorder %s255, %s257
      %p264 = scmp.eq.s32.totalorder %s32, 1
      %p265 = por %p263, %p264
      %p266 = scmp.ne.s32.totalorder %s257, %s258
      %p267 = scmp.eq.s32.totalorder %s32, 0
      %p268 = por %p266, %p267
      %p269 = scmp.ne.s32.totalorder %s257, %s258
      %p270 = scmp.eq.s32.totalorder %s33, 1
      %p271 = por %p269, %p270
      %p273 = scmp.ne.s32.totalorder %s258, %s272
      %p274 = scmp.eq.s32.totalorder %s33, 0
      %p275 = por %p273, %p274
      %s277 = sadd.s32 %s276, 1
      %p280 = scmp.eq.s32.totalorder %s27, 1
      %p281 = scmp.ne.s32.totalorder %s276, %s278
      %p282 = scmp.eq.s32.totalorder %s27, 0
      %p283 = por %p281, %p282
      %p284 = scmp.ne.s32.totalorder %s276, %s278
      %p285 = scmp.eq.s32.totalorder %s32, 1
      %p286 = por %p284, %p285
      %p287 = scmp.ne.s32.totalorder %s278, %s279
      %p288 = scmp.eq.s32.totalorder %s32, 0
      %p289 = por %p287, %p288
      %p290 = scmp.ne.s32.totalorder %s278, %s279
      %p291 = scmp.eq.s32.totalorder %s33, 1
      %p292 = por %p290, %p291
      %p294 = scmp.ne.s32.totalorder %s279, %s293
      %p295 = scmp.eq.s32.totalorder %s33, 0
      %p296 = por %p294, %p295
      %s298 = sadd.s32 %s297, 1
      %p301 = scmp.eq.s32.totalorder %s27, 1
      %p302 = scmp.ne.s32.totalorder %s297, %s299
      %p303 = scmp.eq.s32.totalorder %s27, 0
      %p304 = por %p302, %p303
      %p305 = scmp.ne.s32.totalorder %s297, %s299
      %p306 = scmp.eq.s32.totalorder %s32, 1
      %p307 = por %p305, %p306
      %p308 = scmp.ne.s32.totalorder %s299, %s300
      %p309 = scmp.eq.s32.totalorder %s32, 0
      %p310 = por %p308, %p309
      %p311 = scmp.ne.s32.totalorder %s299, %s300
      %p312 = scmp.eq.s32.totalorder %s33, 1
      %p313 = por %p311, %p312
      %p315 = scmp.ne.s32.totalorder %s300, %s314
      %p316 = scmp.eq.s32.totalorder %s33, 0
      %p317 = por %p315, %p316
      %s319 = sadd.s32 %s318, 1
      %p322 = scmp.eq.s32.totalorder %s27, 1
      %p323 = scmp.ne.s32.totalorder %s318, %s320
      %p324 = scmp.eq.s32.totalorder %s27, 0
      %p325 = por %p323, %p324
      %p326 = scmp.ne.s32.totalorder %s318, %s320
      %p327 = scmp.eq.s32.totalorder %s32, 1
      %p328 = por %p326, %p327
      %p329 = scmp.ne.s32.totalorder %s320, %s321
      %p330 = scmp.eq.s32.totalorder %s32, 0
      %p331 = por %p329, %p330
      %p332 = scmp.ne.s32.totalorder %s320, %s321
      %p333 = scmp.eq.s32.totalorder %s33, 1
      %p334 = por %p332, %p333
      %p336 = scmp.ne.s32.totalorder %s321, %s335
      %p337 = scmp.eq.s32.totalorder %s33, 0
      %p338 = por %p336, %p337
      %s339 = ssub.s32 %s27, %s34
      %p340 = scmp.eq.s32.totalorder %s339, 0
      %s342 = sadd.s32 %s341, 1
      %s343 = scalar_select %p340, %s341, %s342
      %p346 = pneg %p340
      %p347 = scmp.eq.s32.totalorder %s27, 1
      %p348 = por %p346, %p347
      %p349 = scmp.ne.s32.totalorder %s341, %s344
      %p350 = scmp.eq.s32.totalorder %s27, 0
      %p351 = por %p349, %p350
      %p352 = scmp.ne.s32.totalorder %s341, %s344
      %p353 = scmp.eq.s32.totalorder %s32, 1
      %p354 = por %p352, %p353
      %p355 = scmp.ne.s32.totalorder %s344, %s345
      %p356 = scmp.eq.s32.totalorder %s32, 0
      %p357 = por %p355, %p356
      %p358 = scmp.ne.s32.totalorder %s344, %s345
      %p359 = scmp.eq.s32.totalorder %s33, 1
      %p360 = por %p358, %p359
      %p362 = scmp.ne.s32.totalorder %s345, %s361
      %p363 = scmp.eq.s32.totalorder %s33, 0
      %p364 = por %p362, %p363
      %p365 = scmp.le.s32.totalorder 1, %s27
      %p366 = scmp.lt.s32.totalorder %s27, 3
      %p367 = pnand %p365, %p366
      %p368 = pneg %p367
      // Predicated region
      $region9: #{_lambda_.1} parent=5 // pred_check
        _
      $region10: #{_lambda_.1} parent=5 // pred_check_branch
        %370 = sbr.rel (%p367) target = $region12
      $region11: #{_lambda_.1} parent=5 // pred_region
        %s371 = ssub.s32 %s27, 1
        // Predicated region
        $region13: #{_lambda_.1} parent=11 // pred_check
          %p372 = pneg %p100
        $region14: #{_lambda_.1} parent=11 // pred_check_branch
          %374 = sbr.rel (%p372) target = $region16
        $region15: #{_lambda_.1} parent=11 // pred_region
          _
        $region16: #{_lambda_.1} parent=11 // pred_fallthru
          _
        // Predicated region
        $region17: #{_lambda_.1} parent=11 // pred_check
          %p375 = pneg %p121
        $region18: #{_lambda_.1} parent=11 // pred_check_branch
          %377 = sbr.rel (%p375) target = $region20
        $region19: #{_lambda_.1} parent=11 // pred_region
          _
        $region20: #{_lambda_.1} parent=11 // pred_fallthru
          _
        // Predicated region
        $region21: #{_lambda_.1} parent=11 // pred_check
          %p378 = pneg %p142
        $region22: #{_lambda_.1} parent=11 // pred_check_branch
          %380 = sbr.rel (%p378) target = $region24
        $region23: #{_lambda_.1} parent=11 // pred_region
          _
        $region24: #{_lambda_.1} parent=11 // pred_fallthru
          _
        // Predicated region
        $region25: #{_lambda_.1} parent=11 // pred_check
          %p381 = pneg %p163
        $region26: #{_lambda_.1} parent=11 // pred_check_branch
          %383 = sbr.rel (%p381) target = $region28
        $region27: #{_lambda_.1} parent=11 // pred_region
          _
        $region28: #{_lambda_.1} parent=11 // pred_fallthru
          _
        // Predicated region
        $region29: #{_lambda_.1} parent=11 // pred_check
          %p384 = pneg %p184
        $region30: #{_lambda_.1} parent=11 // pred_check_branch
          %386 = sbr.rel (%p384) target = $region32
        $region31: #{_lambda_.1} parent=11 // pred_region
          _
        $region32: #{_lambda_.1} parent=11 // pred_fallthru
          _
        // Predicated region
        $region33: #{_lambda_.1} parent=11 // pred_check
          %p387 = pneg %p205
        $region34: #{_lambda_.1} parent=11 // pred_check_branch
          %389 = sbr.rel (%p387) target = $region36
        $region35: #{_lambda_.1} parent=11 // pred_region
          _
        $region36: #{_lambda_.1} parent=11 // pred_fallthru
          _
        // Predicated region
        $region37: #{_lambda_.1} parent=11 // pred_check
          %p390 = pneg %p226
        $region38: #{_lambda_.1} parent=11 // pred_check_branch
          %392 = sbr.rel (%p390) target = $region40
        $region39: #{_lambda_.1} parent=11 // pred_region
          %s394 = ssub.s32 2304, 2304
          %395 = vsyncadd [#allocation5], %s394
          %s396 = sshll.u32 [#allocation4], 4
          %s397 = int_to_ptr.vmem [resolvable:$true] %s396
          %402 = dma.hbm_to_vmem [thread:$0]  %s8, 2304, %s397, [#allocation5], 64, 64, 4
        $region40: #{_lambda_.1} parent=11 // pred_fallthru
          _
        // Predicated region
        $region41: #{_lambda_.1} parent=11 // pred_check
          %p403 = pneg %p247
        $region42: #{_lambda_.1} parent=11 // pred_check_branch
          %405 = sbr.rel (%p403) target = $region44
        $region43: #{_lambda_.1} parent=11 // pred_region
          _
        $region44: #{_lambda_.1} parent=11 // pred_fallthru
          _
        // Predicated region
        $region45: #{_lambda_.1} parent=11 // pred_check
          %p406 = pneg %p268
        $region46: #{_lambda_.1} parent=11 // pred_check_branch
          %408 = sbr.rel (%p406) target = $region48
        $region47: #{_lambda_.1} parent=11 // pred_region
          %s410 = ssub.s32 4608, 4608
          %411 = vsyncadd [#allocation8], %s410
          %s412 = sshll.u32 [#allocation7], 4
          %s413 = int_to_ptr.vmem [resolvable:$true] %s412
          %418 = dma.hbm_to_vmem [thread:$0]  %s10, 4608, %s413, [#allocation8], 64, 64, 4
        $region48: #{_lambda_.1} parent=11 // pred_fallthru
          _
        // Predicated region
        $region49: #{_lambda_.1} parent=11 // pred_check
          %p419 = pneg %p289
        $region50: #{_lambda_.1} parent=11 // pred_check_branch
          %421 = sbr.rel (%p419) target = $region52
        $region51: #{_lambda_.1} parent=11 // pred_region
          _
        $region52: #{_lambda_.1} parent=11 // pred_fallthru
          _
        // Predicated region
        $region53: #{_lambda_.1} parent=11 // pred_check
          %p422 = pneg %p310
        $region54: #{_lambda_.1} parent=11 // pred_check_branch
          %424 = sbr.rel (%p422) target = $region56
        $region55: #{_lambda_.1} parent=11 // pred_region
          _
        $region56: #{_lambda_.1} parent=11 // pred_fallthru
          _
        // Predicated region
        $region57: #{_lambda_.1} parent=11 // pred_check
          %p425 = pneg %p331
        $region58: #{_lambda_.1} parent=11 // pred_check_branch
          %427 = sbr.rel (%p425) target = $region60
        $region59: #{_lambda_.1} parent=11 // pred_region
          _
        $region60: #{_lambda_.1} parent=11 // pred_fallthru
          _
      $region12: #{_lambda_.1} parent=5 // pred_fallthru
        _
      %p428 = scmp.lt.s32.totalorder %s27, 2
      // Predicated region
      $region61: #{_lambda_.1} parent=5 // pred_check
        %p429 = pneg %p428
      $region62: #{_lambda_.1} parent=5 // pred_check_branch
        %431 = sbr.rel (%p429) target = $region64
      $region63: #{_lambda_.1} parent=5 // pred_region
        // Predicated region
        $region65: #{_lambda_.1} parent=63 // pred_check
          %p432 = pneg %p47
        $region66: #{_lambda_.1} parent=63 // pred_check_branch
          %434 = sbr.rel (%p432) target = $region68
        $region67: #{_lambda_.1} parent=63 // pred_region
          %p435 = scmp.lt.s32.totalorder %s27, 1
          %s436 = scalar_select %p435, %s27, 1
          %s437 = smul.addr %s436, 3
          %s438 = smul.addr %s437, 8
          %s439 = scalar_lea.vmem %s0, %s438
        $region68: #{_lambda_.1} parent=63 // pred_fallthru
          _
        // Predicated region
        $region69: #{_lambda_.1} parent=63 // pred_check
          %p440 = pneg %p73
        $region70: #{_lambda_.1} parent=63 // pred_check_branch
          %442 = sbr.rel (%p440) target = $region72
        $region71: #{_lambda_.1} parent=63 // pred_region
          %p443 = scmp.lt.s32.totalorder %s27, 1
          %s444 = scalar_select %p443, %s27, 1
          %s445 = smul.addr %s444, 8
          %s446 = scalar_lea.vmem %s1, %s445
        $region72: #{_lambda_.1} parent=63 // pred_fallthru
          _
      $region64: #{_lambda_.1} parent=5 // pred_fallthru
        _
      %p447 = scmp.le.s32.totalorder 1, %s27
      %p448 = scmp.lt.s32.totalorder %s27, 3
      %p449 = pnand %p447, %p448
      %p450 = pneg %p449
      // Predicated region
      $region73: #{_lambda_.1} parent=5 // pred_check
        _
      $region74: #{_lambda_.1} parent=5 // pred_check_branch
        %452 = sbr.rel (%p449) target = $region76
      $region75: #{_lambda_.1} parent=5 // pred_region
        %s453 = ssub.s32 %s27, 1
        // Predicated region
        $region77: #{_lambda_.1} parent=75 // pred_check
          %p454 = pneg %p226
        $region78: #{_lambda_.1} parent=75 // pred_check_branch
          %456 = sbr.rel (%p454) target = $region80
        $region79: #{_lambda_.1} parent=75 // pred_region
          %457 = dma.done [#allocation5], 2304
        $region80: #{_lambda_.1} parent=75 // pred_fallthru
          _
        // Predicated region
        $region81: #{_lambda_.1} parent=75 // pred_check
          %p458 = pneg %p268
        $region82: #{_lambda_.1} parent=75 // pred_check_branch
          %460 = sbr.rel (%p458) target = $region84
        $region83: #{_lambda_.1} parent=75 // pred_region
          %461 = dma.done [#allocation8], 4608
        $region84: #{_lambda_.1} parent=75 // pred_fallthru
          _
        %p462 = scmp.lt.s32.totalorder %s32, 1
        %s463 = scalar_select %p462, %s32, 1
        %s464 = smul.addr %s463, 3
        %s465 = smul.addr %s464, 8
        %s466 = scalar_lea.vmem %s0, %s465
        %p467 = pneg %p53
        %p468 = pneg %p50
        %p469 = scmp.lt.s32.totalorder %s32, 1
        %s470 = scalar_select %p469, %s32, 1
        %s471 = smul.addr %s470, 8
        %s472 = scalar_lea.vmem %s1, %s471
        %p473 = pneg %p79
        %p474 = pneg %p76
        %p475 = pneg %p100
        %p476 = pneg %p97
        %p477 = pneg %p121
        %p478 = pneg %p118
        %p479 = pneg %p142
        %p480 = pneg %p139
        %p481 = pneg %p163
        %p482 = pneg %p160
        %p483 = pneg %p184
        %p484 = pneg %p181
        %p485 = pneg %p205
        %p486 = pneg %p202
        %p487 = pneg %p226
        %p488 = pneg %p223
        %p489 = pneg %p247
        %p490 = pneg %p244
        %p491 = pneg %p268
        %p492 = pneg %p265
        %p493 = pneg %p289
        %p494 = pneg %p286
        %p495 = pneg %p310
        %p496 = pneg %p307
        %p497 = pneg %p331
        %p498 = pneg %p328
        %p499 = pneg %p357
        %p500 = pneg %p354
        %s501 = sand.u32 %s344, 1
        %s502 = scalar_lea.sflag [#allocation6], %s501
        %s503 = sand.u32 %s344, 1
        %s504 = smul.addr %s503, 16
        %s505 = scalar_lea.vmem [#allocation9], %s504
        %p506 = scmp.lt.s32.totalorder %s32, 1
        %s507 = scalar_select %p506, %s32, 1
        %s508 = smul.addr %s507, 3
        %s509 = smul.addr %s508, 8
        %s510 = scalar_lea.vmem %s0, %s509
        %p511 = scmp.lt.s32.totalorder %s32, 1
        %s512 = scalar_select %p511, %s32, 1
        %s513 = smul.addr %s512, 8
        %s514 = scalar_lea.vmem %s1, %s513
        %v516 = vld [vmem:[%s510] sm:$0xff]
        %v517 = vld [vmem:[%s510 + $0x8] sm:$0xff]
        %v518 = vld [vmem:[%s510 + $0x10] sm:$0x3]
        %v519 = vld [vmem:[%s2] sm:$0x7]
        %v520 = vld [vmem:[%s2 + $0x4] sm:$0x7]
        %v521 = vld [vmem:[%s2 + $0x8] sm:$0x7]
        %v522 = vlaneseq
        %v523 = vshrl.u32 %v522, 7
        %v524 = vsub.s32 0, %v523
        %v525 = vrot.slane %v516, %v524
        %527 = vbcast.lane.b32.xlu0 %v525, 256
        %v528 = vpop.permute.xlu0 %527
        %s530 = sor.u32 256, 8
        %531 = vbcast.lane.b32.xlu0 %v525, %s530
        %v532 = vpop.permute.xlu0 %531
        %v533 = vlaneseq
        %v534 = vshrl.u32 %v533, 7
        %v535 = vsub.s32 1, %v534
        %v536 = vrot.slane %v516, %v535
        %538 = vbcast.lane.b32.xlu0 %v536, 256
        %v539 = vpop.permute.xlu0 %538
        %s541 = sor.u32 256, 8
        %542 = vbcast.lane.b32.xlu0 %v536, %s541
        %v543 = vpop.permute.xlu0 %542
        %v544 = vlaneseq
        %v545 = vshrl.u32 %v544, 7
        %v546 = vsub.s32 2, %v545
        %v547 = vrot.slane %v516, %v546
        %549 = vbcast.lane.b32.xlu0 %v547, 256
        %v550 = vpop.permute.xlu0 %549
        %s552 = sor.u32 256, 8
        %553 = vbcast.lane.b32.xlu0 %v547, %s552
        %v554 = vpop.permute.xlu0 %553
        %v555 = vlaneseq
        %v556 = vshrl.u32 %v555, 7
        %v557 = vsub.s32 3, %v556
        %v558 = vrot.slane %v516, %v557
        %560 = vbcast.lane.b32.xlu0 %v558, 256
        %v561 = vpop.permute.xlu0 %560
        %s563 = sor.u32 256, 8
        %564 = vbcast.lane.b32.xlu0 %v558, %s563
        %v565 = vpop.permute.xlu0 %564
        %v566 = vlaneseq
        %v567 = vshrl.u32 %v566, 7
        %v568 = vsub.s32 4, %v567
        %v569 = vrot.slane %v516, %v568
        %571 = vbcast.lane.b32.xlu0 %v569, 256
        %v572 = vpop.permute.xlu0 %571
        %s574 = sor.u32 256, 8
        %575 = vbcast.lane.b32.xlu0 %v569, %s574
        %v576 = vpop.permute.xlu0 %575
        %v577 = vlaneseq
        %v578 = vshrl.u32 %v577, 7
        %v579 = vsub.s32 5, %v578
        %v580 = vrot.slane %v516, %v579
        %582 = vbcast.lane.b32.xlu0 %v580, 256
        %v583 = vpop.permute.xlu0 %582
        %s585 = sor.u32 256, 8
        %586 = vbcast.lane.b32.xlu0 %v580, %s585
        %v587 = vpop.permute.xlu0 %586
        %v588 = vlaneseq
        %v589 = vshrl.u32 %v588, 7
        %v590 = vsub.s32 6, %v589
        %v591 = vrot.slane %v516, %v590
        %593 = vbcast.lane.b32.xlu0 %v591, 256
        %v594 = vpop.permute.xlu0 %593
        %s596 = sor.u32 256, 8
        %597 = vbcast.lane.b32.xlu0 %v591, %s596
        %v598 = vpop.permute.xlu0 %597
        %v599 = vlaneseq
        %v600 = vshrl.u32 %v599, 7
        %v601 = vsub.s32 7, %v600
        %v602 = vrot.slane %v516, %v601
        %604 = vbcast.lane.b32.xlu0 %v602, 256
        %v605 = vpop.permute.xlu0 %604
        %s607 = sor.u32 256, 8
        %608 = vbcast.lane.b32.xlu0 %v602, %s607
        %v609 = vpop.permute.xlu0 %608
        %v610 = vlaneseq
        %v611 = vshrl.u32 %v610, 7
        %v612 = vsub.s32 0, %v611
        %v613 = vrot.slane %v517, %v612
        %615 = vbcast.lane.b32.xlu0 %v613, 256
        %v616 = vpop.permute.xlu0 %615
        %s618 = sor.u32 256, 8
        %619 = vbcast.lane.b32.xlu0 %v613, %s618
        %v620 = vpop.permute.xlu0 %619
        %v621 = vlaneseq
        %v622 = vshrl.u32 %v621, 7
        %v623 = vsub.s32 1, %v622
        %v624 = vrot.slane %v517, %v623
        %626 = vbcast.lane.b32.xlu0 %v624, 256
        %v627 = vpop.permute.xlu0 %626
        %s629 = sor.u32 256, 8
        %630 = vbcast.lane.b32.xlu0 %v624, %s629
        %v631 = vpop.permute.xlu0 %630
        %v632 = vlaneseq
        %v633 = vshrl.u32 %v632, 7
        %v634 = vsub.s32 2, %v633
        %v635 = vrot.slane %v517, %v634
        %637 = vbcast.lane.b32.xlu0 %v635, 256
        %v638 = vpop.permute.xlu0 %637
        %s640 = sor.u32 256, 8
        %641 = vbcast.lane.b32.xlu0 %v635, %s640
        %v642 = vpop.permute.xlu0 %641
        %v643 = vlaneseq
        %v644 = vshrl.u32 %v643, 7
        %v645 = vsub.s32 3, %v644
        %v646 = vrot.slane %v517, %v645
        %648 = vbcast.lane.b32.xlu0 %v646, 256
        %v649 = vpop.permute.xlu0 %648
        %s651 = sor.u32 256, 8
        %652 = vbcast.lane.b32.xlu0 %v646, %s651
        %v653 = vpop.permute.xlu0 %652
        %v654 = vlaneseq
        %v655 = vshrl.u32 %v654, 7
        %v656 = vsub.s32 4, %v655
        %v657 = vrot.slane %v517, %v656
        %659 = vbcast.lane.b32.xlu0 %v657, 256
        %v660 = vpop.permute.xlu0 %659
        %s662 = sor.u32 256, 8
        %663 = vbcast.lane.b32.xlu0 %v657, %s662
        %v664 = vpop.permute.xlu0 %663
        %v665 = vlaneseq
        %v666 = vshrl.u32 %v665, 7
        %v667 = vsub.s32 5, %v666
        %v668 = vrot.slane %v517, %v667
        %670 = vbcast.lane.b32.xlu0 %v668, 256
        %v671 = vpop.permute.xlu0 %670
        %s673 = sor.u32 256, 8
        %674 = vbcast.lane.b32.xlu0 %v668, %s673
        %v675 = vpop.permute.xlu0 %674
        %v676 = vlaneseq
        %v677 = vshrl.u32 %v676, 7
        %v678 = vsub.s32 6, %v677
        %v679 = vrot.slane %v517, %v678
        %681 = vbcast.lane.b32.xlu0 %v679, 256
        %v682 = vpop.permute.xlu0 %681
        %s684 = sor.u32 256, 8
        %685 = vbcast.lane.b32.xlu0 %v679, %s684
        %v686 = vpop.permute.xlu0 %685
        %v687 = vlaneseq
        %v688 = vshrl.u32 %v687, 7
        %v689 = vsub.s32 7, %v688
        %v690 = vrot.slane %v517, %v689
        %692 = vbcast.lane.b32.xlu0 %v690, 256
        %v693 = vpop.permute.xlu0 %692
        %s695 = sor.u32 256, 8
        %696 = vbcast.lane.b32.xlu0 %v690, %s695
        %v697 = vpop.permute.xlu0 %696
        %v698 = vlaneseq
        %v699 = vshrl.u32 %v698, 7
        %v700 = vsub.s32 0, %v699
        %v701 = vrot.slane %v519, %v700
        %v702 = vmul.f32 %v528, %v701
        %v703 = vmul.f32 %v532, %v701
        %v704 = vmul.f32 %v539, %v701
        %v705 = vmul.f32 %v543, %v701
        %v706 = vmul.f32 %v550, %v701
        %v707 = vmul.f32 %v554, %v701
        %v708 = vmul.f32 %v561, %v701
        %v709 = vmul.f32 %v565, %v701
        %v710 = vmul.f32 %v572, %v701
        %v711 = vmul.f32 %v576, %v701
        %v712 = vmul.f32 %v583, %v701
        %v713 = vmul.f32 %v587, %v701
        %v714 = vmul.f32 %v594, %v701
        %v715 = vmul.f32 %v598, %v701
        %v716 = vmul.f32 %v605, %v701
        %v717 = vmul.f32 %v609, %v701
        %v718 = vmul.f32 %v616, %v701
        %v719 = vmul.f32 %v620, %v701
        %v720 = vmul.f32 %v627, %v701
        %v721 = vmul.f32 %v631, %v701
        %v722 = vmul.f32 %v638, %v701
        %v723 = vmul.f32 %v642, %v701
        %v724 = vmul.f32 %v649, %v701
        %v725 = vmul.f32 %v653, %v701
        %v726 = vmul.f32 %v660, %v701
        %v727 = vmul.f32 %v664, %v701
        %v728 = vmul.f32 %v671, %v701
        %v729 = vmul.f32 %v675, %v701
        %v730 = vmul.f32 %v682, %v701
        %v731 = vmul.f32 %v686, %v701
        %v732 = vmul.f32 %v693, %v701
        %v733 = vmul.f32 %v697, %v701
        %v734 = vadd.f32 %v702, 0.0
        %v735 = vadd.f32 %v703, 0.0
        %v736 = vadd.f32 %v704, 0.0
        %v737 = vadd.f32 %v705, 0.0
        %v738 = vadd.f32 %v706, 0.0
        %v739 = vadd.f32 %v707, 0.0
        %v740 = vadd.f32 %v708, 0.0
        %v741 = vadd.f32 %v709, 0.0
        %v742 = vadd.f32 %v710, 0.0
        %v743 = vadd.f32 %v711, 0.0
        %v744 = vadd.f32 %v712, 0.0
        %v745 = vadd.f32 %v713, 0.0
        %v746 = vadd.f32 %v714, 0.0
        %v747 = vadd.f32 %v715, 0.0
        %v748 = vadd.f32 %v716, 0.0
        %v749 = vadd.f32 %v717, 0.0
        %v750 = vadd.f32 %v718, 0.0
        %v751 = vadd.f32 %v719, 0.0
        %v752 = vadd.f32 %v720, 0.0
        %v753 = vadd.f32 %v721, 0.0
        %v754 = vadd.f32 %v722, 0.0
        %v755 = vadd.f32 %v723, 0.0
        %v756 = vadd.f32 %v724, 0.0
        %v757 = vadd.f32 %v725, 0.0
        %v758 = vadd.f32 %v726, 0.0
        %v759 = vadd.f32 %v727, 0.0
        %v760 = vadd.f32 %v728, 0.0
        %v761 = vadd.f32 %v729, 0.0
        %v762 = vadd.f32 %v730, 0.0
        %v763 = vadd.f32 %v731, 0.0
        %v764 = vadd.f32 %v732, 0.0
        %v765 = vadd.f32 %v733, 0.0
        %s767 = sor.u32 256, 1
        %768 = vbcast.lane.b32.xlu0 %v525, %s767
        %v769 = vpop.permute.xlu0 %768
        %s771 = sor.u32 256, 9
        %772 = vbcast.lane.b32.xlu0 %v525, %s771
        %v773 = vpop.permute.xlu0 %772
        %s775 = sor.u32 256, 1
        %776 = vbcast.lane.b32.xlu0 %v536, %s775
        %v777 = vpop.permute.xlu0 %776
        %s779 = sor.u32 256, 9
        %780 = vbcast.lane.b32.xlu0 %v536, %s779
        %v781 = vpop.permute.xlu0 %780
        %s783 = sor.u32 256, 1
        %784 = vbcast.lane.b32.xlu0 %v547, %s783
        %v785 = vpop.permute.xlu0 %784
        %s787 = sor.u32 256, 9
        %788 = vbcast.lane.b32.xlu0 %v547, %s787
        %v789 = vpop.permute.xlu0 %788
        %s791 = sor.u32 256, 1
        %792 = vbcast.lane.b32.xlu0 %v558, %s791
        %v793 = vpop.permute.xlu0 %792
        %s795 = sor.u32 256, 9
        %796 = vbcast.lane.b32.xlu0 %v558, %s795
        %v797 = vpop.permute.xlu0 %796
        %s799 = sor.u32 256, 1
        %800 = vbcast.lane.b32.xlu0 %v569, %s799
        %v801 = vpop.permute.xlu0 %800
        %s803 = sor.u32 256, 9
        %804 = vbcast.lane.b32.xlu0 %v569, %s803
        %v805 = vpop.permute.xlu0 %804
        %s807 = sor.u32 256, 1
        %808 = vbcast.lane.b32.xlu0 %v580, %s807
        %v809 = vpop.permute.xlu0 %808
        %s811 = sor.u32 256, 9
        %812 = vbcast.lane.b32.xlu0 %v580, %s811
        %v813 = vpop.permute.xlu0 %812
        %s815 = sor.u32 256, 1
        %816 = vbcast.lane.b32.xlu0 %v591, %s815
        %v817 = vpop.permute.xlu0 %816
        %s819 = sor.u32 256, 9
        %820 = vbcast.lane.b32.xlu0 %v591, %s819
        %v821 = vpop.permute.xlu0 %820
        %s823 = sor.u32 256, 1
        %824 = vbcast.lane.b32.xlu0 %v602, %s823
        %v825 = vpop.permute.xlu0 %824
        %s827 = sor.u32 256, 9
        %828 = vbcast.lane.b32.xlu0 %v602, %s827
        %v829 = vpop.permute.xlu0 %828
        %s831 = sor.u32 256, 1
        %832 = vbcast.lane.b32.xlu0 %v613, %s831
        %v833 = vpop.permute.xlu0 %832
        %s835 = sor.u32 256, 9
        %836 = vbcast.lane.b32.xlu0 %v613, %s835
        %v837 = vpop.permute.xlu0 %836
        %s839 = sor.u32 256, 1
        %840 = vbcast.lane.b32.xlu0 %v624, %s839
        %v841 = vpop.permute.xlu0 %840
        %s843 = sor.u32 256, 9
        %844 = vbcast.lane.b32.xlu0 %v624, %s843
        %v845 = vpop.permute.xlu0 %844
        %s847 = sor.u32 256, 1
        %848 = vbcast.lane.b32.xlu0 %v635, %s847
        %v849 = vpop.permute.xlu0 %848
        %s851 = sor.u32 256, 9
        %852 = vbcast.lane.b32.xlu0 %v635, %s851
        %v853 = vpop.permute.xlu0 %852
        %s855 = sor.u32 256, 1
        %856 = vbcast.lane.b32.xlu0 %v646, %s855
        %v857 = vpop.permute.xlu0 %856
        %s859 = sor.u32 256, 9
        %860 = vbcast.lane.b32.xlu0 %v646, %s859
        %v861 = vpop.permute.xlu0 %860
        %s863 = sor.u32 256, 1
        %864 = vbcast.lane.b32.xlu0 %v657, %s863
        %v865 = vpop.permute.xlu0 %864
        %s867 = sor.u32 256, 9
        %868 = vbcast.lane.b32.xlu0 %v657, %s867
        %v869 = vpop.permute.xlu0 %868
        %s871 = sor.u32 256, 1
        %872 = vbcast.lane.b32.xlu0 %v668, %s871
        %v873 = vpop.permute.xlu0 %872
        %s875 = sor.u32 256, 9
        %876 = vbcast.lane.b32.xlu0 %v668, %s875
        %v877 = vpop.permute.xlu0 %876
        %s879 = sor.u32 256, 1
        %880 = vbcast.lane.b32.xlu0 %v679, %s879
        %v881 = vpop.permute.xlu0 %880
        %s883 = sor.u32 256, 9
        %884 = vbcast.lane.b32.xlu0 %v679, %s883
        %v885 = vpop.permute.xlu0 %884
        %s887 = sor.u32 256, 1
        %888 = vbcast.lane.b32.xlu0 %v690, %s887
        %v889 = vpop.permute.xlu0 %888
        %s891 = sor.u32 256, 9
        %892 = vbcast.lane.b32.xlu0 %v690, %s891
        %v893 = vpop.permute.xlu0 %892
        %v894 = vlaneseq
        %v895 = vshrl.u32 %v894, 7
        %v896 = vsub.s32 1, %v895
        %v897 = vrot.slane %v519, %v896
        %v898 = vmul.f32 %v769, %v897
        %v899 = vmul.f32 %v773, %v897
        %v900 = vmul.f32 %v777, %v897
        %v901 = vmul.f32 %v781, %v897
        %v902 = vmul.f32 %v785, %v897
        %v903 = vmul.f32 %v789, %v897
        %v904 = vmul.f32 %v793, %v897
        %v905 = vmul.f32 %v797, %v897
        %v906 = vmul.f32 %v801, %v897
        %v907 = vmul.f32 %v805, %v897
        %v908 = vmul.f32 %v809, %v897
        %v909 = vmul.f32 %v813, %v897
        %v910 = vmul.f32 %v817, %v897
        %v911 = vmul.f32 %v821, %v897
        %v912 = vmul.f32 %v825, %v897
        %v913 = vmul.f32 %v829, %v897
        %v914 = vmul.f32 %v833, %v897
        %v915 = vmul.f32 %v837, %v897
        %v916 = vmul.f32 %v841, %v897
        %v917 = vmul.f32 %v845, %v897
        %v918 = vmul.f32 %v849, %v897
        %v919 = vmul.f32 %v853, %v897
        %v920 = vmul.f32 %v857, %v897
        %v921 = vmul.f32 %v861, %v897
        %v922 = vmul.f32 %v865, %v897
        %v923 = vmul.f32 %v869, %v897
        %v924 = vmul.f32 %v873, %v897
        %v925 = vmul.f32 %v877, %v897
        %v926 = vmul.f32 %v881, %v897
        %v927 = vmul.f32 %v885, %v897
        %v928 = vmul.f32 %v889, %v897
        %v929 = vmul.f32 %v893, %v897
        %v930 = vadd.f32 %v734, %v898
        %v931 = vadd.f32 %v735, %v899
        %v932 = vadd.f32 %v736, %v900
        %v933 = vadd.f32 %v737, %v901
        %v934 = vadd.f32 %v738, %v902
        %v935 = vadd.f32 %v739, %v903
        %v936 = vadd.f32 %v740, %v904
        %v937 = vadd.f32 %v741, %v905
        %v938 = vadd.f32 %v742, %v906
        %v939 = vadd.f32 %v743, %v907
        %v940 = vadd.f32 %v744, %v908
        %v941 = vadd.f32 %v745, %v909
        %v942 = vadd.f32 %v746, %v910
        %v943 = vadd.f32 %v747, %v911
        %v944 = vadd.f32 %v748, %v912
        %v945 = vadd.f32 %v749, %v913
        %v946 = vadd.f32 %v750, %v914
        %v947 = vadd.f32 %v751, %v915
        %v948 = vadd.f32 %v752, %v916
        %v949 = vadd.f32 %v753, %v917
        %v950 = vadd.f32 %v754, %v918
        %v951 = vadd.f32 %v755, %v919
        %v952 = vadd.f32 %v756, %v920
        %v953 = vadd.f32 %v757, %v921
        %v954 = vadd.f32 %v758, %v922
        %v955 = vadd.f32 %v759, %v923
        %v956 = vadd.f32 %v760, %v924
        %v957 = vadd.f32 %v761, %v925
        %v958 = vadd.f32 %v762, %v926
        %v959 = vadd.f32 %v763, %v927
        %v960 = vadd.f32 %v764, %v928
        %v961 = vadd.f32 %v765, %v929
        %s963 = sor.u32 256, 2
        %964 = vbcast.lane.b32.xlu0 %v525, %s963
        %v965 = vpop.permute.xlu0 %964
        %s967 = sor.u32 256, 10
        %968 = vbcast.lane.b32.xlu0 %v525, %s967
        %v969 = vpop.permute.xlu0 %968
        %s971 = sor.u32 256, 2
        %972 = vbcast.lane.b32.xlu0 %v536, %s971
        %v973 = vpop.permute.xlu0 %972
        %s975 = sor.u32 256, 10
        %976 = vbcast.lane.b32.xlu0 %v536, %s975
        %v977 = vpop.permute.xlu0 %976
        %s979 = sor.u32 256, 2
        %980 = vbcast.lane.b32.xlu0 %v547, %s979
        %v981 = vpop.permute.xlu0 %980
        %s983 = sor.u32 256, 10
        %984 = vbcast.lane.b32.xlu0 %v547, %s983
        %v985 = vpop.permute.xlu0 %984
        %s987 = sor.u32 256, 2
        %988 = vbcast.lane.b32.xlu0 %v558, %s987
        %v989 = vpop.permute.xlu0 %988
        %s991 = sor.u32 256, 10
        %992 = vbcast.lane.b32.xlu0 %v558, %s991
        %v993 = vpop.permute.xlu0 %992
        %s995 = sor.u32 256, 2
        %996 = vbcast.lane.b32.xlu0 %v569, %s995
        %v997 = vpop.permute.xlu0 %996
        %s999 = sor.u32 256, 10
        %1000 = vbcast.lane.b32.xlu0 %v569, %s999
        %v1001 = vpop.permute.xlu0 %1000
        %s1003 = sor.u32 256, 2
        %1004 = vbcast.lane.b32.xlu0 %v580, %s1003
        %v1005 = vpop.permute.xlu0 %1004
        %s1007 = sor.u32 256, 10
        %1008 = vbcast.lane.b32.xlu0 %v580, %s1007
        %v1009 = vpop.permute.xlu0 %1008
        %s1011 = sor.u32 256, 2
        %1012 = vbcast.lane.b32.xlu0 %v591, %s1011
        %v1013 = vpop.permute.xlu0 %1012
        %s1015 = sor.u32 256, 10
        %1016 = vbcast.lane.b32.xlu0 %v591, %s1015
        %v1017 = vpop.permute.xlu0 %1016
        %s1019 = sor.u32 256, 2
        %1020 = vbcast.lane.b32.xlu0 %v602, %s1019
        %v1021 = vpop.permute.xlu0 %1020
        %s1023 = sor.u32 256, 10
        %1024 = vbcast.lane.b32.xlu0 %v602, %s1023
        %v1025 = vpop.permute.xlu0 %1024
        %s1027 = sor.u32 256, 2
        %1028 = vbcast.lane.b32.xlu0 %v613, %s1027
        %v1029 = vpop.permute.xlu0 %1028
        %s1031 = sor.u32 256, 10
        %1032 = vbcast.lane.b32.xlu0 %v613, %s1031
        %v1033 = vpop.permute.xlu0 %1032
        %s1035 = sor.u32 256, 2
        %1036 = vbcast.lane.b32.xlu0 %v624, %s1035
        %v1037 = vpop.permute.xlu0 %1036
        %s1039 = sor.u32 256, 10
        %1040 = vbcast.lane.b32.xlu0 %v624, %s1039
        %v1041 = vpop.permute.xlu0 %1040
        %s1043 = sor.u32 256, 2
        %1044 = vbcast.lane.b32.xlu0 %v635, %s1043
        %v1045 = vpop.permute.xlu0 %1044
        %s1047 = sor.u32 256, 10
        %1048 = vbcast.lane.b32.xlu0 %v635, %s1047
        %v1049 = vpop.permute.xlu0 %1048
        %s1051 = sor.u32 256, 2
        %1052 = vbcast.lane.b32.xlu0 %v646, %s1051
        %v1053 = vpop.permute.xlu0 %1052
        %s1055 = sor.u32 256, 10
        %1056 = vbcast.lane.b32.xlu0 %v646, %s1055
        %v1057 = vpop.permute.xlu0 %1056
        %s1059 = sor.u32 256, 2
        %1060 = vbcast.lane.b32.xlu0 %v657, %s1059
        %v1061 = vpop.permute.xlu0 %1060
        %s1063 = sor.u32 256, 10
        %1064 = vbcast.lane.b32.xlu0 %v657, %s1063
        %v1065 = vpop.permute.xlu0 %1064
        %s1067 = sor.u32 256, 2
        %1068 = vbcast.lane.b32.xlu0 %v668, %s1067
        %v1069 = vpop.permute.xlu0 %1068
        %s1071 = sor.u32 256, 10
        %1072 = vbcast.lane.b32.xlu0 %v668, %s1071
        %v1073 = vpop.permute.xlu0 %1072
        %s1075 = sor.u32 256, 2
        %1076 = vbcast.lane.b32.xlu0 %v679, %s1075
        %v1077 = vpop.permute.xlu0 %1076
        %s1079 = sor.u32 256, 10
        %1080 = vbcast.lane.b32.xlu0 %v679, %s1079
        %v1081 = vpop.permute.xlu0 %1080
        %s1083 = sor.u32 256, 2
        %1084 = vbcast.lane.b32.xlu0 %v690, %s1083
        %v1085 = vpop.permute.xlu0 %1084
        %s1087 = sor.u32 256, 10
        %1088 = vbcast.lane.b32.xlu0 %v690, %s1087
        %v1089 = vpop.permute.xlu0 %1088
        %v1090 = vlaneseq
        %v1091 = vshrl.u32 %v1090, 7
        %v1092 = vsub.s32 2, %v1091
        %v1093 = vrot.slane %v519, %v1092
        %v1094 = vmul.f32 %v965, %v1093
        %v1095 = vmul.f32 %v969, %v1093
        %v1096 = vmul.f32 %v973, %v1093
        %v1097 = vmul.f32 %v977, %v1093
        %v1098 = vmul.f32 %v981, %v1093
        %v1099 = vmul.f32 %v985, %v1093
        %v1100 = vmul.f32 %v989, %v1093
        %v1101 = vmul.f32 %v993, %v1093
        %v1102 = vmul.f32 %v997, %v1093
        %v1103 = vmul.f32 %v1001, %v1093
        %v1104 = vmul.f32 %v1005, %v1093
        %v1105 = vmul.f32 %v1009, %v1093
        %v1106 = vmul.f32 %v1013, %v1093
        %v1107 = vmul.f32 %v1017, %v1093
        %v1108 = vmul.f32 %v1021, %v1093
        %v1109 = vmul.f32 %v1025, %v1093
        %v1110 = vmul.f32 %v1029, %v1093
        %v1111 = vmul.f32 %v1033, %v1093
        %v1112 = vmul.f32 %v1037, %v1093
        %v1113 = vmul.f32 %v1041, %v1093
        %v1114 = vmul.f32 %v1045, %v1093
        %v1115 = vmul.f32 %v1049, %v1093
        %v1116 = vmul.f32 %v1053, %v1093
        %v1117 = vmul.f32 %v1057, %v1093
        %v1118 = vmul.f32 %v1061, %v1093
        %v1119 = vmul.f32 %v1065, %v1093
        %v1120 = vmul.f32 %v1069, %v1093
        %v1121 = vmul.f32 %v1073, %v1093
        %v1122 = vmul.f32 %v1077, %v1093
        %v1123 = vmul.f32 %v1081, %v1093
        %v1124 = vmul.f32 %v1085, %v1093
        %v1125 = vmul.f32 %v1089, %v1093
        %v1126 = vadd.f32 %v930, %v1094
        %v1127 = vadd.f32 %v931, %v1095
        %v1128 = vadd.f32 %v932, %v1096
        %v1129 = vadd.f32 %v933, %v1097
        %v1130 = vadd.f32 %v934, %v1098
        %v1131 = vadd.f32 %v935, %v1099
        %v1132 = vadd.f32 %v936, %v1100
        %v1133 = vadd.f32 %v937, %v1101
        %v1134 = vadd.f32 %v938, %v1102
        %v1135 = vadd.f32 %v939, %v1103
        %v1136 = vadd.f32 %v940, %v1104
        %v1137 = vadd.f32 %v941, %v1105
        %v1138 = vadd.f32 %v942, %v1106
        %v1139 = vadd.f32 %v943, %v1107
        %v1140 = vadd.f32 %v944, %v1108
        %v1141 = vadd.f32 %v945, %v1109
        %v1142 = vadd.f32 %v946, %v1110
        %v1143 = vadd.f32 %v947, %v1111
        %v1144 = vadd.f32 %v948, %v1112
        %v1145 = vadd.f32 %v949, %v1113
        %v1146 = vadd.f32 %v950, %v1114
        %v1147 = vadd.f32 %v951, %v1115
        %v1148 = vadd.f32 %v952, %v1116
        %v1149 = vadd.f32 %v953, %v1117
        %v1150 = vadd.f32 %v954, %v1118
        %v1151 = vadd.f32 %v955, %v1119
        %v1152 = vadd.f32 %v956, %v1120
        %v1153 = vadd.f32 %v957, %v1121
        %v1154 = vadd.f32 %v958, %v1122
        %v1155 = vadd.f32 %v959, %v1123
        %v1156 = vadd.f32 %v960, %v1124
        %v1157 = vadd.f32 %v961, %v1125
        %v1158 = vlaneseq
        %v1159 = vshrl.u32 %v1158, 7
        %v1160 = vsub.s32 0, %v1159
        %v1161 = vrot.slane %v518, %v1160
        %1163 = vbcast.lane.b32.xlu0 %v1161, 256
        %v1164 = vpop.permute.xlu0 %1163
        %s1166 = sor.u32 256, 8
        %1167 = vbcast.lane.b32.xlu0 %v1161, %s1166
        %v1168 = vpop.permute.xlu0 %1167
        %v1169 = vlaneseq
        %v1170 = vshrl.u32 %v1169, 7
        %v1171 = vsub.s32 0, %v1170
        %v1172 = vrot.slane %v520, %v1171
        %v1173 = vmul.f32 %v539, %v1172
        %v1174 = vmul.f32 %v543, %v1172
        %v1175 = vmul.f32 %v550, %v1172
        %v1176 = vmul.f32 %v554, %v1172
        %v1177 = vmul.f32 %v561, %v1172
        %v1178 = vmul.f32 %v565, %v1172
        %v1179 = vmul.f32 %v572, %v1172
        %v1180 = vmul.f32 %v576, %v1172
        %v1181 = vmul.f32 %v583, %v1172
        %v1182 = vmul.f32 %v587, %v1172
        %v1183 = vmul.f32 %v594, %v1172
        %v1184 = vmul.f32 %v598, %v1172
        %v1185 = vmul.f32 %v605, %v1172
        %v1186 = vmul.f32 %v609, %v1172
        %v1187 = vmul.f32 %v616, %v1172
        %v1188 = vmul.f32 %v620, %v1172
        %v1189 = vmul.f32 %v627, %v1172
        %v1190 = vmul.f32 %v631, %v1172
        %v1191 = vmul.f32 %v638, %v1172
        %v1192 = vmul.f32 %v642, %v1172
        %v1193 = vmul.f32 %v649, %v1172
        %v1194 = vmul.f32 %v653, %v1172
        %v1195 = vmul.f32 %v660, %v1172
        %v1196 = vmul.f32 %v664, %v1172
        %v1197 = vmul.f32 %v671, %v1172
        %v1198 = vmul.f32 %v675, %v1172
        %v1199 = vmul.f32 %v682, %v1172
        %v1200 = vmul.f32 %v686, %v1172
        %v1201 = vmul.f32 %v693, %v1172
        %v1202 = vmul.f32 %v697, %v1172
        %v1203 = vmul.f32 %v1164, %v1172
        %v1204 = vmul.f32 %v1168, %v1172
        %v1205 = vadd.f32 %v1126, %v1173
        %v1206 = vadd.f32 %v1127, %v1174
        %v1207 = vadd.f32 %v1128, %v1175
        %v1208 = vadd.f32 %v1129, %v1176
        %v1209 = vadd.f32 %v1130, %v1177
        %v1210 = vadd.f32 %v1131, %v1178
        %v1211 = vadd.f32 %v1132, %v1179
        %v1212 = vadd.f32 %v1133, %v1180
        %v1213 = vadd.f32 %v1134, %v1181
        %v1214 = vadd.f32 %v1135, %v1182
        %v1215 = vadd.f32 %v1136, %v1183
        %v1216 = vadd.f32 %v1137, %v1184
        %v1217 = vadd.f32 %v1138, %v1185
        %v1218 = vadd.f32 %v1139, %v1186
        %v1219 = vadd.f32 %v1140, %v1187
        %v1220 = vadd.f32 %v1141, %v1188
        %v1221 = vadd.f32 %v1142, %v1189
        %v1222 = vadd.f32 %v1143, %v1190
        %v1223 = vadd.f32 %v1144, %v1191
        %v1224 = vadd.f32 %v1145, %v1192
        %v1225 = vadd.f32 %v1146, %v1193
        %v1226 = vadd.f32 %v1147, %v1194
        %v1227 = vadd.f32 %v1148, %v1195
        %v1228 = vadd.f32 %v1149, %v1196
        %v1229 = vadd.f32 %v1150, %v1197
        %v1230 = vadd.f32 %v1151, %v1198
        %v1231 = vadd.f32 %v1152, %v1199
        %v1232 = vadd.f32 %v1153, %v1200
        %v1233 = vadd.f32 %v1154, %v1201
        %v1234 = vadd.f32 %v1155, %v1202
        %v1235 = vadd.f32 %v1156, %v1203
        %v1236 = vadd.f32 %v1157, %v1204
        %s1238 = sor.u32 256, 1
        %1239 = vbcast.lane.b32.xlu0 %v1161, %s1238
        %v1240 = vpop.permute.xlu0 %1239
        %s1242 = sor.u32 256, 9
        %1243 = vbcast.lane.b32.xlu0 %v1161, %s1242
        %v1244 = vpop.permute.xlu0 %1243
        %v1245 = vlaneseq
        %v1246 = vshrl.u32 %v1245, 7
        %v1247 = vsub.s32 1, %v1246
        %v1248 = vrot.slane %v520, %v1247
        %v1249 = vmul.f32 %v777, %v1248
        %v1250 = vmul.f32 %v781, %v1248
        %v1251 = vmul.f32 %v785, %v1248
        %v1252 = vmul.f32 %v789, %v1248
        %v1253 = vmul.f32 %v793, %v1248
        %v1254 = vmul.f32 %v797, %v1248
        %v1255 = vmul.f32 %v801, %v1248
        %v1256 = vmul.f32 %v805, %v1248
        %v1257 = vmul.f32 %v809, %v1248
        %v1258 = vmul.f32 %v813, %v1248
        %v1259 = vmul.f32 %v817, %v1248
        %v1260 = vmul.f32 %v821, %v1248
        %v1261 = vmul.f32 %v825, %v1248
        %v1262 = vmul.f32 %v829, %v1248
        %v1263 = vmul.f32 %v833, %v1248
        %v1264 = vmul.f32 %v837, %v1248
        %v1265 = vmul.f32 %v841, %v1248
        %v1266 = vmul.f32 %v845, %v1248
        %v1267 = vmul.f32 %v849, %v1248
        %v1268 = vmul.f32 %v853, %v1248
        %v1269 = vmul.f32 %v857, %v1248
        %v1270 = vmul.f32 %v861, %v1248
        %v1271 = vmul.f32 %v865, %v1248
        %v1272 = vmul.f32 %v869, %v1248
        %v1273 = vmul.f32 %v873, %v1248
        %v1274 = vmul.f32 %v877, %v1248
        %v1275 = vmul.f32 %v881, %v1248
        %v1276 = vmul.f32 %v885, %v1248
        %v1277 = vmul.f32 %v889, %v1248
        %v1278 = vmul.f32 %v893, %v1248
        %v1279 = vmul.f32 %v1240, %v1248
        %v1280 = vmul.f32 %v1244, %v1248
        %v1281 = vadd.f32 %v1205, %v1249
        %v1282 = vadd.f32 %v1206, %v1250
        %v1283 = vadd.f32 %v1207, %v1251
        %v1284 = vadd.f32 %v1208, %v1252
        %v1285 = vadd.f32 %v1209, %v1253
        %v1286 = vadd.f32 %v1210, %v1254
        %v1287 = vadd.f32 %v1211, %v1255
        %v1288 = vadd.f32 %v1212, %v1256
        %v1289 = vadd.f32 %v1213, %v1257
        %v1290 = vadd.f32 %v1214, %v1258
        %v1291 = vadd.f32 %v1215, %v1259
        %v1292 = vadd.f32 %v1216, %v1260
        %v1293 = vadd.f32 %v1217, %v1261
        %v1294 = vadd.f32 %v1218, %v1262
        %v1295 = vadd.f32 %v1219, %v1263
        %v1296 = vadd.f32 %v1220, %v1264
        %v1297 = vadd.f32 %v1221, %v1265
        %v1298 = vadd.f32 %v1222, %v1266
        %v1299 = vadd.f32 %v1223, %v1267
        %v1300 = vadd.f32 %v1224, %v1268
        %v1301 = vadd.f32 %v1225, %v1269
        %v1302 = vadd.f32 %v1226, %v1270
        %v1303 = vadd.f32 %v1227, %v1271
        %v1304 = vadd.f32 %v1228, %v1272
        %v1305 = vadd.f32 %v1229, %v1273
        %v1306 = vadd.f32 %v1230, %v1274
        %v1307 = vadd.f32 %v1231, %v1275
        %v1308 = vadd.f32 %v1232, %v1276
        %v1309 = vadd.f32 %v1233, %v1277
        %v1310 = vadd.f32 %v1234, %v1278
        %v1311 = vadd.f32 %v1235, %v1279
        %v1312 = vadd.f32 %v1236, %v1280
        %s1314 = sor.u32 256, 2
        %1315 = vbcast.lane.b32.xlu0 %v1161, %s1314
        %v1316 = vpop.permute.xlu0 %1315
        %s1318 = sor.u32 256, 10
        %1319 = vbcast.lane.b32.xlu0 %v1161, %s1318
        %v1320 = vpop.permute.xlu0 %1319
        %v1321 = vlaneseq
        %v1322 = vshrl.u32 %v1321, 7
        %v1323 = vsub.s32 2, %v1322
        %v1324 = vrot.slane %v520, %v1323
        %v1325 = vmul.f32 %v973, %v1324
        %v1326 = vmul.f32 %v977, %v1324
        %v1327 = vmul.f32 %v981, %v1324
        %v1328 = vmul.f32 %v985, %v1324
        %v1329 = vmul.f32 %v989, %v1324
        %v1330 = vmul.f32 %v993, %v1324
        %v1331 = vmul.f32 %v997, %v1324
        %v1332 = vmul.f32 %v1001, %v1324
        %v1333 = vmul.f32 %v1005, %v1324
        %v1334 = vmul.f32 %v1009, %v1324
        %v1335 = vmul.f32 %v1013, %v1324
        %v1336 = vmul.f32 %v1017, %v1324
        %v1337 = vmul.f32 %v1021, %v1324
        %v1338 = vmul.f32 %v1025, %v1324
        %v1339 = vmul.f32 %v1029, %v1324
        %v1340 = vmul.f32 %v1033, %v1324
        %v1341 = vmul.f32 %v1037, %v1324
        %v1342 = vmul.f32 %v1041, %v1324
        %v1343 = vmul.f32 %v1045, %v1324
        %v1344 = vmul.f32 %v1049, %v1324
        %v1345 = vmul.f32 %v1053, %v1324
        %v1346 = vmul.f32 %v1057, %v1324
        %v1347 = vmul.f32 %v1061, %v1324
        %v1348 = vmul.f32 %v1065, %v1324
        %v1349 = vmul.f32 %v1069, %v1324
        %v1350 = vmul.f32 %v1073, %v1324
        %v1351 = vmul.f32 %v1077, %v1324
        %v1352 = vmul.f32 %v1081, %v1324
        %v1353 = vmul.f32 %v1085, %v1324
        %v1354 = vmul.f32 %v1089, %v1324
        %v1355 = vmul.f32 %v1316, %v1324
        %v1356 = vmul.f32 %v1320, %v1324
        %v1357 = vadd.f32 %v1281, %v1325
        %v1358 = vadd.f32 %v1282, %v1326
        %v1359 = vadd.f32 %v1283, %v1327
        %v1360 = vadd.f32 %v1284, %v1328
        %v1361 = vadd.f32 %v1285, %v1329
        %v1362 = vadd.f32 %v1286, %v1330
        %v1363 = vadd.f32 %v1287, %v1331
        %v1364 = vadd.f32 %v1288, %v1332
        %v1365 = vadd.f32 %v1289, %v1333
        %v1366 = vadd.f32 %v1290, %v1334
        %v1367 = vadd.f32 %v1291, %v1335
        %v1368 = vadd.f32 %v1292, %v1336
        %v1369 = vadd.f32 %v1293, %v1337
        %v1370 = vadd.f32 %v1294, %v1338
        %v1371 = vadd.f32 %v1295, %v1339
        %v1372 = vadd.f32 %v1296, %v1340
        %v1373 = vadd.f32 %v1297, %v1341
        %v1374 = vadd.f32 %v1298, %v1342
        %v1375 = vadd.f32 %v1299, %v1343
        %v1376 = vadd.f32 %v1300, %v1344
        %v1377 = vadd.f32 %v1301, %v1345
        %v1378 = vadd.f32 %v1302, %v1346
        %v1379 = vadd.f32 %v1303, %v1347
        %v1380 = vadd.f32 %v1304, %v1348
        %v1381 = vadd.f32 %v1305, %v1349
        %v1382 = vadd.f32 %v1306, %v1350
        %v1383 = vadd.f32 %v1307, %v1351
        %v1384 = vadd.f32 %v1308, %v1352
        %v1385 = vadd.f32 %v1309, %v1353
        %v1386 = vadd.f32 %v1310, %v1354
        %v1387 = vadd.f32 %v1311, %v1355
        %v1388 = vadd.f32 %v1312, %v1356
        %v1389 = vlaneseq
        %v1390 = vshrl.u32 %v1389, 7
        %v1391 = vsub.s32 1, %v1390
        %v1392 = vrot.slane %v518, %v1391
        %1394 = vbcast.lane.b32.xlu0 %v1392, 256
        %v1395 = vpop.permute.xlu0 %1394
        %s1397 = sor.u32 256, 8
        %1398 = vbcast.lane.b32.xlu0 %v1392, %s1397
        %v1399 = vpop.permute.xlu0 %1398
        %v1400 = vlaneseq
        %v1401 = vshrl.u32 %v1400, 7
        %v1402 = vsub.s32 0, %v1401
        %v1403 = vrot.slane %v521, %v1402
        %v1404 = vmul.f32 %v550, %v1403
        %v1405 = vmul.f32 %v554, %v1403
        %v1406 = vmul.f32 %v561, %v1403
        %v1407 = vmul.f32 %v565, %v1403
        %v1408 = vmul.f32 %v572, %v1403
        %v1409 = vmul.f32 %v576, %v1403
        %v1410 = vmul.f32 %v583, %v1403
        %v1411 = vmul.f32 %v587, %v1403
        %v1412 = vmul.f32 %v594, %v1403
        %v1413 = vmul.f32 %v598, %v1403
        %v1414 = vmul.f32 %v605, %v1403
        %v1415 = vmul.f32 %v609, %v1403
        %v1416 = vmul.f32 %v616, %v1403
        %v1417 = vmul.f32 %v620, %v1403
        %v1418 = vmul.f32 %v627, %v1403
        %v1419 = vmul.f32 %v631, %v1403
        %v1420 = vmul.f32 %v638, %v1403
        %v1421 = vmul.f32 %v642, %v1403
        %v1422 = vmul.f32 %v649, %v1403
        %v1423 = vmul.f32 %v653, %v1403
        %v1424 = vmul.f32 %v660, %v1403
        %v1425 = vmul.f32 %v664, %v1403
        %v1426 = vmul.f32 %v671, %v1403
        %v1427 = vmul.f32 %v675, %v1403
        %v1428 = vmul.f32 %v682, %v1403
        %v1429 = vmul.f32 %v686, %v1403
        %v1430 = vmul.f32 %v693, %v1403
        %v1431 = vmul.f32 %v697, %v1403
        %v1432 = vmul.f32 %v1164, %v1403
        %v1433 = vmul.f32 %v1168, %v1403
        %v1434 = vmul.f32 %v1395, %v1403
        %v1435 = vmul.f32 %v1399, %v1403
        %v1436 = vadd.f32 %v1357, %v1404
        %v1437 = vadd.f32 %v1358, %v1405
        %v1438 = vadd.f32 %v1359, %v1406
        %v1439 = vadd.f32 %v1360, %v1407
        %v1440 = vadd.f32 %v1361, %v1408
        %v1441 = vadd.f32 %v1362, %v1409
        %v1442 = vadd.f32 %v1363, %v1410
        %v1443 = vadd.f32 %v1364, %v1411
        %v1444 = vadd.f32 %v1365, %v1412
        %v1445 = vadd.f32 %v1366, %v1413
        %v1446 = vadd.f32 %v1367, %v1414
        %v1447 = vadd.f32 %v1368, %v1415
        %v1448 = vadd.f32 %v1369, %v1416
        %v1449 = vadd.f32 %v1370, %v1417
        %v1450 = vadd.f32 %v1371, %v1418
        %v1451 = vadd.f32 %v1372, %v1419
        %v1452 = vadd.f32 %v1373, %v1420
        %v1453 = vadd.f32 %v1374, %v1421
        %v1454 = vadd.f32 %v1375, %v1422
        %v1455 = vadd.f32 %v1376, %v1423
        %v1456 = vadd.f32 %v1377, %v1424
        %v1457 = vadd.f32 %v1378, %v1425
        %v1458 = vadd.f32 %v1379, %v1426
        %v1459 = vadd.f32 %v1380, %v1427
        %v1460 = vadd.f32 %v1381, %v1428
        %v1461 = vadd.f32 %v1382, %v1429
        %v1462 = vadd.f32 %v1383, %v1430
        %v1463 = vadd.f32 %v1384, %v1431
        %v1464 = vadd.f32 %v1385, %v1432
        %v1465 = vadd.f32 %v1386, %v1433
        %v1466 = vadd.f32 %v1387, %v1434
        %v1467 = vadd.f32 %v1388, %v1435
        %s1469 = sor.u32 256, 1
        %1470 = vbcast.lane.b32.xlu0 %v1392, %s1469
        %v1471 = vpop.permute.xlu0 %1470
        %s1473 = sor.u32 256, 9
        %1474 = vbcast.lane.b32.xlu0 %v1392, %s1473
        %v1475 = vpop.permute.xlu0 %1474
        %v1476 = vlaneseq
        %v1477 = vshrl.u32 %v1476, 7
        %v1478 = vsub.s32 1, %v1477
        %v1479 = vrot.slane %v521, %v1478
        %v1480 = vmul.f32 %v785, %v1479
        %v1481 = vmul.f32 %v789, %v1479
        %v1482 = vmul.f32 %v793, %v1479
        %v1483 = vmul.f32 %v797, %v1479
        %v1484 = vmul.f32 %v801, %v1479
        %v1485 = vmul.f32 %v805, %v1479
        %v1486 = vmul.f32 %v809, %v1479
        %v1487 = vmul.f32 %v813, %v1479
        %v1488 = vmul.f32 %v817, %v1479
        %v1489 = vmul.f32 %v821, %v1479
        %v1490 = vmul.f32 %v825, %v1479
        %v1491 = vmul.f32 %v829, %v1479
        %v1492 = vmul.f32 %v833, %v1479
        %v1493 = vmul.f32 %v837, %v1479
        %v1494 = vmul.f32 %v841, %v1479
        %v1495 = vmul.f32 %v845, %v1479
        %v1496 = vmul.f32 %v849, %v1479
        %v1497 = vmul.f32 %v853, %v1479
        %v1498 = vmul.f32 %v857, %v1479
        %v1499 = vmul.f32 %v861, %v1479
        %v1500 = vmul.f32 %v865, %v1479
        %v1501 = vmul.f32 %v869, %v1479
        %v1502 = vmul.f32 %v873, %v1479
        %v1503 = vmul.f32 %v877, %v1479
        %v1504 = vmul.f32 %v881, %v1479
        %v1505 = vmul.f32 %v885, %v1479
        %v1506 = vmul.f32 %v889, %v1479
        %v1507 = vmul.f32 %v893, %v1479
        %v1508 = vmul.f32 %v1240, %v1479
        %v1509 = vmul.f32 %v1244, %v1479
        %v1510 = vmul.f32 %v1471, %v1479
        %v1511 = vmul.f32 %v1475, %v1479
        %v1512 = vadd.f32 %v1436, %v1480
        %v1513 = vadd.f32 %v1437, %v1481
        %v1514 = vadd.f32 %v1438, %v1482
        %v1515 = vadd.f32 %v1439, %v1483
        %v1516 = vadd.f32 %v1440, %v1484
        %v1517 = vadd.f32 %v1441, %v1485
        %v1518 = vadd.f32 %v1442, %v1486
        %v1519 = vadd.f32 %v1443, %v1487
        %v1520 = vadd.f32 %v1444, %v1488
        %v1521 = vadd.f32 %v1445, %v1489
        %v1522 = vadd.f32 %v1446, %v1490
        %v1523 = vadd.f32 %v1447, %v1491
        %v1524 = vadd.f32 %v1448, %v1492
        %v1525 = vadd.f32 %v1449, %v1493
        %v1526 = vadd.f32 %v1450, %v1494
        %v1527 = vadd.f32 %v1451, %v1495
        %v1528 = vadd.f32 %v1452, %v1496
        %v1529 = vadd.f32 %v1453, %v1497
        %v1530 = vadd.f32 %v1454, %v1498
        %v1531 = vadd.f32 %v1455, %v1499
        %v1532 = vadd.f32 %v1456, %v1500
        %v1533 = vadd.f32 %v1457, %v1501
        %v1534 = vadd.f32 %v1458, %v1502
        %v1535 = vadd.f32 %v1459, %v1503
        %v1536 = vadd.f32 %v1460, %v1504
        %v1537 = vadd.f32 %v1461, %v1505
        %v1538 = vadd.f32 %v1462, %v1506
        %v1539 = vadd.f32 %v1463, %v1507
        %v1540 = vadd.f32 %v1464, %v1508
        %v1541 = vadd.f32 %v1465, %v1509
        %v1542 = vadd.f32 %v1466, %v1510
        %v1543 = vadd.f32 %v1467, %v1511
        %s1545 = sor.u32 256, 2
        %1546 = vbcast.lane.b32.xlu0 %v1392, %s1545
        %v1547 = vpop.permute.xlu0 %1546
        %s1549 = sor.u32 256, 10
        %1550 = vbcast.lane.b32.xlu0 %v1392, %s1549
        %v1551 = vpop.permute.xlu0 %1550
        %v1552 = vlaneseq
        %v1553 = vshrl.u32 %v1552, 7
        %v1554 = vsub.s32 2, %v1553
        %v1555 = vrot.slane %v521, %v1554
        %v1556 = vmul.f32 %v981, %v1555
        %v1557 = vmul.f32 %v985, %v1555
        %v1558 = vmul.f32 %v989, %v1555
        %v1559 = vmul.f32 %v993, %v1555
        %v1560 = vmul.f32 %v997, %v1555
        %v1561 = vmul.f32 %v1001, %v1555
        %v1562 = vmul.f32 %v1005, %v1555
        %v1563 = vmul.f32 %v1009, %v1555
        %v1564 = vmul.f32 %v1013, %v1555
        %v1565 = vmul.f32 %v1017, %v1555
        %v1566 = vmul.f32 %v1021, %v1555
        %v1567 = vmul.f32 %v1025, %v1555
        %v1568 = vmul.f32 %v1029, %v1555
        %v1569 = vmul.f32 %v1033, %v1555
        %v1570 = vmul.f32 %v1037, %v1555
        %v1571 = vmul.f32 %v1041, %v1555
        %v1572 = vmul.f32 %v1045, %v1555
        %v1573 = vmul.f32 %v1049, %v1555
        %v1574 = vmul.f32 %v1053, %v1555
        %v1575 = vmul.f32 %v1057, %v1555
        %v1576 = vmul.f32 %v1061, %v1555
        %v1577 = vmul.f32 %v1065, %v1555
        %v1578 = vmul.f32 %v1069, %v1555
        %v1579 = vmul.f32 %v1073, %v1555
        %v1580 = vmul.f32 %v1077, %v1555
        %v1581 = vmul.f32 %v1081, %v1555
        %v1582 = vmul.f32 %v1085, %v1555
        %v1583 = vmul.f32 %v1089, %v1555
        %v1584 = vmul.f32 %v1316, %v1555
        %v1585 = vmul.f32 %v1320, %v1555
        %v1586 = vmul.f32 %v1547, %v1555
        %v1587 = vmul.f32 %v1551, %v1555
        %v1588 = vadd.f32 %v1512, %v1556
        %v1589 = vadd.f32 %v1513, %v1557
        %v1590 = vadd.f32 %v1514, %v1558
        %v1591 = vadd.f32 %v1515, %v1559
        %v1592 = vadd.f32 %v1516, %v1560
        %v1593 = vadd.f32 %v1517, %v1561
        %v1594 = vadd.f32 %v1518, %v1562
        %v1595 = vadd.f32 %v1519, %v1563
        %v1596 = vadd.f32 %v1520, %v1564
        %v1597 = vadd.f32 %v1521, %v1565
        %v1598 = vadd.f32 %v1522, %v1566
        %v1599 = vadd.f32 %v1523, %v1567
        %v1600 = vadd.f32 %v1524, %v1568
        %v1601 = vadd.f32 %v1525, %v1569
        %v1602 = vadd.f32 %v1526, %v1570
        %v1603 = vadd.f32 %v1527, %v1571
        %v1604 = vadd.f32 %v1528, %v1572
        %v1605 = vadd.f32 %v1529, %v1573
        %v1606 = vadd.f32 %v1530, %v1574
        %v1607 = vadd.f32 %v1531, %v1575
        %v1608 = vadd.f32 %v1532, %v1576
        %v1609 = vadd.f32 %v1533, %v1577
        %v1610 = vadd.f32 %v1534, %v1578
        %v1611 = vadd.f32 %v1535, %v1579
        %v1612 = vadd.f32 %v1536, %v1580
        %v1613 = vadd.f32 %v1537, %v1581
        %v1614 = vadd.f32 %v1538, %v1582
        %v1615 = vadd.f32 %v1539, %v1583
        %v1616 = vadd.f32 %v1540, %v1584
        %v1617 = vadd.f32 %v1541, %v1585
        %v1618 = vadd.f32 %v1542, %v1586
        %v1619 = vadd.f32 %v1543, %v1587
        %v1620 = vld [vmem:[%s3] sm:$0x1]
        %v1622 = vlaneseq
        %v1623 = vshrl.u32 %v1622, 7
        %v1624 = vsub.s32 0, %v1623
        %v1625 = vrot.slane %v1620, %v1624
        %v1627 = vadd.f32 %v1588, %v1625
        %v1628 = vadd.f32 %v1589, %v1625
        %v1629 = vadd.f32 %v1590, %v1625
        %v1630 = vadd.f32 %v1591, %v1625
        %v1631 = vadd.f32 %v1592, %v1625
        %v1632 = vadd.f32 %v1593, %v1625
        %v1633 = vadd.f32 %v1594, %v1625
        %v1634 = vadd.f32 %v1595, %v1625
        %v1635 = vadd.f32 %v1596, %v1625
        %v1636 = vadd.f32 %v1597, %v1625
        %v1637 = vadd.f32 %v1598, %v1625
        %v1638 = vadd.f32 %v1599, %v1625
        %v1639 = vadd.f32 %v1600, %v1625
        %v1640 = vadd.f32 %v1601, %v1625
        %v1641 = vadd.f32 %v1602, %v1625
        %v1642 = vadd.f32 %v1603, %v1625
        %v1643 = vadd.f32 %v1604, %v1625
        %v1644 = vadd.f32 %v1605, %v1625
        %v1645 = vadd.f32 %v1606, %v1625
        %v1646 = vadd.f32 %v1607, %v1625
        %v1647 = vadd.f32 %v1608, %v1625
        %v1648 = vadd.f32 %v1609, %v1625
        %v1649 = vadd.f32 %v1610, %v1625
        %v1650 = vadd.f32 %v1611, %v1625
        %v1651 = vadd.f32 %v1612, %v1625
        %v1652 = vadd.f32 %v1613, %v1625
        %v1653 = vadd.f32 %v1614, %v1625
        %v1654 = vadd.f32 %v1615, %v1625
        %v1655 = vadd.f32 %v1616, %v1625
        %v1656 = vadd.f32 %v1617, %v1625
        %v1657 = vadd.f32 %v1618, %v1625
        %v1658 = vadd.f32 %v1619, %v1625
        %vm1659 = vcmp.ge.f32.partialorder %v1627, 0.0
        %vm1660 = vcmp.ge.f32.partialorder %v1628, 0.0
        %vm1661 = vcmp.ge.f32.partialorder %v1629, 0.0
        %vm1662 = vcmp.ge.f32.partialorder %v1630, 0.0
        %vm1663 = vcmp.ge.f32.partialorder %v1631, 0.0
        %vm1664 = vcmp.ge.f32.partialorder %v1632, 0.0
        %vm1665 = vcmp.ge.f32.partialorder %v1633, 0.0
        %vm1666 = vcmp.ge.f32.partialorder %v1634, 0.0
        %vm1667 = vcmp.ge.f32.partialorder %v1635, 0.0
        %vm1668 = vcmp.ge.f32.partialorder %v1636, 0.0
        %vm1669 = vcmp.ge.f32.partialorder %v1637, 0.0
        %vm1670 = vcmp.ge.f32.partialorder %v1638, 0.0
        %vm1671 = vcmp.ge.f32.partialorder %v1639, 0.0
        %vm1672 = vcmp.ge.f32.partialorder %v1640, 0.0
        %vm1673 = vcmp.ge.f32.partialorder %v1641, 0.0
        %vm1674 = vcmp.ge.f32.partialorder %v1642, 0.0
        %vm1675 = vcmp.ge.f32.partialorder %v1643, 0.0
        %vm1676 = vcmp.ge.f32.partialorder %v1644, 0.0
        %vm1677 = vcmp.ge.f32.partialorder %v1645, 0.0
        %vm1678 = vcmp.ge.f32.partialorder %v1646, 0.0
        %vm1679 = vcmp.ge.f32.partialorder %v1647, 0.0
        %vm1680 = vcmp.ge.f32.partialorder %v1648, 0.0
        %vm1681 = vcmp.ge.f32.partialorder %v1649, 0.0
        %vm1682 = vcmp.ge.f32.partialorder %v1650, 0.0
        %vm1683 = vcmp.ge.f32.partialorder %v1651, 0.0
        %vm1684 = vcmp.ge.f32.partialorder %v1652, 0.0
        %vm1685 = vcmp.ge.f32.partialorder %v1653, 0.0
        %vm1686 = vcmp.ge.f32.partialorder %v1654, 0.0
        %vm1687 = vcmp.ge.f32.partialorder %v1655, 0.0
        %vm1688 = vcmp.ge.f32.partialorder %v1656, 0.0
        %vm1689 = vcmp.ge.f32.partialorder %v1657, 0.0
        %vm1690 = vcmp.ge.f32.partialorder %v1658, 0.0
        %v1691 = vmul.f32 %v1627, 0.2
        %v1692 = vmul.f32 %v1628, 0.2
        %v1693 = vmul.f32 %v1629, 0.2
        %v1694 = vmul.f32 %v1630, 0.2
        %v1695 = vmul.f32 %v1631, 0.2
        %v1696 = vmul.f32 %v1632, 0.2
        %v1697 = vmul.f32 %v1633, 0.2
        %v1698 = vmul.f32 %v1634, 0.2
        %v1699 = vmul.f32 %v1635, 0.2
        %v1700 = vmul.f32 %v1636, 0.2
        %v1701 = vmul.f32 %v1637, 0.2
        %v1702 = vmul.f32 %v1638, 0.2
        %v1703 = vmul.f32 %v1639, 0.2
        %v1704 = vmul.f32 %v1640, 0.2
        %v1705 = vmul.f32 %v1641, 0.2
        %v1706 = vmul.f32 %v1642, 0.2
        %v1707 = vmul.f32 %v1643, 0.2
        %v1708 = vmul.f32 %v1644, 0.2
        %v1709 = vmul.f32 %v1645, 0.2
        %v1710 = vmul.f32 %v1646, 0.2
        %v1711 = vmul.f32 %v1647, 0.2
        %v1712 = vmul.f32 %v1648, 0.2
        %v1713 = vmul.f32 %v1649, 0.2
        %v1714 = vmul.f32 %v1650, 0.2
        %v1715 = vmul.f32 %v1651, 0.2
        %v1716 = vmul.f32 %v1652, 0.2
        %v1717 = vmul.f32 %v1653, 0.2
        %v1718 = vmul.f32 %v1654, 0.2
        %v1719 = vmul.f32 %v1655, 0.2
        %v1720 = vmul.f32 %v1656, 0.2
        %v1721 = vmul.f32 %v1657, 0.2
        %v1722 = vmul.f32 %v1658, 0.2
        %v1723 = vsel %vm1659, %v1627, %v1691
        %v1724 = vsel %vm1660, %v1628, %v1692
        %v1725 = vsel %vm1661, %v1629, %v1693
        %v1726 = vsel %vm1662, %v1630, %v1694
        %v1727 = vsel %vm1663, %v1631, %v1695
        %v1728 = vsel %vm1664, %v1632, %v1696
        %v1729 = vsel %vm1665, %v1633, %v1697
        %v1730 = vsel %vm1666, %v1634, %v1698
        %v1731 = vsel %vm1667, %v1635, %v1699
        %v1732 = vsel %vm1668, %v1636, %v1700
        %v1733 = vsel %vm1669, %v1637, %v1701
        %v1734 = vsel %vm1670, %v1638, %v1702
        %v1735 = vsel %vm1671, %v1639, %v1703
        %v1736 = vsel %vm1672, %v1640, %v1704
        %v1737 = vsel %vm1673, %v1641, %v1705
        %v1738 = vsel %vm1674, %v1642, %v1706
        %v1739 = vsel %vm1675, %v1643, %v1707
        %v1740 = vsel %vm1676, %v1644, %v1708
        %v1741 = vsel %vm1677, %v1645, %v1709
        %v1742 = vsel %vm1678, %v1646, %v1710
        %v1743 = vsel %vm1679, %v1647, %v1711
        %v1744 = vsel %vm1680, %v1648, %v1712
        %v1745 = vsel %vm1681, %v1649, %v1713
        %v1746 = vsel %vm1682, %v1650, %v1714
        %v1747 = vsel %vm1683, %v1651, %v1715
        %v1748 = vsel %vm1684, %v1652, %v1716
        %v1749 = vsel %vm1685, %v1653, %v1717
        %v1750 = vsel %vm1686, %v1654, %v1718
        %v1751 = vsel %vm1687, %v1655, %v1719
        %v1752 = vsel %vm1688, %v1656, %v1720
        %v1753 = vsel %vm1689, %v1657, %v1721
        %v1754 = vsel %vm1690, %v1658, %v1722
        %v1755 = vmax.f32 %v1723, %v1725
        %v1756 = vmax.f32 %v1724, %v1726
        %v1757 = vmax.f32 %v1731, %v1733
        %v1758 = vmax.f32 %v1732, %v1734
        %v1759 = vmax.f32 %v1739, %v1741
        %v1760 = vmax.f32 %v1740, %v1742
        %v1761 = vmax.f32 %v1747, %v1749
        %v1762 = vmax.f32 %v1748, %v1750
        %v1763 = vmax.f32 %v1727, %v1729
        %v1764 = vmax.f32 %v1728, %v1730
        %v1765 = vmax.f32 %v1735, %v1737
        %v1766 = vmax.f32 %v1736, %v1738
        %v1767 = vmax.f32 %v1743, %v1745
        %v1768 = vmax.f32 %v1744, %v1746
        %v1769 = vmax.f32 %v1751, %v1753
        %v1770 = vmax.f32 %v1752, %v1754
        %v1771 = vmax.f32 %v1755, %v1763
        %v1772 = vmax.f32 %v1756, %v1764
        %v1773 = vmax.f32 %v1757, %v1765
        %v1774 = vmax.f32 %v1758, %v1766
        %v1775 = vmax.f32 %v1759, %v1767
        %v1776 = vmax.f32 %v1760, %v1768
        %v1777 = vmax.f32 %v1761, %v1769
        %v1778 = vmax.f32 %v1762, %v1770
        %vm1779 = vcmask 125952
        %v1780 = vsel %vm1779, %v1771, -inf
        %v1781 = vrot.slane %v1780, 4
        %v1782 = vmax.f32 %v1780, %v1781
        %v1783 = vrot.slane %v1782, 2
        %v1784 = vmax.f32 %v1782, %v1783
        %v1785 = vrot.slane %v1784, 1
        %v1786 = vmax.f32 %v1784, %v1785
        %v1787 = vsel %vm1779, %v1773, -inf
        %v1788 = vrot.slane %v1787, 4
        %v1789 = vmax.f32 %v1787, %v1788
        %v1790 = vrot.slane %v1789, 2
        %v1791 = vmax.f32 %v1789, %v1790
        %v1792 = vrot.slane %v1791, 1
        %v1793 = vmax.f32 %v1791, %v1792
        %v1794 = vsel %vm1779, %v1775, -inf
        %v1795 = vrot.slane %v1794, 4
        %v1796 = vmax.f32 %v1794, %v1795
        %v1797 = vrot.slane %v1796, 2
        %v1798 = vmax.f32 %v1796, %v1797
        %v1799 = vrot.slane %v1798, 1
        %v1800 = vmax.f32 %v1798, %v1799
        %v1801 = vsel %vm1779, %v1777, -inf
        %v1802 = vrot.slane %v1801, 4
        %v1803 = vmax.f32 %v1801, %v1802
        %v1804 = vrot.slane %v1803, 2
        %v1805 = vmax.f32 %v1803, %v1804
        %v1806 = vrot.slane %v1805, 1
        %v1807 = vmax.f32 %v1805, %v1806
        %vm1808 = vcmask 130052
        %v1809 = vsel %vm1808, %v1771, -inf
        %v1810 = vrot.slane %v1809, 4
        %v1811 = vmax.f32 %v1809, %v1810
        %v1812 = vrot.slane %v1811, 2
        %v1813 = vmax.f32 %v1811, %v1812
        %v1814 = vrot.slane %v1813, 1
        %v1815 = vmax.f32 %v1813, %v1814
        %v1816 = vsel %vm1808, %v1773, -inf
        %v1817 = vrot.slane %v1816, 4
        %v1818 = vmax.f32 %v1816, %v1817
        %v1819 = vrot.slane %v1818, 2
        %v1820 = vmax.f32 %v1818, %v1819
        %v1821 = vrot.slane %v1820, 1
        %v1822 = vmax.f32 %v1820, %v1821
        %v1823 = vsel %vm1808, %v1775, -inf
        %v1824 = vrot.slane %v1823, 4
        %v1825 = vmax.f32 %v1823, %v1824
        %v1826 = vrot.slane %v1825, 2
        %v1827 = vmax.f32 %v1825, %v1826
        %v1828 = vrot.slane %v1827, 1
        %v1829 = vmax.f32 %v1827, %v1828
        %v1830 = vsel %vm1808, %v1777, -inf
        %v1831 = vrot.slane %v1830, 4
        %v1832 = vmax.f32 %v1830, %v1831
        %v1833 = vrot.slane %v1832, 2
        %v1834 = vmax.f32 %v1832, %v1833
        %v1835 = vrot.slane %v1834, 1
        %v1836 = vmax.f32 %v1834, %v1835
        %v1837 = vsel %vm1779, %v1772, -inf
        %v1838 = vrot.slane %v1837, 4
        %v1839 = vmax.f32 %v1837, %v1838
        %v1840 = vrot.slane %v1839, 2
        %v1841 = vmax.f32 %v1839, %v1840
        %v1842 = vrot.slane %v1841, 1
        %v1843 = vmax.f32 %v1841, %v1842
        %v1844 = vsel %vm1779, %v1774, -inf
        %v1845 = vrot.slane %v1844, 4
        %v1846 = vmax.f32 %v1844, %v1845
        %v1847 = vrot.slane %v1846, 2
        %v1848 = vmax.f32 %v1846, %v1847
        %v1849 = vrot.slane %v1848, 1
        %v1850 = vmax.f32 %v1848, %v1849
        %v1851 = vsel %vm1779, %v1776, -inf
        %v1852 = vrot.slane %v1851, 4
        %v1853 = vmax.f32 %v1851, %v1852
        %v1854 = vrot.slane %v1853, 2
        %v1855 = vmax.f32 %v1853, %v1854
        %v1856 = vrot.slane %v1855, 1
        %v1857 = vmax.f32 %v1855, %v1856
        %v1858 = vsel %vm1779, %v1778, -inf
        %v1859 = vrot.slane %v1858, 4
        %v1860 = vmax.f32 %v1858, %v1859
        %v1861 = vrot.slane %v1860, 2
        %v1862 = vmax.f32 %v1860, %v1861
        %v1863 = vrot.slane %v1862, 1
        %v1864 = vmax.f32 %v1862, %v1863
        %v1865 = vsel %vm1808, %v1772, -inf
        %v1866 = vrot.slane %v1865, 4
        %v1867 = vmax.f32 %v1865, %v1866
        %v1868 = vrot.slane %v1867, 2
        %v1869 = vmax.f32 %v1867, %v1868
        %v1870 = vrot.slane %v1869, 1
        %v1871 = vmax.f32 %v1869, %v1870
        %v1872 = vsel %vm1808, %v1774, -inf
        %v1873 = vrot.slane %v1872, 4
        %v1874 = vmax.f32 %v1872, %v1873
        %v1875 = vrot.slane %v1874, 2
        %v1876 = vmax.f32 %v1874, %v1875
        %v1877 = vrot.slane %v1876, 1
        %v1878 = vmax.f32 %v1876, %v1877
        %v1879 = vsel %vm1808, %v1776, -inf
        %v1880 = vrot.slane %v1879, 4
        %v1881 = vmax.f32 %v1879, %v1880
        %v1882 = vrot.slane %v1881, 2
        %v1883 = vmax.f32 %v1881, %v1882
        %v1884 = vrot.slane %v1883, 1
        %v1885 = vmax.f32 %v1883, %v1884
        %v1886 = vsel %vm1808, %v1778, -inf
        %v1887 = vrot.slane %v1886, 4
        %v1888 = vmax.f32 %v1886, %v1887
        %v1889 = vrot.slane %v1888, 2
        %v1890 = vmax.f32 %v1888, %v1889
        %v1891 = vrot.slane %v1890, 1
        %v1892 = vmax.f32 %v1890, %v1891
        %vm1893 = vcmask 1040384
        %v1894 = vsel %vm1893, %v1786, %v1815
        %v1895 = vsel %vm1893, %v1793, %v1822
        %v1896 = vsel %vm1893, %v1800, %v1829
        %v1897 = vsel %vm1893, %v1807, %v1836
        %vm1898 = vcmask 1041408
        %v1899 = vsel %vm1898, %v1894, %v1843
        %v1900 = vsel %vm1898, %v1895, %v1850
        %v1901 = vsel %vm1898, %v1896, %v1857
        %v1902 = vsel %vm1898, %v1897, %v1864
        %vm1903 = vcmask 1042432
        %v1904 = vsel %vm1903, %v1899, %v1871
        %v1905 = vsel %vm1903, %v1900, %v1878
        %v1906 = vsel %vm1903, %v1901, %v1885
        %v1907 = vsel %vm1903, %v1902, %v1892
        %v1913 = vrot.slane 0.0, 7
        %v1914 = vrot.slane %v1904, 7
        %v1915 = vrot.slane %v1905, 7
        %v1916 = vrot.slane %v1906, 7
        %v1917 = vrot.slane %v1907, 7
        %v1923 = vsel %vm1893, 0.0, %v1913
        %v1924 = vsel %vm1893, 0.0, %v1914
        %v1925 = vsel %vm1893, 0.0, %v1915
        %v1926 = vsel %vm1893, 0.0, %v1916
        %v1927 = vsel %vm1893, 0.0, %v1917
        %vm1928 = vcmask 1044480
        %v1929 = vsel %vm1928, %v1923, 0.0
        %v1930 = vsel %vm1928, %v1924, 0.0
        %v1931 = vsel %vm1928, %v1925, 0.0
        %v1932 = vsel %vm1928, %v1926, 0.0
        %v1933 = vsel %vm1928, %v1927, 0.0
        %v1934 = vld [vmem:[%s4] sm:$0x7]
        %v1935 = vld [vmem:[%s4 + $0x4] sm:$0x7]
        %v1936 = vld [vmem:[%s4 + $0x8] sm:$0x7]
        %v1937 = vlaneseq
        %v1938 = vshrl.u32 %v1937, 7
        %v1939 = vsub.s32 0, %v1938
        %v1940 = vrot.slane %v1934, %v1939
        %v1941 = vmul.f32 %v1929, %v1940
        %v1942 = vmul.f32 %v1930, %v1940
        %v1943 = vmul.f32 %v1931, %v1940
        %v1944 = vmul.f32 %v1932, %v1940
        %v1945 = vadd.f32 %v1941, 0.0
        %v1946 = vadd.f32 %v1942, 0.0
        %v1947 = vadd.f32 %v1943, 0.0
        %v1948 = vadd.f32 %v1944, 0.0
        %v1949 = vlaneseq
        %v1950 = vshrl.u32 %v1949, 7
        %v1951 = vsub.s32 1, %v1950
        %v1952 = vrot.slane %v1934, %v1951
        %v1953 = vmul.f32 %v1929, %v1952
        %v1954 = vmul.f32 %v1930, %v1952
        %v1955 = vmul.f32 %v1931, %v1952
        %v1956 = vmul.f32 %v1932, %v1952
        %v1961 = vrot.slane %v1953, 1
        %v1962 = vrot.slane %v1954, 1
        %v1963 = vrot.slane %v1955, 1
        %v1964 = vrot.slane %v1956, 1
        %v1969 = vadd.f32 %v1945, %v1961
        %v1970 = vadd.f32 %v1946, %v1962
        %v1971 = vadd.f32 %v1947, %v1963
        %v1972 = vadd.f32 %v1948, %v1964
        %v1973 = vlaneseq
        %v1974 = vshrl.u32 %v1973, 7
        %v1975 = vsub.s32 2, %v1974
        %v1976 = vrot.slane %v1934, %v1975
        %v1977 = vmul.f32 %v1929, %v1976
        %v1978 = vmul.f32 %v1930, %v1976
        %v1979 = vmul.f32 %v1931, %v1976
        %v1980 = vmul.f32 %v1932, %v1976
        %v1985 = vrot.slane %v1977, 2
        %v1986 = vrot.slane %v1978, 2
        %v1987 = vrot.slane %v1979, 2
        %v1988 = vrot.slane %v1980, 2
        %v1993 = vadd.f32 %v1969, %v1985
        %v1994 = vadd.f32 %v1970, %v1986
        %v1995 = vadd.f32 %v1971, %v1987
        %v1996 = vadd.f32 %v1972, %v1988
        %v1997 = vlaneseq
        %v1998 = vshrl.u32 %v1997, 7
        %v1999 = vsub.s32 0, %v1998
        %v2000 = vrot.slane %v1935, %v1999
        %v2001 = vmul.f32 %v1930, %v2000
        %v2002 = vmul.f32 %v1931, %v2000
        %v2003 = vmul.f32 %v1932, %v2000
        %v2004 = vmul.f32 %v1933, %v2000
        %v2005 = vadd.f32 %v1993, %v2001
        %v2006 = vadd.f32 %v1994, %v2002
        %v2007 = vadd.f32 %v1995, %v2003
        %v2008 = vadd.f32 %v1996, %v2004
        %v2009 = vlaneseq
        %v2010 = vshrl.u32 %v2009, 7
        %v2011 = vsub.s32 1, %v2010
        %v2012 = vrot.slane %v1935, %v2011
        %v2013 = vmul.f32 %v1930, %v2012
        %v2014 = vmul.f32 %v1931, %v2012
        %v2015 = vmul.f32 %v1932, %v2012
        %v2016 = vmul.f32 %v1933, %v2012
        %v2021 = vrot.slane %v2013, 1
        %v2022 = vrot.slane %v2014, 1
        %v2023 = vrot.slane %v2015, 1
        %v2024 = vrot.slane %v2016, 1
        %v2029 = vadd.f32 %v2005, %v2021
        %v2030 = vadd.f32 %v2006, %v2022
        %v2031 = vadd.f32 %v2007, %v2023
        %v2032 = vadd.f32 %v2008, %v2024
        %v2033 = vlaneseq
        %v2034 = vshrl.u32 %v2033, 7
        %v2035 = vsub.s32 2, %v2034
        %v2036 = vrot.slane %v1935, %v2035
        %v2037 = vmul.f32 %v1930, %v2036
        %v2038 = vmul.f32 %v1931, %v2036
        %v2039 = vmul.f32 %v1932, %v2036
        %v2040 = vmul.f32 %v1933, %v2036
        %v2045 = vrot.slane %v2037, 2
        %v2046 = vrot.slane %v2038, 2
        %v2047 = vrot.slane %v2039, 2
        %v2048 = vrot.slane %v2040, 2
        %v2053 = vadd.f32 %v2029, %v2045
        %v2054 = vadd.f32 %v2030, %v2046
        %v2055 = vadd.f32 %v2031, %v2047
        %v2056 = vadd.f32 %v2032, %v2048
        %v2057 = vlaneseq
        %v2058 = vshrl.u32 %v2057, 7
        %v2059 = vsub.s32 0, %v2058
        %v2060 = vrot.slane %v1936, %v2059
        %v2061 = vmul.f32 %v1931, %v2060
        %v2062 = vmul.f32 %v1932, %v2060
        %v2063 = vmul.f32 %v1933, %v2060
        %v2064 = vmul.f32 %v1929, %v2060
        %v2065 = vadd.f32 %v2053, %v2061
        %v2066 = vadd.f32 %v2054, %v2062
        %v2067 = vadd.f32 %v2055, %v2063
        %v2068 = vadd.f32 %v2056, %v2064
        %v2069 = vlaneseq
        %v2070 = vshrl.u32 %v2069, 7
        %v2071 = vsub.s32 1, %v2070
        %v2072 = vrot.slane %v1936, %v2071
        %v2073 = vmul.f32 %v1931, %v2072
        %v2074 = vmul.f32 %v1932, %v2072
        %v2075 = vmul.f32 %v1933, %v2072
        %v2076 = vmul.f32 %v1929, %v2072
        %v2081 = vrot.slane %v2073, 1
        %v2082 = vrot.slane %v2074, 1
        %v2083 = vrot.slane %v2075, 1
        %v2084 = vrot.slane %v2076, 1
        %v2089 = vadd.f32 %v2065, %v2081
        %v2090 = vadd.f32 %v2066, %v2082
        %v2091 = vadd.f32 %v2067, %v2083
        %v2092 = vadd.f32 %v2068, %v2084
        %v2093 = vlaneseq
        %v2094 = vshrl.u32 %v2093, 7
        %v2095 = vsub.s32 2, %v2094
        %v2096 = vrot.slane %v1936, %v2095
        %v2097 = vmul.f32 %v1931, %v2096
        %v2098 = vmul.f32 %v1932, %v2096
        %v2099 = vmul.f32 %v1933, %v2096
        %v2100 = vmul.f32 %v1929, %v2096
        %v2105 = vrot.slane %v2097, 2
        %v2106 = vrot.slane %v2098, 2
        %v2107 = vrot.slane %v2099, 2
        %v2108 = vrot.slane %v2100, 2
        %v2113 = vadd.f32 %v2089, %v2105
        %v2114 = vadd.f32 %v2090, %v2106
        %v2115 = vadd.f32 %v2091, %v2107
        %v2116 = vadd.f32 %v2092, %v2108
        %v2117 = vsel %vm1779, %v2113, 0.0
        %2118 = vadd.xlane.f32.xlu0 %v2117
        %v2119 = vpop.xlane.xlu0 %2118
        %v2120 = vsel %vm1779, %v2114, 0.0
        %2121 = vadd.xlane.f32.xlu0 %v2120
        %v2122 = vpop.xlane.xlu0 %2121
        %v2123 = vsel %vm1779, %v2115, 0.0
        %2124 = vadd.xlane.f32.xlu0 %v2123
        %v2125 = vpop.xlane.xlu0 %2124
        %v2126 = vsel %vm1779, %v2116, 0.0
        %2127 = vadd.xlane.f32.xlu0 %v2126
        %v2128 = vpop.xlane.xlu0 %2127
        %s2129 = sld [smem:[#allocation2]]
        %v2130 = vstv %s2129
        %v2131 = vadd.f32 %v2119, %v2130
        %v2132 = vadd.f32 %v2122, %v2130
        %v2133 = vadd.f32 %v2125, %v2130
        %v2134 = vadd.f32 %v2128, %v2130
        %v2135 = vld [vmem:[%s514] sm:$0x3f]
        %v2140 = vrot.slane %v2131, 7
        %v2141 = vrot.slane %v2132, 7
        %v2142 = vrot.slane %v2133, 7
        %v2143 = vrot.slane %v2134, 7
        %v2148 = vsel %vm1893, 0.0, %v2140
        %v2149 = vsel %vm1893, 0.0, %v2141
        %v2150 = vsel %vm1893, 0.0, %v2142
        %v2151 = vsel %vm1893, 0.0, %v2143
        %v2152 = vsel %vm1928, %v2148, 0.0
        %v2153 = vsel %vm1928, %v2149, 0.0
        %v2154 = vsel %vm1928, %v2150, 0.0
        %v2155 = vsel %vm1928, %v2151, 0.0
        %v2156 = vld [vmem:[%s6] sm:$0x3]
        %v2157 = vld [vmem:[%s6 + $0x2] sm:$0x3]
        %v2158 = vld [vmem:[%s6 + $0x4] sm:$0x3]
        %v2159 = vld [vmem:[%s6 + $0x6] sm:$0x3]
        %v2160 = vld [vmem:[%s6 + $0x8] sm:$0x3]
        %v2161 = vld [vmem:[%s6 + $0xa] sm:$0x3]
        %v2162 = vld [vmem:[%s6 + $0xc] sm:$0x3]
        %v2163 = vld [vmem:[%s6 + $0xe] sm:$0x3]
        %v2164 = vld [vmem:[%s6 + $0x10] sm:$0x3]
        %2166 = vset.pattern.permute.xlu0 0
        %2167 = vperm.xlu0 %2166, %v1929
        %v2168 = vpop.permute.xlu0 %2167
        %2171 = vset.pattern.permute.xlu0 0
        %2172 = vperm.xlu0 %2171, %v2152
        %v2173 = vpop.permute.xlu0 %2172
        %2176 = vset.pattern.permute.xlu0 0
        %2177 = vperm.xlu0 %2176, %v2153
        %v2178 = vpop.permute.xlu0 %2177
        %2181 = vset.pattern.permute.xlu0 0
        %2182 = vperm.xlu0 %2181, %v2154
        %v2183 = vpop.permute.xlu0 %2182
        %v2185 = vlaneseq
        %v2186 = vshrl.u32 %v2185, 7
        %v2187 = vsub.s32 0, %v2186
        %v2188 = vrot.slane %v2156, %v2187
        %v2189 = vmul.f32 %v2168, %v2188
        %v2190 = vmul.f32 %v2173, %v2188
        %v2191 = vmul.f32 %v2178, %v2188
        %v2192 = vmul.f32 %v2183, %v2188
        %v2193 = vadd.f32 %v2189, 0.0
        %v2194 = vadd.f32 %v2190, 0.0
        %v2195 = vadd.f32 %v2191, 0.0
        %v2196 = vadd.f32 %v2192, 0.0
        %v2197 = vlaneseq
        %v2198 = vshrl.u32 %v2197, 7
        %v2199 = vsub.s32 0, %v2198
        %v2200 = vrot.slane %v2135, %v2199
        %2202 = vbcast.lane.b32.xlu0 %v2200, 256
        %v2203 = vpop.permute.xlu0 %2202
        %v2204 = vlaneseq
        %v2205 = vshrl.u32 %v2204, 7
        %v2206 = vsub.s32 1, %v2205
        %v2207 = vrot.slane %v2135, %v2206
        %2209 = vbcast.lane.b32.xlu0 %v2207, 256
        %v2210 = vpop.permute.xlu0 %2209
        %v2211 = vlaneseq
        %v2212 = vshrl.u32 %v2211, 7
        %v2213 = vsub.s32 2, %v2212
        %v2214 = vrot.slane %v2135, %v2213
        %2216 = vbcast.lane.b32.xlu0 %v2214, 256
        %v2217 = vpop.permute.xlu0 %2216
        %v2218 = vlaneseq
        %v2219 = vshrl.u32 %v2218, 7
        %v2220 = vsub.s32 3, %v2219
        %v2221 = vrot.slane %v2135, %v2220
        %2223 = vbcast.lane.b32.xlu0 %v2221, 256
        %v2224 = vpop.permute.xlu0 %2223
        %v2225 = vlaneseq
        %v2226 = vshrl.u32 %v2225, 7
        %v2227 = vsub.s32 1, %v2226
        %v2228 = vrot.slane %v2156, %v2227
        %v2229 = vmul.f32 %v2203, %v2228
        %v2230 = vmul.f32 %v2210, %v2228
        %v2231 = vmul.f32 %v2217, %v2228
        %v2232 = vmul.f32 %v2224, %v2228
        %v2233 = vadd.f32 %v2193, %v2229
        %v2234 = vadd.f32 %v2194, %v2230
        %v2235 = vadd.f32 %v2195, %v2231
        %v2236 = vadd.f32 %v2196, %v2232
        %v2237 = vlaneseq
        %v2238 = vshrl.u32 %v2237, 7
        %v2239 = vsub.s32 0, %v2238
        %v2240 = vrot.slane %v2157, %v2239
        %v2241 = vmul.f32 %v2168, %v2240
        %v2242 = vmul.f32 %v2173, %v2240
        %v2243 = vmul.f32 %v2178, %v2240
        %v2244 = vmul.f32 %v2183, %v2240
        %v2249 = vrot.slane %v2241, 1
        %v2250 = vrot.slane %v2242, 1
        %v2251 = vrot.slane %v2243, 1
        %v2252 = vrot.slane %v2244, 1
        %v2257 = vadd.f32 %v2233, %v2249
        %v2258 = vadd.f32 %v2234, %v2250
        %v2259 = vadd.f32 %v2235, %v2251
        %v2260 = vadd.f32 %v2236, %v2252
        %s2262 = sor.u32 256, 1
        %2263 = vbcast.lane.b32.xlu0 %v2200, %s2262
        %v2264 = vpop.permute.xlu0 %2263
        %s2266 = sor.u32 256, 1
        %2267 = vbcast.lane.b32.xlu0 %v2207, %s2266
        %v2268 = vpop.permute.xlu0 %2267
        %s2270 = sor.u32 256, 1
        %2271 = vbcast.lane.b32.xlu0 %v2214, %s2270
        %v2272 = vpop.permute.xlu0 %2271
        %s2274 = sor.u32 256, 1
        %2275 = vbcast.lane.b32.xlu0 %v2221, %s2274
        %v2276 = vpop.permute.xlu0 %2275
        %v2277 = vlaneseq
        %v2278 = vshrl.u32 %v2277, 7
        %v2279 = vsub.s32 1, %v2278
        %v2280 = vrot.slane %v2157, %v2279
        %v2281 = vmul.f32 %v2264, %v2280
        %v2282 = vmul.f32 %v2268, %v2280
        %v2283 = vmul.f32 %v2272, %v2280
        %v2284 = vmul.f32 %v2276, %v2280
        %v2285 = vadd.f32 %v2257, %v2281
        %v2286 = vadd.f32 %v2258, %v2282
        %v2287 = vadd.f32 %v2259, %v2283
        %v2288 = vadd.f32 %v2260, %v2284
        %v2289 = vlaneseq
        %v2290 = vshrl.u32 %v2289, 7
        %v2291 = vsub.s32 0, %v2290
        %v2292 = vrot.slane %v2158, %v2291
        %v2293 = vmul.f32 %v2168, %v2292
        %v2294 = vmul.f32 %v2173, %v2292
        %v2295 = vmul.f32 %v2178, %v2292
        %v2296 = vmul.f32 %v2183, %v2292
        %v2301 = vrot.slane %v2293, 2
        %v2302 = vrot.slane %v2294, 2
        %v2303 = vrot.slane %v2295, 2
        %v2304 = vrot.slane %v2296, 2
        %v2309 = vadd.f32 %v2285, %v2301
        %v2310 = vadd.f32 %v2286, %v2302
        %v2311 = vadd.f32 %v2287, %v2303
        %v2312 = vadd.f32 %v2288, %v2304
        %s2314 = sor.u32 256, 2
        %2315 = vbcast.lane.b32.xlu0 %v2200, %s2314
        %v2316 = vpop.permute.xlu0 %2315
        %s2318 = sor.u32 256, 2
        %2319 = vbcast.lane.b32.xlu0 %v2207, %s2318
        %v2320 = vpop.permute.xlu0 %2319
        %s2322 = sor.u32 256, 2
        %2323 = vbcast.lane.b32.xlu0 %v2214, %s2322
        %v2324 = vpop.permute.xlu0 %2323
        %s2326 = sor.u32 256, 2
        %2327 = vbcast.lane.b32.xlu0 %v2221, %s2326
        %v2328 = vpop.permute.xlu0 %2327
        %v2329 = vlaneseq
        %v2330 = vshrl.u32 %v2329, 7
        %v2331 = vsub.s32 1, %v2330
        %v2332 = vrot.slane %v2158, %v2331
        %v2333 = vmul.f32 %v2316, %v2332
        %v2334 = vmul.f32 %v2320, %v2332
        %v2335 = vmul.f32 %v2324, %v2332
        %v2336 = vmul.f32 %v2328, %v2332
        %v2337 = vadd.f32 %v2309, %v2333
        %v2338 = vadd.f32 %v2310, %v2334
        %v2339 = vadd.f32 %v2311, %v2335
        %v2340 = vadd.f32 %v2312, %v2336
        %2342 = vset.pattern.permute.xlu0 0
        %2343 = vperm.xlu0 %2342, %v2155
        %v2344 = vpop.permute.xlu0 %2343
        %v2346 = vlaneseq
        %v2347 = vshrl.u32 %v2346, 7
        %v2348 = vsub.s32 0, %v2347
        %v2349 = vrot.slane %v2159, %v2348
        %v2350 = vmul.f32 %v2173, %v2349
        %v2351 = vmul.f32 %v2178, %v2349
        %v2352 = vmul.f32 %v2183, %v2349
        %v2353 = vmul.f32 %v2344, %v2349
        %v2354 = vadd.f32 %v2337, %v2350
        %v2355 = vadd.f32 %v2338, %v2351
        %v2356 = vadd.f32 %v2339, %v2352
        %v2357 = vadd.f32 %v2340, %v2353
        %v2358 = vlaneseq
        %v2359 = vshrl.u32 %v2358, 7
        %v2360 = vsub.s32 4, %v2359
        %v2361 = vrot.slane %v2135, %v2360
        %2363 = vbcast.lane.b32.xlu0 %v2361, 256
        %v2364 = vpop.permute.xlu0 %2363
        %v2365 = vlaneseq
        %v2366 = vshrl.u32 %v2365, 7
        %v2367 = vsub.s32 1, %v2366
        %v2368 = vrot.slane %v2159, %v2367
        %v2369 = vmul.f32 %v2210, %v2368
        %v2370 = vmul.f32 %v2217, %v2368
        %v2371 = vmul.f32 %v2224, %v2368
        %v2372 = vmul.f32 %v2364, %v2368
        %v2373 = vadd.f32 %v2354, %v2369
        %v2374 = vadd.f32 %v2355, %v2370
        %v2375 = vadd.f32 %v2356, %v2371
        %v2376 = vadd.f32 %v2357, %v2372
        %v2377 = vlaneseq
        %v2378 = vshrl.u32 %v2377, 7
        %v2379 = vsub.s32 0, %v2378
        %v2380 = vrot.slane %v2160, %v2379
        %v2381 = vmul.f32 %v2173, %v2380
        %v2382 = vmul.f32 %v2178, %v2380
        %v2383 = vmul.f32 %v2183, %v2380
        %v2384 = vmul.f32 %v2344, %v2380
        %v2389 = vrot.slane %v2381, 1
        %v2390 = vrot.slane %v2382, 1
        %v2391 = vrot.slane %v2383, 1
        %v2392 = vrot.slane %v2384, 1
        %v2397 = vadd.f32 %v2373, %v2389
        %v2398 = vadd.f32 %v2374, %v2390
        %v2399 = vadd.f32 %v2375, %v2391
        %v2400 = vadd.f32 %v2376, %v2392
        %s2402 = sor.u32 256, 1
        %2403 = vbcast.lane.b32.xlu0 %v2361, %s2402
        %v2404 = vpop.permute.xlu0 %2403
        %v2405 = vlaneseq
        %v2406 = vshrl.u32 %v2405, 7
        %v2407 = vsub.s32 1, %v2406
        %v2408 = vrot.slane %v2160, %v2407
        %v2409 = vmul.f32 %v2268, %v2408
        %v2410 = vmul.f32 %v2272, %v2408
        %v2411 = vmul.f32 %v2276, %v2408
        %v2412 = vmul.f32 %v2404, %v2408
        %v2413 = vadd.f32 %v2397, %v2409
        %v2414 = vadd.f32 %v2398, %v2410
        %v2415 = vadd.f32 %v2399, %v2411
        %v2416 = vadd.f32 %v2400, %v2412
        %v2417 = vlaneseq
        %v2418 = vshrl.u32 %v2417, 7
        %v2419 = vsub.s32 0, %v2418
        %v2420 = vrot.slane %v2161, %v2419
        %v2421 = vmul.f32 %v2173, %v2420
        %v2422 = vmul.f32 %v2178, %v2420
        %v2423 = vmul.f32 %v2183, %v2420
        %v2424 = vmul.f32 %v2344, %v2420
        %v2429 = vrot.slane %v2421, 2
        %v2430 = vrot.slane %v2422, 2
        %v2431 = vrot.slane %v2423, 2
        %v2432 = vrot.slane %v2424, 2
        %v2437 = vadd.f32 %v2413, %v2429
        %v2438 = vadd.f32 %v2414, %v2430
        %v2439 = vadd.f32 %v2415, %v2431
        %v2440 = vadd.f32 %v2416, %v2432
        %s2442 = sor.u32 256, 2
        %2443 = vbcast.lane.b32.xlu0 %v2361, %s2442
        %v2444 = vpop.permute.xlu0 %2443
        %v2445 = vlaneseq
        %v2446 = vshrl.u32 %v2445, 7
        %v2447 = vsub.s32 1, %v2446
        %v2448 = vrot.slane %v2161, %v2447
        %v2449 = vmul.f32 %v2320, %v2448
        %v2450 = vmul.f32 %v2324, %v2448
        %v2451 = vmul.f32 %v2328, %v2448
        %v2452 = vmul.f32 %v2444, %v2448
        %v2453 = vadd.f32 %v2437, %v2449
        %v2454 = vadd.f32 %v2438, %v2450
        %v2455 = vadd.f32 %v2439, %v2451
        %v2456 = vadd.f32 %v2440, %v2452
        %v2457 = vlaneseq
        %v2458 = vshrl.u32 %v2457, 7
        %v2459 = vsub.s32 0, %v2458
        %v2460 = vrot.slane %v2162, %v2459
        %v2461 = vmul.f32 %v2178, %v2460
        %v2462 = vmul.f32 %v2183, %v2460
        %v2463 = vmul.f32 %v2344, %v2460
        %v2464 = vmul.f32 %v2168, %v2460
        %v2465 = vadd.f32 %v2453, %v2461
        %v2466 = vadd.f32 %v2454, %v2462
        %v2467 = vadd.f32 %v2455, %v2463
        %v2468 = vadd.f32 %v2456, %v2464
        %v2469 = vlaneseq
        %v2470 = vshrl.u32 %v2469, 7
        %v2471 = vsub.s32 5, %v2470
        %v2472 = vrot.slane %v2135, %v2471
        %2474 = vbcast.lane.b32.xlu0 %v2472, 256
        %v2475 = vpop.permute.xlu0 %2474
        %v2476 = vlaneseq
        %v2477 = vshrl.u32 %v2476, 7
        %v2478 = vsub.s32 1, %v2477
        %v2479 = vrot.slane %v2162, %v2478
        %v2480 = vmul.f32 %v2217, %v2479
        %v2481 = vmul.f32 %v2224, %v2479
        %v2482 = vmul.f32 %v2364, %v2479
        %v2483 = vmul.f32 %v2475, %v2479
        %v2484 = vadd.f32 %v2465, %v2480
        %v2485 = vadd.f32 %v2466, %v2481
        %v2486 = vadd.f32 %v2467, %v2482
        %v2487 = vadd.f32 %v2468, %v2483
        %v2488 = vlaneseq
        %v2489 = vshrl.u32 %v2488, 7
        %v2490 = vsub.s32 0, %v2489
        %v2491 = vrot.slane %v2163, %v2490
        %v2492 = vmul.f32 %v2178, %v2491
        %v2493 = vmul.f32 %v2183, %v2491
        %v2494 = vmul.f32 %v2344, %v2491
        %v2495 = vmul.f32 %v2168, %v2491
        %v2500 = vrot.slane %v2492, 1
        %v2501 = vrot.slane %v2493, 1
        %v2502 = vrot.slane %v2494, 1
        %v2503 = vrot.slane %v2495, 1
        %v2508 = vadd.f32 %v2484, %v2500
        %v2509 = vadd.f32 %v2485, %v2501
        %v2510 = vadd.f32 %v2486, %v2502
        %v2511 = vadd.f32 %v2487, %v2503
        %s2513 = sor.u32 256, 1
        %2514 = vbcast.lane.b32.xlu0 %v2472, %s2513
        %v2515 = vpop.permute.xlu0 %2514
        %v2516 = vlaneseq
        %v2517 = vshrl.u32 %v2516, 7
        %v2518 = vsub.s32 1, %v2517
        %v2519 = vrot.slane %v2163, %v2518
        %v2520 = vmul.f32 %v2272, %v2519
        %v2521 = vmul.f32 %v2276, %v2519
        %v2522 = vmul.f32 %v2404, %v2519
        %v2523 = vmul.f32 %v2515, %v2519
        %v2524 = vadd.f32 %v2508, %v2520
        %v2525 = vadd.f32 %v2509, %v2521
        %v2526 = vadd.f32 %v2510, %v2522
        %v2527 = vadd.f32 %v2511, %v2523
        %v2528 = vlaneseq
        %v2529 = vshrl.u32 %v2528, 7
        %v2530 = vsub.s32 0, %v2529
        %v2531 = vrot.slane %v2164, %v2530
        %v2532 = vmul.f32 %v2178, %v2531
        %v2533 = vmul.f32 %v2183, %v2531
        %v2534 = vmul.f32 %v2344, %v2531
        %v2535 = vmul.f32 %v2168, %v2531
        %v2540 = vrot.slane %v2532, 2
        %v2541 = vrot.slane %v2533, 2
        %v2542 = vrot.slane %v2534, 2
        %v2543 = vrot.slane %v2535, 2
        %v2548 = vadd.f32 %v2524, %v2540
        %v2549 = vadd.f32 %v2525, %v2541
        %v2550 = vadd.f32 %v2526, %v2542
        %v2551 = vadd.f32 %v2527, %v2543
        %s2553 = sor.u32 256, 2
        %2554 = vbcast.lane.b32.xlu0 %v2472, %s2553
        %v2555 = vpop.permute.xlu0 %2554
        %v2556 = vlaneseq
        %v2557 = vshrl.u32 %v2556, 7
        %v2558 = vsub.s32 1, %v2557
        %v2559 = vrot.slane %v2164, %v2558
        %v2560 = vmul.f32 %v2324, %v2559
        %v2561 = vmul.f32 %v2328, %v2559
        %v2562 = vmul.f32 %v2444, %v2559
        %v2563 = vmul.f32 %v2555, %v2559
        %v2564 = vadd.f32 %v2548, %v2560
        %v2565 = vadd.f32 %v2549, %v2561
        %v2566 = vadd.f32 %v2550, %v2562
        %v2567 = vadd.f32 %v2551, %v2563
        %v2568 = vld [vmem:[%s7] sm:$0x1]
        %v2570 = vlaneseq
        %v2571 = vshrl.u32 %v2570, 7
        %v2572 = vsub.s32 0, %v2571
        %v2573 = vrot.slane %v2568, %v2572
        %v2575 = vadd.f32 %v2564, %v2573
        %v2576 = vadd.f32 %v2565, %v2573
        %v2577 = vadd.f32 %v2566, %v2573
        %v2578 = vadd.f32 %v2567, %v2573
        %vm2579 = vcmp.ge.f32.partialorder %v2575, 0.0
        %vm2580 = vcmp.ge.f32.partialorder %v2576, 0.0
        %vm2581 = vcmp.ge.f32.partialorder %v2577, 0.0
        %vm2582 = vcmp.ge.f32.partialorder %v2578, 0.0
        %v2583 = vmul.f32 %v2575, 0.2
        %v2584 = vmul.f32 %v2576, 0.2
        %v2585 = vmul.f32 %v2577, 0.2
        %v2586 = vmul.f32 %v2578, 0.2
        %v2587 = vsel %vm2579, %v2575, %v2583
        %v2588 = vsel %vm2580, %v2576, %v2584
        %v2589 = vsel %vm2581, %v2577, %v2585
        %v2590 = vsel %vm2582, %v2578, %v2586
        %v2591 = vlaneseq
        %v2592 = vshrl.u32 %v2591, 7
        %v2593 = vsub.s32 0, %v2592
        %v2594 = vrot.slane %v2587, %v2593
        %v2595 = vlaneseq
        %v2596 = vshrl.u32 %v2595, 7
        %v2597 = vsub.s32 0, %v2596
        %v2598 = vrot.slane %v2588, %v2597
        %v2599 = vlaneseq
        %v2600 = vshrl.u32 %v2599, 7
        %v2601 = vsub.s32 0, %v2600
        %v2602 = vrot.slane %v2589, %v2601
        %v2603 = vlaneseq
        %v2604 = vshrl.u32 %v2603, 7
        %v2605 = vsub.s32 0, %v2604
        %v2606 = vrot.slane %v2590, %v2605
        %v2607 = vlaneseq
        %v2608 = vshrl.u32 %v2607, 7
        %v2609 = vsub.s32 1, %v2608
        %v2610 = vrot.slane %v2587, %v2609
        %v2611 = vlaneseq
        %v2612 = vshrl.u32 %v2611, 7
        %v2613 = vsub.s32 1, %v2612
        %v2614 = vrot.slane %v2588, %v2613
        %v2615 = vlaneseq
        %v2616 = vshrl.u32 %v2615, 7
        %v2617 = vsub.s32 1, %v2616
        %v2618 = vrot.slane %v2589, %v2617
        %v2619 = vlaneseq
        %v2620 = vshrl.u32 %v2619, 7
        %v2621 = vsub.s32 1, %v2620
        %v2622 = vrot.slane %v2590, %v2621
        %v2623 = vlaneseq
        %v2624 = vshrl.u32 %v2623, 7
        %v2625 = vsub.s32 2, %v2624
        %v2626 = vrot.slane %v2587, %v2625
        %v2627 = vlaneseq
        %v2628 = vshrl.u32 %v2627, 7
        %v2629 = vsub.s32 2, %v2628
        %v2630 = vrot.slane %v2588, %v2629
        %v2631 = vlaneseq
        %v2632 = vshrl.u32 %v2631, 7
        %v2633 = vsub.s32 2, %v2632
        %v2634 = vrot.slane %v2589, %v2633
        %v2635 = vlaneseq
        %v2636 = vshrl.u32 %v2635, 7
        %v2637 = vsub.s32 2, %v2636
        %v2638 = vrot.slane %v2590, %v2637
        %v2639 = vlaneseq
        %v2640 = vshrl.u32 %v2639, 7
        %v2641 = vsub.s32 3, %v2640
        %v2642 = vrot.slane %v2587, %v2641
        %v2643 = vlaneseq
        %v2644 = vshrl.u32 %v2643, 7
        %v2645 = vsub.s32 3, %v2644
        %v2646 = vrot.slane %v2588, %v2645
        %v2647 = vlaneseq
        %v2648 = vshrl.u32 %v2647, 7
        %v2649 = vsub.s32 3, %v2648
        %v2650 = vrot.slane %v2589, %v2649
        %v2651 = vlaneseq
        %v2652 = vshrl.u32 %v2651, 7
        %v2653 = vsub.s32 3, %v2652
        %v2654 = vrot.slane %v2590, %v2653
        %vm2655 = vcmask 1043456
        %v2656 = vsel %vm2655, %v2594, %v2610
        %v2657 = vsel %vm2655, %v2598, %v2614
        %v2658 = vsel %vm2655, %v2602, %v2618
        %v2659 = vsel %vm2655, %v2606, %v2622
        %v2660 = vsel %vm2655, %v2626, %v2642
        %v2661 = vsel %vm2655, %v2630, %v2646
        %v2662 = vsel %vm2655, %v2634, %v2650
        %v2663 = vsel %vm2655, %v2638, %v2654
        %v2672 = vsel %vm1893, %v1913, %v1913
        %v2673 = vrot.slane %v2656, 7
        %v2674 = vrot.slane %v2660, 7
        %v2675 = vsel %vm1893, %v2673, %v2674
        %v2676 = vrot.slane %v2657, 7
        %v2677 = vrot.slane %v2661, 7
        %v2678 = vsel %vm1893, %v2676, %v2677
        %v2679 = vrot.slane %v2658, 7
        %v2680 = vrot.slane %v2662, 7
        %v2681 = vsel %vm1893, %v2679, %v2680
        %v2682 = vrot.slane %v2659, 7
        %v2683 = vrot.slane %v2663, 7
        %v2684 = vsel %vm1893, %v2682, %v2683
        %v2698 = vsel %vm1893, 0.0, %v2673
        %v2699 = vsel %vm1893, 0.0, %v2676
        %v2700 = vsel %vm1893, 0.0, %v2679
        %v2701 = vsel %vm1893, 0.0, %v2682
        %v2702 = vsel %vm1893, %v1913, 0.0
        %v2703 = vsel %vm1893, %v2674, 0.0
        %v2704 = vsel %vm1893, %v2677, 0.0
        %v2705 = vsel %vm1893, %v2680, 0.0
        %v2706 = vsel %vm1893, %v2683, 0.0
        %vm2717 = vcmask 1046528
        %v2718 = vrot.slane %v1923, 1
        %v2719 = vrot.slane %v2672, 1
        %v2720 = vsel %vm2717, %v2718, %v2719
        %v2721 = vrot.slane %v2702, 1
        %v2722 = vsel %vm2717, %v2719, %v2721
        %v2723 = vrot.slane %v2698, 1
        %v2724 = vrot.slane %v2675, 1
        %v2725 = vsel %vm2717, %v2723, %v2724
        %v2726 = vrot.slane %v2703, 1
        %v2727 = vsel %vm2717, %v2724, %v2726
        %v2728 = vrot.slane %v2699, 1
        %v2729 = vrot.slane %v2678, 1
        %v2730 = vsel %vm2717, %v2728, %v2729
        %v2731 = vrot.slane %v2704, 1
        %v2732 = vsel %vm2717, %v2729, %v2731
        %v2733 = vrot.slane %v2700, 1
        %v2734 = vrot.slane %v2681, 1
        %v2735 = vsel %vm2717, %v2733, %v2734
        %v2736 = vrot.slane %v2705, 1
        %v2737 = vsel %vm2717, %v2734, %v2736
        %v2738 = vrot.slane %v2701, 1
        %v2739 = vrot.slane %v2684, 1
        %v2740 = vsel %vm2717, %v2738, %v2739
        %v2741 = vrot.slane %v2706, 1
        %v2742 = vsel %vm2717, %v2739, %v2741
        %2743 = vrot.lane.b32.xlu0 %v2720, 32
        %v2744 = vpop.permute.xlu0 %2743
        %2745 = vrot.lane.b32.xlu0 %v2722, 32
        %v2746 = vpop.permute.xlu0 %2745
        %2747 = vrot.lane.b32.xlu0 %v2725, 32
        %v2748 = vpop.permute.xlu0 %2747
        %2749 = vrot.lane.b32.xlu0 %v2727, 32
        %v2750 = vpop.permute.xlu0 %2749
        %2751 = vrot.lane.b32.xlu0 %v2730, 32
        %v2752 = vpop.permute.xlu0 %2751
        %2753 = vrot.lane.b32.xlu0 %v2732, 32
        %v2754 = vpop.permute.xlu0 %2753
        %2755 = vrot.lane.b32.xlu0 %v2735, 32
        %v2756 = vpop.permute.xlu0 %2755
        %2757 = vrot.lane.b32.xlu0 %v2737, 32
        %v2758 = vpop.permute.xlu0 %2757
        %2759 = vrot.lane.b32.xlu0 %v2740, 32
        %v2760 = vpop.permute.xlu0 %2759
        %2761 = vrot.lane.b32.xlu0 %v2742, 32
        %v2762 = vpop.permute.xlu0 %2761
        %vm2773 = vcmask 1045504
        %v2774 = vrot.slane %v1923, 2
        %v2775 = vrot.slane %v2672, 2
        %v2776 = vsel %vm2773, %v2774, %v2775
        %v2777 = vrot.slane %v2702, 2
        %v2778 = vsel %vm2773, %v2775, %v2777
        %v2779 = vrot.slane %v2698, 2
        %v2780 = vrot.slane %v2675, 2
        %v2781 = vsel %vm2773, %v2779, %v2780
        %v2782 = vrot.slane %v2703, 2
        %v2783 = vsel %vm2773, %v2780, %v2782
        %v2784 = vrot.slane %v2699, 2
        %v2785 = vrot.slane %v2678, 2
        %v2786 = vsel %vm2773, %v2784, %v2785
        %v2787 = vrot.slane %v2704, 2
        %v2788 = vsel %vm2773, %v2785, %v2787
        %v2789 = vrot.slane %v2700, 2
        %v2790 = vrot.slane %v2681, 2
        %v2791 = vsel %vm2773, %v2789, %v2790
        %v2792 = vrot.slane %v2705, 2
        %v2793 = vsel %vm2773, %v2790, %v2792
        %v2794 = vrot.slane %v2701, 2
        %v2795 = vrot.slane %v2684, 2
        %v2796 = vsel %vm2773, %v2794, %v2795
        %v2797 = vrot.slane %v2706, 2
        %v2798 = vsel %vm2773, %v2795, %v2797
        %2799 = vrot.lane.b32.xlu0 %v2776, 64
        %v2800 = vpop.permute.xlu0 %2799
        %2801 = vrot.lane.b32.xlu0 %v2778, 64
        %v2802 = vpop.permute.xlu0 %2801
        %2803 = vrot.lane.b32.xlu0 %v2781, 64
        %v2804 = vpop.permute.xlu0 %2803
        %2805 = vrot.lane.b32.xlu0 %v2783, 64
        %v2806 = vpop.permute.xlu0 %2805
        %2807 = vrot.lane.b32.xlu0 %v2786, 64
        %v2808 = vpop.permute.xlu0 %2807
        %2809 = vrot.lane.b32.xlu0 %v2788, 64
        %v2810 = vpop.permute.xlu0 %2809
        %2811 = vrot.lane.b32.xlu0 %v2791, 64
        %v2812 = vpop.permute.xlu0 %2811
        %2813 = vrot.lane.b32.xlu0 %v2793, 64
        %v2814 = vpop.permute.xlu0 %2813
        %2815 = vrot.lane.b32.xlu0 %v2796, 64
        %v2816 = vpop.permute.xlu0 %2815
        %2817 = vrot.lane.b32.xlu0 %v2798, 64
        %v2818 = vpop.permute.xlu0 %2817
        %2829 = vrot.lane.b32.xlu0 %v2698, 96
        %v2830 = vpop.permute.xlu0 %2829
        %2831 = vrot.lane.b32.xlu0 %v2675, 96
        %v2832 = vpop.permute.xlu0 %2831
        %2833 = vrot.lane.b32.xlu0 %v2699, 96
        %v2834 = vpop.permute.xlu0 %2833
        %2835 = vrot.lane.b32.xlu0 %v2678, 96
        %v2836 = vpop.permute.xlu0 %2835
        %2837 = vrot.lane.b32.xlu0 %v2700, 96
        %v2838 = vpop.permute.xlu0 %2837
        %2839 = vrot.lane.b32.xlu0 %v2681, 96
        %v2840 = vpop.permute.xlu0 %2839
        %2841 = vrot.lane.b32.xlu0 %v2701, 96
        %v2842 = vpop.permute.xlu0 %2841
        %2843 = vrot.lane.b32.xlu0 %v2684, 96
        %v2844 = vpop.permute.xlu0 %2843
        %2861 = vrot.lane.b32.xlu0 %v2781, 32
        %v2862 = vpop.permute.xlu0 %2861
        %2863 = vrot.lane.b32.xlu0 %v2783, 32
        %v2864 = vpop.permute.xlu0 %2863
        %2865 = vrot.lane.b32.xlu0 %v2786, 32
        %v2866 = vpop.permute.xlu0 %2865
        %2867 = vrot.lane.b32.xlu0 %v2788, 32
        %v2868 = vpop.permute.xlu0 %2867
        %2869 = vrot.lane.b32.xlu0 %v2791, 32
        %v2870 = vpop.permute.xlu0 %2869
        %2871 = vrot.lane.b32.xlu0 %v2793, 32
        %v2872 = vpop.permute.xlu0 %2871
        %2873 = vrot.lane.b32.xlu0 %v2796, 32
        %v2874 = vpop.permute.xlu0 %2873
        %2875 = vrot.lane.b32.xlu0 %v2798, 32
        %v2876 = vpop.permute.xlu0 %2875
        %2885 = vrot.lane.b32.xlu0 %v2698, 64
        %v2886 = vpop.permute.xlu0 %2885
        %2887 = vrot.lane.b32.xlu0 %v2675, 64
        %v2888 = vpop.permute.xlu0 %2887
        %2889 = vrot.lane.b32.xlu0 %v2699, 64
        %v2890 = vpop.permute.xlu0 %2889
        %2891 = vrot.lane.b32.xlu0 %v2678, 64
        %v2892 = vpop.permute.xlu0 %2891
        %2893 = vrot.lane.b32.xlu0 %v2700, 64
        %v2894 = vpop.permute.xlu0 %2893
        %2895 = vrot.lane.b32.xlu0 %v2681, 64
        %v2896 = vpop.permute.xlu0 %2895
        %2897 = vrot.lane.b32.xlu0 %v2701, 64
        %v2898 = vpop.permute.xlu0 %2897
        %2899 = vrot.lane.b32.xlu0 %v2684, 64
        %v2900 = vpop.permute.xlu0 %2899
        %2901 = vrot.lane.b32.xlu0 %v1923, 64
        %v2902 = vpop.permute.xlu0 %2901
        %2903 = vrot.lane.b32.xlu0 %v2672, 64
        %v2904 = vpop.permute.xlu0 %2903
        %2915 = vrot.lane.b32.xlu0 %v2725, 96
        %v2916 = vpop.permute.xlu0 %2915
        %2917 = vrot.lane.b32.xlu0 %v2727, 96
        %v2918 = vpop.permute.xlu0 %2917
        %2919 = vrot.lane.b32.xlu0 %v2730, 96
        %v2920 = vpop.permute.xlu0 %2919
        %2921 = vrot.lane.b32.xlu0 %v2732, 96
        %v2922 = vpop.permute.xlu0 %2921
        %2923 = vrot.lane.b32.xlu0 %v2735, 96
        %v2924 = vpop.permute.xlu0 %2923
        %2925 = vrot.lane.b32.xlu0 %v2737, 96
        %v2926 = vpop.permute.xlu0 %2925
        %2927 = vrot.lane.b32.xlu0 %v2740, 96
        %v2928 = vpop.permute.xlu0 %2927
        %2929 = vrot.lane.b32.xlu0 %v2742, 96
        %v2930 = vpop.permute.xlu0 %2929
        %2931 = vrot.lane.b32.xlu0 %v2720, 96
        %v2932 = vpop.permute.xlu0 %2931
        %2933 = vrot.lane.b32.xlu0 %v2722, 96
        %v2934 = vpop.permute.xlu0 %2933
        %vm2955 = vcmask 261120
        %v2956 = vsel %vm2955, %v1923, %v2744
        %v2957 = vsel %vm2955, %v2672, %v2746
        %v2958 = vsel %vm2955, %v2698, %v2748
        %v2959 = vsel %vm2955, %v2675, %v2750
        %v2960 = vsel %vm2955, %v2699, %v2752
        %v2961 = vsel %vm2955, %v2678, %v2754
        %v2962 = vsel %vm2955, %v2700, %v2756
        %v2963 = vsel %vm2955, %v2681, %v2758
        %v2964 = vsel %vm2955, %v2701, %v2760
        %v2965 = vsel %vm2955, %v2684, %v2762
        %vm2966 = vcmask 523264
        %v2967 = vsel %vm2966, %v2956, %v2800
        %v2968 = vsel %vm2966, %v2957, %v2802
        %v2969 = vsel %vm2966, %v2958, %v2804
        %v2970 = vsel %vm2966, %v2959, %v2806
        %v2971 = vsel %vm2966, %v2960, %v2808
        %v2972 = vsel %vm2966, %v2961, %v2810
        %v2973 = vsel %vm2966, %v2962, %v2812
        %v2974 = vsel %vm2966, %v2963, %v2814
        %v2975 = vsel %vm2966, %v2964, %v2816
        %v2976 = vsel %vm2966, %v2965, %v2818
        %vm2977 = vcmask 785408
        %v2978 = vsel %vm2977, %v2967, %v2830
        %v2979 = vsel %vm2977, %v2968, %v2832
        %v2980 = vsel %vm2977, %v2969, %v2830
        %v2981 = vsel %vm2977, %v2970, %v2832
        %v2982 = vsel %vm2977, %v2969, %v2834
        %v2983 = vsel %vm2977, %v2970, %v2836
        %v2984 = vsel %vm2977, %v2971, %v2834
        %v2985 = vsel %vm2977, %v2972, %v2836
        %v2986 = vsel %vm2977, %v2971, %v2838
        %v2987 = vsel %vm2977, %v2972, %v2840
        %v2988 = vsel %vm2977, %v2973, %v2838
        %v2989 = vsel %vm2977, %v2974, %v2840
        %v2990 = vsel %vm2977, %v2973, %v2842
        %v2991 = vsel %vm2977, %v2974, %v2844
        %v2992 = vsel %vm2977, %v2975, %v2842
        %v2993 = vsel %vm2977, %v2976, %v2844
        %v2994 = vsel %vm2955, %v2725, %v2862
        %v2995 = vsel %vm2955, %v2727, %v2864
        %v2996 = vsel %vm2955, %v2730, %v2866
        %v2997 = vsel %vm2955, %v2732, %v2868
        %v2998 = vsel %vm2955, %v2735, %v2870
        %v2999 = vsel %vm2955, %v2737, %v2872
        %v3000 = vsel %vm2955, %v2740, %v2874
        %v3001 = vsel %vm2955, %v2742, %v2876
        %v3002 = vsel %vm2966, %v2994, %v2886
        %v3003 = vsel %vm2966, %v2995, %v2888
        %v3004 = vsel %vm2966, %v2994, %v2890
        %v3005 = vsel %vm2966, %v2995, %v2892
        %v3006 = vsel %vm2966, %v2996, %v2890
        %v3007 = vsel %vm2966, %v2997, %v2892
        %v3008 = vsel %vm2966, %v2996, %v2894
        %v3009 = vsel %vm2966, %v2997, %v2896
        %v3010 = vsel %vm2966, %v2998, %v2894
        %v3011 = vsel %vm2966, %v2999, %v2896
        %v3012 = vsel %vm2966, %v2998, %v2898
        %v3013 = vsel %vm2966, %v2999, %v2900
        %v3014 = vsel %vm2966, %v3000, %v2898
        %v3015 = vsel %vm2966, %v3001, %v2900
        %v3016 = vsel %vm2966, %v3000, %v2902
        %v3017 = vsel %vm2966, %v3001, %v2904
        %v3018 = vsel %vm2977, %v3002, %v2916
        %v3019 = vsel %vm2977, %v3003, %v2918
        %v3020 = vsel %vm2977, %v3004, %v2920
        %v3021 = vsel %vm2977, %v3005, %v2922
        %v3022 = vsel %vm2977, %v3006, %v2920
        %v3023 = vsel %vm2977, %v3007, %v2922
        %v3024 = vsel %vm2977, %v3008, %v2924
        %v3025 = vsel %vm2977, %v3009, %v2926
        %v3026 = vsel %vm2977, %v3010, %v2924
        %v3027 = vsel %vm2977, %v3011, %v2926
        %v3028 = vsel %vm2977, %v3012, %v2928
        %v3029 = vsel %vm2977, %v3013, %v2930
        %v3030 = vsel %vm2977, %v3014, %v2928
        %v3031 = vsel %vm2977, %v3015, %v2930
        %v3032 = vsel %vm2977, %v3016, %v2932
        %v3033 = vsel %vm2977, %v3017, %v2934
        %v3034 = vpack.c.bf16 %v2979, %v2978
        %v3035 = vpack.c.bf16 %v3019, %v3018
        %v3036 = vpack.c.bf16 %v2783, %v2781
        %v3037 = vpack.c.bf16 %v2981, %v2980
        %v3038 = vpack.c.bf16 %v3021, %v3020
        %v3039 = vpack.c.bf16 %v2788, %v2786
        %v3040 = vpack.c.bf16 %v2983, %v2982
        %v3041 = vpack.c.bf16 %v3023, %v3022
        %v3042 = vpack.c.bf16 %v2985, %v2984
        %v3043 = vpack.c.bf16 %v3025, %v3024
        %v3044 = vpack.c.bf16 %v2793, %v2791
        %v3045 = vpack.c.bf16 %v2987, %v2986
        %v3046 = vpack.c.bf16 %v3027, %v3026
        %v3047 = vpack.c.bf16 %v2989, %v2988
        %v3048 = vpack.c.bf16 %v3029, %v3028
        %v3049 = vpack.c.bf16 %v2798, %v2796
        %v3050 = vpack.c.bf16 %v2991, %v2990
        %v3051 = vpack.c.bf16 %v3031, %v3030
        %v3052 = vpack.c.bf16 %v2993, %v2992
        %v3053 = vpack.c.bf16 %v3033, %v3032
        %v3054 = vpack.c.bf16 %v2778, %v2776
        %v3055 = vld [vmem:[#allocation4] sm:$0xf]
        %v3056 = vld [vmem:[#allocation4 + $0x4] sm:$0xf]
        %v3057 = vld [vmem:[#allocation4 + $0x8] sm:$0xf]
        %v3058 = vld [vmem:[#allocation4 + $0xc] sm:$0xf]
        %v3059 = vld [vmem:[#allocation4 + $0x10] sm:$0xf]
        %v3060 = vld [vmem:[#allocation4 + $0x14] sm:$0xf]
        %v3061 = vld [vmem:[#allocation4 + $0x18] sm:$0xf]
        %v3062 = vld [vmem:[#allocation4 + $0x1c] sm:$0xf]
        %v3063 = vld [vmem:[#allocation4 + $0x20] sm:$0xf]
        %v3064 = vld [vmem:[#allocation4 + $0x24] sm:$0xf]
        %v3065 = vld [vmem:[#allocation4 + $0x28] sm:$0xf]
        %v3066 = vld [vmem:[#allocation4 + $0x2c] sm:$0xf]
        %v3067 = vld [vmem:[#allocation4 + $0x30] sm:$0xf]
        %v3068 = vld [vmem:[#allocation4 + $0x34] sm:$0xf]
        %v3069 = vld [vmem:[#allocation4 + $0x38] sm:$0xf]
        %v3070 = vld [vmem:[#allocation4 + $0x3c] sm:$0xf]
        %v3071 = vld [vmem:[#allocation4 + $0x40] sm:$0xf]
        %v3072 = vld [vmem:[#allocation4 + $0x44] sm:$0xf]
        %v3073 = vld [vmem:[#allocation4 + $0x48] sm:$0xf]
        %v3074 = vld [vmem:[#allocation4 + $0x4c] sm:$0xf]
        %v3075 = vld [vmem:[#allocation4 + $0x50] sm:$0xf]
        %v3076 = vld [vmem:[#allocation4 + $0x54] sm:$0xf]
        %v3077 = vld [vmem:[#allocation4 + $0x58] sm:$0xf]
        %v3078 = vld [vmem:[#allocation4 + $0x5c] sm:$0xf]
        %v3079 = vld [vmem:[#allocation4 + $0x60] sm:$0xf]
        %v3080 = vld [vmem:[#allocation4 + $0x64] sm:$0xf]
        %v3081 = vld [vmem:[#allocation4 + $0x68] sm:$0xf]
        %v3082 = vld [vmem:[#allocation4 + $0x6c] sm:$0xf]
        %v3083 = vld [vmem:[#allocation4 + $0x70] sm:$0xf]
        %v3084 = vld [vmem:[#allocation4 + $0x74] sm:$0xf]
        %v3085 = vld [vmem:[#allocation4 + $0x78] sm:$0xf]
        %v3086 = vld [vmem:[#allocation4 + $0x7c] sm:$0xf]
        %v3087 = vld [vmem:[#allocation4 + $0x80] sm:$0xf]
        %v3088 = vld [vmem:[#allocation4 + $0x84] sm:$0xf]
        %v3089 = vld [vmem:[#allocation4 + $0x88] sm:$0xf]
        %v3090 = vld [vmem:[#allocation4 + $0x8c] sm:$0xf]
        %v3091 = vld [vmem:[%s9] sm:$0x1]
        %v3093 = vlaneseq
        %v3094 = vshrl.u32 %v3093, 7
        %v3095 = vsub.s32 0, %v3094
        %v3096 = vrot.slane %v3091, %v3095
        %v3134 = vunpack.c.l.b16 %v3055
        %v3135 = vunpack.c.l.b16 %v3056
        %v3136 = vunpack.c.l.b16 %v3057
        %v3137 = vunpack.c.l.b16 %v3058
        %v3138 = vunpack.c.l.b16 %v3059
        %v3139 = vunpack.c.l.b16 %v3060
        %v3140 = vunpack.c.l.b16 %v3061
        %v3141 = vunpack.c.l.b16 %v3062
        %v3142 = vunpack.c.l.b16 %v3063
        %v3143 = vunpack.c.l.b16 %v3064
        %v3144 = vunpack.c.l.b16 %v3065
        %v3145 = vunpack.c.l.b16 %v3066
        %v3146 = vunpack.c.l.b16 %v3067
        %v3147 = vunpack.c.l.b16 %v3068
        %v3148 = vunpack.c.l.b16 %v3069
        %v3149 = vunpack.c.l.b16 %v3070
        %v3150 = vunpack.c.l.b16 %v3071
        %v3151 = vunpack.c.l.b16 %v3072
        %v3152 = vunpack.c.l.b16 %v3073
        %v3153 = vunpack.c.l.b16 %v3074
        %v3154 = vunpack.c.l.b16 %v3075
        %v3155 = vunpack.c.l.b16 %v3076
        %v3156 = vunpack.c.l.b16 %v3077
        %v3157 = vunpack.c.l.b16 %v3078
        %v3158 = vunpack.c.l.b16 %v3079
        %v3159 = vunpack.c.l.b16 %v3080
        %v3160 = vunpack.c.l.b16 %v3081
        %v3161 = vunpack.c.l.b16 %v3082
        %v3162 = vunpack.c.l.b16 %v3083
        %v3163 = vunpack.c.l.b16 %v3084
        %v3164 = vunpack.c.l.b16 %v3085
        %v3165 = vunpack.c.l.b16 %v3086
        %v3166 = vunpack.c.l.b16 %v3087
        %v3167 = vunpack.c.l.b16 %v3088
        %v3168 = vunpack.c.l.b16 %v3089
        %v3169 = vunpack.c.l.b16 %v3090
        %v3170 = vpack.c.b16 %v3135, %v3134
        %v3171 = vpack.c.b16 %v3137, %v3136
        %v3172 = vpack.c.b16 %v3139, %v3138
        %v3173 = vpack.c.b16 %v3141, %v3140
        %v3174 = vpack.c.b16 %v3143, %v3142
        %v3175 = vpack.c.b16 %v3145, %v3144
        %v3176 = vpack.c.b16 %v3147, %v3146
        %v3177 = vpack.c.b16 %v3149, %v3148
        %v3178 = vpack.c.b16 %v3151, %v3150
        %v3179 = vpack.c.b16 %v3153, %v3152
        %v3180 = vpack.c.b16 %v3155, %v3154
        %v3181 = vpack.c.b16 %v3157, %v3156
        %v3182 = vpack.c.b16 %v3159, %v3158
        %v3183 = vpack.c.b16 %v3161, %v3160
        %v3184 = vpack.c.b16 %v3163, %v3162
        %v3185 = vpack.c.b16 %v3165, %v3164
        %v3186 = vpack.c.b16 %v3167, %v3166
        %v3187 = vpack.c.b16 %v3169, %v3168
        %v3207 = vsel %vm2955, %v3036, 0
        %v3210 = vsel %vm2955, %v3039, 0
        %v3213 = vsel %vm2955, %v3044, 0
        %v3216 = vsel %vm2955, %v3049, 0
        %v3219 = vsel %vm2955, %v3054, 0
        %3221 = vmatprep.subr.bf16.mxu0 0
        %3222 = vmatpush1.bf16.msra.mxu0 %v3177
        %3223 = vmatprep.subr.bf16.mxu0 0
        %3224 = vmatpush1.bf16.msra.mxu0 %v3176
        %3225 = vmatprep.subr.bf16.mxu0 0
        %3226 = vmatpush1.bf16.msra.mxu0 %v3175
        %3227 = vmatprep.subr.bf16.mxu0 0
        %3228 = vmatpush1.bf16.msra.mxu0 %v3174
        %3229 = vmatprep.subr.bf16.mxu0 0
        %3230 = vmatpush1.bf16.msra.mxu0 %v3173
        %3231 = vmatprep.subr.bf16.mxu0 0
        %3232 = vmatpush1.bf16.msra.mxu0 %v3172
        %3233 = vmatprep.subr.bf16.mxu0 0
        %3234 = vmatpush1.bf16.msra.mxu0 %v3171
        %3235 = vmatprep.subr.bf16.mxu0 0
        %3236 = vmatpush1.bf16.msra.mxu0 %v3170
        %3237 = vmatprep.subr.bf16.mxu0 0
        %3238 = vmatpush2.bf16.msra.mxu0 %v3185
        %3239 = vmatprep.subr.bf16.mxu0 0
        %3240 = vmatpush2.bf16.msra.mxu0 %v3184
        %3241 = vmatprep.subr.bf16.mxu0 0
        %3242 = vmatpush2.bf16.msra.mxu0 %v3183
        %3243 = vmatprep.subr.bf16.mxu0 0
        %3244 = vmatpush2.bf16.msra.mxu0 %v3182
        %3245 = vmatprep.subr.bf16.mxu0 0
        %3246 = vmatpush2.bf16.msra.mxu0 %v3181
        %3247 = vmatprep.subr.bf16.mxu0 0
        %3248 = vmatpush2.bf16.msra.mxu0 %v3180
        %3249 = vmatprep.subr.bf16.mxu0 0
        %3250 = vmatpush2.bf16.msra.mxu0 %v3179
        %3251 = vmatprep.subr.bf16.mxu0 0
        %3252 = vmatpush2.bf16.msra.mxu0 %v3178
        %3253 = vmatprep.mubr.bf16.mxu0 %v3035
        %3254 = vmatmul.mubr.bf16.gmra.mxu0 %v3034
        %v3255 = vpop.f32.mrf.mxu0
        %v3256 = vadd.f32 %v3096, %v3255
        %v3257 = vpop.f32.mrf.mxu0
        %v3258 = vpop.f32.mrf.mxu0
        %v3259 = vadd.f32 %v3096, %v3258
        %v3260 = vpop.f32.mrf.mxu0
        %3261 = vmatprep.mubr.bf16.mxu0 %v3035
        %3262 = vmatmul.mubr.bf16.gmra.mxu0 %v3037
        %v3263 = vpop.f32.mrf.mxu0
        %v3264 = vadd.f32 %v3096, %v3263
        %v3265 = vpop.f32.mrf.mxu0
        %v3266 = vpop.f32.mrf.mxu0
        %v3267 = vadd.f32 %v3096, %v3266
        %v3268 = vpop.f32.mrf.mxu0
        %3269 = vmatprep.mubr.bf16.mxu0 %v3035
        %3270 = vmatmul.mubr.bf16.gmra.mxu0 %v3037
        %v3271 = vpop.f32.mrf.mxu0
        %v3272 = vadd.f32 %v3096, %v3271
        %v3273 = vpop.f32.mrf.mxu0
        %v3274 = vpop.f32.mrf.mxu0
        %v3275 = vadd.f32 %v3096, %v3274
        %v3276 = vpop.f32.mrf.mxu0
        %3277 = vmatprep.mubr.bf16.mxu0 %v3038
        %3278 = vmatmul.mubr.bf16.gmra.mxu0 %v3037
        %v3279 = vpop.f32.mrf.mxu0
        %v3280 = vadd.f32 %v3096, %v3279
        %v3281 = vpop.f32.mrf.mxu0
        %v3282 = vpop.f32.mrf.mxu0
        %v3283 = vadd.f32 %v3096, %v3282
        %v3284 = vpop.f32.mrf.mxu0
        %3285 = vmatprep.mubr.bf16.mxu0 %v3041
        %3286 = vmatmul.mubr.bf16.gmra.mxu0 %v3040
        %v3287 = vpop.f32.mrf.mxu0
        %v3288 = vadd.f32 %v3096, %v3287
        %v3289 = vpop.f32.mrf.mxu0
        %v3290 = vpop.f32.mrf.mxu0
        %v3291 = vadd.f32 %v3096, %v3290
        %v3292 = vpop.f32.mrf.mxu0
        %3293 = vmatprep.mubr.bf16.mxu0 %v3041
        %3294 = vmatmul.mubr.bf16.gmra.mxu0 %v3042
        %v3295 = vpop.f32.mrf.mxu0
        %v3296 = vadd.f32 %v3096, %v3295
        %v3297 = vpop.f32.mrf.mxu0
        %v3298 = vpop.f32.mrf.mxu0
        %v3299 = vadd.f32 %v3096, %v3298
        %v3300 = vpop.f32.mrf.mxu0
        %3301 = vmatprep.mubr.bf16.mxu0 %v3041
        %3302 = vmatmul.mubr.bf16.gmra.mxu0 %v3042
        %v3303 = vpop.f32.mrf.mxu0
        %v3304 = vadd.f32 %v3096, %v3303
        %v3305 = vpop.f32.mrf.mxu0
        %v3306 = vpop.f32.mrf.mxu0
        %v3307 = vadd.f32 %v3096, %v3306
        %v3308 = vpop.f32.mrf.mxu0
        %3309 = vmatprep.mubr.bf16.mxu0 %v3043
        %3310 = vmatmul.mubr.bf16.gmra.mxu0 %v3042
        %v3311 = vpop.f32.mrf.mxu0
        %v3312 = vadd.f32 %v3096, %v3311
        %v3313 = vpop.f32.mrf.mxu0
        %v3314 = vpop.f32.mrf.mxu0
        %v3315 = vadd.f32 %v3096, %v3314
        %v3316 = vpop.f32.mrf.mxu0
        %3317 = vmatprep.mubr.bf16.mxu0 %v3046
        %3318 = vmatmul.mubr.bf16.gmra.mxu0 %v3045
        %v3319 = vpop.f32.mrf.mxu0
        %v3320 = vadd.f32 %v3096, %v3319
        %v3321 = vpop.f32.mrf.mxu0
        %v3322 = vpop.f32.mrf.mxu0
        %v3323 = vadd.f32 %v3096, %v3322
        %v3324 = vpop.f32.mrf.mxu0
        %3325 = vmatprep.mubr.bf16.mxu0 %v3046
        %3326 = vmatmul.mubr.bf16.gmra.mxu0 %v3047
        %v3327 = vpop.f32.mrf.mxu0
        %v3328 = vadd.f32 %v3096, %v3327
        %v3329 = vpop.f32.mrf.mxu0
        %v3330 = vpop.f32.mrf.mxu0
        %v3331 = vadd.f32 %v3096, %v3330
        %v3332 = vpop.f32.mrf.mxu0
        %3333 = vmatprep.mubr.bf16.mxu0 %v3046
        %3334 = vmatmul.mubr.bf16.gmra.mxu0 %v3047
        %v3335 = vpop.f32.mrf.mxu0
        %v3336 = vadd.f32 %v3096, %v3335
        %v3337 = vpop.f32.mrf.mxu0
        %v3338 = vpop.f32.mrf.mxu0
        %v3339 = vadd.f32 %v3096, %v3338
        %v3340 = vpop.f32.mrf.mxu0
        %3341 = vmatprep.mubr.bf16.mxu0 %v3048
        %3342 = vmatmul.mubr.bf16.gmra.mxu0 %v3047
        %v3343 = vpop.f32.mrf.mxu0
        %v3344 = vadd.f32 %v3096, %v3343
        %v3345 = vpop.f32.mrf.mxu0
        %v3346 = vpop.f32.mrf.mxu0
        %v3347 = vadd.f32 %v3096, %v3346
        %v3348 = vpop.f32.mrf.mxu0
        %3349 = vmatprep.mubr.bf16.mxu0 %v3051
        %3350 = vmatmul.mubr.bf16.gmra.mxu0 %v3050
        %v3351 = vpop.f32.mrf.mxu0
        %v3352 = vadd.f32 %v3096, %v3351
        %v3353 = vpop.f32.mrf.mxu0
        %v3354 = vpop.f32.mrf.mxu0
        %v3355 = vadd.f32 %v3096, %v3354
        %v3356 = vpop.f32.mrf.mxu0
        %3357 = vmatprep.mubr.bf16.mxu0 %v3051
        %3358 = vmatmul.mubr.bf16.gmra.mxu0 %v3052
        %v3359 = vpop.f32.mrf.mxu0
        %v3360 = vadd.f32 %v3096, %v3359
        %v3361 = vpop.f32.mrf.mxu0
        %v3362 = vpop.f32.mrf.mxu0
        %v3363 = vadd.f32 %v3096, %v3362
        %v3364 = vpop.f32.mrf.mxu0
        %3365 = vmatprep.mubr.bf16.mxu0 %v3051
        %3366 = vmatmul.mubr.bf16.gmra.mxu0 %v3052
        %v3367 = vpop.f32.mrf.mxu0
        %v3368 = vadd.f32 %v3096, %v3367
        %v3369 = vpop.f32.mrf.mxu0
        %v3370 = vpop.f32.mrf.mxu0
        %v3371 = vadd.f32 %v3096, %v3370
        %v3372 = vpop.f32.mrf.mxu0
        %3373 = vmatprep.mubr.bf16.mxu0 %v3053
        %3374 = vmatmul.mubr.bf16.gmra.mxu0 %v3052
        %v3375 = vpop.f32.mrf.mxu0
        %v3376 = vadd.f32 %v3096, %v3375
        %v3377 = vpop.f32.mrf.mxu0
        %v3378 = vpop.f32.mrf.mxu0
        %v3379 = vadd.f32 %v3096, %v3378
        %v3380 = vpop.f32.mrf.mxu0
        %3381 = vdwg.mxu0
        %3382 = vmatprep.subr.bf16.mxu0 0
        %3383 = vmatpush1.bf16.msra.mxu0 0
        %3384 = vmatprep.subr.bf16.mxu0 0
        %3385 = vmatpush1.bf16.msra.mxu0 0
        %3386 = vmatprep.subr.bf16.mxu0 0
        %3387 = vmatpush1.bf16.msra.mxu0 0
        %3388 = vmatprep.subr.bf16.mxu0 0
        %3389 = vmatpush1.bf16.msra.mxu0 0
        %3390 = vmatprep.subr.bf16.mxu0 0
        %3391 = vmatpush1.bf16.msra.mxu0 0
        %3392 = vmatprep.subr.bf16.mxu0 0
        %3393 = vmatpush1.bf16.msra.mxu0 0
        %3394 = vmatprep.subr.bf16.mxu0 0
        %3395 = vmatpush1.bf16.msra.mxu0 %v3187
        %3396 = vmatprep.subr.bf16.mxu0 0
        %3397 = vmatpush1.bf16.msra.mxu0 %v3186
        %3398 = vmatprep.subr.bf16.mxu0 0
        %3399 = vmatpush2.bf16.msra.mxu0 0
        %3400 = vmatprep.subr.bf16.mxu0 0
        %3401 = vmatpush2.bf16.msra.mxu0 0
        %3402 = vmatprep.subr.bf16.mxu0 0
        %3403 = vmatpush2.bf16.msra.mxu0 0
        %3404 = vmatprep.subr.bf16.mxu0 0
        %3405 = vmatpush2.bf16.msra.mxu0 0
        %3406 = vmatprep.subr.bf16.mxu0 0
        %3407 = vmatpush2.bf16.msra.mxu0 0
        %3408 = vmatprep.subr.bf16.mxu0 0
        %3409 = vmatpush2.bf16.msra.mxu0 0
        %3410 = vmatprep.subr.bf16.mxu0 0
        %3411 = vmatpush2.bf16.msra.mxu0 0
        %3412 = vmatprep.subr.bf16.mxu0 0
        %3413 = vmatpush2.bf16.msra.mxu0 0
        %3414 = vmatprep.mubr.bf16.mxu0 0
        %3415 = vmatmul.mubr.bf16.gmra.mxu0 %v3207
        %v3416 = vpop.f32.mrf.mxu0
        %v3417 = vadd.f32 %v3256, %v3416
        %v3418 = vpop.f32.mrf.mxu0
        %v3419 = vpop.f32.mrf.mxu0
        %v3420 = vadd.f32 %v3259, %v3419
        %v3421 = vpop.f32.mrf.mxu0
        %3422 = vmatprep.mubr.bf16.mxu0 0
        %3423 = vmatmul.mubr.bf16.gmra.mxu0 %v3207
        %v3424 = vpop.f32.mrf.mxu0
        %v3425 = vadd.f32 %v3264, %v3424
        %v3426 = vpop.f32.mrf.mxu0
        %v3427 = vpop.f32.mrf.mxu0
        %v3428 = vadd.f32 %v3267, %v3427
        %v3429 = vpop.f32.mrf.mxu0
        %3430 = vmatprep.mubr.bf16.mxu0 0
        %3431 = vmatmul.mubr.bf16.gmra.mxu0 %v3207
        %v3432 = vpop.f32.mrf.mxu0
        %v3433 = vadd.f32 %v3272, %v3432
        %v3434 = vpop.f32.mrf.mxu0
        %v3435 = vpop.f32.mrf.mxu0
        %v3436 = vadd.f32 %v3275, %v3435
        %v3437 = vpop.f32.mrf.mxu0
        %3438 = vmatprep.mubr.bf16.mxu0 0
        %3439 = vmatmul.mubr.bf16.gmra.mxu0 %v3210
        %v3440 = vpop.f32.mrf.mxu0
        %v3441 = vadd.f32 %v3280, %v3440
        %v3442 = vpop.f32.mrf.mxu0
        %v3443 = vpop.f32.mrf.mxu0
        %v3444 = vadd.f32 %v3283, %v3443
        %v3445 = vpop.f32.mrf.mxu0
        %3446 = vmatprep.mubr.bf16.mxu0 0
        %3447 = vmatmul.mubr.bf16.gmra.mxu0 %v3210
        %v3448 = vpop.f32.mrf.mxu0
        %v3449 = vadd.f32 %v3288, %v3448
        %v3450 = vpop.f32.mrf.mxu0
        %v3451 = vpop.f32.mrf.mxu0
        %v3452 = vadd.f32 %v3291, %v3451
        %v3453 = vpop.f32.mrf.mxu0
        %3454 = vmatprep.mubr.bf16.mxu0 0
        %3455 = vmatmul.mubr.bf16.gmra.mxu0 %v3210
        %v3456 = vpop.f32.mrf.mxu0
        %v3457 = vadd.f32 %v3296, %v3456
        %v3458 = vpop.f32.mrf.mxu0
        %v3459 = vpop.f32.mrf.mxu0
        %v3460 = vadd.f32 %v3299, %v3459
        %v3461 = vpop.f32.mrf.mxu0
        %3462 = vmatprep.mubr.bf16.mxu0 0
        %3463 = vmatmul.mubr.bf16.gmra.mxu0 %v3210
        %v3464 = vpop.f32.mrf.mxu0
        %v3465 = vadd.f32 %v3304, %v3464
        %v3466 = vpop.f32.mrf.mxu0
        %v3467 = vpop.f32.mrf.mxu0
        %v3468 = vadd.f32 %v3307, %v3467
        %v3469 = vpop.f32.mrf.mxu0
        %3470 = vmatprep.mubr.bf16.mxu0 0
        %3471 = vmatmul.mubr.bf16.gmra.mxu0 %v3213
        %v3472 = vpop.f32.mrf.mxu0
        %v3473 = vadd.f32 %v3312, %v3472
        %v3474 = vpop.f32.mrf.mxu0
        %v3475 = vpop.f32.mrf.mxu0
        %v3476 = vadd.f32 %v3315, %v3475
        %v3477 = vpop.f32.mrf.mxu0
        %3478 = vmatprep.mubr.bf16.mxu0 0
        %3479 = vmatmul.mubr.bf16.gmra.mxu0 %v3213
        %v3480 = vpop.f32.mrf.mxu0
        %v3481 = vadd.f32 %v3320, %v3480
        %v3482 = vpop.f32.mrf.mxu0
        %v3483 = vpop.f32.mrf.mxu0
        %v3484 = vadd.f32 %v3323, %v3483
        %v3485 = vpop.f32.mrf.mxu0
        %3486 = vmatprep.mubr.bf16.mxu0 0
        %3487 = vmatmul.mubr.bf16.gmra.mxu0 %v3213
        %v3488 = vpop.f32.mrf.mxu0
        %v3489 = vadd.f32 %v3328, %v3488
        %v3490 = vpop.f32.mrf.mxu0
        %v3491 = vpop.f32.mrf.mxu0
        %v3492 = vadd.f32 %v3331, %v3491
        %v3493 = vpop.f32.mrf.mxu0
        %3494 = vmatprep.mubr.bf16.mxu0 0
        %3495 = vmatmul.mubr.bf16.gmra.mxu0 %v3213
        %v3496 = vpop.f32.mrf.mxu0
        %v3497 = vadd.f32 %v3336, %v3496
        %v3498 = vpop.f32.mrf.mxu0
        %v3499 = vpop.f32.mrf.mxu0
        %v3500 = vadd.f32 %v3339, %v3499
        %v3501 = vpop.f32.mrf.mxu0
        %3502 = vmatprep.mubr.bf16.mxu0 0
        %3503 = vmatmul.mubr.bf16.gmra.mxu0 %v3216
        %v3504 = vpop.f32.mrf.mxu0
        %v3505 = vadd.f32 %v3344, %v3504
        %v3506 = vpop.f32.mrf.mxu0
        %v3507 = vpop.f32.mrf.mxu0
        %v3508 = vadd.f32 %v3347, %v3507
        %v3509 = vpop.f32.mrf.mxu0
        %3510 = vmatprep.mubr.bf16.mxu0 0
        %3511 = vmatmul.mubr.bf16.gmra.mxu0 %v3216
        %v3512 = vpop.f32.mrf.mxu0
        %v3513 = vadd.f32 %v3352, %v3512
        %v3514 = vpop.f32.mrf.mxu0
        %v3515 = vpop.f32.mrf.mxu0
        %v3516 = vadd.f32 %v3355, %v3515
        %v3517 = vpop.f32.mrf.mxu0
        %3518 = vmatprep.mubr.bf16.mxu0 0
        %3519 = vmatmul.mubr.bf16.gmra.mxu0 %v3216
        %v3520 = vpop.f32.mrf.mxu0
        %v3521 = vadd.f32 %v3360, %v3520
        %v3522 = vpop.f32.mrf.mxu0
        %v3523 = vpop.f32.mrf.mxu0
        %v3524 = vadd.f32 %v3363, %v3523
        %v3525 = vpop.f32.mrf.mxu0
        %3526 = vmatprep.mubr.bf16.mxu0 0
        %3527 = vmatmul.mubr.bf16.gmra.mxu0 %v3216
        %v3528 = vpop.f32.mrf.mxu0
        %v3529 = vadd.f32 %v3368, %v3528
        %v3530 = vpop.f32.mrf.mxu0
        %v3531 = vpop.f32.mrf.mxu0
        %v3532 = vadd.f32 %v3371, %v3531
        %v3533 = vpop.f32.mrf.mxu0
        %3534 = vmatprep.mubr.bf16.mxu0 0
        %3535 = vmatmul.mubr.bf16.gmra.mxu0 %v3219
        %v3536 = vpop.f32.mrf.mxu0
        %v3537 = vadd.f32 %v3376, %v3536
        %v3538 = vpop.f32.mrf.mxu0
        %v3539 = vpop.f32.mrf.mxu0
        %v3540 = vadd.f32 %v3379, %v3539
        %v3541 = vpop.f32.mrf.mxu0
        %3542 = vdwg.mxu0
        %vm3543 = vcmp.ge.f32.partialorder %v3417, 0.0
        %vm3544 = vcmp.ge.f32.partialorder %v3420, 0.0
        %vm3545 = vcmp.ge.f32.partialorder %v3425, 0.0
        %vm3546 = vcmp.ge.f32.partialorder %v3428, 0.0
        %vm3547 = vcmp.ge.f32.partialorder %v3433, 0.0
        %vm3548 = vcmp.ge.f32.partialorder %v3436, 0.0
        %vm3549 = vcmp.ge.f32.partialorder %v3441, 0.0
        %vm3550 = vcmp.ge.f32.partialorder %v3444, 0.0
        %vm3551 = vcmp.ge.f32.partialorder %v3449, 0.0
        %vm3552 = vcmp.ge.f32.partialorder %v3452, 0.0
        %vm3553 = vcmp.ge.f32.partialorder %v3457, 0.0
        %vm3554 = vcmp.ge.f32.partialorder %v3460, 0.0
        %vm3555 = vcmp.ge.f32.partialorder %v3465, 0.0
        %vm3556 = vcmp.ge.f32.partialorder %v3468, 0.0
        %vm3557 = vcmp.ge.f32.partialorder %v3473, 0.0
        %vm3558 = vcmp.ge.f32.partialorder %v3476, 0.0
        %vm3559 = vcmp.ge.f32.partialorder %v3481, 0.0
        %vm3560 = vcmp.ge.f32.partialorder %v3484, 0.0
        %vm3561 = vcmp.ge.f32.partialorder %v3489, 0.0
        %vm3562 = vcmp.ge.f32.partialorder %v3492, 0.0
        %vm3563 = vcmp.ge.f32.partialorder %v3497, 0.0
        %vm3564 = vcmp.ge.f32.partialorder %v3500, 0.0
        %vm3565 = vcmp.ge.f32.partialorder %v3505, 0.0
        %vm3566 = vcmp.ge.f32.partialorder %v3508, 0.0
        %vm3567 = vcmp.ge.f32.partialorder %v3513, 0.0
        %vm3568 = vcmp.ge.f32.partialorder %v3516, 0.0
        %vm3569 = vcmp.ge.f32.partialorder %v3521, 0.0
        %vm3570 = vcmp.ge.f32.partialorder %v3524, 0.0
        %vm3571 = vcmp.ge.f32.partialorder %v3529, 0.0
        %vm3572 = vcmp.ge.f32.partialorder %v3532, 0.0
        %vm3573 = vcmp.ge.f32.partialorder %v3537, 0.0
        %vm3574 = vcmp.ge.f32.partialorder %v3540, 0.0
        %v3575 = vmul.f32 %v3417, 0.2
        %v3576 = vmul.f32 %v3420, 0.2
        %v3577 = vmul.f32 %v3425, 0.2
        %v3578 = vmul.f32 %v3428, 0.2
        %v3579 = vmul.f32 %v3433, 0.2
        %v3580 = vmul.f32 %v3436, 0.2
        %v3581 = vmul.f32 %v3441, 0.2
        %v3582 = vmul.f32 %v3444, 0.2
        %v3583 = vmul.f32 %v3449, 0.2
        %v3584 = vmul.f32 %v3452, 0.2
        %v3585 = vmul.f32 %v3457, 0.2
        %v3586 = vmul.f32 %v3460, 0.2
        %v3587 = vmul.f32 %v3465, 0.2
        %v3588 = vmul.f32 %v3468, 0.2
        %v3589 = vmul.f32 %v3473, 0.2
        %v3590 = vmul.f32 %v3476, 0.2
        %v3591 = vmul.f32 %v3481, 0.2
        %v3592 = vmul.f32 %v3484, 0.2
        %v3593 = vmul.f32 %v3489, 0.2
        %v3594 = vmul.f32 %v3492, 0.2
        %v3595 = vmul.f32 %v3497, 0.2
        %v3596 = vmul.f32 %v3500, 0.2
        %v3597 = vmul.f32 %v3505, 0.2
        %v3598 = vmul.f32 %v3508, 0.2
        %v3599 = vmul.f32 %v3513, 0.2
        %v3600 = vmul.f32 %v3516, 0.2
        %v3601 = vmul.f32 %v3521, 0.2
        %v3602 = vmul.f32 %v3524, 0.2
        %v3603 = vmul.f32 %v3529, 0.2
        %v3604 = vmul.f32 %v3532, 0.2
        %v3605 = vmul.f32 %v3537, 0.2
        %v3606 = vmul.f32 %v3540, 0.2
        %v3607 = vsel %vm3543, %v3417, %v3575
        %v3608 = vsel %vm3544, %v3420, %v3576
        %v3609 = vsel %vm3545, %v3425, %v3577
        %v3610 = vsel %vm3546, %v3428, %v3578
        %v3611 = vsel %vm3547, %v3433, %v3579
        %v3612 = vsel %vm3548, %v3436, %v3580
        %v3613 = vsel %vm3549, %v3441, %v3581
        %v3614 = vsel %vm3550, %v3444, %v3582
        %v3615 = vsel %vm3551, %v3449, %v3583
        %v3616 = vsel %vm3552, %v3452, %v3584
        %v3617 = vsel %vm3553, %v3457, %v3585
        %v3618 = vsel %vm3554, %v3460, %v3586
        %v3619 = vsel %vm3555, %v3465, %v3587
        %v3620 = vsel %vm3556, %v3468, %v3588
        %v3621 = vsel %vm3557, %v3473, %v3589
        %v3622 = vsel %vm3558, %v3476, %v3590
        %v3623 = vsel %vm3559, %v3481, %v3591
        %v3624 = vsel %vm3560, %v3484, %v3592
        %v3625 = vsel %vm3561, %v3489, %v3593
        %v3626 = vsel %vm3562, %v3492, %v3594
        %v3627 = vsel %vm3563, %v3497, %v3595
        %v3628 = vsel %vm3564, %v3500, %v3596
        %v3629 = vsel %vm3565, %v3505, %v3597
        %v3630 = vsel %vm3566, %v3508, %v3598
        %v3631 = vsel %vm3567, %v3513, %v3599
        %v3632 = vsel %vm3568, %v3516, %v3600
        %v3633 = vsel %vm3569, %v3521, %v3601
        %v3634 = vsel %vm3570, %v3524, %v3602
        %v3635 = vsel %vm3571, %v3529, %v3603
        %v3636 = vsel %vm3572, %v3532, %v3604
        %v3637 = vsel %vm3573, %v3537, %v3605
        %v3638 = vsel %vm3574, %v3540, %v3606
        %v3671 = vrot.slane %v3607, 7
        %v3672 = vrot.slane %v3608, 7
        %v3673 = vsel %vm1893, %v3671, %v3672
        %v3674 = vrot.slane %v3609, 7
        %v3675 = vrot.slane %v3610, 7
        %v3676 = vsel %vm1893, %v3674, %v3675
        %v3677 = vrot.slane %v3611, 7
        %v3678 = vrot.slane %v3612, 7
        %v3679 = vsel %vm1893, %v3677, %v3678
        %v3680 = vrot.slane %v3613, 7
        %v3681 = vrot.slane %v3614, 7
        %v3682 = vsel %vm1893, %v3680, %v3681
        %v3683 = vrot.slane %v3615, 7
        %v3684 = vrot.slane %v3616, 7
        %v3685 = vsel %vm1893, %v3683, %v3684
        %v3686 = vrot.slane %v3617, 7
        %v3687 = vrot.slane %v3618, 7
        %v3688 = vsel %vm1893, %v3686, %v3687
        %v3689 = vrot.slane %v3619, 7
        %v3690 = vrot.slane %v3620, 7
        %v3691 = vsel %vm1893, %v3689, %v3690
        %v3692 = vrot.slane %v3621, 7
        %v3693 = vrot.slane %v3622, 7
        %v3694 = vsel %vm1893, %v3692, %v3693
        %v3695 = vrot.slane %v3623, 7
        %v3696 = vrot.slane %v3624, 7
        %v3697 = vsel %vm1893, %v3695, %v3696
        %v3698 = vrot.slane %v3625, 7
        %v3699 = vrot.slane %v3626, 7
        %v3700 = vsel %vm1893, %v3698, %v3699
        %v3701 = vrot.slane %v3627, 7
        %v3702 = vrot.slane %v3628, 7
        %v3703 = vsel %vm1893, %v3701, %v3702
        %v3704 = vrot.slane %v3629, 7
        %v3705 = vrot.slane %v3630, 7
        %v3706 = vsel %vm1893, %v3704, %v3705
        %v3707 = vrot.slane %v3631, 7
        %v3708 = vrot.slane %v3632, 7
        %v3709 = vsel %vm1893, %v3707, %v3708
        %v3710 = vrot.slane %v3633, 7
        %v3711 = vrot.slane %v3634, 7
        %v3712 = vsel %vm1893, %v3710, %v3711
        %v3713 = vrot.slane %v3635, 7
        %v3714 = vrot.slane %v3636, 7
        %v3715 = vsel %vm1893, %v3713, %v3714
        %v3716 = vrot.slane %v3637, 7
        %v3717 = vrot.slane %v3638, 7
        %v3718 = vsel %vm1893, %v3716, %v3717
        %v3767 = vsel %vm1893, 0.0, %v3671
        %v3768 = vsel %vm1893, 0.0, %v3674
        %v3769 = vsel %vm1893, 0.0, %v3677
        %v3770 = vsel %vm1893, 0.0, %v3680
        %v3771 = vsel %vm1893, 0.0, %v3683
        %v3772 = vsel %vm1893, 0.0, %v3686
        %v3773 = vsel %vm1893, 0.0, %v3689
        %v3774 = vsel %vm1893, 0.0, %v3692
        %v3775 = vsel %vm1893, 0.0, %v3695
        %v3776 = vsel %vm1893, 0.0, %v3698
        %v3777 = vsel %vm1893, 0.0, %v3701
        %v3778 = vsel %vm1893, 0.0, %v3704
        %v3779 = vsel %vm1893, 0.0, %v3707
        %v3780 = vsel %vm1893, 0.0, %v3710
        %v3781 = vsel %vm1893, 0.0, %v3713
        %v3782 = vsel %vm1893, 0.0, %v3716
        %v3783 = vsel %vm1893, %v3672, 0.0
        %v3784 = vsel %vm1893, %v3675, 0.0
        %v3785 = vsel %vm1893, %v3678, 0.0
        %v3786 = vsel %vm1893, %v3681, 0.0
        %v3787 = vsel %vm1893, %v3684, 0.0
        %v3788 = vsel %vm1893, %v3687, 0.0
        %v3789 = vsel %vm1893, %v3690, 0.0
        %v3790 = vsel %vm1893, %v3693, 0.0
        %v3791 = vsel %vm1893, %v3696, 0.0
        %v3792 = vsel %vm1893, %v3699, 0.0
        %v3793 = vsel %vm1893, %v3702, 0.0
        %v3794 = vsel %vm1893, %v3705, 0.0
        %v3795 = vsel %vm1893, %v3708, 0.0
        %v3796 = vsel %vm1893, %v3711, 0.0
        %v3797 = vsel %vm1893, %v3714, 0.0
        %v3798 = vsel %vm1893, %v3717, 0.0
        %v3829 = vrot.slane %v3767, 1
        %v3830 = vrot.slane %v3673, 1
        %v3831 = vsel %vm2717, %v3829, %v3830
        %v3832 = vrot.slane %v3783, 1
        %v3833 = vsel %vm2717, %v3830, %v3832
        %v3834 = vrot.slane %v3768, 1
        %v3835 = vrot.slane %v3676, 1
        %v3836 = vsel %vm2717, %v3834, %v3835
        %v3837 = vrot.slane %v3784, 1
        %v3838 = vsel %vm2717, %v3835, %v3837
        %v3839 = vrot.slane %v3769, 1
        %v3840 = vrot.slane %v3679, 1
        %v3841 = vsel %vm2717, %v3839, %v3840
        %v3842 = vrot.slane %v3785, 1
        %v3843 = vsel %vm2717, %v3840, %v3842
        %v3844 = vrot.slane %v3770, 1
        %v3845 = vrot.slane %v3682, 1
        %v3846 = vsel %vm2717, %v3844, %v3845
        %v3847 = vrot.slane %v3786, 1
        %v3848 = vsel %vm2717, %v3845, %v3847
        %v3849 = vrot.slane %v3771, 1
        %v3850 = vrot.slane %v3685, 1
        %v3851 = vsel %vm2717, %v3849, %v3850
        %v3852 = vrot.slane %v3787, 1
        %v3853 = vsel %vm2717, %v3850, %v3852
        %v3854 = vrot.slane %v3772, 1
        %v3855 = vrot.slane %v3688, 1
        %v3856 = vsel %vm2717, %v3854, %v3855
        %v3857 = vrot.slane %v3788, 1
        %v3858 = vsel %vm2717, %v3855, %v3857
        %v3859 = vrot.slane %v3773, 1
        %v3860 = vrot.slane %v3691, 1
        %v3861 = vsel %vm2717, %v3859, %v3860
        %v3862 = vrot.slane %v3789, 1
        %v3863 = vsel %vm2717, %v3860, %v3862
        %v3864 = vrot.slane %v3774, 1
        %v3865 = vrot.slane %v3694, 1
        %v3866 = vsel %vm2717, %v3864, %v3865
        %v3867 = vrot.slane %v3790, 1
        %v3868 = vsel %vm2717, %v3865, %v3867
        %v3869 = vrot.slane %v3775, 1
        %v3870 = vrot.slane %v3697, 1
        %v3871 = vsel %vm2717, %v3869, %v3870
        %v3872 = vrot.slane %v3791, 1
        %v3873 = vsel %vm2717, %v3870, %v3872
        %v3874 = vrot.slane %v3776, 1
        %v3875 = vrot.slane %v3700, 1
        %v3876 = vsel %vm2717, %v3874, %v3875
        %v3877 = vrot.slane %v3792, 1
        %v3878 = vsel %vm2717, %v3875, %v3877
        %v3879 = vrot.slane %v3777, 1
        %v3880 = vrot.slane %v3703, 1
        %v3881 = vsel %vm2717, %v3879, %v3880
        %v3882 = vrot.slane %v3793, 1
        %v3883 = vsel %vm2717, %v3880, %v3882
        %v3884 = vrot.slane %v3778, 1
        %v3885 = vrot.slane %v3706, 1
        %v3886 = vsel %vm2717, %v3884, %v3885
        %v3887 = vrot.slane %v3794, 1
        %v3888 = vsel %vm2717, %v3885, %v3887
        %v3889 = vrot.slane %v3779, 1
        %v3890 = vrot.slane %v3709, 1
        %v3891 = vsel %vm2717, %v3889, %v3890
        %v3892 = vrot.slane %v3795, 1
        %v3893 = vsel %vm2717, %v3890, %v3892
        %v3894 = vrot.slane %v3780, 1
        %v3895 = vrot.slane %v3712, 1
        %v3896 = vsel %vm2717, %v3894, %v3895
        %v3897 = vrot.slane %v3796, 1
        %v3898 = vsel %vm2717, %v3895, %v3897
        %v3899 = vrot.slane %v3781, 1
        %v3900 = vrot.slane %v3715, 1
        %v3901 = vsel %vm2717, %v3899, %v3900
        %v3902 = vrot.slane %v3797, 1
        %v3903 = vsel %vm2717, %v3900, %v3902
        %3904 = vrot.lane.b32.xlu0 %v2720, 64
        %v3905 = vpop.permute.xlu0 %3904
        %3906 = vrot.lane.b32.xlu0 %v2722, 64
        %v3907 = vpop.permute.xlu0 %3906
        %3908 = vrot.lane.b32.xlu0 %v3831, 64
        %v3909 = vpop.permute.xlu0 %3908
        %3910 = vrot.lane.b32.xlu0 %v3833, 64
        %v3911 = vpop.permute.xlu0 %3910
        %3912 = vrot.lane.b32.xlu0 %v3836, 64
        %v3913 = vpop.permute.xlu0 %3912
        %3914 = vrot.lane.b32.xlu0 %v3838, 64
        %v3915 = vpop.permute.xlu0 %3914
        %3916 = vrot.lane.b32.xlu0 %v3841, 64
        %v3917 = vpop.permute.xlu0 %3916
        %3918 = vrot.lane.b32.xlu0 %v3843, 64
        %v3919 = vpop.permute.xlu0 %3918
        %3920 = vrot.lane.b32.xlu0 %v3846, 64
        %v3921 = vpop.permute.xlu0 %3920
        %3922 = vrot.lane.b32.xlu0 %v3848, 64
        %v3923 = vpop.permute.xlu0 %3922
        %3924 = vrot.lane.b32.xlu0 %v3851, 64
        %v3925 = vpop.permute.xlu0 %3924
        %3926 = vrot.lane.b32.xlu0 %v3853, 64
        %v3927 = vpop.permute.xlu0 %3926
        %3928 = vrot.lane.b32.xlu0 %v3856, 64
        %v3929 = vpop.permute.xlu0 %3928
        %3930 = vrot.lane.b32.xlu0 %v3858, 64
        %v3931 = vpop.permute.xlu0 %3930
        %3932 = vrot.lane.b32.xlu0 %v3861, 64
        %v3933 = vpop.permute.xlu0 %3932
        %3934 = vrot.lane.b32.xlu0 %v3863, 64
        %v3935 = vpop.permute.xlu0 %3934
        %3936 = vrot.lane.b32.xlu0 %v3866, 64
        %v3937 = vpop.permute.xlu0 %3936
        %3938 = vrot.lane.b32.xlu0 %v3868, 64
        %v3939 = vpop.permute.xlu0 %3938
        %3940 = vrot.lane.b32.xlu0 %v3871, 64
        %v3941 = vpop.permute.xlu0 %3940
        %3942 = vrot.lane.b32.xlu0 %v3873, 64
        %v3943 = vpop.permute.xlu0 %3942
        %3944 = vrot.lane.b32.xlu0 %v3876, 64
        %v3945 = vpop.permute.xlu0 %3944
        %3946 = vrot.lane.b32.xlu0 %v3878, 64
        %v3947 = vpop.permute.xlu0 %3946
        %3948 = vrot.lane.b32.xlu0 %v3881, 64
        %v3949 = vpop.permute.xlu0 %3948
        %3950 = vrot.lane.b32.xlu0 %v3883, 64
        %v3951 = vpop.permute.xlu0 %3950
        %3952 = vrot.lane.b32.xlu0 %v3886, 64
        %v3953 = vpop.permute.xlu0 %3952
        %3954 = vrot.lane.b32.xlu0 %v3888, 64
        %v3955 = vpop.permute.xlu0 %3954
        %3956 = vrot.lane.b32.xlu0 %v3891, 64
        %v3957 = vpop.permute.xlu0 %3956
        %3958 = vrot.lane.b32.xlu0 %v3893, 64
        %v3959 = vpop.permute.xlu0 %3958
        %3960 = vrot.lane.b32.xlu0 %v3896, 64
        %v3961 = vpop.permute.xlu0 %3960
        %3962 = vrot.lane.b32.xlu0 %v3898, 64
        %v3963 = vpop.permute.xlu0 %3962
        %3964 = vrot.lane.b32.xlu0 %v3901, 64
        %v3965 = vpop.permute.xlu0 %3964
        %3966 = vrot.lane.b32.xlu0 %v3903, 64
        %v3967 = vpop.permute.xlu0 %3966
        %v4000 = vrot.slane %v3767, 2
        %v4001 = vrot.slane %v3673, 2
        %v4002 = vsel %vm2773, %v4000, %v4001
        %v4003 = vrot.slane %v3783, 2
        %v4004 = vsel %vm2773, %v4001, %v4003
        %v4005 = vrot.slane %v3768, 2
        %v4006 = vrot.slane %v3676, 2
        %v4007 = vsel %vm2773, %v4005, %v4006
        %v4008 = vrot.slane %v3784, 2
        %v4009 = vsel %vm2773, %v4006, %v4008
        %v4010 = vrot.slane %v3769, 2
        %v4011 = vrot.slane %v3679, 2
        %v4012 = vsel %vm2773, %v4010, %v4011
        %v4013 = vrot.slane %v3785, 2
        %v4014 = vsel %vm2773, %v4011, %v4013
        %v4015 = vrot.slane %v3770, 2
        %v4016 = vrot.slane %v3682, 2
        %v4017 = vsel %vm2773, %v4015, %v4016
        %v4018 = vrot.slane %v3786, 2
        %v4019 = vsel %vm2773, %v4016, %v4018
        %v4020 = vrot.slane %v3771, 2
        %v4021 = vrot.slane %v3685, 2
        %v4022 = vsel %vm2773, %v4020, %v4021
        %v4023 = vrot.slane %v3787, 2
        %v4024 = vsel %vm2773, %v4021, %v4023
        %v4025 = vrot.slane %v3772, 2
        %v4026 = vrot.slane %v3688, 2
        %v4027 = vsel %vm2773, %v4025, %v4026
        %v4028 = vrot.slane %v3788, 2
        %v4029 = vsel %vm2773, %v4026, %v4028
        %v4030 = vrot.slane %v3773, 2
        %v4031 = vrot.slane %v3691, 2
        %v4032 = vsel %vm2773, %v4030, %v4031
        %v4033 = vrot.slane %v3789, 2
        %v4034 = vsel %vm2773, %v4031, %v4033
        %v4035 = vrot.slane %v3774, 2
        %v4036 = vrot.slane %v3694, 2
        %v4037 = vsel %vm2773, %v4035, %v4036
        %v4038 = vrot.slane %v3790, 2
        %v4039 = vsel %vm2773, %v4036, %v4038
        %v4040 = vrot.slane %v3775, 2
        %v4041 = vrot.slane %v3697, 2
        %v4042 = vsel %vm2773, %v4040, %v4041
        %v4043 = vrot.slane %v3791, 2
        %v4044 = vsel %vm2773, %v4041, %v4043
        %v4045 = vrot.slane %v3776, 2
        %v4046 = vrot.slane %v3700, 2
        %v4047 = vsel %vm2773, %v4045, %v4046
        %v4048 = vrot.slane %v3792, 2
        %v4049 = vsel %vm2773, %v4046, %v4048
        %v4050 = vrot.slane %v3777, 2
        %v4051 = vrot.slane %v3703, 2
        %v4052 = vsel %vm2773, %v4050, %v4051
        %v4053 = vrot.slane %v3793, 2
        %v4054 = vsel %vm2773, %v4051, %v4053
        %v4055 = vrot.slane %v3778, 2
        %v4056 = vrot.slane %v3706, 2
        %v4057 = vsel %vm2773, %v4055, %v4056
        %v4058 = vrot.slane %v3794, 2
        %v4059 = vsel %vm2773, %v4056, %v4058
        %v4060 = vrot.slane %v3779, 2
        %v4061 = vrot.slane %v3709, 2
        %v4062 = vsel %vm2773, %v4060, %v4061
        %v4063 = vrot.slane %v3795, 2
        %v4064 = vsel %vm2773, %v4061, %v4063
        %v4065 = vrot.slane %v3780, 2
        %v4066 = vrot.slane %v3712, 2
        %v4067 = vsel %vm2773, %v4065, %v4066
        %v4068 = vrot.slane %v3796, 2
        %v4069 = vsel %vm2773, %v4066, %v4068
        %v4070 = vrot.slane %v3781, 2
        %v4071 = vrot.slane %v3715, 2
        %v4072 = vsel %vm2773, %v4070, %v4071
        %v4073 = vrot.slane %v3797, 2
        %v4074 = vsel %vm2773, %v4071, %v4073
        %4106 = vrot.lane.b32.xlu0 %v3767, 64
        %v4107 = vpop.permute.xlu0 %4106
        %4108 = vrot.lane.b32.xlu0 %v3673, 64
        %v4109 = vpop.permute.xlu0 %4108
        %4110 = vrot.lane.b32.xlu0 %v3768, 64
        %v4111 = vpop.permute.xlu0 %4110
        %4112 = vrot.lane.b32.xlu0 %v3676, 64
        %v4113 = vpop.permute.xlu0 %4112
        %4114 = vrot.lane.b32.xlu0 %v3769, 64
        %v4115 = vpop.permute.xlu0 %4114
        %4116 = vrot.lane.b32.xlu0 %v3679, 64
        %v4117 = vpop.permute.xlu0 %4116
        %4118 = vrot.lane.b32.xlu0 %v3770, 64
        %v4119 = vpop.permute.xlu0 %4118
        %4120 = vrot.lane.b32.xlu0 %v3682, 64
        %v4121 = vpop.permute.xlu0 %4120
        %4122 = vrot.lane.b32.xlu0 %v3771, 64
        %v4123 = vpop.permute.xlu0 %4122
        %4124 = vrot.lane.b32.xlu0 %v3685, 64
        %v4125 = vpop.permute.xlu0 %4124
        %4126 = vrot.lane.b32.xlu0 %v3772, 64
        %v4127 = vpop.permute.xlu0 %4126
        %4128 = vrot.lane.b32.xlu0 %v3688, 64
        %v4129 = vpop.permute.xlu0 %4128
        %4130 = vrot.lane.b32.xlu0 %v3773, 64
        %v4131 = vpop.permute.xlu0 %4130
        %4132 = vrot.lane.b32.xlu0 %v3691, 64
        %v4133 = vpop.permute.xlu0 %4132
        %4134 = vrot.lane.b32.xlu0 %v3774, 64
        %v4135 = vpop.permute.xlu0 %4134
        %4136 = vrot.lane.b32.xlu0 %v3694, 64
        %v4137 = vpop.permute.xlu0 %4136
        %4138 = vrot.lane.b32.xlu0 %v3775, 64
        %v4139 = vpop.permute.xlu0 %4138
        %4140 = vrot.lane.b32.xlu0 %v3697, 64
        %v4141 = vpop.permute.xlu0 %4140
        %4142 = vrot.lane.b32.xlu0 %v3776, 64
        %v4143 = vpop.permute.xlu0 %4142
        %4144 = vrot.lane.b32.xlu0 %v3700, 64
        %v4145 = vpop.permute.xlu0 %4144
        %4146 = vrot.lane.b32.xlu0 %v3777, 64
        %v4147 = vpop.permute.xlu0 %4146
        %4148 = vrot.lane.b32.xlu0 %v3703, 64
        %v4149 = vpop.permute.xlu0 %4148
        %4150 = vrot.lane.b32.xlu0 %v3778, 64
        %v4151 = vpop.permute.xlu0 %4150
        %4152 = vrot.lane.b32.xlu0 %v3706, 64
        %v4153 = vpop.permute.xlu0 %4152
        %4154 = vrot.lane.b32.xlu0 %v3779, 64
        %v4155 = vpop.permute.xlu0 %4154
        %4156 = vrot.lane.b32.xlu0 %v3709, 64
        %v4157 = vpop.permute.xlu0 %4156
        %4158 = vrot.lane.b32.xlu0 %v3780, 64
        %v4159 = vpop.permute.xlu0 %4158
        %4160 = vrot.lane.b32.xlu0 %v3712, 64
        %v4161 = vpop.permute.xlu0 %4160
        %4162 = vrot.lane.b32.xlu0 %v3781, 64
        %v4163 = vpop.permute.xlu0 %4162
        %4164 = vrot.lane.b32.xlu0 %v3715, 64
        %v4165 = vpop.permute.xlu0 %4164
        %4166 = vrot.lane.b32.xlu0 %v3782, 64
        %v4167 = vpop.permute.xlu0 %4166
        %4168 = vrot.lane.b32.xlu0 %v3718, 64
        %v4169 = vpop.permute.xlu0 %4168
        %v4203 = vrot.slane %v3782, 1
        %v4204 = vrot.slane %v3718, 1
        %v4205 = vsel %vm2717, %v4203, %v4204
        %v4206 = vrot.slane %v3798, 1
        %v4207 = vsel %vm2717, %v4204, %v4206
        %v4240 = vrot.slane %v3782, 2
        %v4241 = vrot.slane %v3718, 2
        %v4242 = vsel %vm2773, %v4240, %v4241
        %v4243 = vrot.slane %v3798, 2
        %v4244 = vsel %vm2773, %v4241, %v4243
        %4245 = vrot.lane.b32.xlu0 %v4002, 64
        %v4246 = vpop.permute.xlu0 %4245
        %4247 = vrot.lane.b32.xlu0 %v4004, 64
        %v4248 = vpop.permute.xlu0 %4247
        %4249 = vrot.lane.b32.xlu0 %v4007, 64
        %v4250 = vpop.permute.xlu0 %4249
        %4251 = vrot.lane.b32.xlu0 %v4009, 64
        %v4252 = vpop.permute.xlu0 %4251
        %4253 = vrot.lane.b32.xlu0 %v4012, 64
        %v4254 = vpop.permute.xlu0 %4253
        %4255 = vrot.lane.b32.xlu0 %v4014, 64
        %v4256 = vpop.permute.xlu0 %4255
        %4257 = vrot.lane.b32.xlu0 %v4017, 64
        %v4258 = vpop.permute.xlu0 %4257
        %4259 = vrot.lane.b32.xlu0 %v4019, 64
        %v4260 = vpop.permute.xlu0 %4259
        %4261 = vrot.lane.b32.xlu0 %v4022, 64
        %v4262 = vpop.permute.xlu0 %4261
        %4263 = vrot.lane.b32.xlu0 %v4024, 64
        %v4264 = vpop.permute.xlu0 %4263
        %4265 = vrot.lane.b32.xlu0 %v4027, 64
        %v4266 = vpop.permute.xlu0 %4265
        %4267 = vrot.lane.b32.xlu0 %v4029, 64
        %v4268 = vpop.permute.xlu0 %4267
        %4269 = vrot.lane.b32.xlu0 %v4032, 64
        %v4270 = vpop.permute.xlu0 %4269
        %4271 = vrot.lane.b32.xlu0 %v4034, 64
        %v4272 = vpop.permute.xlu0 %4271
        %4273 = vrot.lane.b32.xlu0 %v4037, 64
        %v4274 = vpop.permute.xlu0 %4273
        %4275 = vrot.lane.b32.xlu0 %v4039, 64
        %v4276 = vpop.permute.xlu0 %4275
        %4277 = vrot.lane.b32.xlu0 %v4042, 64
        %v4278 = vpop.permute.xlu0 %4277
        %4279 = vrot.lane.b32.xlu0 %v4044, 64
        %v4280 = vpop.permute.xlu0 %4279
        %4281 = vrot.lane.b32.xlu0 %v4047, 64
        %v4282 = vpop.permute.xlu0 %4281
        %4283 = vrot.lane.b32.xlu0 %v4049, 64
        %v4284 = vpop.permute.xlu0 %4283
        %4285 = vrot.lane.b32.xlu0 %v4052, 64
        %v4286 = vpop.permute.xlu0 %4285
        %4287 = vrot.lane.b32.xlu0 %v4054, 64
        %v4288 = vpop.permute.xlu0 %4287
        %4289 = vrot.lane.b32.xlu0 %v4057, 64
        %v4290 = vpop.permute.xlu0 %4289
        %4291 = vrot.lane.b32.xlu0 %v4059, 64
        %v4292 = vpop.permute.xlu0 %4291
        %4293 = vrot.lane.b32.xlu0 %v4062, 64
        %v4294 = vpop.permute.xlu0 %4293
        %4295 = vrot.lane.b32.xlu0 %v4064, 64
        %v4296 = vpop.permute.xlu0 %4295
        %4297 = vrot.lane.b32.xlu0 %v4067, 64
        %v4298 = vpop.permute.xlu0 %4297
        %4299 = vrot.lane.b32.xlu0 %v4069, 64
        %v4300 = vpop.permute.xlu0 %4299
        %4301 = vrot.lane.b32.xlu0 %v4072, 64
        %v4302 = vpop.permute.xlu0 %4301
        %4303 = vrot.lane.b32.xlu0 %v4074, 64
        %v4304 = vpop.permute.xlu0 %4303
        %4305 = vrot.lane.b32.xlu0 %v4242, 64
        %v4306 = vpop.permute.xlu0 %4305
        %4307 = vrot.lane.b32.xlu0 %v4244, 64
        %v4308 = vpop.permute.xlu0 %4307
        %4341 = vrot.lane.b32.xlu0 %v4205, 64
        %v4342 = vpop.permute.xlu0 %4341
        %4343 = vrot.lane.b32.xlu0 %v4207, 64
        %v4344 = vpop.permute.xlu0 %4343
        %v4349 = vsel %vm2966, %v1923, %v3905
        %v4350 = vsel %vm2966, %v2672, %v3907
        %v4351 = vsel %vm2966, %v3767, %v3909
        %v4352 = vsel %vm2966, %v3673, %v3911
        %v4353 = vsel %vm2966, %v3768, %v3913
        %v4354 = vsel %vm2966, %v3676, %v3915
        %v4355 = vsel %vm2966, %v3769, %v3917
        %v4356 = vsel %vm2966, %v3679, %v3919
        %v4357 = vsel %vm2966, %v3770, %v3921
        %v4358 = vsel %vm2966, %v3682, %v3923
        %v4359 = vsel %vm2966, %v3771, %v3925
        %v4360 = vsel %vm2966, %v3685, %v3927
        %v4361 = vsel %vm2966, %v3772, %v3929
        %v4362 = vsel %vm2966, %v3688, %v3931
        %v4363 = vsel %vm2966, %v3773, %v3933
        %v4364 = vsel %vm2966, %v3691, %v3935
        %v4365 = vsel %vm2966, %v3774, %v3937
        %v4366 = vsel %vm2966, %v3694, %v3939
        %v4367 = vsel %vm2966, %v3775, %v3941
        %v4368 = vsel %vm2966, %v3697, %v3943
        %v4369 = vsel %vm2966, %v3776, %v3945
        %v4370 = vsel %vm2966, %v3700, %v3947
        %v4371 = vsel %vm2966, %v3777, %v3949
        %v4372 = vsel %vm2966, %v3703, %v3951
        %v4373 = vsel %vm2966, %v3778, %v3953
        %v4374 = vsel %vm2966, %v3706, %v3955
        %v4375 = vsel %vm2966, %v3779, %v3957
        %v4376 = vsel %vm2966, %v3709, %v3959
        %v4377 = vsel %vm2966, %v3780, %v3961
        %v4378 = vsel %vm2966, %v3712, %v3963
        %v4379 = vsel %vm2966, %v3781, %v3965
        %v4380 = vsel %vm2966, %v3715, %v3967
        %v4381 = vsel %vm2966, %v2776, %v4107
        %v4382 = vsel %vm2966, %v2778, %v4109
        %v4383 = vsel %vm2966, %v4002, %v4111
        %v4384 = vsel %vm2966, %v4004, %v4113
        %v4385 = vsel %vm2966, %v4007, %v4115
        %v4386 = vsel %vm2966, %v4009, %v4117
        %v4387 = vsel %vm2966, %v4012, %v4119
        %v4388 = vsel %vm2966, %v4014, %v4121
        %v4389 = vsel %vm2966, %v4017, %v4123
        %v4390 = vsel %vm2966, %v4019, %v4125
        %v4391 = vsel %vm2966, %v4022, %v4127
        %v4392 = vsel %vm2966, %v4024, %v4129
        %v4393 = vsel %vm2966, %v4027, %v4131
        %v4394 = vsel %vm2966, %v4029, %v4133
        %v4395 = vsel %vm2966, %v4032, %v4135
        %v4396 = vsel %vm2966, %v4034, %v4137
        %v4397 = vsel %vm2966, %v4037, %v4139
        %v4398 = vsel %vm2966, %v4039, %v4141
        %v4399 = vsel %vm2966, %v4042, %v4143
        %v4400 = vsel %vm2966, %v4044, %v4145
        %v4401 = vsel %vm2966, %v4047, %v4147
        %v4402 = vsel %vm2966, %v4049, %v4149
        %v4403 = vsel %vm2966, %v4052, %v4151
        %v4404 = vsel %vm2966, %v4054, %v4153
        %v4405 = vsel %vm2966, %v4057, %v4155
        %v4406 = vsel %vm2966, %v4059, %v4157
        %v4407 = vsel %vm2966, %v4062, %v4159
        %v4408 = vsel %vm2966, %v4064, %v4161
        %v4409 = vsel %vm2966, %v4067, %v4163
        %v4410 = vsel %vm2966, %v4069, %v4165
        %v4411 = vsel %vm2966, %v4072, %v4167
        %v4412 = vsel %vm2966, %v4074, %v4169
        %v4413 = vsel %vm2966, %v3831, %v4246
        %v4414 = vsel %vm2966, %v3833, %v4248
        %v4415 = vsel %vm2966, %v3836, %v4250
        %v4416 = vsel %vm2966, %v3838, %v4252
        %v4417 = vsel %vm2966, %v3841, %v4254
        %v4418 = vsel %vm2966, %v3843, %v4256
        %v4419 = vsel %vm2966, %v3846, %v4258
        %v4420 = vsel %vm2966, %v3848, %v4260
        %v4421 = vsel %vm2966, %v3851, %v4262
        %v4422 = vsel %vm2966, %v3853, %v4264
        %v4423 = vsel %vm2966, %v3856, %v4266
        %v4424 = vsel %vm2966, %v3858, %v4268
        %v4425 = vsel %vm2966, %v3861, %v4270
        %v4426 = vsel %vm2966, %v3863, %v4272
        %v4427 = vsel %vm2966, %v3866, %v4274
        %v4428 = vsel %vm2966, %v3868, %v4276
        %v4429 = vsel %vm2966, %v3871, %v4278
        %v4430 = vsel %vm2966, %v3873, %v4280
        %v4431 = vsel %vm2966, %v3876, %v4282
        %v4432 = vsel %vm2966, %v3878, %v4284
        %v4433 = vsel %vm2966, %v3881, %v4286
        %v4434 = vsel %vm2966, %v3883, %v4288
        %v4435 = vsel %vm2966, %v3886, %v4290
        %v4436 = vsel %vm2966, %v3888, %v4292
        %v4437 = vsel %vm2966, %v3891, %v4294
        %v4438 = vsel %vm2966, %v3893, %v4296
        %v4439 = vsel %vm2966, %v3896, %v4298
        %v4440 = vsel %vm2966, %v3898, %v4300
        %v4441 = vsel %vm2966, %v3901, %v4302
        %v4442 = vsel %vm2966, %v3903, %v4304
        %v4443 = vsel %vm2966, %v4205, %v4306
        %v4444 = vsel %vm2966, %v4207, %v4308
        %v4445 = vsel %vm2966, %v3782, %v4342
        %v4446 = vsel %vm2966, %v3718, %v4344
        %v4447 = vpack.c.bf16 %v4350, %v4349
        %v4448 = vpack.c.bf16 %v4382, %v4381
        %v4449 = vpack.c.bf16 %v4414, %v4413
        %v4450 = vpack.c.bf16 %v4354, %v4353
        %v4451 = vpack.c.bf16 %v4009, %v4007
        %v4452 = vpack.c.bf16 %v4352, %v4351
        %v4453 = vpack.c.bf16 %v4384, %v4383
        %v4454 = vpack.c.bf16 %v4416, %v4415
        %v4455 = vpack.c.bf16 %v4356, %v4355
        %v4456 = vpack.c.bf16 %v4014, %v4012
        %v4457 = vpack.c.bf16 %v4386, %v4385
        %v4458 = vpack.c.bf16 %v4418, %v4417
        %v4459 = vpack.c.bf16 %v4358, %v4357
        %v4460 = vpack.c.bf16 %v4019, %v4017
        %v4461 = vpack.c.bf16 %v4388, %v4387
        %v4462 = vpack.c.bf16 %v4420, %v4419
        %v4463 = vpack.c.bf16 %v4360, %v4359
        %v4464 = vpack.c.bf16 %v4024, %v4022
        %v4465 = vpack.c.bf16 %v4390, %v4389
        %v4466 = vpack.c.bf16 %v4422, %v4421
        %v4467 = vpack.c.bf16 %v4362, %v4361
        %v4468 = vpack.c.bf16 %v4029, %v4027
        %v4469 = vpack.c.bf16 %v4392, %v4391
        %v4470 = vpack.c.bf16 %v4424, %v4423
        %v4471 = vpack.c.bf16 %v4364, %v4363
        %v4472 = vpack.c.bf16 %v4034, %v4032
        %v4473 = vpack.c.bf16 %v4394, %v4393
        %v4474 = vpack.c.bf16 %v4426, %v4425
        %v4475 = vpack.c.bf16 %v4366, %v4365
        %v4476 = vpack.c.bf16 %v4039, %v4037
        %v4477 = vpack.c.bf16 %v4396, %v4395
        %v4478 = vpack.c.bf16 %v4428, %v4427
        %v4479 = vpack.c.bf16 %v4368, %v4367
        %v4480 = vpack.c.bf16 %v4044, %v4042
        %v4481 = vpack.c.bf16 %v4398, %v4397
        %v4482 = vpack.c.bf16 %v4430, %v4429
        %v4483 = vpack.c.bf16 %v4370, %v4369
        %v4484 = vpack.c.bf16 %v4049, %v4047
        %v4485 = vpack.c.bf16 %v4400, %v4399
        %v4486 = vpack.c.bf16 %v4432, %v4431
        %v4487 = vpack.c.bf16 %v4372, %v4371
        %v4488 = vpack.c.bf16 %v4054, %v4052
        %v4489 = vpack.c.bf16 %v4402, %v4401
        %v4490 = vpack.c.bf16 %v4434, %v4433
        %v4491 = vpack.c.bf16 %v4374, %v4373
        %v4492 = vpack.c.bf16 %v4059, %v4057
        %v4493 = vpack.c.bf16 %v4404, %v4403
        %v4494 = vpack.c.bf16 %v4436, %v4435
        %v4495 = vpack.c.bf16 %v4376, %v4375
        %v4496 = vpack.c.bf16 %v4064, %v4062
        %v4497 = vpack.c.bf16 %v4406, %v4405
        %v4498 = vpack.c.bf16 %v4438, %v4437
        %v4499 = vpack.c.bf16 %v4378, %v4377
        %v4500 = vpack.c.bf16 %v4069, %v4067
        %v4501 = vpack.c.bf16 %v4408, %v4407
        %v4502 = vpack.c.bf16 %v4440, %v4439
        %v4503 = vpack.c.bf16 %v4380, %v4379
        %v4504 = vpack.c.bf16 %v4074, %v4072
        %v4505 = vpack.c.bf16 %v4410, %v4409
        %v4506 = vpack.c.bf16 %v4442, %v4441
        %v4507 = vpack.c.bf16 %v4446, %v4445
        %v4508 = vpack.c.bf16 %v4244, %v4242
        %v4509 = vpack.c.bf16 %v4412, %v4411
        %v4510 = vpack.c.bf16 %v4444, %v4443
        %v4511 = vld [vmem:[#allocation7] sm:$0xf]
        %v4512 = vld [vmem:[#allocation7 + $0x4] sm:$0xf]
        %v4513 = vld [vmem:[#allocation7 + $0x8] sm:$0xf]
        %v4514 = vld [vmem:[#allocation7 + $0xc] sm:$0xf]
        %v4515 = vld [vmem:[#allocation7 + $0x10] sm:$0xf]
        %v4516 = vld [vmem:[#allocation7 + $0x14] sm:$0xf]
        %v4517 = vld [vmem:[#allocation7 + $0x18] sm:$0xf]
        %v4518 = vld [vmem:[#allocation7 + $0x1c] sm:$0xf]
        %v4519 = vld [vmem:[#allocation7 + $0x20] sm:$0xf]
        %v4520 = vld [vmem:[#allocation7 + $0x24] sm:$0xf]
        %v4521 = vld [vmem:[#allocation7 + $0x28] sm:$0xf]
        %v4522 = vld [vmem:[#allocation7 + $0x2c] sm:$0xf]
        %v4523 = vld [vmem:[#allocation7 + $0x30] sm:$0xf]
        %v4524 = vld [vmem:[#allocation7 + $0x34] sm:$0xf]
        %v4525 = vld [vmem:[#allocation7 + $0x38] sm:$0xf]
        %v4526 = vld [vmem:[#allocation7 + $0x3c] sm:$0xf]
        %v4527 = vld [vmem:[#allocation7 + $0x40] sm:$0xf]
        %v4528 = vld [vmem:[#allocation7 + $0x44] sm:$0xf]
        %v4529 = vld [vmem:[#allocation7 + $0x48] sm:$0xf]
        %v4530 = vld [vmem:[#allocation7 + $0x4c] sm:$0xf]
        %v4531 = vld [vmem:[#allocation7 + $0x50] sm:$0xf]
        %v4532 = vld [vmem:[#allocation7 + $0x54] sm:$0xf]
        %v4533 = vld [vmem:[#allocation7 + $0x58] sm:$0xf]
        %v4534 = vld [vmem:[#allocation7 + $0x5c] sm:$0xf]
        %v4535 = vld [vmem:[#allocation7 + $0x60] sm:$0xf]
        %v4536 = vld [vmem:[#allocation7 + $0x64] sm:$0xf]
        %v4537 = vld [vmem:[#allocation7 + $0x68] sm:$0xf]
        %v4538 = vld [vmem:[#allocation7 + $0x6c] sm:$0xf]
        %v4539 = vld [vmem:[#allocation7 + $0x70] sm:$0xf]
        %v4540 = vld [vmem:[#allocation7 + $0x74] sm:$0xf]
        %v4541 = vld [vmem:[#allocation7 + $0x78] sm:$0xf]
        %v4542 = vld [vmem:[#allocation7 + $0x7c] sm:$0xf]
        %v4543 = vld [vmem:[#allocation7 + $0x80] sm:$0xf]
        %v4544 = vld [vmem:[#allocation7 + $0x84] sm:$0xf]
        %v4545 = vld [vmem:[#allocation7 + $0x88] sm:$0xf]
        %v4546 = vld [vmem:[#allocation7 + $0x8c] sm:$0xf]
        %v4547 = vld [vmem:[#allocation7 + $0x90] sm:$0xf]
        %v4548 = vld [vmem:[#allocation7 + $0x94] sm:$0xf]
        %v4549 = vld [vmem:[#allocation7 + $0x98] sm:$0xf]
        %v4550 = vld [vmem:[#allocation7 + $0x9c] sm:$0xf]
        %v4551 = vld [vmem:[#allocation7 + $0xa0] sm:$0xf]
        %v4552 = vld [vmem:[#allocation7 + $0xa4] sm:$0xf]
        %v4553 = vld [vmem:[#allocation7 + $0xa8] sm:$0xf]
        %v4554 = vld [vmem:[#allocation7 + $0xac] sm:$0xf]
        %v4555 = vld [vmem:[#allocation7 + $0xb0] sm:$0xf]
        %v4556 = vld [vmem:[#allocation7 + $0xb4] sm:$0xf]
        %v4557 = vld [vmem:[#allocation7 + $0xb8] sm:$0xf]
        %v4558 = vld [vmem:[#allocation7 + $0xbc] sm:$0xf]
        %v4559 = vld [vmem:[#allocation7 + $0xc0] sm:$0xf]
        %v4560 = vld [vmem:[#allocation7 + $0xc4] sm:$0xf]
        %v4561 = vld [vmem:[#allocation7 + $0xc8] sm:$0xf]
        %v4562 = vld [vmem:[#allocation7 + $0xcc] sm:$0xf]
        %v4563 = vld [vmem:[#allocation7 + $0xd0] sm:$0xf]
        %v4564 = vld [vmem:[#allocation7 + $0xd4] sm:$0xf]
        %v4565 = vld [vmem:[#allocation7 + $0xd8] sm:$0xf]
        %v4566 = vld [vmem:[#allocation7 + $0xdc] sm:$0xf]
        %v4567 = vld [vmem:[#allocation7 + $0xe0] sm:$0xf]
        %v4568 = vld [vmem:[#allocation7 + $0xe4] sm:$0xf]
        %v4569 = vld [vmem:[#allocation7 + $0xe8] sm:$0xf]
        %v4570 = vld [vmem:[#allocation7 + $0xec] sm:$0xf]
        %v4571 = vld [vmem:[#allocation7 + $0xf0] sm:$0xf]
        %v4572 = vld [vmem:[#allocation7 + $0xf4] sm:$0xf]
        %v4573 = vld [vmem:[#allocation7 + $0xf8] sm:$0xf]
        %v4574 = vld [vmem:[#allocation7 + $0xfc] sm:$0xf]
        %v4575 = vld [vmem:[#allocation7 + $0x100] sm:$0xf]
        %v4576 = vld [vmem:[#allocation7 + $0x104] sm:$0xf]
        %v4577 = vld [vmem:[#allocation7 + $0x108] sm:$0xf]
        %v4578 = vld [vmem:[#allocation7 + $0x10c] sm:$0xf]
        %v4579 = vld [vmem:[#allocation7 + $0x110] sm:$0xf]
        %v4580 = vld [vmem:[#allocation7 + $0x114] sm:$0xf]
        %v4581 = vld [vmem:[#allocation7 + $0x118] sm:$0xf]
        %v4582 = vld [vmem:[#allocation7 + $0x11c] sm:$0xf]
        %v4583 = vld [vmem:[%s11] sm:$0x1]
        %v4585 = vlaneseq
        %v4586 = vshrl.u32 %v4585, 7
        %v4587 = vsub.s32 0, %v4586
        %v4588 = vrot.slane %v4583, %v4587
        %v4662 = vunpack.c.l.b16 %v4511
        %v4663 = vunpack.c.l.b16 %v4512
        %v4664 = vunpack.c.l.b16 %v4513
        %v4665 = vunpack.c.l.b16 %v4514
        %v4666 = vunpack.c.l.b16 %v4515
        %v4667 = vunpack.c.l.b16 %v4516
        %v4668 = vunpack.c.l.b16 %v4517
        %v4669 = vunpack.c.l.b16 %v4518
        %v4670 = vunpack.c.l.b16 %v4519
        %v4671 = vunpack.c.l.b16 %v4520
        %v4672 = vunpack.c.l.b16 %v4521
        %v4673 = vunpack.c.l.b16 %v4522
        %v4674 = vunpack.c.l.b16 %v4523
        %v4675 = vunpack.c.l.b16 %v4524
        %v4676 = vunpack.c.l.b16 %v4525
        %v4677 = vunpack.c.l.b16 %v4526
        %v4678 = vunpack.c.l.b16 %v4527
        %v4679 = vunpack.c.l.b16 %v4528
        %v4680 = vunpack.c.l.b16 %v4529
        %v4681 = vunpack.c.l.b16 %v4530
        %v4682 = vunpack.c.l.b16 %v4531
        %v4683 = vunpack.c.l.b16 %v4532
        %v4684 = vunpack.c.l.b16 %v4533
        %v4685 = vunpack.c.l.b16 %v4534
        %v4686 = vunpack.c.l.b16 %v4535
        %v4687 = vunpack.c.l.b16 %v4536
        %v4688 = vunpack.c.l.b16 %v4537
        %v4689 = vunpack.c.l.b16 %v4538
        %v4690 = vunpack.c.l.b16 %v4539
        %v4691 = vunpack.c.l.b16 %v4540
        %v4692 = vunpack.c.l.b16 %v4541
        %v4693 = vunpack.c.l.b16 %v4542
        %v4694 = vunpack.c.l.b16 %v4543
        %v4695 = vunpack.c.l.b16 %v4544
        %v4696 = vunpack.c.l.b16 %v4545
        %v4697 = vunpack.c.l.b16 %v4546
        %v4698 = vunpack.c.l.b16 %v4547
        %v4699 = vunpack.c.l.b16 %v4548
        %v4700 = vunpack.c.l.b16 %v4549
        %v4701 = vunpack.c.l.b16 %v4550
        %v4702 = vunpack.c.l.b16 %v4551
        %v4703 = vunpack.c.l.b16 %v4552
        %v4704 = vunpack.c.l.b16 %v4553
        %v4705 = vunpack.c.l.b16 %v4554
        %v4706 = vunpack.c.l.b16 %v4555
        %v4707 = vunpack.c.l.b16 %v4556
        %v4708 = vunpack.c.l.b16 %v4557
        %v4709 = vunpack.c.l.b16 %v4558
        %v4710 = vunpack.c.l.b16 %v4559
        %v4711 = vunpack.c.l.b16 %v4560
        %v4712 = vunpack.c.l.b16 %v4561
        %v4713 = vunpack.c.l.b16 %v4562
        %v4714 = vunpack.c.l.b16 %v4563
        %v4715 = vunpack.c.l.b16 %v4564
        %v4716 = vunpack.c.l.b16 %v4565
        %v4717 = vunpack.c.l.b16 %v4566
        %v4718 = vunpack.c.l.b16 %v4567
        %v4719 = vunpack.c.l.b16 %v4568
        %v4720 = vunpack.c.l.b16 %v4569
        %v4721 = vunpack.c.l.b16 %v4570
        %v4722 = vunpack.c.l.b16 %v4571
        %v4723 = vunpack.c.l.b16 %v4572
        %v4724 = vunpack.c.l.b16 %v4573
        %v4725 = vunpack.c.l.b16 %v4574
        %v4726 = vunpack.c.l.b16 %v4575
        %v4727 = vunpack.c.l.b16 %v4576
        %v4728 = vunpack.c.l.b16 %v4577
        %v4729 = vunpack.c.l.b16 %v4578
        %v4730 = vunpack.c.l.b16 %v4579
        %v4731 = vunpack.c.l.b16 %v4580
        %v4732 = vunpack.c.l.b16 %v4581
        %v4733 = vunpack.c.l.b16 %v4582
        %v4734 = vpack.c.b16 %v4663, %v4662
        %v4735 = vpack.c.b16 %v4665, %v4664
        %v4736 = vpack.c.b16 %v4667, %v4666
        %v4737 = vpack.c.b16 %v4669, %v4668
        %v4738 = vpack.c.b16 %v4671, %v4670
        %v4739 = vpack.c.b16 %v4673, %v4672
        %v4740 = vpack.c.b16 %v4675, %v4674
        %v4741 = vpack.c.b16 %v4677, %v4676
        %v4742 = vpack.c.b16 %v4679, %v4678
        %v4743 = vpack.c.b16 %v4681, %v4680
        %v4744 = vpack.c.b16 %v4683, %v4682
        %v4745 = vpack.c.b16 %v4685, %v4684
        %v4746 = vpack.c.b16 %v4687, %v4686
        %v4747 = vpack.c.b16 %v4689, %v4688
        %v4748 = vpack.c.b16 %v4691, %v4690
        %v4749 = vpack.c.b16 %v4693, %v4692
        %v4750 = vpack.c.b16 %v4695, %v4694
        %v4751 = vpack.c.b16 %v4697, %v4696
        %v4752 = vpack.c.b16 %v4699, %v4698
        %v4753 = vpack.c.b16 %v4701, %v4700
        %v4754 = vpack.c.b16 %v4703, %v4702
        %v4755 = vpack.c.b16 %v4705, %v4704
        %v4756 = vpack.c.b16 %v4707, %v4706
        %v4757 = vpack.c.b16 %v4709, %v4708
        %v4758 = vpack.c.b16 %v4711, %v4710
        %v4759 = vpack.c.b16 %v4713, %v4712
        %v4760 = vpack.c.b16 %v4715, %v4714
        %v4761 = vpack.c.b16 %v4717, %v4716
        %v4762 = vpack.c.b16 %v4719, %v4718
        %v4763 = vpack.c.b16 %v4721, %v4720
        %v4764 = vpack.c.b16 %v4723, %v4722
        %v4765 = vpack.c.b16 %v4725, %v4724
        %v4766 = vpack.c.b16 %v4727, %v4726
        %v4767 = vpack.c.b16 %v4729, %v4728
        %v4768 = vpack.c.b16 %v4731, %v4730
        %v4769 = vpack.c.b16 %v4733, %v4732
        %v4807 = vsel %vm2966, %v4451, 0
        %v4810 = vsel %vm2966, %v4456, 0
        %v4813 = vsel %vm2966, %v4460, 0
        %v4816 = vsel %vm2966, %v4464, 0
        %v4819 = vsel %vm2966, %v4468, 0
        %v4822 = vsel %vm2966, %v4472, 0
        %v4825 = vsel %vm2966, %v4476, 0
        %v4828 = vsel %vm2966, %v4480, 0
        %v4831 = vsel %vm2966, %v4484, 0
        %v4834 = vsel %vm2966, %v4488, 0
        %v4837 = vsel %vm2966, %v4492, 0
        %v4840 = vsel %vm2966, %v4496, 0
        %v4843 = vsel %vm2966, %v4500, 0
        %v4846 = vsel %vm2966, %v4504, 0
        %v4849 = vsel %vm2966, %v4508, 0
        %v4851 = vsel %vm2966, %v3054, 0
        %4853 = vmatprep.subr.bf16.mxu0 0
        %4854 = vmatpush1.bf16.msra.mxu0 %v4741
        %4855 = vmatprep.subr.bf16.mxu0 0
        %4856 = vmatpush1.bf16.msra.mxu0 %v4740
        %4857 = vmatprep.subr.bf16.mxu0 0
        %4858 = vmatpush1.bf16.msra.mxu0 %v4739
        %4859 = vmatprep.subr.bf16.mxu0 0
        %4860 = vmatpush1.bf16.msra.mxu0 %v4738
        %4861 = vmatprep.subr.bf16.mxu0 0
        %4862 = vmatpush1.bf16.msra.mxu0 %v4737
        %4863 = vmatprep.subr.bf16.mxu0 0
        %4864 = vmatpush1.bf16.msra.mxu0 %v4736
        %4865 = vmatprep.subr.bf16.mxu0 0
        %4866 = vmatpush1.bf16.msra.mxu0 %v4735
        %4867 = vmatprep.subr.bf16.mxu0 0
        %4868 = vmatpush1.bf16.msra.mxu0 %v4734
        %4869 = vmatprep.subr.bf16.mxu0 0
        %4870 = vmatpush2.bf16.msra.mxu0 %v4749
        %4871 = vmatprep.subr.bf16.mxu0 0
        %4872 = vmatpush2.bf16.msra.mxu0 %v4748
        %4873 = vmatprep.subr.bf16.mxu0 0
        %4874 = vmatpush2.bf16.msra.mxu0 %v4747
        %4875 = vmatprep.subr.bf16.mxu0 0
        %4876 = vmatpush2.bf16.msra.mxu0 %v4746
        %4877 = vmatprep.subr.bf16.mxu0 0
        %4878 = vmatpush2.bf16.msra.mxu0 %v4745
        %4879 = vmatprep.subr.bf16.mxu0 0
        %4880 = vmatpush2.bf16.msra.mxu0 %v4744
        %4881 = vmatprep.subr.bf16.mxu0 0
        %4882 = vmatpush2.bf16.msra.mxu0 %v4743
        %4883 = vmatprep.subr.bf16.mxu0 0
        %4884 = vmatpush2.bf16.msra.mxu0 %v4742
        %4885 = vmatprep.mubr.bf16.mxu0 %v4448
        %4886 = vmatmul.mubr.bf16.gmra.mxu0 %v4447
        %v4887 = vpop.f32.mrf.mxu0
        %v4888 = vadd.f32 %v4588, %v4887
        %v4889 = vpop.f32.mrf.mxu0
        %v4890 = vpop.f32.mrf.mxu0
        %v4891 = vadd.f32 %v4588, %v4890
        %v4892 = vpop.f32.mrf.mxu0
        %4893 = vmatprep.mubr.bf16.mxu0 %v4453
        %4894 = vmatmul.mubr.bf16.gmra.mxu0 %v4452
        %v4895 = vpop.f32.mrf.mxu0
        %v4896 = vadd.f32 %v4588, %v4895
        %v4897 = vpop.f32.mrf.mxu0
        %v4898 = vpop.f32.mrf.mxu0
        %v4899 = vadd.f32 %v4588, %v4898
        %v4900 = vpop.f32.mrf.mxu0
        %4901 = vmatprep.mubr.bf16.mxu0 %v4457
        %4902 = vmatmul.mubr.bf16.gmra.mxu0 %v4450
        %v4903 = vpop.f32.mrf.mxu0
        %v4904 = vadd.f32 %v4588, %v4903
        %v4905 = vpop.f32.mrf.mxu0
        %v4906 = vpop.f32.mrf.mxu0
        %v4907 = vadd.f32 %v4588, %v4906
        %v4908 = vpop.f32.mrf.mxu0
        %4909 = vmatprep.mubr.bf16.mxu0 %v4461
        %4910 = vmatmul.mubr.bf16.gmra.mxu0 %v4455
        %v4911 = vpop.f32.mrf.mxu0
        %v4912 = vadd.f32 %v4588, %v4911
        %v4913 = vpop.f32.mrf.mxu0
        %v4914 = vpop.f32.mrf.mxu0
        %v4915 = vadd.f32 %v4588, %v4914
        %v4916 = vpop.f32.mrf.mxu0
        %4917 = vmatprep.mubr.bf16.mxu0 %v4465
        %4918 = vmatmul.mubr.bf16.gmra.mxu0 %v4459
        %v4919 = vpop.f32.mrf.mxu0
        %v4920 = vadd.f32 %v4588, %v4919
        %v4921 = vpop.f32.mrf.mxu0
        %v4922 = vpop.f32.mrf.mxu0
        %v4923 = vadd.f32 %v4588, %v4922
        %v4924 = vpop.f32.mrf.mxu0
        %4925 = vmatprep.mubr.bf16.mxu0 %v4469
        %4926 = vmatmul.mubr.bf16.gmra.mxu0 %v4463
        %v4927 = vpop.f32.mrf.mxu0
        %v4928 = vadd.f32 %v4588, %v4927
        %v4929 = vpop.f32.mrf.mxu0
        %v4930 = vpop.f32.mrf.mxu0
        %v4931 = vadd.f32 %v4588, %v4930
        %v4932 = vpop.f32.mrf.mxu0
        %4933 = vmatprep.mubr.bf16.mxu0 %v4473
        %4934 = vmatmul.mubr.bf16.gmra.mxu0 %v4467
        %v4935 = vpop.f32.mrf.mxu0
        %v4936 = vadd.f32 %v4588, %v4935
        %v4937 = vpop.f32.mrf.mxu0
        %v4938 = vpop.f32.mrf.mxu0
        %v4939 = vadd.f32 %v4588, %v4938
        %v4940 = vpop.f32.mrf.mxu0
        %4941 = vmatprep.mubr.bf16.mxu0 %v4477
        %4942 = vmatmul.mubr.bf16.gmra.mxu0 %v4471
        %v4943 = vpop.f32.mrf.mxu0
        %v4944 = vadd.f32 %v4588, %v4943
        %v4945 = vpop.f32.mrf.mxu0
        %v4946 = vpop.f32.mrf.mxu0
        %v4947 = vadd.f32 %v4588, %v4946
        %v4948 = vpop.f32.mrf.mxu0
        %4949 = vmatprep.mubr.bf16.mxu0 %v4481
        %4950 = vmatmul.mubr.bf16.gmra.mxu0 %v4475
        %v4951 = vpop.f32.mrf.mxu0
        %v4952 = vadd.f32 %v4588, %v4951
        %v4953 = vpop.f32.mrf.mxu0
        %v4954 = vpop.f32.mrf.mxu0
        %v4955 = vadd.f32 %v4588, %v4954
        %v4956 = vpop.f32.mrf.mxu0
        %4957 = vmatprep.mubr.bf16.mxu0 %v4485
        %4958 = vmatmul.mubr.bf16.gmra.mxu0 %v4479
        %v4959 = vpop.f32.mrf.mxu0
        %v4960 = vadd.f32 %v4588, %v4959
        %v4961 = vpop.f32.mrf.mxu0
        %v4962 = vpop.f32.mrf.mxu0
        %v4963 = vadd.f32 %v4588, %v4962
        %v4964 = vpop.f32.mrf.mxu0
        %4965 = vmatprep.mubr.bf16.mxu0 %v4489
        %4966 = vmatmul.mubr.bf16.gmra.mxu0 %v4483
        %v4967 = vpop.f32.mrf.mxu0
        %v4968 = vadd.f32 %v4588, %v4967
        %v4969 = vpop.f32.mrf.mxu0
        %v4970 = vpop.f32.mrf.mxu0
        %v4971 = vadd.f32 %v4588, %v4970
        %v4972 = vpop.f32.mrf.mxu0
        %4973 = vmatprep.mubr.bf16.mxu0 %v4493
        %4974 = vmatmul.mubr.bf16.gmra.mxu0 %v4487
        %v4975 = vpop.f32.mrf.mxu0
        %v4976 = vadd.f32 %v4588, %v4975
        %v4977 = vpop.f32.mrf.mxu0
        %v4978 = vpop.f32.mrf.mxu0
        %v4979 = vadd.f32 %v4588, %v4978
        %v4980 = vpop.f32.mrf.mxu0
        %4981 = vmatprep.mubr.bf16.mxu0 %v4497
        %4982 = vmatmul.mubr.bf16.gmra.mxu0 %v4491
        %v4983 = vpop.f32.mrf.mxu0
        %v4984 = vadd.f32 %v4588, %v4983
        %v4985 = vpop.f32.mrf.mxu0
        %v4986 = vpop.f32.mrf.mxu0
        %v4987 = vadd.f32 %v4588, %v4986
        %v4988 = vpop.f32.mrf.mxu0
        %4989 = vmatprep.mubr.bf16.mxu0 %v4501
        %4990 = vmatmul.mubr.bf16.gmra.mxu0 %v4495
        %v4991 = vpop.f32.mrf.mxu0
        %v4992 = vadd.f32 %v4588, %v4991
        %v4993 = vpop.f32.mrf.mxu0
        %v4994 = vpop.f32.mrf.mxu0
        %v4995 = vadd.f32 %v4588, %v4994
        %v4996 = vpop.f32.mrf.mxu0
        %4997 = vmatprep.mubr.bf16.mxu0 %v4505
        %4998 = vmatmul.mubr.bf16.gmra.mxu0 %v4499
        %v4999 = vpop.f32.mrf.mxu0
        %v5000 = vadd.f32 %v4588, %v4999
        %v5001 = vpop.f32.mrf.mxu0
        %v5002 = vpop.f32.mrf.mxu0
        %v5003 = vadd.f32 %v4588, %v5002
        %v5004 = vpop.f32.mrf.mxu0
        %5005 = vmatprep.mubr.bf16.mxu0 %v4509
        %5006 = vmatmul.mubr.bf16.gmra.mxu0 %v4503
        %v5007 = vpop.f32.mrf.mxu0
        %v5008 = vadd.f32 %v4588, %v5007
        %v5009 = vpop.f32.mrf.mxu0
        %v5010 = vpop.f32.mrf.mxu0
        %v5011 = vadd.f32 %v4588, %v5010
        %v5012 = vpop.f32.mrf.mxu0
        %5013 = vdwg.mxu0
        %5014 = vmatprep.subr.bf16.mxu0 0
        %5015 = vmatpush1.bf16.msra.mxu0 %v4757
        %5016 = vmatprep.subr.bf16.mxu0 0
        %5017 = vmatpush1.bf16.msra.mxu0 %v4756
        %5018 = vmatprep.subr.bf16.mxu0 0
        %5019 = vmatpush1.bf16.msra.mxu0 %v4755
        %5020 = vmatprep.subr.bf16.mxu0 0
        %5021 = vmatpush1.bf16.msra.mxu0 %v4754
        %5022 = vmatprep.subr.bf16.mxu0 0
        %5023 = vmatpush1.bf16.msra.mxu0 %v4753
        %5024 = vmatprep.subr.bf16.mxu0 0
        %5025 = vmatpush1.bf16.msra.mxu0 %v4752
        %5026 = vmatprep.subr.bf16.mxu0 0
        %5027 = vmatpush1.bf16.msra.mxu0 %v4751
        %5028 = vmatprep.subr.bf16.mxu0 0
        %5029 = vmatpush1.bf16.msra.mxu0 %v4750
        %5030 = vmatprep.subr.bf16.mxu0 0
        %5031 = vmatpush2.bf16.msra.mxu0 %v4765
        %5032 = vmatprep.subr.bf16.mxu0 0
        %5033 = vmatpush2.bf16.msra.mxu0 %v4764
        %5034 = vmatprep.subr.bf16.mxu0 0
        %5035 = vmatpush2.bf16.msra.mxu0 %v4763
        %5036 = vmatprep.subr.bf16.mxu0 0
        %5037 = vmatpush2.bf16.msra.mxu0 %v4762
        %5038 = vmatprep.subr.bf16.mxu0 0
        %5039 = vmatpush2.bf16.msra.mxu0 %v4761
        %5040 = vmatprep.subr.bf16.mxu0 0
        %5041 = vmatpush2.bf16.msra.mxu0 %v4760
        %5042 = vmatprep.subr.bf16.mxu0 0
        %5043 = vmatpush2.bf16.msra.mxu0 %v4759
        %5044 = vmatprep.subr.bf16.mxu0 0
        %5045 = vmatpush2.bf16.msra.mxu0 %v4758
        %5046 = vmatprep.mubr.bf16.mxu0 %v4450
        %5047 = vmatmul.mubr.bf16.gmra.mxu0 %v4449
        %v5048 = vpop.f32.mrf.mxu0
        %v5049 = vadd.f32 %v4888, %v5048
        %v5050 = vpop.f32.mrf.mxu0
        %v5051 = vpop.f32.mrf.mxu0
        %v5052 = vadd.f32 %v4891, %v5051
        %v5053 = vpop.f32.mrf.mxu0
        %5054 = vmatprep.mubr.bf16.mxu0 %v4455
        %5055 = vmatmul.mubr.bf16.gmra.mxu0 %v4454
        %v5056 = vpop.f32.mrf.mxu0
        %v5057 = vadd.f32 %v4896, %v5056
        %v5058 = vpop.f32.mrf.mxu0
        %v5059 = vpop.f32.mrf.mxu0
        %v5060 = vadd.f32 %v4899, %v5059
        %v5061 = vpop.f32.mrf.mxu0
        %5062 = vmatprep.mubr.bf16.mxu0 %v4459
        %5063 = vmatmul.mubr.bf16.gmra.mxu0 %v4458
        %v5064 = vpop.f32.mrf.mxu0
        %v5065 = vadd.f32 %v4904, %v5064
        %v5066 = vpop.f32.mrf.mxu0
        %v5067 = vpop.f32.mrf.mxu0
        %v5068 = vadd.f32 %v4907, %v5067
        %v5069 = vpop.f32.mrf.mxu0
        %5070 = vmatprep.mubr.bf16.mxu0 %v4463
        %5071 = vmatmul.mubr.bf16.gmra.mxu0 %v4462
        %v5072 = vpop.f32.mrf.mxu0
        %v5073 = vadd.f32 %v4912, %v5072
        %v5074 = vpop.f32.mrf.mxu0
        %v5075 = vpop.f32.mrf.mxu0
        %v5076 = vadd.f32 %v4915, %v5075
        %v5077 = vpop.f32.mrf.mxu0
        %5078 = vmatprep.mubr.bf16.mxu0 %v4467
        %5079 = vmatmul.mubr.bf16.gmra.mxu0 %v4466
        %v5080 = vpop.f32.mrf.mxu0
        %v5081 = vadd.f32 %v4920, %v5080
        %v5082 = vpop.f32.mrf.mxu0
        %v5083 = vpop.f32.mrf.mxu0
        %v5084 = vadd.f32 %v4923, %v5083
        %v5085 = vpop.f32.mrf.mxu0
        %5086 = vmatprep.mubr.bf16.mxu0 %v4471
        %5087 = vmatmul.mubr.bf16.gmra.mxu0 %v4470
        %v5088 = vpop.f32.mrf.mxu0
        %v5089 = vadd.f32 %v4928, %v5088
        %v5090 = vpop.f32.mrf.mxu0
        %v5091 = vpop.f32.mrf.mxu0
        %v5092 = vadd.f32 %v4931, %v5091
        %v5093 = vpop.f32.mrf.mxu0
        %5094 = vmatprep.mubr.bf16.mxu0 %v4475
        %5095 = vmatmul.mubr.bf16.gmra.mxu0 %v4474
        %v5096 = vpop.f32.mrf.mxu0
        %v5097 = vadd.f32 %v4936, %v5096
        %v5098 = vpop.f32.mrf.mxu0
        %v5099 = vpop.f32.mrf.mxu0
        %v5100 = vadd.f32 %v4939, %v5099
        %v5101 = vpop.f32.mrf.mxu0
        %5102 = vmatprep.mubr.bf16.mxu0 %v4479
        %5103 = vmatmul.mubr.bf16.gmra.mxu0 %v4478
        %v5104 = vpop.f32.mrf.mxu0
        %v5105 = vadd.f32 %v4944, %v5104
        %v5106 = vpop.f32.mrf.mxu0
        %v5107 = vpop.f32.mrf.mxu0
        %v5108 = vadd.f32 %v4947, %v5107
        %v5109 = vpop.f32.mrf.mxu0
        %5110 = vmatprep.mubr.bf16.mxu0 %v4483
        %5111 = vmatmul.mubr.bf16.gmra.mxu0 %v4482
        %v5112 = vpop.f32.mrf.mxu0
        %v5113 = vadd.f32 %v4952, %v5112
        %v5114 = vpop.f32.mrf.mxu0
        %v5115 = vpop.f32.mrf.mxu0
        %v5116 = vadd.f32 %v4955, %v5115
        %v5117 = vpop.f32.mrf.mxu0
        %5118 = vmatprep.mubr.bf16.mxu0 %v4487
        %5119 = vmatmul.mubr.bf16.gmra.mxu0 %v4486
        %v5120 = vpop.f32.mrf.mxu0
        %v5121 = vadd.f32 %v4960, %v5120
        %v5122 = vpop.f32.mrf.mxu0
        %v5123 = vpop.f32.mrf.mxu0
        %v5124 = vadd.f32 %v4963, %v5123
        %v5125 = vpop.f32.mrf.mxu0
        %5126 = vmatprep.mubr.bf16.mxu0 %v4491
        %5127 = vmatmul.mubr.bf16.gmra.mxu0 %v4490
        %v5128 = vpop.f32.mrf.mxu0
        %v5129 = vadd.f32 %v4968, %v5128
        %v5130 = vpop.f32.mrf.mxu0
        %v5131 = vpop.f32.mrf.mxu0
        %v5132 = vadd.f32 %v4971, %v5131
        %v5133 = vpop.f32.mrf.mxu0
        %5134 = vmatprep.mubr.bf16.mxu0 %v4495
        %5135 = vmatmul.mubr.bf16.gmra.mxu0 %v4494
        %v5136 = vpop.f32.mrf.mxu0
        %v5137 = vadd.f32 %v4976, %v5136
        %v5138 = vpop.f32.mrf.mxu0
        %v5139 = vpop.f32.mrf.mxu0
        %v5140 = vadd.f32 %v4979, %v5139
        %v5141 = vpop.f32.mrf.mxu0
        %5142 = vmatprep.mubr.bf16.mxu0 %v4499
        %5143 = vmatmul.mubr.bf16.gmra.mxu0 %v4498
        %v5144 = vpop.f32.mrf.mxu0
        %v5145 = vadd.f32 %v4984, %v5144
        %v5146 = vpop.f32.mrf.mxu0
        %v5147 = vpop.f32.mrf.mxu0
        %v5148 = vadd.f32 %v4987, %v5147
        %v5149 = vpop.f32.mrf.mxu0
        %5150 = vmatprep.mubr.bf16.mxu0 %v4503
        %5151 = vmatmul.mubr.bf16.gmra.mxu0 %v4502
        %v5152 = vpop.f32.mrf.mxu0
        %v5153 = vadd.f32 %v4992, %v5152
        %v5154 = vpop.f32.mrf.mxu0
        %v5155 = vpop.f32.mrf.mxu0
        %v5156 = vadd.f32 %v4995, %v5155
        %v5157 = vpop.f32.mrf.mxu0
        %5158 = vmatprep.mubr.bf16.mxu0 %v4507
        %5159 = vmatmul.mubr.bf16.gmra.mxu0 %v4506
        %v5160 = vpop.f32.mrf.mxu0
        %v5161 = vadd.f32 %v5000, %v5160
        %v5162 = vpop.f32.mrf.mxu0
        %v5163 = vpop.f32.mrf.mxu0
        %v5164 = vadd.f32 %v5003, %v5163
        %v5165 = vpop.f32.mrf.mxu0
        %5166 = vmatprep.mubr.bf16.mxu0 %v4447
        %5167 = vmatmul.mubr.bf16.gmra.mxu0 %v4510
        %v5168 = vpop.f32.mrf.mxu0
        %v5169 = vadd.f32 %v5008, %v5168
        %v5170 = vpop.f32.mrf.mxu0
        %v5171 = vpop.f32.mrf.mxu0
        %v5172 = vadd.f32 %v5011, %v5171
        %v5173 = vpop.f32.mrf.mxu0
        %5174 = vdwg.mxu0
        %5175 = vmatprep.subr.bf16.mxu0 0
        %5176 = vmatpush1.bf16.msra.mxu0 0
        %5177 = vmatprep.subr.bf16.mxu0 0
        %5178 = vmatpush1.bf16.msra.mxu0 0
        %5179 = vmatprep.subr.bf16.mxu0 0
        %5180 = vmatpush1.bf16.msra.mxu0 0
        %5181 = vmatprep.subr.bf16.mxu0 0
        %5182 = vmatpush1.bf16.msra.mxu0 0
        %5183 = vmatprep.subr.bf16.mxu0 0
        %5184 = vmatpush1.bf16.msra.mxu0 %v4769
        %5185 = vmatprep.subr.bf16.mxu0 0
        %5186 = vmatpush1.bf16.msra.mxu0 %v4768
        %5187 = vmatprep.subr.bf16.mxu0 0
        %5188 = vmatpush1.bf16.msra.mxu0 %v4767
        %5189 = vmatprep.subr.bf16.mxu0 0
        %5190 = vmatpush1.bf16.msra.mxu0 %v4766
        %5191 = vmatprep.subr.bf16.mxu0 0
        %5192 = vmatpush2.bf16.msra.mxu0 0
        %5193 = vmatprep.subr.bf16.mxu0 0
        %5194 = vmatpush2.bf16.msra.mxu0 0
        %5195 = vmatprep.subr.bf16.mxu0 0
        %5196 = vmatpush2.bf16.msra.mxu0 0
        %5197 = vmatprep.subr.bf16.mxu0 0
        %5198 = vmatpush2.bf16.msra.mxu0 0
        %5199 = vmatprep.subr.bf16.mxu0 0
        %5200 = vmatpush2.bf16.msra.mxu0 0
        %5201 = vmatprep.subr.bf16.mxu0 0
        %5202 = vmatpush2.bf16.msra.mxu0 0
        %5203 = vmatprep.subr.bf16.mxu0 0
        %5204 = vmatpush2.bf16.msra.mxu0 0
        %5205 = vmatprep.subr.bf16.mxu0 0
        %5206 = vmatpush2.bf16.msra.mxu0 0
        %5207 = vmatprep.mubr.bf16.mxu0 0
        %5208 = vmatmul.mubr.bf16.gmra.mxu0 %v4807
        %v5209 = vpop.f32.mrf.mxu0
        %v5210 = vadd.f32 %v5049, %v5209
        %v5211 = vpop.f32.mrf.mxu0
        %v5212 = vpop.f32.mrf.mxu0
        %v5213 = vadd.f32 %v5052, %v5212
        %v5214 = vpop.f32.mrf.mxu0
        %5215 = vmatprep.mubr.bf16.mxu0 0
        %5216 = vmatmul.mubr.bf16.gmra.mxu0 %v4810
        %v5217 = vpop.f32.mrf.mxu0
        %v5218 = vadd.f32 %v5057, %v5217
        %v5219 = vpop.f32.mrf.mxu0
        %v5220 = vpop.f32.mrf.mxu0
        %v5221 = vadd.f32 %v5060, %v5220
        %v5222 = vpop.f32.mrf.mxu0
        %5223 = vmatprep.mubr.bf16.mxu0 0
        %5224 = vmatmul.mubr.bf16.gmra.mxu0 %v4813
        %v5225 = vpop.f32.mrf.mxu0
        %v5226 = vadd.f32 %v5065, %v5225
        %v5227 = vpop.f32.mrf.mxu0
        %v5228 = vpop.f32.mrf.mxu0
        %v5229 = vadd.f32 %v5068, %v5228
        %v5230 = vpop.f32.mrf.mxu0
        %5231 = vmatprep.mubr.bf16.mxu0 0
        %5232 = vmatmul.mubr.bf16.gmra.mxu0 %v4816
        %v5233 = vpop.f32.mrf.mxu0
        %v5234 = vadd.f32 %v5073, %v5233
        %v5235 = vpop.f32.mrf.mxu0
        %v5236 = vpop.f32.mrf.mxu0
        %v5237 = vadd.f32 %v5076, %v5236
        %v5238 = vpop.f32.mrf.mxu0
        %5239 = vmatprep.mubr.bf16.mxu0 0
        %5240 = vmatmul.mubr.bf16.gmra.mxu0 %v4819
        %v5241 = vpop.f32.mrf.mxu0
        %v5242 = vadd.f32 %v5081, %v5241
        %v5243 = vpop.f32.mrf.mxu0
        %v5244 = vpop.f32.mrf.mxu0
        %v5245 = vadd.f32 %v5084, %v5244
        %v5246 = vpop.f32.mrf.mxu0
        %5247 = vmatprep.mubr.bf16.mxu0 0
        %5248 = vmatmul.mubr.bf16.gmra.mxu0 %v4822
        %v5249 = vpop.f32.mrf.mxu0
        %v5250 = vadd.f32 %v5089, %v5249
        %v5251 = vpop.f32.mrf.mxu0
        %v5252 = vpop.f32.mrf.mxu0
        %v5253 = vadd.f32 %v5092, %v5252
        %v5254 = vpop.f32.mrf.mxu0
        %5255 = vmatprep.mubr.bf16.mxu0 0
        %5256 = vmatmul.mubr.bf16.gmra.mxu0 %v4825
        %v5257 = vpop.f32.mrf.mxu0
        %v5258 = vadd.f32 %v5097, %v5257
        %v5259 = vpop.f32.mrf.mxu0
        %v5260 = vpop.f32.mrf.mxu0
        %v5261 = vadd.f32 %v5100, %v5260
        %v5262 = vpop.f32.mrf.mxu0
        %5263 = vmatprep.mubr.bf16.mxu0 0
        %5264 = vmatmul.mubr.bf16.gmra.mxu0 %v4828
        %v5265 = vpop.f32.mrf.mxu0
        %v5266 = vadd.f32 %v5105, %v5265
        %v5267 = vpop.f32.mrf.mxu0
        %v5268 = vpop.f32.mrf.mxu0
        %v5269 = vadd.f32 %v5108, %v5268
        %v5270 = vpop.f32.mrf.mxu0
        %5271 = vmatprep.mubr.bf16.mxu0 0
        %5272 = vmatmul.mubr.bf16.gmra.mxu0 %v4831
        %v5273 = vpop.f32.mrf.mxu0
        %v5274 = vadd.f32 %v5113, %v5273
        %v5275 = vpop.f32.mrf.mxu0
        %v5276 = vpop.f32.mrf.mxu0
        %v5277 = vadd.f32 %v5116, %v5276
        %v5278 = vpop.f32.mrf.mxu0
        %5279 = vmatprep.mubr.bf16.mxu0 0
        %5280 = vmatmul.mubr.bf16.gmra.mxu0 %v4834
        %v5281 = vpop.f32.mrf.mxu0
        %v5282 = vadd.f32 %v5121, %v5281
        %v5283 = vpop.f32.mrf.mxu0
        %v5284 = vpop.f32.mrf.mxu0
        %v5285 = vadd.f32 %v5124, %v5284
        %v5286 = vpop.f32.mrf.mxu0
        %5287 = vmatprep.mubr.bf16.mxu0 0
        %5288 = vmatmul.mubr.bf16.gmra.mxu0 %v4837
        %v5289 = vpop.f32.mrf.mxu0
        %v5290 = vadd.f32 %v5129, %v5289
        %v5291 = vpop.f32.mrf.mxu0
        %v5292 = vpop.f32.mrf.mxu0
        %v5293 = vadd.f32 %v5132, %v5292
        %v5294 = vpop.f32.mrf.mxu0
        %5295 = vmatprep.mubr.bf16.mxu0 0
        %5296 = vmatmul.mubr.bf16.gmra.mxu0 %v4840
        %v5297 = vpop.f32.mrf.mxu0
        %v5298 = vadd.f32 %v5137, %v5297
        %v5299 = vpop.f32.mrf.mxu0
        %v5300 = vpop.f32.mrf.mxu0
        %v5301 = vadd.f32 %v5140, %v5300
        %v5302 = vpop.f32.mrf.mxu0
        %5303 = vmatprep.mubr.bf16.mxu0 0
        %5304 = vmatmul.mubr.bf16.gmra.mxu0 %v4843
        %v5305 = vpop.f32.mrf.mxu0
        %v5306 = vadd.f32 %v5145, %v5305
        %v5307 = vpop.f32.mrf.mxu0
        %v5308 = vpop.f32.mrf.mxu0
        %v5309 = vadd.f32 %v5148, %v5308
        %v5310 = vpop.f32.mrf.mxu0
        %5311 = vmatprep.mubr.bf16.mxu0 0
        %5312 = vmatmul.mubr.bf16.gmra.mxu0 %v4846
        %v5313 = vpop.f32.mrf.mxu0
        %v5314 = vadd.f32 %v5153, %v5313
        %v5315 = vpop.f32.mrf.mxu0
        %v5316 = vpop.f32.mrf.mxu0
        %v5317 = vadd.f32 %v5156, %v5316
        %v5318 = vpop.f32.mrf.mxu0
        %5319 = vmatprep.mubr.bf16.mxu0 0
        %5320 = vmatmul.mubr.bf16.gmra.mxu0 %v4849
        %v5321 = vpop.f32.mrf.mxu0
        %v5322 = vadd.f32 %v5161, %v5321
        %v5323 = vpop.f32.mrf.mxu0
        %v5324 = vpop.f32.mrf.mxu0
        %v5325 = vadd.f32 %v5164, %v5324
        %v5326 = vpop.f32.mrf.mxu0
        %5327 = vmatprep.mubr.bf16.mxu0 0
        %5328 = vmatmul.mubr.bf16.gmra.mxu0 %v4851
        %v5329 = vpop.f32.mrf.mxu0
        %v5330 = vadd.f32 %v5169, %v5329
        %v5331 = vpop.f32.mrf.mxu0
        %v5332 = vpop.f32.mrf.mxu0
        %v5333 = vadd.f32 %v5172, %v5332
        %v5334 = vpop.f32.mrf.mxu0
        %5335 = vdwg.mxu0
        %vm5336 = vcmp.ge.f32.partialorder %v5210, 0.0
        %vm5337 = vcmp.ge.f32.partialorder %v5213, 0.0
        %vm5338 = vcmp.ge.f32.partialorder %v5218, 0.0
        %vm5339 = vcmp.ge.f32.partialorder %v5221, 0.0
        %vm5340 = vcmp.ge.f32.partialorder %v5226, 0.0
        %vm5341 = vcmp.ge.f32.partialorder %v5229, 0.0
        %vm5342 = vcmp.ge.f32.partialorder %v5234, 0.0
        %vm5343 = vcmp.ge.f32.partialorder %v5237, 0.0
        %vm5344 = vcmp.ge.f32.partialorder %v5242, 0.0
        %vm5345 = vcmp.ge.f32.partialorder %v5245, 0.0
        %vm5346 = vcmp.ge.f32.partialorder %v5250, 0.0
        %vm5347 = vcmp.ge.f32.partialorder %v5253, 0.0
        %vm5348 = vcmp.ge.f32.partialorder %v5258, 0.0
        %vm5349 = vcmp.ge.f32.partialorder %v5261, 0.0
        %vm5350 = vcmp.ge.f32.partialorder %v5266, 0.0
        %vm5351 = vcmp.ge.f32.partialorder %v5269, 0.0
        %vm5352 = vcmp.ge.f32.partialorder %v5274, 0.0
        %vm5353 = vcmp.ge.f32.partialorder %v5277, 0.0
        %vm5354 = vcmp.ge.f32.partialorder %v5282, 0.0
        %vm5355 = vcmp.ge.f32.partialorder %v5285, 0.0
        %vm5356 = vcmp.ge.f32.partialorder %v5290, 0.0
        %vm5357 = vcmp.ge.f32.partialorder %v5293, 0.0
        %vm5358 = vcmp.ge.f32.partialorder %v5298, 0.0
        %vm5359 = vcmp.ge.f32.partialorder %v5301, 0.0
        %vm5360 = vcmp.ge.f32.partialorder %v5306, 0.0
        %vm5361 = vcmp.ge.f32.partialorder %v5309, 0.0
        %vm5362 = vcmp.ge.f32.partialorder %v5314, 0.0
        %vm5363 = vcmp.ge.f32.partialorder %v5317, 0.0
        %vm5364 = vcmp.ge.f32.partialorder %v5322, 0.0
        %vm5365 = vcmp.ge.f32.partialorder %v5325, 0.0
        %vm5366 = vcmp.ge.f32.partialorder %v5330, 0.0
        %vm5367 = vcmp.ge.f32.partialorder %v5333, 0.0
        %v5368 = vmul.f32 %v5210, 0.2
        %v5369 = vmul.f32 %v5213, 0.2
        %v5370 = vmul.f32 %v5218, 0.2
        %v5371 = vmul.f32 %v5221, 0.2
        %v5372 = vmul.f32 %v5226, 0.2
        %v5373 = vmul.f32 %v5229, 0.2
        %v5374 = vmul.f32 %v5234, 0.2
        %v5375 = vmul.f32 %v5237, 0.2
        %v5376 = vmul.f32 %v5242, 0.2
        %v5377 = vmul.f32 %v5245, 0.2
        %v5378 = vmul.f32 %v5250, 0.2
        %v5379 = vmul.f32 %v5253, 0.2
        %v5380 = vmul.f32 %v5258, 0.2
        %v5381 = vmul.f32 %v5261, 0.2
        %v5382 = vmul.f32 %v5266, 0.2
        %v5383 = vmul.f32 %v5269, 0.2
        %v5384 = vmul.f32 %v5274, 0.2
        %v5385 = vmul.f32 %v5277, 0.2
        %v5386 = vmul.f32 %v5282, 0.2
        %v5387 = vmul.f32 %v5285, 0.2
        %v5388 = vmul.f32 %v5290, 0.2
        %v5389 = vmul.f32 %v5293, 0.2
        %v5390 = vmul.f32 %v5298, 0.2
        %v5391 = vmul.f32 %v5301, 0.2
        %v5392 = vmul.f32 %v5306, 0.2
        %v5393 = vmul.f32 %v5309, 0.2
        %v5394 = vmul.f32 %v5314, 0.2
        %v5395 = vmul.f32 %v5317, 0.2
        %v5396 = vmul.f32 %v5322, 0.2
        %v5397 = vmul.f32 %v5325, 0.2
        %v5398 = vmul.f32 %v5330, 0.2
        %v5399 = vmul.f32 %v5333, 0.2
        %v5400 = vsel %vm5336, %v5210, %v5368
        %v5401 = vsel %vm5337, %v5213, %v5369
        %v5402 = vsel %vm5338, %v5218, %v5370
        %v5403 = vsel %vm5339, %v5221, %v5371
        %v5404 = vsel %vm5340, %v5226, %v5372
        %v5405 = vsel %vm5341, %v5229, %v5373
        %v5406 = vsel %vm5342, %v5234, %v5374
        %v5407 = vsel %vm5343, %v5237, %v5375
        %v5408 = vsel %vm5344, %v5242, %v5376
        %v5409 = vsel %vm5345, %v5245, %v5377
        %v5410 = vsel %vm5346, %v5250, %v5378
        %v5411 = vsel %vm5347, %v5253, %v5379
        %v5412 = vsel %vm5348, %v5258, %v5380
        %v5413 = vsel %vm5349, %v5261, %v5381
        %v5414 = vsel %vm5350, %v5266, %v5382
        %v5415 = vsel %vm5351, %v5269, %v5383
        %v5416 = vsel %vm5352, %v5274, %v5384
        %v5417 = vsel %vm5353, %v5277, %v5385
        %v5418 = vsel %vm5354, %v5282, %v5386
        %v5419 = vsel %vm5355, %v5285, %v5387
        %v5420 = vsel %vm5356, %v5290, %v5388
        %v5421 = vsel %vm5357, %v5293, %v5389
        %v5422 = vsel %vm5358, %v5298, %v5390
        %v5423 = vsel %vm5359, %v5301, %v5391
        %v5424 = vsel %vm5360, %v5306, %v5392
        %v5425 = vsel %vm5361, %v5309, %v5393
        %v5426 = vsel %vm5362, %v5314, %v5394
        %v5427 = vsel %vm5363, %v5317, %v5395
        %v5428 = vsel %vm5364, %v5322, %v5396
        %v5429 = vsel %vm5365, %v5325, %v5397
        %v5430 = vsel %vm5366, %v5330, %v5398
        %v5431 = vsel %vm5367, %v5333, %v5399
        %v5464 = vrot.slane %v5400, 7
        %v5465 = vrot.slane %v5401, 7
        %v5466 = vsel %vm1893, %v5464, %v5465
        %v5467 = vrot.slane %v5402, 7
        %v5468 = vrot.slane %v5403, 7
        %v5469 = vsel %vm1893, %v5467, %v5468
        %v5470 = vrot.slane %v5404, 7
        %v5471 = vrot.slane %v5405, 7
        %v5472 = vsel %vm1893, %v5470, %v5471
        %v5473 = vrot.slane %v5406, 7
        %v5474 = vrot.slane %v5407, 7
        %v5475 = vsel %vm1893, %v5473, %v5474
        %v5476 = vrot.slane %v5408, 7
        %v5477 = vrot.slane %v5409, 7
        %v5478 = vsel %vm1893, %v5476, %v5477
        %v5479 = vrot.slane %v5410, 7
        %v5480 = vrot.slane %v5411, 7
        %v5481 = vsel %vm1893, %v5479, %v5480
        %v5482 = vrot.slane %v5412, 7
        %v5483 = vrot.slane %v5413, 7
        %v5484 = vsel %vm1893, %v5482, %v5483
        %v5485 = vrot.slane %v5414, 7
        %v5486 = vrot.slane %v5415, 7
        %v5487 = vsel %vm1893, %v5485, %v5486
        %v5488 = vrot.slane %v5416, 7
        %v5489 = vrot.slane %v5417, 7
        %v5490 = vsel %vm1893, %v5488, %v5489
        %v5491 = vrot.slane %v5418, 7
        %v5492 = vrot.slane %v5419, 7
        %v5493 = vsel %vm1893, %v5491, %v5492
        %v5494 = vrot.slane %v5420, 7
        %v5495 = vrot.slane %v5421, 7
        %v5496 = vsel %vm1893, %v5494, %v5495
        %v5497 = vrot.slane %v5422, 7
        %v5498 = vrot.slane %v5423, 7
        %v5499 = vsel %vm1893, %v5497, %v5498
        %v5500 = vrot.slane %v5424, 7
        %v5501 = vrot.slane %v5425, 7
        %v5502 = vsel %vm1893, %v5500, %v5501
        %v5503 = vrot.slane %v5426, 7
        %v5504 = vrot.slane %v5427, 7
        %v5505 = vsel %vm1893, %v5503, %v5504
        %v5506 = vrot.slane %v5428, 7
        %v5507 = vrot.slane %v5429, 7
        %v5508 = vsel %vm1893, %v5506, %v5507
        %v5509 = vrot.slane %v5430, 7
        %v5510 = vrot.slane %v5431, 7
        %v5511 = vsel %vm1893, %v5509, %v5510
        %v5560 = vsel %vm1893, 0.0, %v5464
        %v5561 = vsel %vm1893, 0.0, %v5467
        %v5562 = vsel %vm1893, 0.0, %v5470
        %v5563 = vsel %vm1893, 0.0, %v5473
        %v5564 = vsel %vm1893, 0.0, %v5476
        %v5565 = vsel %vm1893, 0.0, %v5479
        %v5566 = vsel %vm1893, 0.0, %v5482
        %v5567 = vsel %vm1893, 0.0, %v5485
        %v5568 = vsel %vm1893, 0.0, %v5488
        %v5569 = vsel %vm1893, 0.0, %v5491
        %v5570 = vsel %vm1893, 0.0, %v5494
        %v5571 = vsel %vm1893, 0.0, %v5497
        %v5572 = vsel %vm1893, 0.0, %v5500
        %v5573 = vsel %vm1893, 0.0, %v5503
        %v5574 = vsel %vm1893, 0.0, %v5506
        %v5575 = vsel %vm1893, 0.0, %v5509
        %v5576 = vsel %vm1893, %v5465, 0.0
        %v5577 = vsel %vm1893, %v5468, 0.0
        %v5578 = vsel %vm1893, %v5471, 0.0
        %v5579 = vsel %vm1893, %v5474, 0.0
        %v5580 = vsel %vm1893, %v5477, 0.0
        %v5581 = vsel %vm1893, %v5480, 0.0
        %v5582 = vsel %vm1893, %v5483, 0.0
        %v5583 = vsel %vm1893, %v5486, 0.0
        %v5584 = vsel %vm1893, %v5489, 0.0
        %v5585 = vsel %vm1893, %v5492, 0.0
        %v5586 = vsel %vm1893, %v5495, 0.0
        %v5587 = vsel %vm1893, %v5498, 0.0
        %v5588 = vsel %vm1893, %v5501, 0.0
        %v5589 = vsel %vm1893, %v5504, 0.0
        %v5590 = vsel %vm1893, %v5507, 0.0
        %v5591 = vsel %vm1893, %v5510, 0.0
        %v5592 = vld [vmem:[%s12] sm:$0x7]
        %v5593 = vld [vmem:[%s12 + $0x4] sm:$0x7]
        %v5594 = vld [vmem:[%s12 + $0x8] sm:$0x7]
        %v5595 = vlaneseq
        %v5596 = vshrl.u32 %v5595, 7
        %v5597 = vsub.s32 0, %v5596
        %v5598 = vrot.slane %v5592, %v5597
        %v5599 = vmul.f32 %v1923, %v5598
        %v5600 = vmul.f32 %v2672, %v5598
        %v5601 = vmul.f32 %v5560, %v5598
        %v5602 = vmul.f32 %v5466, %v5598
        %v5603 = vmul.f32 %v5561, %v5598
        %v5604 = vmul.f32 %v5469, %v5598
        %v5605 = vmul.f32 %v5562, %v5598
        %v5606 = vmul.f32 %v5472, %v5598
        %v5607 = vmul.f32 %v5563, %v5598
        %v5608 = vmul.f32 %v5475, %v5598
        %v5609 = vmul.f32 %v5564, %v5598
        %v5610 = vmul.f32 %v5478, %v5598
        %v5611 = vmul.f32 %v5565, %v5598
        %v5612 = vmul.f32 %v5481, %v5598
        %v5613 = vmul.f32 %v5566, %v5598
        %v5614 = vmul.f32 %v5484, %v5598
        %v5615 = vmul.f32 %v5567, %v5598
        %v5616 = vmul.f32 %v5487, %v5598
        %v5617 = vmul.f32 %v5568, %v5598
        %v5618 = vmul.f32 %v5490, %v5598
        %v5619 = vmul.f32 %v5569, %v5598
        %v5620 = vmul.f32 %v5493, %v5598
        %v5621 = vmul.f32 %v5570, %v5598
        %v5622 = vmul.f32 %v5496, %v5598
        %v5623 = vmul.f32 %v5571, %v5598
        %v5624 = vmul.f32 %v5499, %v5598
        %v5625 = vmul.f32 %v5572, %v5598
        %v5626 = vmul.f32 %v5502, %v5598
        %v5627 = vmul.f32 %v5573, %v5598
        %v5628 = vmul.f32 %v5505, %v5598
        %v5629 = vmul.f32 %v5574, %v5598
        %v5630 = vmul.f32 %v5508, %v5598
        %v5631 = vadd.f32 %v5599, 0.0
        %v5632 = vadd.f32 %v5600, 0.0
        %v5633 = vadd.f32 %v5601, 0.0
        %v5634 = vadd.f32 %v5602, 0.0
        %v5635 = vadd.f32 %v5603, 0.0
        %v5636 = vadd.f32 %v5604, 0.0
        %v5637 = vadd.f32 %v5605, 0.0
        %v5638 = vadd.f32 %v5606, 0.0
        %v5639 = vadd.f32 %v5607, 0.0
        %v5640 = vadd.f32 %v5608, 0.0
        %v5641 = vadd.f32 %v5609, 0.0
        %v5642 = vadd.f32 %v5610, 0.0
        %v5643 = vadd.f32 %v5611, 0.0
        %v5644 = vadd.f32 %v5612, 0.0
        %v5645 = vadd.f32 %v5613, 0.0
        %v5646 = vadd.f32 %v5614, 0.0
        %v5647 = vadd.f32 %v5615, 0.0
        %v5648 = vadd.f32 %v5616, 0.0
        %v5649 = vadd.f32 %v5617, 0.0
        %v5650 = vadd.f32 %v5618, 0.0
        %v5651 = vadd.f32 %v5619, 0.0
        %v5652 = vadd.f32 %v5620, 0.0
        %v5653 = vadd.f32 %v5621, 0.0
        %v5654 = vadd.f32 %v5622, 0.0
        %v5655 = vadd.f32 %v5623, 0.0
        %v5656 = vadd.f32 %v5624, 0.0
        %v5657 = vadd.f32 %v5625, 0.0
        %v5658 = vadd.f32 %v5626, 0.0
        %v5659 = vadd.f32 %v5627, 0.0
        %v5660 = vadd.f32 %v5628, 0.0
        %v5661 = vadd.f32 %v5629, 0.0
        %v5662 = vadd.f32 %v5630, 0.0
        %v5663 = vlaneseq
        %v5664 = vshrl.u32 %v5663, 7
        %v5665 = vsub.s32 1, %v5664
        %v5666 = vrot.slane %v5592, %v5665
        %v5667 = vmul.f32 %v1923, %v5666
        %v5668 = vmul.f32 %v2672, %v5666
        %v5669 = vmul.f32 %v2702, %v5666
        %v5670 = vmul.f32 %v5560, %v5666
        %v5671 = vmul.f32 %v5466, %v5666
        %v5672 = vmul.f32 %v5576, %v5666
        %v5673 = vmul.f32 %v5561, %v5666
        %v5674 = vmul.f32 %v5469, %v5666
        %v5675 = vmul.f32 %v5577, %v5666
        %v5676 = vmul.f32 %v5562, %v5666
        %v5677 = vmul.f32 %v5472, %v5666
        %v5678 = vmul.f32 %v5578, %v5666
        %v5679 = vmul.f32 %v5563, %v5666
        %v5680 = vmul.f32 %v5475, %v5666
        %v5681 = vmul.f32 %v5579, %v5666
        %v5682 = vmul.f32 %v5564, %v5666
        %v5683 = vmul.f32 %v5478, %v5666
        %v5684 = vmul.f32 %v5580, %v5666
        %v5685 = vmul.f32 %v5565, %v5666
        %v5686 = vmul.f32 %v5481, %v5666
        %v5687 = vmul.f32 %v5581, %v5666
        %v5688 = vmul.f32 %v5566, %v5666
        %v5689 = vmul.f32 %v5484, %v5666
        %v5690 = vmul.f32 %v5582, %v5666
        %v5691 = vmul.f32 %v5567, %v5666
        %v5692 = vmul.f32 %v5487, %v5666
        %v5693 = vmul.f32 %v5583, %v5666
        %v5694 = vmul.f32 %v5568, %v5666
        %v5695 = vmul.f32 %v5490, %v5666
        %v5696 = vmul.f32 %v5584, %v5666
        %v5697 = vmul.f32 %v5569, %v5666
        %v5698 = vmul.f32 %v5493, %v5666
        %v5699 = vmul.f32 %v5585, %v5666
        %v5700 = vmul.f32 %v5570, %v5666
        %v5701 = vmul.f32 %v5496, %v5666
        %v5702 = vmul.f32 %v5586, %v5666
        %v5703 = vmul.f32 %v5571, %v5666
        %v5704 = vmul.f32 %v5499, %v5666
        %v5705 = vmul.f32 %v5587, %v5666
        %v5706 = vmul.f32 %v5572, %v5666
        %v5707 = vmul.f32 %v5502, %v5666
        %v5708 = vmul.f32 %v5588, %v5666
        %v5709 = vmul.f32 %v5573, %v5666
        %v5710 = vmul.f32 %v5505, %v5666
        %v5711 = vmul.f32 %v5589, %v5666
        %v5712 = vmul.f32 %v5574, %v5666
        %v5713 = vmul.f32 %v5508, %v5666
        %v5714 = vmul.f32 %v5590, %v5666
        %v5763 = vrot.slane %v5667, 1
        %v5764 = vrot.slane %v5668, 1
        %v5765 = vsel %vm2717, %v5763, %v5764
        %v5766 = vrot.slane %v5669, 1
        %v5767 = vsel %vm2717, %v5764, %v5766
        %v5768 = vrot.slane %v5670, 1
        %v5769 = vrot.slane %v5671, 1
        %v5770 = vsel %vm2717, %v5768, %v5769
        %v5771 = vrot.slane %v5672, 1
        %v5772 = vsel %vm2717, %v5769, %v5771
        %v5773 = vrot.slane %v5673, 1
        %v5774 = vrot.slane %v5674, 1
        %v5775 = vsel %vm2717, %v5773, %v5774
        %v5776 = vrot.slane %v5675, 1
        %v5777 = vsel %vm2717, %v5774, %v5776
        %v5778 = vrot.slane %v5676, 1
        %v5779 = vrot.slane %v5677, 1
        %v5780 = vsel %vm2717, %v5778, %v5779
        %v5781 = vrot.slane %v5678, 1
        %v5782 = vsel %vm2717, %v5779, %v5781
        %v5783 = vrot.slane %v5679, 1
        %v5784 = vrot.slane %v5680, 1
        %v5785 = vsel %vm2717, %v5783, %v5784
        %v5786 = vrot.slane %v5681, 1
        %v5787 = vsel %vm2717, %v5784, %v5786
        %v5788 = vrot.slane %v5682, 1
        %v5789 = vrot.slane %v5683, 1
        %v5790 = vsel %vm2717, %v5788, %v5789
        %v5791 = vrot.slane %v5684, 1
        %v5792 = vsel %vm2717, %v5789, %v5791
        %v5793 = vrot.slane %v5685, 1
        %v5794 = vrot.slane %v5686, 1
        %v5795 = vsel %vm2717, %v5793, %v5794
        %v5796 = vrot.slane %v5687, 1
        %v5797 = vsel %vm2717, %v5794, %v5796
        %v5798 = vrot.slane %v5688, 1
        %v5799 = vrot.slane %v5689, 1
        %v5800 = vsel %vm2717, %v5798, %v5799
        %v5801 = vrot.slane %v5690, 1
        %v5802 = vsel %vm2717, %v5799, %v5801
        %v5803 = vrot.slane %v5691, 1
        %v5804 = vrot.slane %v5692, 1
        %v5805 = vsel %vm2717, %v5803, %v5804
        %v5806 = vrot.slane %v5693, 1
        %v5807 = vsel %vm2717, %v5804, %v5806
        %v5808 = vrot.slane %v5694, 1
        %v5809 = vrot.slane %v5695, 1
        %v5810 = vsel %vm2717, %v5808, %v5809
        %v5811 = vrot.slane %v5696, 1
        %v5812 = vsel %vm2717, %v5809, %v5811
        %v5813 = vrot.slane %v5697, 1
        %v5814 = vrot.slane %v5698, 1
        %v5815 = vsel %vm2717, %v5813, %v5814
        %v5816 = vrot.slane %v5699, 1
        %v5817 = vsel %vm2717, %v5814, %v5816
        %v5818 = vrot.slane %v5700, 1
        %v5819 = vrot.slane %v5701, 1
        %v5820 = vsel %vm2717, %v5818, %v5819
        %v5821 = vrot.slane %v5702, 1
        %v5822 = vsel %vm2717, %v5819, %v5821
        %v5823 = vrot.slane %v5703, 1
        %v5824 = vrot.slane %v5704, 1
        %v5825 = vsel %vm2717, %v5823, %v5824
        %v5826 = vrot.slane %v5705, 1
        %v5827 = vsel %vm2717, %v5824, %v5826
        %v5828 = vrot.slane %v5706, 1
        %v5829 = vrot.slane %v5707, 1
        %v5830 = vsel %vm2717, %v5828, %v5829
        %v5831 = vrot.slane %v5708, 1
        %v5832 = vsel %vm2717, %v5829, %v5831
        %v5833 = vrot.slane %v5709, 1
        %v5834 = vrot.slane %v5710, 1
        %v5835 = vsel %vm2717, %v5833, %v5834
        %v5836 = vrot.slane %v5711, 1
        %v5837 = vsel %vm2717, %v5834, %v5836
        %v5838 = vrot.slane %v5712, 1
        %v5839 = vrot.slane %v5713, 1
        %v5840 = vsel %vm2717, %v5838, %v5839
        %v5841 = vrot.slane %v5714, 1
        %v5842 = vsel %vm2717, %v5839, %v5841
        %v5875 = vadd.f32 %v5631, %v5765
        %v5876 = vadd.f32 %v5632, %v5767
        %v5877 = vadd.f32 %v5633, %v5770
        %v5878 = vadd.f32 %v5634, %v5772
        %v5879 = vadd.f32 %v5635, %v5775
        %v5880 = vadd.f32 %v5636, %v5777
        %v5881 = vadd.f32 %v5637, %v5780
        %v5882 = vadd.f32 %v5638, %v5782
        %v5883 = vadd.f32 %v5639, %v5785
        %v5884 = vadd.f32 %v5640, %v5787
        %v5885 = vadd.f32 %v5641, %v5790
        %v5886 = vadd.f32 %v5642, %v5792
        %v5887 = vadd.f32 %v5643, %v5795
        %v5888 = vadd.f32 %v5644, %v5797
        %v5889 = vadd.f32 %v5645, %v5800
        %v5890 = vadd.f32 %v5646, %v5802
        %v5891 = vadd.f32 %v5647, %v5805
        %v5892 = vadd.f32 %v5648, %v5807
        %v5893 = vadd.f32 %v5649, %v5810
        %v5894 = vadd.f32 %v5650, %v5812
        %v5895 = vadd.f32 %v5651, %v5815
        %v5896 = vadd.f32 %v5652, %v5817
        %v5897 = vadd.f32 %v5653, %v5820
        %v5898 = vadd.f32 %v5654, %v5822
        %v5899 = vadd.f32 %v5655, %v5825
        %v5900 = vadd.f32 %v5656, %v5827
        %v5901 = vadd.f32 %v5657, %v5830
        %v5902 = vadd.f32 %v5658, %v5832
        %v5903 = vadd.f32 %v5659, %v5835
        %v5904 = vadd.f32 %v5660, %v5837
        %v5905 = vadd.f32 %v5661, %v5840
        %v5906 = vadd.f32 %v5662, %v5842
        %v5907 = vlaneseq
        %v5908 = vshrl.u32 %v5907, 7
        %v5909 = vsub.s32 2, %v5908
        %v5910 = vrot.slane %v5592, %v5909
        %v5911 = vmul.f32 %v1923, %v5910
        %v5912 = vmul.f32 %v2672, %v5910
        %v5913 = vmul.f32 %v2702, %v5910
        %v5914 = vmul.f32 %v5560, %v5910
        %v5915 = vmul.f32 %v5466, %v5910
        %v5916 = vmul.f32 %v5576, %v5910
        %v5917 = vmul.f32 %v5561, %v5910
        %v5918 = vmul.f32 %v5469, %v5910
        %v5919 = vmul.f32 %v5577, %v5910
        %v5920 = vmul.f32 %v5562, %v5910
        %v5921 = vmul.f32 %v5472, %v5910
        %v5922 = vmul.f32 %v5578, %v5910
        %v5923 = vmul.f32 %v5563, %v5910
        %v5924 = vmul.f32 %v5475, %v5910
        %v5925 = vmul.f32 %v5579, %v5910
        %v5926 = vmul.f32 %v5564, %v5910
        %v5927 = vmul.f32 %v5478, %v5910
        %v5928 = vmul.f32 %v5580, %v5910
        %v5929 = vmul.f32 %v5565, %v5910
        %v5930 = vmul.f32 %v5481, %v5910
        %v5931 = vmul.f32 %v5581, %v5910
        %v5932 = vmul.f32 %v5566, %v5910
        %v5933 = vmul.f32 %v5484, %v5910
        %v5934 = vmul.f32 %v5582, %v5910
        %v5935 = vmul.f32 %v5567, %v5910
        %v5936 = vmul.f32 %v5487, %v5910
        %v5937 = vmul.f32 %v5583, %v5910
        %v5938 = vmul.f32 %v5568, %v5910
        %v5939 = vmul.f32 %v5490, %v5910
        %v5940 = vmul.f32 %v5584, %v5910
        %v5941 = vmul.f32 %v5569, %v5910
        %v5942 = vmul.f32 %v5493, %v5910
        %v5943 = vmul.f32 %v5585, %v5910
        %v5944 = vmul.f32 %v5570, %v5910
        %v5945 = vmul.f32 %v5496, %v5910
        %v5946 = vmul.f32 %v5586, %v5910
        %v5947 = vmul.f32 %v5571, %v5910
        %v5948 = vmul.f32 %v5499, %v5910
        %v5949 = vmul.f32 %v5587, %v5910
        %v5950 = vmul.f32 %v5572, %v5910
        %v5951 = vmul.f32 %v5502, %v5910
        %v5952 = vmul.f32 %v5588, %v5910
        %v5953 = vmul.f32 %v5573, %v5910
        %v5954 = vmul.f32 %v5505, %v5910
        %v5955 = vmul.f32 %v5589, %v5910
        %v5956 = vmul.f32 %v5574, %v5910
        %v5957 = vmul.f32 %v5508, %v5910
        %v5958 = vmul.f32 %v5590, %v5910
        %v6007 = vrot.slane %v5911, 2
        %v6008 = vrot.slane %v5912, 2
        %v6009 = vsel %vm2773, %v6007, %v6008
        %v6010 = vrot.slane %v5913, 2
        %v6011 = vsel %vm2773, %v6008, %v6010
        %v6012 = vrot.slane %v5914, 2
        %v6013 = vrot.slane %v5915, 2
        %v6014 = vsel %vm2773, %v6012, %v6013
        %v6015 = vrot.slane %v5916, 2
        %v6016 = vsel %vm2773, %v6013, %v6015
        %v6017 = vrot.slane %v5917, 2
        %v6018 = vrot.slane %v5918, 2
        %v6019 = vsel %vm2773, %v6017, %v6018
        %v6020 = vrot.slane %v5919, 2
        %v6021 = vsel %vm2773, %v6018, %v6020
        %v6022 = vrot.slane %v5920, 2
        %v6023 = vrot.slane %v5921, 2
        %v6024 = vsel %vm2773, %v6022, %v6023
        %v6025 = vrot.slane %v5922, 2
        %v6026 = vsel %vm2773, %v6023, %v6025
        %v6027 = vrot.slane %v5923, 2
        %v6028 = vrot.slane %v5924, 2
        %v6029 = vsel %vm2773, %v6027, %v6028
        %v6030 = vrot.slane %v5925, 2
        %v6031 = vsel %vm2773, %v6028, %v6030
        %v6032 = vrot.slane %v5926, 2
        %v6033 = vrot.slane %v5927, 2
        %v6034 = vsel %vm2773, %v6032, %v6033
        %v6035 = vrot.slane %v5928, 2
        %v6036 = vsel %vm2773, %v6033, %v6035
        %v6037 = vrot.slane %v5929, 2
        %v6038 = vrot.slane %v5930, 2
        %v6039 = vsel %vm2773, %v6037, %v6038
        %v6040 = vrot.slane %v5931, 2
        %v6041 = vsel %vm2773, %v6038, %v6040
        %v6042 = vrot.slane %v5932, 2
        %v6043 = vrot.slane %v5933, 2
        %v6044 = vsel %vm2773, %v6042, %v6043
        %v6045 = vrot.slane %v5934, 2
        %v6046 = vsel %vm2773, %v6043, %v6045
        %v6047 = vrot.slane %v5935, 2
        %v6048 = vrot.slane %v5936, 2
        %v6049 = vsel %vm2773, %v6047, %v6048
        %v6050 = vrot.slane %v5937, 2
        %v6051 = vsel %vm2773, %v6048, %v6050
        %v6052 = vrot.slane %v5938, 2
        %v6053 = vrot.slane %v5939, 2
        %v6054 = vsel %vm2773, %v6052, %v6053
        %v6055 = vrot.slane %v5940, 2
        %v6056 = vsel %vm2773, %v6053, %v6055
        %v6057 = vrot.slane %v5941, 2
        %v6058 = vrot.slane %v5942, 2
        %v6059 = vsel %vm2773, %v6057, %v6058
        %v6060 = vrot.slane %v5943, 2
        %v6061 = vsel %vm2773, %v6058, %v6060
        %v6062 = vrot.slane %v5944, 2
        %v6063 = vrot.slane %v5945, 2
        %v6064 = vsel %vm2773, %v6062, %v6063
        %v6065 = vrot.slane %v5946, 2
        %v6066 = vsel %vm2773, %v6063, %v6065
        %v6067 = vrot.slane %v5947, 2
        %v6068 = vrot.slane %v5948, 2
        %v6069 = vsel %vm2773, %v6067, %v6068
        %v6070 = vrot.slane %v5949, 2
        %v6071 = vsel %vm2773, %v6068, %v6070
        %v6072 = vrot.slane %v5950, 2
        %v6073 = vrot.slane %v5951, 2
        %v6074 = vsel %vm2773, %v6072, %v6073
        %v6075 = vrot.slane %v5952, 2
        %v6076 = vsel %vm2773, %v6073, %v6075
        %v6077 = vrot.slane %v5953, 2
        %v6078 = vrot.slane %v5954, 2
        %v6079 = vsel %vm2773, %v6077, %v6078
        %v6080 = vrot.slane %v5955, 2
        %v6081 = vsel %vm2773, %v6078, %v6080
        %v6082 = vrot.slane %v5956, 2
        %v6083 = vrot.slane %v5957, 2
        %v6084 = vsel %vm2773, %v6082, %v6083
        %v6085 = vrot.slane %v5958, 2
        %v6086 = vsel %vm2773, %v6083, %v6085
        %v6119 = vadd.f32 %v5875, %v6009
        %v6120 = vadd.f32 %v5876, %v6011
        %v6121 = vadd.f32 %v5877, %v6014
        %v6122 = vadd.f32 %v5878, %v6016
        %v6123 = vadd.f32 %v5879, %v6019
        %v6124 = vadd.f32 %v5880, %v6021
        %v6125 = vadd.f32 %v5881, %v6024
        %v6126 = vadd.f32 %v5882, %v6026
        %v6127 = vadd.f32 %v5883, %v6029
        %v6128 = vadd.f32 %v5884, %v6031
        %v6129 = vadd.f32 %v5885, %v6034
        %v6130 = vadd.f32 %v5886, %v6036
        %v6131 = vadd.f32 %v5887, %v6039
        %v6132 = vadd.f32 %v5888, %v6041
        %v6133 = vadd.f32 %v5889, %v6044
        %v6134 = vadd.f32 %v5890, %v6046
        %v6135 = vadd.f32 %v5891, %v6049
        %v6136 = vadd.f32 %v5892, %v6051
        %v6137 = vadd.f32 %v5893, %v6054
        %v6138 = vadd.f32 %v5894, %v6056
        %v6139 = vadd.f32 %v5895, %v6059
        %v6140 = vadd.f32 %v5896, %v6061
        %v6141 = vadd.f32 %v5897, %v6064
        %v6142 = vadd.f32 %v5898, %v6066
        %v6143 = vadd.f32 %v5899, %v6069
        %v6144 = vadd.f32 %v5900, %v6071
        %v6145 = vadd.f32 %v5901, %v6074
        %v6146 = vadd.f32 %v5902, %v6076
        %v6147 = vadd.f32 %v5903, %v6079
        %v6148 = vadd.f32 %v5904, %v6081
        %v6149 = vadd.f32 %v5905, %v6084
        %v6150 = vadd.f32 %v5906, %v6086
        %v6151 = vlaneseq
        %v6152 = vshrl.u32 %v6151, 7
        %v6153 = vsub.s32 0, %v6152
        %v6154 = vrot.slane %v5593, %v6153
        %v6155 = vmul.f32 %v5560, %v6154
        %v6156 = vmul.f32 %v5466, %v6154
        %v6157 = vmul.f32 %v5561, %v6154
        %v6158 = vmul.f32 %v5469, %v6154
        %v6159 = vmul.f32 %v5562, %v6154
        %v6160 = vmul.f32 %v5472, %v6154
        %v6161 = vmul.f32 %v5563, %v6154
        %v6162 = vmul.f32 %v5475, %v6154
        %v6163 = vmul.f32 %v5564, %v6154
        %v6164 = vmul.f32 %v5478, %v6154
        %v6165 = vmul.f32 %v5565, %v6154
        %v6166 = vmul.f32 %v5481, %v6154
        %v6167 = vmul.f32 %v5566, %v6154
        %v6168 = vmul.f32 %v5484, %v6154
        %v6169 = vmul.f32 %v5567, %v6154
        %v6170 = vmul.f32 %v5487, %v6154
        %v6171 = vmul.f32 %v5568, %v6154
        %v6172 = vmul.f32 %v5490, %v6154
        %v6173 = vmul.f32 %v5569, %v6154
        %v6174 = vmul.f32 %v5493, %v6154
        %v6175 = vmul.f32 %v5570, %v6154
        %v6176 = vmul.f32 %v5496, %v6154
        %v6177 = vmul.f32 %v5571, %v6154
        %v6178 = vmul.f32 %v5499, %v6154
        %v6179 = vmul.f32 %v5572, %v6154
        %v6180 = vmul.f32 %v5502, %v6154
        %v6181 = vmul.f32 %v5573, %v6154
        %v6182 = vmul.f32 %v5505, %v6154
        %v6183 = vmul.f32 %v5574, %v6154
        %v6184 = vmul.f32 %v5508, %v6154
        %v6185 = vmul.f32 %v5575, %v6154
        %v6186 = vmul.f32 %v5511, %v6154
        %v6187 = vadd.f32 %v6119, %v6155
        %v6188 = vadd.f32 %v6120, %v6156
        %v6189 = vadd.f32 %v6121, %v6157
        %v6190 = vadd.f32 %v6122, %v6158
        %v6191 = vadd.f32 %v6123, %v6159
        %v6192 = vadd.f32 %v6124, %v6160
        %v6193 = vadd.f32 %v6125, %v6161
        %v6194 = vadd.f32 %v6126, %v6162
        %v6195 = vadd.f32 %v6127, %v6163
        %v6196 = vadd.f32 %v6128, %v6164
        %v6197 = vadd.f32 %v6129, %v6165
        %v6198 = vadd.f32 %v6130, %v6166
        %v6199 = vadd.f32 %v6131, %v6167
        %v6200 = vadd.f32 %v6132, %v6168
        %v6201 = vadd.f32 %v6133, %v6169
        %v6202 = vadd.f32 %v6134, %v6170
        %v6203 = vadd.f32 %v6135, %v6171
        %v6204 = vadd.f32 %v6136, %v6172
        %v6205 = vadd.f32 %v6137, %v6173
        %v6206 = vadd.f32 %v6138, %v6174
        %v6207 = vadd.f32 %v6139, %v6175
        %v6208 = vadd.f32 %v6140, %v6176
        %v6209 = vadd.f32 %v6141, %v6177
        %v6210 = vadd.f32 %v6142, %v6178
        %v6211 = vadd.f32 %v6143, %v6179
        %v6212 = vadd.f32 %v6144, %v6180
        %v6213 = vadd.f32 %v6145, %v6181
        %v6214 = vadd.f32 %v6146, %v6182
        %v6215 = vadd.f32 %v6147, %v6183
        %v6216 = vadd.f32 %v6148, %v6184
        %v6217 = vadd.f32 %v6149, %v6185
        %v6218 = vadd.f32 %v6150, %v6186
        %v6219 = vlaneseq
        %v6220 = vshrl.u32 %v6219, 7
        %v6221 = vsub.s32 1, %v6220
        %v6222 = vrot.slane %v5593, %v6221
        %v6223 = vmul.f32 %v5560, %v6222
        %v6224 = vmul.f32 %v5466, %v6222
        %v6225 = vmul.f32 %v5576, %v6222
        %v6226 = vmul.f32 %v5561, %v6222
        %v6227 = vmul.f32 %v5469, %v6222
        %v6228 = vmul.f32 %v5577, %v6222
        %v6229 = vmul.f32 %v5562, %v6222
        %v6230 = vmul.f32 %v5472, %v6222
        %v6231 = vmul.f32 %v5578, %v6222
        %v6232 = vmul.f32 %v5563, %v6222
        %v6233 = vmul.f32 %v5475, %v6222
        %v6234 = vmul.f32 %v5579, %v6222
        %v6235 = vmul.f32 %v5564, %v6222
        %v6236 = vmul.f32 %v5478, %v6222
        %v6237 = vmul.f32 %v5580, %v6222
        %v6238 = vmul.f32 %v5565, %v6222
        %v6239 = vmul.f32 %v5481, %v6222
        %v6240 = vmul.f32 %v5581, %v6222
        %v6241 = vmul.f32 %v5566, %v6222
        %v6242 = vmul.f32 %v5484, %v6222
        %v6243 = vmul.f32 %v5582, %v6222
        %v6244 = vmul.f32 %v5567, %v6222
        %v6245 = vmul.f32 %v5487, %v6222
        %v6246 = vmul.f32 %v5583, %v6222
        %v6247 = vmul.f32 %v5568, %v6222
        %v6248 = vmul.f32 %v5490, %v6222
        %v6249 = vmul.f32 %v5584, %v6222
        %v6250 = vmul.f32 %v5569, %v6222
        %v6251 = vmul.f32 %v5493, %v6222
        %v6252 = vmul.f32 %v5585, %v6222
        %v6253 = vmul.f32 %v5570, %v6222
        %v6254 = vmul.f32 %v5496, %v6222
        %v6255 = vmul.f32 %v5586, %v6222
        %v6256 = vmul.f32 %v5571, %v6222
        %v6257 = vmul.f32 %v5499, %v6222
        %v6258 = vmul.f32 %v5587, %v6222
        %v6259 = vmul.f32 %v5572, %v6222
        %v6260 = vmul.f32 %v5502, %v6222
        %v6261 = vmul.f32 %v5588, %v6222
        %v6262 = vmul.f32 %v5573, %v6222
        %v6263 = vmul.f32 %v5505, %v6222
        %v6264 = vmul.f32 %v5589, %v6222
        %v6265 = vmul.f32 %v5574, %v6222
        %v6266 = vmul.f32 %v5508, %v6222
        %v6267 = vmul.f32 %v5590, %v6222
        %v6268 = vmul.f32 %v5575, %v6222
        %v6269 = vmul.f32 %v5511, %v6222
        %v6270 = vmul.f32 %v5591, %v6222
        %v6319 = vrot.slane %v6223, 1
        %v6320 = vrot.slane %v6224, 1
        %v6321 = vsel %vm2717, %v6319, %v6320
        %v6322 = vrot.slane %v6225, 1
        %v6323 = vsel %vm2717, %v6320, %v6322
        %v6324 = vrot.slane %v6226, 1
        %v6325 = vrot.slane %v6227, 1
        %v6326 = vsel %vm2717, %v6324, %v6325
        %v6327 = vrot.slane %v6228, 1
        %v6328 = vsel %vm2717, %v6325, %v6327
        %v6329 = vrot.slane %v6229, 1
        %v6330 = vrot.slane %v6230, 1
        %v6331 = vsel %vm2717, %v6329, %v6330
        %v6332 = vrot.slane %v6231, 1
        %v6333 = vsel %vm2717, %v6330, %v6332
        %v6334 = vrot.slane %v6232, 1
        %v6335 = vrot.slane %v6233, 1
        %v6336 = vsel %vm2717, %v6334, %v6335
        %v6337 = vrot.slane %v6234, 1
        %v6338 = vsel %vm2717, %v6335, %v6337
        %v6339 = vrot.slane %v6235, 1
        %v6340 = vrot.slane %v6236, 1
        %v6341 = vsel %vm2717, %v6339, %v6340
        %v6342 = vrot.slane %v6237, 1
        %v6343 = vsel %vm2717, %v6340, %v6342
        %v6344 = vrot.slane %v6238, 1
        %v6345 = vrot.slane %v6239, 1
        %v6346 = vsel %vm2717, %v6344, %v6345
        %v6347 = vrot.slane %v6240, 1
        %v6348 = vsel %vm2717, %v6345, %v6347
        %v6349 = vrot.slane %v6241, 1
        %v6350 = vrot.slane %v6242, 1
        %v6351 = vsel %vm2717, %v6349, %v6350
        %v6352 = vrot.slane %v6243, 1
        %v6353 = vsel %vm2717, %v6350, %v6352
        %v6354 = vrot.slane %v6244, 1
        %v6355 = vrot.slane %v6245, 1
        %v6356 = vsel %vm2717, %v6354, %v6355
        %v6357 = vrot.slane %v6246, 1
        %v6358 = vsel %vm2717, %v6355, %v6357
        %v6359 = vrot.slane %v6247, 1
        %v6360 = vrot.slane %v6248, 1
        %v6361 = vsel %vm2717, %v6359, %v6360
        %v6362 = vrot.slane %v6249, 1
        %v6363 = vsel %vm2717, %v6360, %v6362
        %v6364 = vrot.slane %v6250, 1
        %v6365 = vrot.slane %v6251, 1
        %v6366 = vsel %vm2717, %v6364, %v6365
        %v6367 = vrot.slane %v6252, 1
        %v6368 = vsel %vm2717, %v6365, %v6367
        %v6369 = vrot.slane %v6253, 1
        %v6370 = vrot.slane %v6254, 1
        %v6371 = vsel %vm2717, %v6369, %v6370
        %v6372 = vrot.slane %v6255, 1
        %v6373 = vsel %vm2717, %v6370, %v6372
        %v6374 = vrot.slane %v6256, 1
        %v6375 = vrot.slane %v6257, 1
        %v6376 = vsel %vm2717, %v6374, %v6375
        %v6377 = vrot.slane %v6258, 1
        %v6378 = vsel %vm2717, %v6375, %v6377
        %v6379 = vrot.slane %v6259, 1
        %v6380 = vrot.slane %v6260, 1
        %v6381 = vsel %vm2717, %v6379, %v6380
        %v6382 = vrot.slane %v6261, 1
        %v6383 = vsel %vm2717, %v6380, %v6382
        %v6384 = vrot.slane %v6262, 1
        %v6385 = vrot.slane %v6263, 1
        %v6386 = vsel %vm2717, %v6384, %v6385
        %v6387 = vrot.slane %v6264, 1
        %v6388 = vsel %vm2717, %v6385, %v6387
        %v6389 = vrot.slane %v6265, 1
        %v6390 = vrot.slane %v6266, 1
        %v6391 = vsel %vm2717, %v6389, %v6390
        %v6392 = vrot.slane %v6267, 1
        %v6393 = vsel %vm2717, %v6390, %v6392
        %v6394 = vrot.slane %v6268, 1
        %v6395 = vrot.slane %v6269, 1
        %v6396 = vsel %vm2717, %v6394, %v6395
        %v6397 = vrot.slane %v6270, 1
        %v6398 = vsel %vm2717, %v6395, %v6397
        %v6431 = vadd.f32 %v6187, %v6321
        %v6432 = vadd.f32 %v6188, %v6323
        %v6433 = vadd.f32 %v6189, %v6326
        %v6434 = vadd.f32 %v6190, %v6328
        %v6435 = vadd.f32 %v6191, %v6331
        %v6436 = vadd.f32 %v6192, %v6333
        %v6437 = vadd.f32 %v6193, %v6336
        %v6438 = vadd.f32 %v6194, %v6338
        %v6439 = vadd.f32 %v6195, %v6341
        %v6440 = vadd.f32 %v6196, %v6343
        %v6441 = vadd.f32 %v6197, %v6346
        %v6442 = vadd.f32 %v6198, %v6348
        %v6443 = vadd.f32 %v6199, %v6351
        %v6444 = vadd.f32 %v6200, %v6353
        %v6445 = vadd.f32 %v6201, %v6356
        %v6446 = vadd.f32 %v6202, %v6358
        %v6447 = vadd.f32 %v6203, %v6361
        %v6448 = vadd.f32 %v6204, %v6363
        %v6449 = vadd.f32 %v6205, %v6366
        %v6450 = vadd.f32 %v6206, %v6368
        %v6451 = vadd.f32 %v6207, %v6371
        %v6452 = vadd.f32 %v6208, %v6373
        %v6453 = vadd.f32 %v6209, %v6376
        %v6454 = vadd.f32 %v6210, %v6378
        %v6455 = vadd.f32 %v6211, %v6381
        %v6456 = vadd.f32 %v6212, %v6383
        %v6457 = vadd.f32 %v6213, %v6386
        %v6458 = vadd.f32 %v6214, %v6388
        %v6459 = vadd.f32 %v6215, %v6391
        %v6460 = vadd.f32 %v6216, %v6393
        %v6461 = vadd.f32 %v6217, %v6396
        %v6462 = vadd.f32 %v6218, %v6398
        %v6463 = vlaneseq
        %v6464 = vshrl.u32 %v6463, 7
        %v6465 = vsub.s32 2, %v6464
        %v6466 = vrot.slane %v5593, %v6465
        %v6467 = vmul.f32 %v5560, %v6466
        %v6468 = vmul.f32 %v5466, %v6466
        %v6469 = vmul.f32 %v5576, %v6466
        %v6470 = vmul.f32 %v5561, %v6466
        %v6471 = vmul.f32 %v5469, %v6466
        %v6472 = vmul.f32 %v5577, %v6466
        %v6473 = vmul.f32 %v5562, %v6466
        %v6474 = vmul.f32 %v5472, %v6466
        %v6475 = vmul.f32 %v5578, %v6466
        %v6476 = vmul.f32 %v5563, %v6466
        %v6477 = vmul.f32 %v5475, %v6466
        %v6478 = vmul.f32 %v5579, %v6466
        %v6479 = vmul.f32 %v5564, %v6466
        %v6480 = vmul.f32 %v5478, %v6466
        %v6481 = vmul.f32 %v5580, %v6466
        %v6482 = vmul.f32 %v5565, %v6466
        %v6483 = vmul.f32 %v5481, %v6466
        %v6484 = vmul.f32 %v5581, %v6466
        %v6485 = vmul.f32 %v5566, %v6466
        %v6486 = vmul.f32 %v5484, %v6466
        %v6487 = vmul.f32 %v5582, %v6466
        %v6488 = vmul.f32 %v5567, %v6466
        %v6489 = vmul.f32 %v5487, %v6466
        %v6490 = vmul.f32 %v5583, %v6466
        %v6491 = vmul.f32 %v5568, %v6466
        %v6492 = vmul.f32 %v5490, %v6466
        %v6493 = vmul.f32 %v5584, %v6466
        %v6494 = vmul.f32 %v5569, %v6466
        %v6495 = vmul.f32 %v5493, %v6466
        %v6496 = vmul.f32 %v5585, %v6466
        %v6497 = vmul.f32 %v5570, %v6466
        %v6498 = vmul.f32 %v5496, %v6466
        %v6499 = vmul.f32 %v5586, %v6466
        %v6500 = vmul.f32 %v5571, %v6466
        %v6501 = vmul.f32 %v5499, %v6466
        %v6502 = vmul.f32 %v5587, %v6466
        %v6503 = vmul.f32 %v5572, %v6466
        %v6504 = vmul.f32 %v5502, %v6466
        %v6505 = vmul.f32 %v5588, %v6466
        %v6506 = vmul.f32 %v5573, %v6466
        %v6507 = vmul.f32 %v5505, %v6466
        %v6508 = vmul.f32 %v5589, %v6466
        %v6509 = vmul.f32 %v5574, %v6466
        %v6510 = vmul.f32 %v5508, %v6466
        %v6511 = vmul.f32 %v5590, %v6466
        %v6512 = vmul.f32 %v5575, %v6466
        %v6513 = vmul.f32 %v5511, %v6466
        %v6514 = vmul.f32 %v5591, %v6466
        %v6563 = vrot.slane %v6467, 2
        %v6564 = vrot.slane %v6468, 2
        %v6565 = vsel %vm2773, %v6563, %v6564
        %v6566 = vrot.slane %v6469, 2
        %v6567 = vsel %vm2773, %v6564, %v6566
        %v6568 = vrot.slane %v6470, 2
        %v6569 = vrot.slane %v6471, 2
        %v6570 = vsel %vm2773, %v6568, %v6569
        %v6571 = vrot.slane %v6472, 2
        %v6572 = vsel %vm2773, %v6569, %v6571
        %v6573 = vrot.slane %v6473, 2
        %v6574 = vrot.slane %v6474, 2
        %v6575 = vsel %vm2773, %v6573, %v6574
        %v6576 = vrot.slane %v6475, 2
        %v6577 = vsel %vm2773, %v6574, %v6576
        %v6578 = vrot.slane %v6476, 2
        %v6579 = vrot.slane %v6477, 2
        %v6580 = vsel %vm2773, %v6578, %v6579
        %v6581 = vrot.slane %v6478, 2
        %v6582 = vsel %vm2773, %v6579, %v6581
        %v6583 = vrot.slane %v6479, 2
        %v6584 = vrot.slane %v6480, 2
        %v6585 = vsel %vm2773, %v6583, %v6584
        %v6586 = vrot.slane %v6481, 2
        %v6587 = vsel %vm2773, %v6584, %v6586
        %v6588 = vrot.slane %v6482, 2
        %v6589 = vrot.slane %v6483, 2
        %v6590 = vsel %vm2773, %v6588, %v6589
        %v6591 = vrot.slane %v6484, 2
        %v6592 = vsel %vm2773, %v6589, %v6591
        %v6593 = vrot.slane %v6485, 2
        %v6594 = vrot.slane %v6486, 2
        %v6595 = vsel %vm2773, %v6593, %v6594
        %v6596 = vrot.slane %v6487, 2
        %v6597 = vsel %vm2773, %v6594, %v6596
        %v6598 = vrot.slane %v6488, 2
        %v6599 = vrot.slane %v6489, 2
        %v6600 = vsel %vm2773, %v6598, %v6599
        %v6601 = vrot.slane %v6490, 2
        %v6602 = vsel %vm2773, %v6599, %v6601
        %v6603 = vrot.slane %v6491, 2
        %v6604 = vrot.slane %v6492, 2
        %v6605 = vsel %vm2773, %v6603, %v6604
        %v6606 = vrot.slane %v6493, 2
        %v6607 = vsel %vm2773, %v6604, %v6606
        %v6608 = vrot.slane %v6494, 2
        %v6609 = vrot.slane %v6495, 2
        %v6610 = vsel %vm2773, %v6608, %v6609
        %v6611 = vrot.slane %v6496, 2
        %v6612 = vsel %vm2773, %v6609, %v6611
        %v6613 = vrot.slane %v6497, 2
        %v6614 = vrot.slane %v6498, 2
        %v6615 = vsel %vm2773, %v6613, %v6614
        %v6616 = vrot.slane %v6499, 2
        %v6617 = vsel %vm2773, %v6614, %v6616
        %v6618 = vrot.slane %v6500, 2
        %v6619 = vrot.slane %v6501, 2
        %v6620 = vsel %vm2773, %v6618, %v6619
        %v6621 = vrot.slane %v6502, 2
        %v6622 = vsel %vm2773, %v6619, %v6621
        %v6623 = vrot.slane %v6503, 2
        %v6624 = vrot.slane %v6504, 2
        %v6625 = vsel %vm2773, %v6623, %v6624
        %v6626 = vrot.slane %v6505, 2
        %v6627 = vsel %vm2773, %v6624, %v6626
        %v6628 = vrot.slane %v6506, 2
        %v6629 = vrot.slane %v6507, 2
        %v6630 = vsel %vm2773, %v6628, %v6629
        %v6631 = vrot.slane %v6508, 2
        %v6632 = vsel %vm2773, %v6629, %v6631
        %v6633 = vrot.slane %v6509, 2
        %v6634 = vrot.slane %v6510, 2
        %v6635 = vsel %vm2773, %v6633, %v6634
        %v6636 = vrot.slane %v6511, 2
        %v6637 = vsel %vm2773, %v6634, %v6636
        %v6638 = vrot.slane %v6512, 2
        %v6639 = vrot.slane %v6513, 2
        %v6640 = vsel %vm2773, %v6638, %v6639
        %v6641 = vrot.slane %v6514, 2
        %v6642 = vsel %vm2773, %v6639, %v6641
        %v6675 = vadd.f32 %v6431, %v6565
        %v6676 = vadd.f32 %v6432, %v6567
        %v6677 = vadd.f32 %v6433, %v6570
        %v6678 = vadd.f32 %v6434, %v6572
        %v6679 = vadd.f32 %v6435, %v6575
        %v6680 = vadd.f32 %v6436, %v6577
        %v6681 = vadd.f32 %v6437, %v6580
        %v6682 = vadd.f32 %v6438, %v6582
        %v6683 = vadd.f32 %v6439, %v6585
        %v6684 = vadd.f32 %v6440, %v6587
        %v6685 = vadd.f32 %v6441, %v6590
        %v6686 = vadd.f32 %v6442, %v6592
        %v6687 = vadd.f32 %v6443, %v6595
        %v6688 = vadd.f32 %v6444, %v6597
        %v6689 = vadd.f32 %v6445, %v6600
        %v6690 = vadd.f32 %v6446, %v6602
        %v6691 = vadd.f32 %v6447, %v6605
        %v6692 = vadd.f32 %v6448, %v6607
        %v6693 = vadd.f32 %v6449, %v6610
        %v6694 = vadd.f32 %v6450, %v6612
        %v6695 = vadd.f32 %v6451, %v6615
        %v6696 = vadd.f32 %v6452, %v6617
        %v6697 = vadd.f32 %v6453, %v6620
        %v6698 = vadd.f32 %v6454, %v6622
        %v6699 = vadd.f32 %v6455, %v6625
        %v6700 = vadd.f32 %v6456, %v6627
        %v6701 = vadd.f32 %v6457, %v6630
        %v6702 = vadd.f32 %v6458, %v6632
        %v6703 = vadd.f32 %v6459, %v6635
        %v6704 = vadd.f32 %v6460, %v6637
        %v6705 = vadd.f32 %v6461, %v6640
        %v6706 = vadd.f32 %v6462, %v6642
        %v6707 = vlaneseq
        %v6708 = vshrl.u32 %v6707, 7
        %v6709 = vsub.s32 0, %v6708
        %v6710 = vrot.slane %v5594, %v6709
        %v6711 = vmul.f32 %v5561, %v6710
        %v6712 = vmul.f32 %v5469, %v6710
        %v6713 = vmul.f32 %v5562, %v6710
        %v6714 = vmul.f32 %v5472, %v6710
        %v6715 = vmul.f32 %v5563, %v6710
        %v6716 = vmul.f32 %v5475, %v6710
        %v6717 = vmul.f32 %v5564, %v6710
        %v6718 = vmul.f32 %v5478, %v6710
        %v6719 = vmul.f32 %v5565, %v6710
        %v6720 = vmul.f32 %v5481, %v6710
        %v6721 = vmul.f32 %v5566, %v6710
        %v6722 = vmul.f32 %v5484, %v6710
        %v6723 = vmul.f32 %v5567, %v6710
        %v6724 = vmul.f32 %v5487, %v6710
        %v6725 = vmul.f32 %v5568, %v6710
        %v6726 = vmul.f32 %v5490, %v6710
        %v6727 = vmul.f32 %v5569, %v6710
        %v6728 = vmul.f32 %v5493, %v6710
        %v6729 = vmul.f32 %v5570, %v6710
        %v6730 = vmul.f32 %v5496, %v6710
        %v6731 = vmul.f32 %v5571, %v6710
        %v6732 = vmul.f32 %v5499, %v6710
        %v6733 = vmul.f32 %v5572, %v6710
        %v6734 = vmul.f32 %v5502, %v6710
        %v6735 = vmul.f32 %v5573, %v6710
        %v6736 = vmul.f32 %v5505, %v6710
        %v6737 = vmul.f32 %v5574, %v6710
        %v6738 = vmul.f32 %v5508, %v6710
        %v6739 = vmul.f32 %v5575, %v6710
        %v6740 = vmul.f32 %v5511, %v6710
        %v6741 = vmul.f32 %v1923, %v6710
        %v6742 = vmul.f32 %v2672, %v6710
        %v6743 = vadd.f32 %v6675, %v6711
        %v6744 = vadd.f32 %v6676, %v6712
        %v6745 = vadd.f32 %v6677, %v6713
        %v6746 = vadd.f32 %v6678, %v6714
        %v6747 = vadd.f32 %v6679, %v6715
        %v6748 = vadd.f32 %v6680, %v6716
        %v6749 = vadd.f32 %v6681, %v6717
        %v6750 = vadd.f32 %v6682, %v6718
        %v6751 = vadd.f32 %v6683, %v6719
        %v6752 = vadd.f32 %v6684, %v6720
        %v6753 = vadd.f32 %v6685, %v6721
        %v6754 = vadd.f32 %v6686, %v6722
        %v6755 = vadd.f32 %v6687, %v6723
        %v6756 = vadd.f32 %v6688, %v6724
        %v6757 = vadd.f32 %v6689, %v6725
        %v6758 = vadd.f32 %v6690, %v6726
        %v6759 = vadd.f32 %v6691, %v6727
        %v6760 = vadd.f32 %v6692, %v6728
        %v6761 = vadd.f32 %v6693, %v6729
        %v6762 = vadd.f32 %v6694, %v6730
        %v6763 = vadd.f32 %v6695, %v6731
        %v6764 = vadd.f32 %v6696, %v6732
        %v6765 = vadd.f32 %v6697, %v6733
        %v6766 = vadd.f32 %v6698, %v6734
        %v6767 = vadd.f32 %v6699, %v6735
        %v6768 = vadd.f32 %v6700, %v6736
        %v6769 = vadd.f32 %v6701, %v6737
        %v6770 = vadd.f32 %v6702, %v6738
        %v6771 = vadd.f32 %v6703, %v6739
        %v6772 = vadd.f32 %v6704, %v6740
        %v6773 = vadd.f32 %v6705, %v6741
        %v6774 = vadd.f32 %v6706, %v6742
        %v6775 = vlaneseq
        %v6776 = vshrl.u32 %v6775, 7
        %v6777 = vsub.s32 1, %v6776
        %v6778 = vrot.slane %v5594, %v6777
        %v6779 = vmul.f32 %v5561, %v6778
        %v6780 = vmul.f32 %v5469, %v6778
        %v6781 = vmul.f32 %v5577, %v6778
        %v6782 = vmul.f32 %v5562, %v6778
        %v6783 = vmul.f32 %v5472, %v6778
        %v6784 = vmul.f32 %v5578, %v6778
        %v6785 = vmul.f32 %v5563, %v6778
        %v6786 = vmul.f32 %v5475, %v6778
        %v6787 = vmul.f32 %v5579, %v6778
        %v6788 = vmul.f32 %v5564, %v6778
        %v6789 = vmul.f32 %v5478, %v6778
        %v6790 = vmul.f32 %v5580, %v6778
        %v6791 = vmul.f32 %v5565, %v6778
        %v6792 = vmul.f32 %v5481, %v6778
        %v6793 = vmul.f32 %v5581, %v6778
        %v6794 = vmul.f32 %v5566, %v6778
        %v6795 = vmul.f32 %v5484, %v6778
        %v6796 = vmul.f32 %v5582, %v6778
        %v6797 = vmul.f32 %v5567, %v6778
        %v6798 = vmul.f32 %v5487, %v6778
        %v6799 = vmul.f32 %v5583, %v6778
        %v6800 = vmul.f32 %v5568, %v6778
        %v6801 = vmul.f32 %v5490, %v6778
        %v6802 = vmul.f32 %v5584, %v6778
        %v6803 = vmul.f32 %v5569, %v6778
        %v6804 = vmul.f32 %v5493, %v6778
        %v6805 = vmul.f32 %v5585, %v6778
        %v6806 = vmul.f32 %v5570, %v6778
        %v6807 = vmul.f32 %v5496, %v6778
        %v6808 = vmul.f32 %v5586, %v6778
        %v6809 = vmul.f32 %v5571, %v6778
        %v6810 = vmul.f32 %v5499, %v6778
        %v6811 = vmul.f32 %v5587, %v6778
        %v6812 = vmul.f32 %v5572, %v6778
        %v6813 = vmul.f32 %v5502, %v6778
        %v6814 = vmul.f32 %v5588, %v6778
        %v6815 = vmul.f32 %v5573, %v6778
        %v6816 = vmul.f32 %v5505, %v6778
        %v6817 = vmul.f32 %v5589, %v6778
        %v6818 = vmul.f32 %v5574, %v6778
        %v6819 = vmul.f32 %v5508, %v6778
        %v6820 = vmul.f32 %v5590, %v6778
        %v6821 = vmul.f32 %v5575, %v6778
        %v6822 = vmul.f32 %v5511, %v6778
        %v6823 = vmul.f32 %v5591, %v6778
        %v6824 = vmul.f32 %v1923, %v6778
        %v6825 = vmul.f32 %v2672, %v6778
        %v6826 = vmul.f32 %v2702, %v6778
        %v6875 = vrot.slane %v6779, 1
        %v6876 = vrot.slane %v6780, 1
        %v6877 = vsel %vm2717, %v6875, %v6876
        %v6878 = vrot.slane %v6781, 1
        %v6879 = vsel %vm2717, %v6876, %v6878
        %v6880 = vrot.slane %v6782, 1
        %v6881 = vrot.slane %v6783, 1
        %v6882 = vsel %vm2717, %v6880, %v6881
        %v6883 = vrot.slane %v6784, 1
        %v6884 = vsel %vm2717, %v6881, %v6883
        %v6885 = vrot.slane %v6785, 1
        %v6886 = vrot.slane %v6786, 1
        %v6887 = vsel %vm2717, %v6885, %v6886
        %v6888 = vrot.slane %v6787, 1
        %v6889 = vsel %vm2717, %v6886, %v6888
        %v6890 = vrot.slane %v6788, 1
        %v6891 = vrot.slane %v6789, 1
        %v6892 = vsel %vm2717, %v6890, %v6891
        %v6893 = vrot.slane %v6790, 1
        %v6894 = vsel %vm2717, %v6891, %v6893
        %v6895 = vrot.slane %v6791, 1
        %v6896 = vrot.slane %v6792, 1
        %v6897 = vsel %vm2717, %v6895, %v6896
        %v6898 = vrot.slane %v6793, 1
        %v6899 = vsel %vm2717, %v6896, %v6898
        %v6900 = vrot.slane %v6794, 1
        %v6901 = vrot.slane %v6795, 1
        %v6902 = vsel %vm2717, %v6900, %v6901
        %v6903 = vrot.slane %v6796, 1
        %v6904 = vsel %vm2717, %v6901, %v6903
        %v6905 = vrot.slane %v6797, 1
        %v6906 = vrot.slane %v6798, 1
        %v6907 = vsel %vm2717, %v6905, %v6906
        %v6908 = vrot.slane %v6799, 1
        %v6909 = vsel %vm2717, %v6906, %v6908
        %v6910 = vrot.slane %v6800, 1
        %v6911 = vrot.slane %v6801, 1
        %v6912 = vsel %vm2717, %v6910, %v6911
        %v6913 = vrot.slane %v6802, 1
        %v6914 = vsel %vm2717, %v6911, %v6913
        %v6915 = vrot.slane %v6803, 1
        %v6916 = vrot.slane %v6804, 1
        %v6917 = vsel %vm2717, %v6915, %v6916
        %v6918 = vrot.slane %v6805, 1
        %v6919 = vsel %vm2717, %v6916, %v6918
        %v6920 = vrot.slane %v6806, 1
        %v6921 = vrot.slane %v6807, 1
        %v6922 = vsel %vm2717, %v6920, %v6921
        %v6923 = vrot.slane %v6808, 1
        %v6924 = vsel %vm2717, %v6921, %v6923
        %v6925 = vrot.slane %v6809, 1
        %v6926 = vrot.slane %v6810, 1
        %v6927 = vsel %vm2717, %v6925, %v6926
        %v6928 = vrot.slane %v6811, 1
        %v6929 = vsel %vm2717, %v6926, %v6928
        %v6930 = vrot.slane %v6812, 1
        %v6931 = vrot.slane %v6813, 1
        %v6932 = vsel %vm2717, %v6930, %v6931
        %v6933 = vrot.slane %v6814, 1
        %v6934 = vsel %vm2717, %v6931, %v6933
        %v6935 = vrot.slane %v6815, 1
        %v6936 = vrot.slane %v6816, 1
        %v6937 = vsel %vm2717, %v6935, %v6936
        %v6938 = vrot.slane %v6817, 1
        %v6939 = vsel %vm2717, %v6936, %v6938
        %v6940 = vrot.slane %v6818, 1
        %v6941 = vrot.slane %v6819, 1
        %v6942 = vsel %vm2717, %v6940, %v6941
        %v6943 = vrot.slane %v6820, 1
        %v6944 = vsel %vm2717, %v6941, %v6943
        %v6945 = vrot.slane %v6821, 1
        %v6946 = vrot.slane %v6822, 1
        %v6947 = vsel %vm2717, %v6945, %v6946
        %v6948 = vrot.slane %v6823, 1
        %v6949 = vsel %vm2717, %v6946, %v6948
        %v6950 = vrot.slane %v6824, 1
        %v6951 = vrot.slane %v6825, 1
        %v6952 = vsel %vm2717, %v6950, %v6951
        %v6953 = vrot.slane %v6826, 1
        %v6954 = vsel %vm2717, %v6951, %v6953
        %v6987 = vadd.f32 %v6743, %v6877
        %v6988 = vadd.f32 %v6744, %v6879
        %v6989 = vadd.f32 %v6745, %v6882
        %v6990 = vadd.f32 %v6746, %v6884
        %v6991 = vadd.f32 %v6747, %v6887
        %v6992 = vadd.f32 %v6748, %v6889
        %v6993 = vadd.f32 %v6749, %v6892
        %v6994 = vadd.f32 %v6750, %v6894
        %v6995 = vadd.f32 %v6751, %v6897
        %v6996 = vadd.f32 %v6752, %v6899
        %v6997 = vadd.f32 %v6753, %v6902
        %v6998 = vadd.f32 %v6754, %v6904
        %v6999 = vadd.f32 %v6755, %v6907
        %v7000 = vadd.f32 %v6756, %v6909
        %v7001 = vadd.f32 %v6757, %v6912
        %v7002 = vadd.f32 %v6758, %v6914
        %v7003 = vadd.f32 %v6759, %v6917
        %v7004 = vadd.f32 %v6760, %v6919
        %v7005 = vadd.f32 %v6761, %v6922
        %v7006 = vadd.f32 %v6762, %v6924
        %v7007 = vadd.f32 %v6763, %v6927
        %v7008 = vadd.f32 %v6764, %v6929
        %v7009 = vadd.f32 %v6765, %v6932
        %v7010 = vadd.f32 %v6766, %v6934
        %v7011 = vadd.f32 %v6767, %v6937
        %v7012 = vadd.f32 %v6768, %v6939
        %v7013 = vadd.f32 %v6769, %v6942
        %v7014 = vadd.f32 %v6770, %v6944
        %v7015 = vadd.f32 %v6771, %v6947
        %v7016 = vadd.f32 %v6772, %v6949
        %v7017 = vadd.f32 %v6773, %v6952
        %v7018 = vadd.f32 %v6774, %v6954
        %v7019 = vlaneseq
        %v7020 = vshrl.u32 %v7019, 7
        %v7021 = vsub.s32 2, %v7020
        %v7022 = vrot.slane %v5594, %v7021
        %v7023 = vmul.f32 %v5561, %v7022
        %v7024 = vmul.f32 %v5469, %v7022
        %v7025 = vmul.f32 %v5577, %v7022
        %v7026 = vmul.f32 %v5562, %v7022
        %v7027 = vmul.f32 %v5472, %v7022
        %v7028 = vmul.f32 %v5578, %v7022
        %v7029 = vmul.f32 %v5563, %v7022
        %v7030 = vmul.f32 %v5475, %v7022
        %v7031 = vmul.f32 %v5579, %v7022
        %v7032 = vmul.f32 %v5564, %v7022
        %v7033 = vmul.f32 %v5478, %v7022
        %v7034 = vmul.f32 %v5580, %v7022
        %v7035 = vmul.f32 %v5565, %v7022
        %v7036 = vmul.f32 %v5481, %v7022
        %v7037 = vmul.f32 %v5581, %v7022
        %v7038 = vmul.f32 %v5566, %v7022
        %v7039 = vmul.f32 %v5484, %v7022
        %v7040 = vmul.f32 %v5582, %v7022
        %v7041 = vmul.f32 %v5567, %v7022
        %v7042 = vmul.f32 %v5487, %v7022
        %v7043 = vmul.f32 %v5583, %v7022
        %v7044 = vmul.f32 %v5568, %v7022
        %v7045 = vmul.f32 %v5490, %v7022
        %v7046 = vmul.f32 %v5584, %v7022
        %v7047 = vmul.f32 %v5569, %v7022
        %v7048 = vmul.f32 %v5493, %v7022
        %v7049 = vmul.f32 %v5585, %v7022
        %v7050 = vmul.f32 %v5570, %v7022
        %v7051 = vmul.f32 %v5496, %v7022
        %v7052 = vmul.f32 %v5586, %v7022
        %v7053 = vmul.f32 %v5571, %v7022
        %v7054 = vmul.f32 %v5499, %v7022
        %v7055 = vmul.f32 %v5587, %v7022
        %v7056 = vmul.f32 %v5572, %v7022
        %v7057 = vmul.f32 %v5502, %v7022
        %v7058 = vmul.f32 %v5588, %v7022
        %v7059 = vmul.f32 %v5573, %v7022
        %v7060 = vmul.f32 %v5505, %v7022
        %v7061 = vmul.f32 %v5589, %v7022
        %v7062 = vmul.f32 %v5574, %v7022
        %v7063 = vmul.f32 %v5508, %v7022
        %v7064 = vmul.f32 %v5590, %v7022
        %v7065 = vmul.f32 %v5575, %v7022
        %v7066 = vmul.f32 %v5511, %v7022
        %v7067 = vmul.f32 %v5591, %v7022
        %v7068 = vmul.f32 %v1923, %v7022
        %v7069 = vmul.f32 %v2672, %v7022
        %v7070 = vmul.f32 %v2702, %v7022
        %v7119 = vrot.slane %v7023, 2
        %v7120 = vrot.slane %v7024, 2
        %v7121 = vsel %vm2773, %v7119, %v7120
        %v7122 = vrot.slane %v7025, 2
        %v7123 = vsel %vm2773, %v7120, %v7122
        %v7124 = vrot.slane %v7026, 2
        %v7125 = vrot.slane %v7027, 2
        %v7126 = vsel %vm2773, %v7124, %v7125
        %v7127 = vrot.slane %v7028, 2
        %v7128 = vsel %vm2773, %v7125, %v7127
        %v7129 = vrot.slane %v7029, 2
        %v7130 = vrot.slane %v7030, 2
        %v7131 = vsel %vm2773, %v7129, %v7130
        %v7132 = vrot.slane %v7031, 2
        %v7133 = vsel %vm2773, %v7130, %v7132
        %v7134 = vrot.slane %v7032, 2
        %v7135 = vrot.slane %v7033, 2
        %v7136 = vsel %vm2773, %v7134, %v7135
        %v7137 = vrot.slane %v7034, 2
        %v7138 = vsel %vm2773, %v7135, %v7137
        %v7139 = vrot.slane %v7035, 2
        %v7140 = vrot.slane %v7036, 2
        %v7141 = vsel %vm2773, %v7139, %v7140
        %v7142 = vrot.slane %v7037, 2
        %v7143 = vsel %vm2773, %v7140, %v7142
        %v7144 = vrot.slane %v7038, 2
        %v7145 = vrot.slane %v7039, 2
        %v7146 = vsel %vm2773, %v7144, %v7145
        %v7147 = vrot.slane %v7040, 2
        %v7148 = vsel %vm2773, %v7145, %v7147
        %v7149 = vrot.slane %v7041, 2
        %v7150 = vrot.slane %v7042, 2
        %v7151 = vsel %vm2773, %v7149, %v7150
        %v7152 = vrot.slane %v7043, 2
        %v7153 = vsel %vm2773, %v7150, %v7152
        %v7154 = vrot.slane %v7044, 2
        %v7155 = vrot.slane %v7045, 2
        %v7156 = vsel %vm2773, %v7154, %v7155
        %v7157 = vrot.slane %v7046, 2
        %v7158 = vsel %vm2773, %v7155, %v7157
        %v7159 = vrot.slane %v7047, 2
        %v7160 = vrot.slane %v7048, 2
        %v7161 = vsel %vm2773, %v7159, %v7160
        %v7162 = vrot.slane %v7049, 2
        %v7163 = vsel %vm2773, %v7160, %v7162
        %v7164 = vrot.slane %v7050, 2
        %v7165 = vrot.slane %v7051, 2
        %v7166 = vsel %vm2773, %v7164, %v7165
        %v7167 = vrot.slane %v7052, 2
        %v7168 = vsel %vm2773, %v7165, %v7167
        %v7169 = vrot.slane %v7053, 2
        %v7170 = vrot.slane %v7054, 2
        %v7171 = vsel %vm2773, %v7169, %v7170
        %v7172 = vrot.slane %v7055, 2
        %v7173 = vsel %vm2773, %v7170, %v7172
        %v7174 = vrot.slane %v7056, 2
        %v7175 = vrot.slane %v7057, 2
        %v7176 = vsel %vm2773, %v7174, %v7175
        %v7177 = vrot.slane %v7058, 2
        %v7178 = vsel %vm2773, %v7175, %v7177
        %v7179 = vrot.slane %v7059, 2
        %v7180 = vrot.slane %v7060, 2
        %v7181 = vsel %vm2773, %v7179, %v7180
        %v7182 = vrot.slane %v7061, 2
        %v7183 = vsel %vm2773, %v7180, %v7182
        %v7184 = vrot.slane %v7062, 2
        %v7185 = vrot.slane %v7063, 2
        %v7186 = vsel %vm2773, %v7184, %v7185
        %v7187 = vrot.slane %v7064, 2
        %v7188 = vsel %vm2773, %v7185, %v7187
        %v7189 = vrot.slane %v7065, 2
        %v7190 = vrot.slane %v7066, 2
        %v7191 = vsel %vm2773, %v7189, %v7190
        %v7192 = vrot.slane %v7067, 2
        %v7193 = vsel %vm2773, %v7190, %v7192
        %v7194 = vrot.slane %v7068, 2
        %v7195 = vrot.slane %v7069, 2
        %v7196 = vsel %vm2773, %v7194, %v7195
        %v7197 = vrot.slane %v7070, 2
        %v7198 = vsel %vm2773, %v7195, %v7197
        %v7231 = vadd.f32 %v6987, %v7121
        %v7232 = vadd.f32 %v6988, %v7123
        %v7233 = vadd.f32 %v6989, %v7126
        %v7234 = vadd.f32 %v6990, %v7128
        %v7235 = vadd.f32 %v6991, %v7131
        %v7236 = vadd.f32 %v6992, %v7133
        %v7237 = vadd.f32 %v6993, %v7136
        %v7238 = vadd.f32 %v6994, %v7138
        %v7239 = vadd.f32 %v6995, %v7141
        %v7240 = vadd.f32 %v6996, %v7143
        %v7241 = vadd.f32 %v6997, %v7146
        %v7242 = vadd.f32 %v6998, %v7148
        %v7243 = vadd.f32 %v6999, %v7151
        %v7244 = vadd.f32 %v7000, %v7153
        %v7245 = vadd.f32 %v7001, %v7156
        %v7246 = vadd.f32 %v7002, %v7158
        %v7247 = vadd.f32 %v7003, %v7161
        %v7248 = vadd.f32 %v7004, %v7163
        %v7249 = vadd.f32 %v7005, %v7166
        %v7250 = vadd.f32 %v7006, %v7168
        %v7251 = vadd.f32 %v7007, %v7171
        %v7252 = vadd.f32 %v7008, %v7173
        %v7253 = vadd.f32 %v7009, %v7176
        %v7254 = vadd.f32 %v7010, %v7178
        %v7255 = vadd.f32 %v7011, %v7181
        %v7256 = vadd.f32 %v7012, %v7183
        %v7257 = vadd.f32 %v7013, %v7186
        %v7258 = vadd.f32 %v7014, %v7188
        %v7259 = vadd.f32 %v7015, %v7191
        %v7260 = vadd.f32 %v7016, %v7193
        %v7261 = vadd.f32 %v7017, %v7196
        %v7262 = vadd.f32 %v7018, %v7198
        %7263 = vadd.xlane.f32.xlu0 %v7231
        %v7264 = vpop.xlane.xlu0 %7263
        %7265 = vadd.xlane.f32.xlu0 %v7232
        %v7266 = vpop.xlane.xlu0 %7265
        %7267 = vadd.xlane.f32.xlu0 %v7233
        %v7268 = vpop.xlane.xlu0 %7267
        %7269 = vadd.xlane.f32.xlu0 %v7234
        %v7270 = vpop.xlane.xlu0 %7269
        %7271 = vadd.xlane.f32.xlu0 %v7235
        %v7272 = vpop.xlane.xlu0 %7271
        %7273 = vadd.xlane.f32.xlu0 %v7236
        %v7274 = vpop.xlane.xlu0 %7273
        %7275 = vadd.xlane.f32.xlu0 %v7237
        %v7276 = vpop.xlane.xlu0 %7275
        %7277 = vadd.xlane.f32.xlu0 %v7238
        %v7278 = vpop.xlane.xlu0 %7277
        %7279 = vadd.xlane.f32.xlu0 %v7239
        %v7280 = vpop.xlane.xlu0 %7279
        %7281 = vadd.xlane.f32.xlu0 %v7240
        %v7282 = vpop.xlane.xlu0 %7281
        %7283 = vadd.xlane.f32.xlu0 %v7241
        %v7284 = vpop.xlane.xlu0 %7283
        %7285 = vadd.xlane.f32.xlu0 %v7242
        %v7286 = vpop.xlane.xlu0 %7285
        %7287 = vadd.xlane.f32.xlu0 %v7243
        %v7288 = vpop.xlane.xlu0 %7287
        %7289 = vadd.xlane.f32.xlu0 %v7244
        %v7290 = vpop.xlane.xlu0 %7289
        %7291 = vadd.xlane.f32.xlu0 %v7245
        %v7292 = vpop.xlane.xlu0 %7291
        %7293 = vadd.xlane.f32.xlu0 %v7246
        %v7294 = vpop.xlane.xlu0 %7293
        %7295 = vadd.xlane.f32.xlu0 %v7247
        %v7296 = vpop.xlane.xlu0 %7295
        %7297 = vadd.xlane.f32.xlu0 %v7248
        %v7298 = vpop.xlane.xlu0 %7297
        %7299 = vadd.xlane.f32.xlu0 %v7249
        %v7300 = vpop.xlane.xlu0 %7299
        %7301 = vadd.xlane.f32.xlu0 %v7250
        %v7302 = vpop.xlane.xlu0 %7301
        %7303 = vadd.xlane.f32.xlu0 %v7251
        %v7304 = vpop.xlane.xlu0 %7303
        %7305 = vadd.xlane.f32.xlu0 %v7252
        %v7306 = vpop.xlane.xlu0 %7305
        %7307 = vadd.xlane.f32.xlu0 %v7253
        %v7308 = vpop.xlane.xlu0 %7307
        %7309 = vadd.xlane.f32.xlu0 %v7254
        %v7310 = vpop.xlane.xlu0 %7309
        %7311 = vadd.xlane.f32.xlu0 %v7255
        %v7312 = vpop.xlane.xlu0 %7311
        %7313 = vadd.xlane.f32.xlu0 %v7256
        %v7314 = vpop.xlane.xlu0 %7313
        %7315 = vadd.xlane.f32.xlu0 %v7257
        %v7316 = vpop.xlane.xlu0 %7315
        %7317 = vadd.xlane.f32.xlu0 %v7258
        %v7318 = vpop.xlane.xlu0 %7317
        %7319 = vadd.xlane.f32.xlu0 %v7259
        %v7320 = vpop.xlane.xlu0 %7319
        %7321 = vadd.xlane.f32.xlu0 %v7260
        %v7322 = vpop.xlane.xlu0 %7321
        %7323 = vadd.xlane.f32.xlu0 %v7261
        %v7324 = vpop.xlane.xlu0 %7323
        %7325 = vadd.xlane.f32.xlu0 %v7262
        %v7326 = vpop.xlane.xlu0 %7325
        %s7327 = sld [smem:[#allocation3]]
        %v7328 = vstv %s7327
        %v7329 = vadd.f32 %v7264, %v7328
        %v7330 = vadd.f32 %v7266, %v7328
        %v7331 = vadd.f32 %v7268, %v7328
        %v7332 = vadd.f32 %v7270, %v7328
        %v7333 = vadd.f32 %v7272, %v7328
        %v7334 = vadd.f32 %v7274, %v7328
        %v7335 = vadd.f32 %v7276, %v7328
        %v7336 = vadd.f32 %v7278, %v7328
        %v7337 = vadd.f32 %v7280, %v7328
        %v7338 = vadd.f32 %v7282, %v7328
        %v7339 = vadd.f32 %v7284, %v7328
        %v7340 = vadd.f32 %v7286, %v7328
        %v7341 = vadd.f32 %v7288, %v7328
        %v7342 = vadd.f32 %v7290, %v7328
        %v7343 = vadd.f32 %v7292, %v7328
        %v7344 = vadd.f32 %v7294, %v7328
        %v7345 = vadd.f32 %v7296, %v7328
        %v7346 = vadd.f32 %v7298, %v7328
        %v7347 = vadd.f32 %v7300, %v7328
        %v7348 = vadd.f32 %v7302, %v7328
        %v7349 = vadd.f32 %v7304, %v7328
        %v7350 = vadd.f32 %v7306, %v7328
        %v7351 = vadd.f32 %v7308, %v7328
        %v7352 = vadd.f32 %v7310, %v7328
        %v7353 = vadd.f32 %v7312, %v7328
        %v7354 = vadd.f32 %v7314, %v7328
        %v7355 = vadd.f32 %v7316, %v7328
        %v7356 = vadd.f32 %v7318, %v7328
        %v7357 = vadd.f32 %v7320, %v7328
        %v7358 = vadd.f32 %v7322, %v7328
        %v7359 = vadd.f32 %v7324, %v7328
        %v7360 = vadd.f32 %v7326, %v7328
        %v7393 = vlaneseq
        %v7394 = vand.u32 %v7393, 127
        %v7395 = vlaneseq
        %v7396 = vshrl.u32 %v7395, 7
        %v7397 = vsub.s32 %v7394, %v7396
        %v7398 = vrot.slane %v7329, %v7397
        %v7399 = vadd.s32 %v7394, 4294967288
        %v7400 = vlaneseq
        %v7401 = vshrl.u32 %v7400, 7
        %v7402 = vsub.s32 %v7399, %v7401
        %v7403 = vrot.slane %v7330, %v7402
        %vm7404 = vcmask 130112
        %v7405 = vsel %vm7404, %v7403, %v7398
        %v7406 = vlaneseq
        %v7407 = vshrl.u32 %v7406, 7
        %v7408 = vsub.s32 %v7394, %v7407
        %v7409 = vrot.slane %v7331, %v7408
        %v7410 = vlaneseq
        %v7411 = vshrl.u32 %v7410, 7
        %v7412 = vsub.s32 %v7399, %v7411
        %v7413 = vrot.slane %v7332, %v7412
        %v7414 = vsel %vm7404, %v7413, %v7409
        %v7415 = vlaneseq
        %v7416 = vshrl.u32 %v7415, 7
        %v7417 = vsub.s32 %v7394, %v7416
        %v7418 = vrot.slane %v7333, %v7417
        %v7419 = vlaneseq
        %v7420 = vshrl.u32 %v7419, 7
        %v7421 = vsub.s32 %v7399, %v7420
        %v7422 = vrot.slane %v7334, %v7421
        %v7423 = vsel %vm7404, %v7422, %v7418
        %v7424 = vlaneseq
        %v7425 = vshrl.u32 %v7424, 7
        %v7426 = vsub.s32 %v7394, %v7425
        %v7427 = vrot.slane %v7335, %v7426
        %v7428 = vlaneseq
        %v7429 = vshrl.u32 %v7428, 7
        %v7430 = vsub.s32 %v7399, %v7429
        %v7431 = vrot.slane %v7336, %v7430
        %v7432 = vsel %vm7404, %v7431, %v7427
        %v7433 = vlaneseq
        %v7434 = vshrl.u32 %v7433, 7
        %v7435 = vsub.s32 %v7394, %v7434
        %v7436 = vrot.slane %v7337, %v7435
        %v7437 = vlaneseq
        %v7438 = vshrl.u32 %v7437, 7
        %v7439 = vsub.s32 %v7399, %v7438
        %v7440 = vrot.slane %v7338, %v7439
        %v7441 = vsel %vm7404, %v7440, %v7436
        %v7442 = vlaneseq
        %v7443 = vshrl.u32 %v7442, 7
        %v7444 = vsub.s32 %v7394, %v7443
        %v7445 = vrot.slane %v7339, %v7444
        %v7446 = vlaneseq
        %v7447 = vshrl.u32 %v7446, 7
        %v7448 = vsub.s32 %v7399, %v7447
        %v7449 = vrot.slane %v7340, %v7448
        %v7450 = vsel %vm7404, %v7449, %v7445
        %v7451 = vlaneseq
        %v7452 = vshrl.u32 %v7451, 7
        %v7453 = vsub.s32 %v7394, %v7452
        %v7454 = vrot.slane %v7341, %v7453
        %v7455 = vlaneseq
        %v7456 = vshrl.u32 %v7455, 7
        %v7457 = vsub.s32 %v7399, %v7456
        %v7458 = vrot.slane %v7342, %v7457
        %v7459 = vsel %vm7404, %v7458, %v7454
        %v7460 = vlaneseq
        %v7461 = vshrl.u32 %v7460, 7
        %v7462 = vsub.s32 %v7394, %v7461
        %v7463 = vrot.slane %v7343, %v7462
        %v7464 = vlaneseq
        %v7465 = vshrl.u32 %v7464, 7
        %v7466 = vsub.s32 %v7399, %v7465
        %v7467 = vrot.slane %v7344, %v7466
        %v7468 = vsel %vm7404, %v7467, %v7463
        %v7469 = vlaneseq
        %v7470 = vshrl.u32 %v7469, 7
        %v7471 = vsub.s32 %v7394, %v7470
        %v7472 = vrot.slane %v7345, %v7471
        %v7473 = vlaneseq
        %v7474 = vshrl.u32 %v7473, 7
        %v7475 = vsub.s32 %v7399, %v7474
        %v7476 = vrot.slane %v7346, %v7475
        %v7477 = vsel %vm7404, %v7476, %v7472
        %v7478 = vlaneseq
        %v7479 = vshrl.u32 %v7478, 7
        %v7480 = vsub.s32 %v7394, %v7479
        %v7481 = vrot.slane %v7347, %v7480
        %v7482 = vlaneseq
        %v7483 = vshrl.u32 %v7482, 7
        %v7484 = vsub.s32 %v7399, %v7483
        %v7485 = vrot.slane %v7348, %v7484
        %v7486 = vsel %vm7404, %v7485, %v7481
        %v7487 = vlaneseq
        %v7488 = vshrl.u32 %v7487, 7
        %v7489 = vsub.s32 %v7394, %v7488
        %v7490 = vrot.slane %v7349, %v7489
        %v7491 = vlaneseq
        %v7492 = vshrl.u32 %v7491, 7
        %v7493 = vsub.s32 %v7399, %v7492
        %v7494 = vrot.slane %v7350, %v7493
        %v7495 = vsel %vm7404, %v7494, %v7490
        %v7496 = vlaneseq
        %v7497 = vshrl.u32 %v7496, 7
        %v7498 = vsub.s32 %v7394, %v7497
        %v7499 = vrot.slane %v7351, %v7498
        %v7500 = vlaneseq
        %v7501 = vshrl.u32 %v7500, 7
        %v7502 = vsub.s32 %v7399, %v7501
        %v7503 = vrot.slane %v7352, %v7502
        %v7504 = vsel %vm7404, %v7503, %v7499
        %v7505 = vlaneseq
        %v7506 = vshrl.u32 %v7505, 7
        %v7507 = vsub.s32 %v7394, %v7506
        %v7508 = vrot.slane %v7353, %v7507
        %v7509 = vlaneseq
        %v7510 = vshrl.u32 %v7509, 7
        %v7511 = vsub.s32 %v7399, %v7510
        %v7512 = vrot.slane %v7354, %v7511
        %v7513 = vsel %vm7404, %v7512, %v7508
        %v7514 = vlaneseq
        %v7515 = vshrl.u32 %v7514, 7
        %v7516 = vsub.s32 %v7394, %v7515
        %v7517 = vrot.slane %v7355, %v7516
        %v7518 = vlaneseq
        %v7519 = vshrl.u32 %v7518, 7
        %v7520 = vsub.s32 %v7399, %v7519
        %v7521 = vrot.slane %v7356, %v7520
        %v7522 = vsel %vm7404, %v7521, %v7517
        %v7523 = vlaneseq
        %v7524 = vshrl.u32 %v7523, 7
        %v7525 = vsub.s32 %v7394, %v7524
        %v7526 = vrot.slane %v7357, %v7525
        %v7527 = vlaneseq
        %v7528 = vshrl.u32 %v7527, 7
        %v7529 = vsub.s32 %v7399, %v7528
        %v7530 = vrot.slane %v7358, %v7529
        %v7531 = vsel %vm7404, %v7530, %v7526
        %v7532 = vlaneseq
        %v7533 = vshrl.u32 %v7532, 7
        %v7534 = vsub.s32 %v7394, %v7533
        %v7535 = vrot.slane %v7359, %v7534
        %v7536 = vlaneseq
        %v7537 = vshrl.u32 %v7536, 7
        %v7538 = vsub.s32 %v7399, %v7537
        %v7539 = vrot.slane %v7360, %v7538
        %v7540 = vsel %vm7404, %v7539, %v7535
        %vm7541 = vcmask 1041409
        %v7542 = vsel %vm7541, %v7414, %v7405
        %vm7543 = vcmask 1042434
        %v7544 = vsel %vm7543, %v7423, %v7542
        %vm7545 = vcmask 1043459
        %v7546 = vsel %vm7545, %v7432, %v7544
        %vm7547 = vcmask 1044484
        %v7548 = vsel %vm7547, %v7441, %v7546
        %vm7549 = vcmask 1045509
        %v7550 = vsel %vm7549, %v7450, %v7548
        %vm7551 = vcmask 1046534
        %v7552 = vsel %vm7551, %v7459, %v7550
        %vm7553 = vcmask 1047559
        %v7554 = vsel %vm7553, %v7468, %v7552
        %v7555 = vsel %vm7541, %v7486, %v7477
        %v7556 = vsel %vm7543, %v7495, %v7555
        %v7557 = vsel %vm7545, %v7504, %v7556
        %v7558 = vsel %vm7547, %v7513, %v7557
        %v7559 = vsel %vm7549, %v7522, %v7558
        %v7560 = vsel %vm7551, %v7531, %v7559
        %v7561 = vsel %vm7553, %v7540, %v7560
        %vm7564 = vcmask 130048
        %7565 = vst.msk [vmem:[%s505] sm:$0xff] %vm7564, %v7554
        %7566 = vst.msk [vmem:[%s505 + $0x8] sm:$0xff] %vm7564, %v7561
        %s7567 = sand.u32 %s344, 1
        %s7568 = scalar_lea.sflag [#allocation6], %s7567
        %s7569 = sand.u32 %s344, 1
        %s7570 = smul.addr %s7569, 16
        %s7571 = scalar_lea.vmem [#allocation9], %s7570
        // Predicated region
        $region85: #{_lambda_.1} parent=75 // pred_check
          %p7572 = pneg %p354
        $region86: #{_lambda_.1} parent=75 // pred_check_branch
          %7574 = sbr.rel (%p7572) target = $region88
        $region87: #{_lambda_.1} parent=75 // pred_region
          %s7576 = ssub.s32 256, 256
          %7577 = vsyncadd %s7568, %s7576
          %s7578 = smul.addr %s32, 2
          %s7579 = smul.addr %s7578, 128
          %s7580 = scalar_lea.hbm %s14, %s7579
          %s7581 = sshll.u32 %s7571, 4
          %s7582 = int_to_ptr.vmem [resolvable:$true] %s7581
          %7587 = dma.vmem_to_hbm [thread:$0]  %s7582, 256, %s7580, %s7568, 128, 128, 8
        $region88: #{_lambda_.1} parent=75 // pred_fallthru
          _
      $region76: #{_lambda_.1} parent=5 // pred_fallthru
        _
      %p7588 = scmp.le.s32.totalorder 2, %s27
      // Predicated region
      $region89: #{_lambda_.1} parent=5 // pred_check
        %p7589 = pneg %p7588
      $region90: #{_lambda_.1} parent=5 // pred_check_branch
        %7591 = sbr.rel (%p7589) target = $region92
      $region91: #{_lambda_.1} parent=5 // pred_region
        %s7592 = ssub.s32 %s27, 2
        // Predicated region
        $region93: #{_lambda_.1} parent=91 // pred_check
          %p7593 = pneg %p360
        $region94: #{_lambda_.1} parent=91 // pred_check_branch
          %7595 = sbr.rel (%p7593) target = $region96
        $region95: #{_lambda_.1} parent=91 // pred_region
          %s7596 = sand.u32 %s345, 1
          %s7597 = scalar_lea.sflag [#allocation6], %s7596
          %s7598 = sand.u32 %s345, 1
          %s7599 = smul.addr %s7598, 16
          %s7600 = scalar_lea.vmem [#allocation9], %s7599
          %7601 = dma.done %s7597, 256
        $region96: #{_lambda_.1} parent=91 // pred_fallthru
          _
      $region92: #{_lambda_.1} parent=5 // pred_fallthru
        _
    $region6: #{_lambda_.1} parent=1 // loop_footer
      %s31 = sadd.s32 1, %s27
    $region7: #{_lambda_.1} parent=1 // loop_footer_branch
      %26 = sbr.rel target = $region3
    $region8: #{_lambda_.1} parent=1 // loop_exit
      _
    %7602 = vsyncpa [#allocation5], 1
    %s7603 = scalar_lea.sflag [#allocation5], 1
    %7604 = vsyncpa %s7603, 1
    %7605 = vsyncpa [#allocation8], 1
    %7606 = vsyncpa [#allocation6], 1
    %s7607 = scalar_lea.sflag [#allocation6], 1
    %7608 = vsyncpa %s7607, 1

</llo_original>
